<compile_context>
chip_gen: v7x
topology: tpu7x:2x2x1
jax: 0.10.0
libtpu: 0.0.40
codegen_flags: <defaults>
</compile_context>

<pallas_src>
import jax
import jax.numpy as jnp
from jax.experimental import pallas as pl
from jax.experimental.pallas import tpu as pltpu

IN_FEATURES = 12288     # 3 * 64 * 64, fixed by the module
HIDDEN = 256
OUT_FEATURES = 96
NEG_SLOPE = 0.01        # F.leaky_relu default


def nn4_kernel(x_ref, w1_ref, b1_ref, w2_ref, b2_ref, out_ref):
    """Fused MLP kernel: all operands resident in VMEM, single invocation.

    x arrives in f32 and is cast to bf16 in-kernel (VPU is idle — the kernel
    is W1-DMA bound), so the first matmul runs bf16 x bf16 on the MXU with a
    f32 accumulator. Bias, leaky_relu and the small second matmul stay f32.
    """
    x_bf16 = x_ref[...].astype(jnp.bfloat16)

    # Layer 1: [B, 12288](bf16) x [12288, 256](bf16) -> f32
    h = jnp.dot(x_bf16, w1_ref[...], preferred_element_type=jnp.float32)
    h = h + b1_ref[...]                         # bias broadcast [1, HIDDEN]
    h = jnp.where(h > 0, h, NEG_SLOPE * h)      # leaky_relu

    # Layer 2: [B, 256](f32) x [256, 96](f32) -> f32
    y = jnp.dot(h, w2_ref[...], preferred_element_type=jnp.float32) + b2_ref[...]
    out_ref[...] = y.astype(out_ref.dtype)


def nn4_forward(x_nchw, w1_bf16, b1, w2, b2):
    """x_nchw: [B, 3, 64, 64] float32. Returns [B, 96] float32."""
    B = x_nchw.shape[0]
    # C-order flatten == nn.Flatten on NCHW. Reshape is free (no HBM copy);
    # the bf16 cast happens inside the kernel.
    x_flat = x_nchw.reshape(B, -1)
    assert x_flat.shape[1] == IN_FEATURES

    vmem = pl.BlockSpec(memory_space=pltpu.MemorySpace.VMEM)

    out = pl.pallas_call(
        nn4_kernel,
        out_shape=jax.ShapeDtypeStruct((B, OUT_FEATURES), jnp.float32),
        # grid=() — single kernel invocation, every operand DMA'd whole into
        # VMEM once, single-buffered (no pipeline, no double-buffering).
        in_specs=[vmem, vmem, vmem, vmem, vmem],
        out_specs=vmem,
        compiler_params=pltpu.CompilerParams(
            vmem_limit_bytes=32 * 1024 * 1024,
        ),
    )(x_flat, w1_bf16, b1, w2, b2)

    return out


def init_params(key):
    """Deterministic parameter init matching nn.Linear shapes.

    PyTorch stores weight as [out, in]; we keep [in, out] (x @ W form), which
    is mathematically identical. W1 is stored in bf16 (streaming dtype — it is
    ~97% of all bytes moved); second-layer params stay f32 (negligible traffic).
    """
    k1, k2, k3, k4 = jax.random.split(key, 4)
    bound1 = 1.0 / jnp.sqrt(IN_FEATURES)
    bound2 = 1.0 / jnp.sqrt(HIDDEN)
    w1 = jax.random.uniform(k1, (IN_FEATURES, HIDDEN), jnp.float32, -bound1, bound1)
    b1 = jax.random.uniform(k2, (1, HIDDEN), jnp.float32, -bound1, bound1)
    w2 = jax.random.uniform(k3, (HIDDEN, OUT_FEATURES), jnp.float32, -bound2, bound2)
    b2 = jax.random.uniform(k4, (1, OUT_FEATURES), jnp.float32, -bound2, bound2)
    return w1.astype(jnp.bfloat16), b1, w2, b2


if __name__ == "__main__":
    key = jax.random.PRNGKey(0)
    kx, kp = jax.random.split(key)

    # 12288 = 3 * 64 * 64 -> NCHW input [2, 3, 64, 64] (fixed by the module).
    x = jax.random.normal(kx, (2, 3, 64, 64), jnp.float32)
    w1_bf16, b1, w2, b2 = init_params(kp)

    out = nn4_forward(x, w1_bf16, b1, w2, b2)
    out = jax.block_until_ready(out)

    # Pure-JAX reference with the same bf16 rounding of x / W1 promoted to f32,
    # so the only difference vs. the kernel is accumulation order / MXU rounding.
    x_flat = x.reshape(x.shape[0], -1).astype(jnp.bfloat16).astype(jnp.float32)
    w1_f32 = w1_bf16.astype(jnp.float32)
    h_ref = x_flat @ w1_f32 + b1
    h_ref = jnp.where(h_ref > 0, h_ref, NEG_SLOPE * h_ref)
    ref = h_ref @ w2 + b2

    assert out.shape == (2, OUT_FEATURES)
    assert jnp.allclose(out, ref, atol=2e-3, rtol=2e-3)

    print("KERNEL_OK")
</pallas_src>

<mosaic_0001>
module attributes {stable_mosaic.version = 11 : i64} {
  func.func @nn4_kernel(%arg0: memref<2x12288xf32, #tpu.memory_space<vmem>>, %arg1: memref<12288x256xbf16, #tpu.memory_space<vmem>>, %arg2: memref<1x256xf32, #tpu.memory_space<vmem>>, %arg3: memref<256x96xf32, #tpu.memory_space<vmem>>, %arg4: memref<1x96xf32, #tpu.memory_space<vmem>>, %arg5: memref<2x96xf32, #tpu.memory_space<vmem>>) attributes {dimension_semantics = [], scalar_prefetch = 0 : i64, scratch_operands = 0 : i64, tpu.core_type = #tpu.core_type<tc>} {
    %c0 = arith.constant 0 : index
    %c0_0 = arith.constant 0 : index
    %0 = vector.load %arg0[%c0, %c0_0] : memref<2x12288xf32, #tpu.memory_space<vmem>>, vector<2x12288xf32>
    %1 = arith.truncf %0 : vector<2x12288xf32> to vector<2x12288xbf16>
    %c0_1 = arith.constant 0 : index
    %c0_2 = arith.constant 0 : index
    %2 = vector.load %arg1[%c0_1, %c0_2] : memref<12288x256xbf16, #tpu.memory_space<vmem>>, vector<12288x256xbf16>
    %cst = arith.constant dense<0.000000e+00> : vector<2x256xf32>
    %3 = tpu.matmul %1, %2, %cst {dimension_numbers = #tpu.dot_dimension_numbers<[1], [0], [0], [1], [0, 0, 1, 1], [], []>} : vector<2x12288xbf16>, vector<12288x256xbf16>, vector<2x256xf32> -> vector<2x256xf32>
    %c0_3 = arith.constant 0 : index
    %c0_4 = arith.constant 0 : index
    %4 = vector.load %arg2[%c0_3, %c0_4] : memref<1x256xf32, #tpu.memory_space<vmem>>, vector<1x256xf32>
    %5 = vector.broadcast %4 : vector<1x256xf32> to vector<2x256xf32>
    %6 = arith.addf %3, %5 : vector<2x256xf32>
    %cst_5 = arith.constant 0.000000e+00 : f32
    %7 = vector.broadcast %cst_5 : f32 to vector<2x256xf32>
    %8 = arith.cmpf ogt, %6, %7 : vector<2x256xf32>
    %cst_6 = arith.constant 0.00999999977 : f32
    %9 = vector.broadcast %cst_6 : f32 to vector<2x256xf32>
    %10 = arith.mulf %9, %6 : vector<2x256xf32>
    %11 = arith.select %8, %6, %10 : vector<2x256xi1>, vector<2x256xf32>
    %c0_7 = arith.constant 0 : index
    %c0_8 = arith.constant 0 : index
    %12 = vector.load %arg3[%c0_7, %c0_8] : memref<256x96xf32, #tpu.memory_space<vmem>>, vector<256x96xf32>
    %cst_9 = arith.constant dense<0.000000e+00> : vector<2x96xf32>
    %13 = tpu.matmul %11, %12, %cst_9 {dimension_numbers = #tpu.dot_dimension_numbers<[1], [0], [0], [1], [0, 0, 1, 1], [], []>} : vector<2x256xf32>, vector<256x96xf32>, vector<2x96xf32> -> vector<2x96xf32>
    %c0_10 = arith.constant 0 : index
    %c0_11 = arith.constant 0 : index
    %14 = vector.load %arg4[%c0_10, %c0_11] : memref<1x96xf32, #tpu.memory_space<vmem>>, vector<1x96xf32>
    %15 = vector.broadcast %14 : vector<1x96xf32> to vector<2x96xf32>
    %16 = arith.addf %13, %15 : vector<2x96xf32>
    %c0_12 = arith.constant 0 : index
    %c0_13 = arith.constant 0 : index
    %17 = vector.load %arg5[%c0_12, %c0_13] : memref<2x96xf32, #tpu.memory_space<vmem>>, vector<2x96xf32>
    tpu.vector_store %arg5[%c0_12, %c0_13], %16 {strides = array<i32>} : memref<2x96xf32, #tpu.memory_space<vmem>>, vector<2x96xf32>,
    return
  }
}

</mosaic_0001>

<llo_original>
// kernel: tpu_custom_call.1
$region0: #{tpu_custom_call.1}
  #allocation0 [shape = 'u32[]', space=smem, size = 0x4, offset = 0x4, fixed_abs, tag = 'smem constant byte address 0x4 - core index']
  #allocation1 [shape = 'u32[144,128]{1,0:T(1,128)}', space=vmem, size = 0x12000, scoped, tag = 'internal scratch']
  %s0 = inlined_call_operand.hbm [shape: f32[2,12288], index: 0, kind: input, shape index: {}]
  %s1 = inlined_call_operand.hbm [shape: bf16[12288,256], index: 1, kind: input, shape index: {}]
  %s2 = inlined_call_operand.hbm [shape: f32[1,256], index: 2, kind: input, shape index: {}]
  %s3 = inlined_call_operand.vmem [shape: f32[256,96], index: 3, kind: input, shape index: {}]
  %s4 = inlined_call_operand.hbm [shape: f32[1,96], index: 4, kind: input, shape index: {}]
  %s5 = inlined_call_operand.hbm [shape: f32[2,96], index: 5, kind: output, shape index: {}]
  %s6 = sld [smem:[#allocation0]]
  $region46: #{tpu_custom_call.1} parent=0
    _
  %s8 = ssub.s32 1, %s6
  %s9 = scalar_select 0, %s8, %s6
  $region1: #{tpu_custom_call.1} parent=0
    #allocation2 [shape = 'u8[98304]{0}', space=vmem, size = 0x18000, scoped, tag = 'input window, operand 0, single buffered']
    #allocation3 [shape = 's32[1]{0}', space=sflag, size = 0x4, scoped, tag = 'scoped memory for tpu_custom_call.1']
    #allocation4 [shape = 's32[1]{0}', space=sflag, size = 0x4, scoped, tag = 'scoped memory for tpu_custom_call.1']
    #allocation5 [shape = 'u8[6291456]{0}', space=vmem, size = 0x600000, scoped, tag = 'input window, operand 1, single buffered']
    #allocation6 [shape = 's32[1]{0}', space=sflag, size = 0x4, scoped, tag = 'scoped memory for tpu_custom_call.1']
    #allocation7 [shape = 'u8[1024]{0}', space=vmem, size = 0x400, scoped, tag = 'input window, operand 2, single buffered']
    #allocation8 [shape = 'u8[512]{0}', space=vmem, size = 0x400, scoped, tag = 'input window, operand 4, single buffered']
    #allocation9 [shape = 's32[1]{0}', space=sflag, size = 0x4, scoped, tag = 'scoped memory for tpu_custom_call.1']
    #allocation10 [shape = 'u8[1024]{0}', space=vmem, size = 0x400, scoped, tag = 'output window, operand 0, single buffered']
    %10 = vsyncpa [#allocation3], 0
    %11 = vsyncpa [#allocation6], 0
    %12 = vsyncpa [#allocation9], 0
    %13 = vsyncpa [#allocation4], 0
    // Predicated region
    $region2: #{tpu_custom_call.1} parent=1 // pred_check
      _
    $region3: #{tpu_custom_call.1} parent=1 // pred_check_branch
      %15 = sbr.rel (0) target = $region5
    $region4: #{tpu_custom_call.1} parent=1 // pred_region
      %s17 = ssub.s32 3072, 3072
      %18 = vsyncadd [#allocation3], %s17
      %s20 = sshll.u32 [#allocation2], 4
      %s21 = int_to_ptr.vmem [resolvable:$true] %s20
      %23 = dma.hbm_to_vmem [thread:$0]  %s0, 3072, %s21, [#allocation3]
    $region5: #{tpu_custom_call.1} parent=1 // pred_fallthru
      _
    // Predicated region
    $region6: #{tpu_custom_call.1} parent=1 // pred_check
      _
    $region7: #{tpu_custom_call.1} parent=1 // pred_check_branch
      %25 = sbr.rel (0) target = $region9
    $region8: #{tpu_custom_call.1} parent=1 // pred_region
      %s27 = ssub.s32 196608, 196608
      %28 = vsyncadd [#allocation6], %s27
      %s29 = sshll.u32 [#allocation5], 4
      %s30 = int_to_ptr.vmem [resolvable:$true] %s29
      %35 = dma.hbm_to_vmem [thread:$0]  %s1, 196608, %s30, [#allocation6], 128, 128, 8
    $region9: #{tpu_custom_call.1} parent=1 // pred_fallthru
      _
    // Predicated region
    $region10: #{tpu_custom_call.1} parent=1 // pred_check
      _
    $region11: #{tpu_custom_call.1} parent=1 // pred_check_branch
      %37 = sbr.rel (0) target = $region13
    $region12: #{tpu_custom_call.1} parent=1 // pred_region
      %s39 = ssub.s32 32, 32
      %40 = vsyncadd [#allocation6], %s39
      %s42 = sshll.u32 [#allocation7], 4
      %s43 = int_to_ptr.vmem [resolvable:$true] %s42
      %45 = dma.hbm_to_vmem [thread:$0]  %s2, 32, %s43, [#allocation6]
    $region13: #{tpu_custom_call.1} parent=1 // pred_fallthru
      _
    // Predicated region
    $region14: #{tpu_custom_call.1} parent=1 // pred_check
      _
    $region15: #{tpu_custom_call.1} parent=1 // pred_check_branch
      %47 = sbr.rel (0) target = $region17
    $region16: #{tpu_custom_call.1} parent=1 // pred_region
      _
    $region17: #{tpu_custom_call.1} parent=1 // pred_fallthru
      _
    // Predicated region
    $region18: #{tpu_custom_call.1} parent=1 // pred_check
      _
    $region19: #{tpu_custom_call.1} parent=1 // pred_check_branch
      %49 = sbr.rel (0) target = $region21
    $region20: #{tpu_custom_call.1} parent=1 // pred_region
      %s51 = ssub.s32 16, 16
      %52 = vsyncadd [#allocation9], %s51
      %s54 = sshll.u32 [#allocation8], 4
      %s55 = int_to_ptr.vmem [resolvable:$true] %s54
      %57 = dma.hbm_to_vmem [thread:$0]  %s4, 16, %s55, [#allocation9]
    $region21: #{tpu_custom_call.1} parent=1 // pred_fallthru
      _
    // Predicated region
    $region22: #{tpu_custom_call.1} parent=1 // pred_check
      _
    $region23: #{tpu_custom_call.1} parent=1 // pred_check_branch
      %59 = sbr.rel (0) target = $region25
    $region24: #{tpu_custom_call.1} parent=1 // pred_region
      %60 = dma.done [#allocation3], 3072
    $region25: #{tpu_custom_call.1} parent=1 // pred_fallthru
      _
    // Predicated region
    $region26: #{tpu_custom_call.1} parent=1 // pred_check
      _
    $region27: #{tpu_custom_call.1} parent=1 // pred_check_branch
      %62 = sbr.rel (0) target = $region29
    $region28: #{tpu_custom_call.1} parent=1 // pred_region
      %63 = dma.done [#allocation6], 196608
    $region29: #{tpu_custom_call.1} parent=1 // pred_fallthru
      _
    // Predicated region
    $region30: #{tpu_custom_call.1} parent=1 // pred_check
      _
    $region31: #{tpu_custom_call.1} parent=1 // pred_check_branch
      %65 = sbr.rel (0) target = $region33
    $region32: #{tpu_custom_call.1} parent=1 // pred_region
      %66 = dma.done [#allocation6], 32
    $region33: #{tpu_custom_call.1} parent=1 // pred_fallthru
      _
    // Predicated region
    $region34: #{tpu_custom_call.1} parent=1 // pred_check
      _
    $region35: #{tpu_custom_call.1} parent=1 // pred_check_branch
      %68 = sbr.rel (0) target = $region37
    $region36: #{tpu_custom_call.1} parent=1 // pred_region
      %69 = dma.done [#allocation9], 16
    $region37: #{tpu_custom_call.1} parent=1 // pred_fallthru
      _
    %v70 = vld [vmem:[#allocation2] sm:$0xff]
    %v71 = vld [vmem:[#allocation2 + $0x8] sm:$0xff]
    %v72 = vld [vmem:[#allocation2 + $0x10] sm:$0xff]
    %v73 = vld [vmem:[#allocation2 + $0x18] sm:$0xff]
    %v74 = vld [vmem:[#allocation2 + $0x20] sm:$0xff]
    %v75 = vld [vmem:[#allocation2 + $0x28] sm:$0xff]
    %v76 = vld [vmem:[#allocation2 + $0x30] sm:$0xff]
    %v77 = vld [vmem:[#allocation2 + $0x38] sm:$0xff]
    %v78 = vld [vmem:[#allocation2 + $0x40] sm:$0xff]
    %v79 = vld [vmem:[#allocation2 + $0x48] sm:$0xff]
    %v80 = vld [vmem:[#allocation2 + $0x50] sm:$0xff]
    %v81 = vld [vmem:[#allocation2 + $0x58] sm:$0xff]
    %v82 = vld [vmem:[#allocation2 + $0x60] sm:$0xff]
    %v83 = vld [vmem:[#allocation2 + $0x68] sm:$0xff]
    %v84 = vld [vmem:[#allocation2 + $0x70] sm:$0xff]
    %v85 = vld [vmem:[#allocation2 + $0x78] sm:$0xff]
    %v86 = vld [vmem:[#allocation2 + $0x80] sm:$0xff]
    %v87 = vld [vmem:[#allocation2 + $0x88] sm:$0xff]
    %v88 = vld [vmem:[#allocation2 + $0x90] sm:$0xff]
    %v89 = vld [vmem:[#allocation2 + $0x98] sm:$0xff]
    %v90 = vld [vmem:[#allocation2 + $0xa0] sm:$0xff]
    %v91 = vld [vmem:[#allocation2 + $0xa8] sm:$0xff]
    %v92 = vld [vmem:[#allocation2 + $0xb0] sm:$0xff]
    %v93 = vld [vmem:[#allocation2 + $0xb8] sm:$0xff]
    %v118 = vcombine.high %v70, %v70
    %v120 = vunpack.c.l.s4 1983009808
    %v121 = vunpack.c.0.s8 %v120
    %v122 = vlaneseq
    %v123 = vshrl.u32 %v122, 7
    %v124 = vsub.s32 %v121, %v123
    %v125 = vrot.slane %v70, %v124
    %v127 = vunpack.c.l.s4 1983009808
    %v128 = vunpack.c.0.s8 %v127
    %v129 = vlaneseq
    %v130 = vshrl.u32 %v129, 7
    %v131 = vsub.s32 %v128, %v130
    %v132 = vrot.slane %v118, %v131
    %v133 = vcombine.high %v125, %v125
    %v134 = vcombine.high %v132, %v132
    %v135 = vcombine.high %v71, %v71
    %v137 = vunpack.c.l.s4 1983009808
    %v138 = vunpack.c.0.s8 %v137
    %v139 = vlaneseq
    %v140 = vshrl.u32 %v139, 7
    %v141 = vsub.s32 %v138, %v140
    %v142 = vrot.slane %v71, %v141
    %v144 = vunpack.c.l.s4 1983009808
    %v145 = vunpack.c.0.s8 %v144
    %v146 = vlaneseq
    %v147 = vshrl.u32 %v146, 7
    %v148 = vsub.s32 %v145, %v147
    %v149 = vrot.slane %v135, %v148
    %v150 = vcombine.high %v142, %v142
    %v151 = vcombine.high %v149, %v149
    %v152 = vcombine.high %v72, %v72
    %v154 = vunpack.c.l.s4 1983009808
    %v155 = vunpack.c.0.s8 %v154
    %v156 = vlaneseq
    %v157 = vshrl.u32 %v156, 7
    %v158 = vsub.s32 %v155, %v157
    %v159 = vrot.slane %v72, %v158
    %v161 = vunpack.c.l.s4 1983009808
    %v162 = vunpack.c.0.s8 %v161
    %v163 = vlaneseq
    %v164 = vshrl.u32 %v163, 7
    %v165 = vsub.s32 %v162, %v164
    %v166 = vrot.slane %v152, %v165
    %v167 = vcombine.high %v159, %v159
    %v168 = vcombine.high %v166, %v166
    %v169 = vcombine.high %v73, %v73
    %v171 = vunpack.c.l.s4 1983009808
    %v172 = vunpack.c.0.s8 %v171
    %v173 = vlaneseq
    %v174 = vshrl.u32 %v173, 7
    %v175 = vsub.s32 %v172, %v174
    %v176 = vrot.slane %v73, %v175
    %v178 = vunpack.c.l.s4 1983009808
    %v179 = vunpack.c.0.s8 %v178
    %v180 = vlaneseq
    %v181 = vshrl.u32 %v180, 7
    %v182 = vsub.s32 %v179, %v181
    %v183 = vrot.slane %v169, %v182
    %v184 = vcombine.high %v176, %v176
    %v185 = vcombine.high %v183, %v183
    %v186 = vcombine.high %v74, %v74
    %v188 = vunpack.c.l.s4 1983009808
    %v189 = vunpack.c.0.s8 %v188
    %v190 = vlaneseq
    %v191 = vshrl.u32 %v190, 7
    %v192 = vsub.s32 %v189, %v191
    %v193 = vrot.slane %v74, %v192
    %v195 = vunpack.c.l.s4 1983009808
    %v196 = vunpack.c.0.s8 %v195
    %v197 = vlaneseq
    %v198 = vshrl.u32 %v197, 7
    %v199 = vsub.s32 %v196, %v198
    %v200 = vrot.slane %v186, %v199
    %v201 = vcombine.high %v193, %v193
    %v202 = vcombine.high %v200, %v200
    %v203 = vcombine.high %v75, %v75
    %v205 = vunpack.c.l.s4 1983009808
    %v206 = vunpack.c.0.s8 %v205
    %v207 = vlaneseq
    %v208 = vshrl.u32 %v207, 7
    %v209 = vsub.s32 %v206, %v208
    %v210 = vrot.slane %v75, %v209
    %v212 = vunpack.c.l.s4 1983009808
    %v213 = vunpack.c.0.s8 %v212
    %v214 = vlaneseq
    %v215 = vshrl.u32 %v214, 7
    %v216 = vsub.s32 %v213, %v215
    %v217 = vrot.slane %v203, %v216
    %v218 = vcombine.high %v210, %v210
    %v219 = vcombine.high %v217, %v217
    %v220 = vcombine.high %v76, %v76
    %v222 = vunpack.c.l.s4 1983009808
    %v223 = vunpack.c.0.s8 %v222
    %v224 = vlaneseq
    %v225 = vshrl.u32 %v224, 7
    %v226 = vsub.s32 %v223, %v225
    %v227 = vrot.slane %v76, %v226
    %v229 = vunpack.c.l.s4 1983009808
    %v230 = vunpack.c.0.s8 %v229
    %v231 = vlaneseq
    %v232 = vshrl.u32 %v231, 7
    %v233 = vsub.s32 %v230, %v232
    %v234 = vrot.slane %v220, %v233
    %v235 = vcombine.high %v227, %v227
    %v236 = vcombine.high %v234, %v234
    %v237 = vcombine.high %v77, %v77
    %v239 = vunpack.c.l.s4 1983009808
    %v240 = vunpack.c.0.s8 %v239
    %v241 = vlaneseq
    %v242 = vshrl.u32 %v241, 7
    %v243 = vsub.s32 %v240, %v242
    %v244 = vrot.slane %v77, %v243
    %v246 = vunpack.c.l.s4 1983009808
    %v247 = vunpack.c.0.s8 %v246
    %v248 = vlaneseq
    %v249 = vshrl.u32 %v248, 7
    %v250 = vsub.s32 %v247, %v249
    %v251 = vrot.slane %v237, %v250
    %v252 = vcombine.high %v244, %v244
    %v253 = vcombine.high %v251, %v251
    %v254 = vcombine.high %v78, %v78
    %v256 = vunpack.c.l.s4 1983009808
    %v257 = vunpack.c.0.s8 %v256
    %v258 = vlaneseq
    %v259 = vshrl.u32 %v258, 7
    %v260 = vsub.s32 %v257, %v259
    %v261 = vrot.slane %v78, %v260
    %v263 = vunpack.c.l.s4 1983009808
    %v264 = vunpack.c.0.s8 %v263
    %v265 = vlaneseq
    %v266 = vshrl.u32 %v265, 7
    %v267 = vsub.s32 %v264, %v266
    %v268 = vrot.slane %v254, %v267
    %v269 = vcombine.high %v261, %v261
    %v270 = vcombine.high %v268, %v268
    %v271 = vcombine.high %v79, %v79
    %v273 = vunpack.c.l.s4 1983009808
    %v274 = vunpack.c.0.s8 %v273
    %v275 = vlaneseq
    %v276 = vshrl.u32 %v275, 7
    %v277 = vsub.s32 %v274, %v276
    %v278 = vrot.slane %v79, %v277
    %v280 = vunpack.c.l.s4 1983009808
    %v281 = vunpack.c.0.s8 %v280
    %v282 = vlaneseq
    %v283 = vshrl.u32 %v282, 7
    %v284 = vsub.s32 %v281, %v283
    %v285 = vrot.slane %v271, %v284
    %v286 = vcombine.high %v278, %v278
    %v287 = vcombine.high %v285, %v285
    %v288 = vcombine.high %v80, %v80
    %v290 = vunpack.c.l.s4 1983009808
    %v291 = vunpack.c.0.s8 %v290
    %v292 = vlaneseq
    %v293 = vshrl.u32 %v292, 7
    %v294 = vsub.s32 %v291, %v293
    %v295 = vrot.slane %v80, %v294
    %v297 = vunpack.c.l.s4 1983009808
    %v298 = vunpack.c.0.s8 %v297
    %v299 = vlaneseq
    %v300 = vshrl.u32 %v299, 7
    %v301 = vsub.s32 %v298, %v300
    %v302 = vrot.slane %v288, %v301
    %v303 = vcombine.high %v295, %v295
    %v304 = vcombine.high %v302, %v302
    %v305 = vcombine.high %v81, %v81
    %v307 = vunpack.c.l.s4 1983009808
    %v308 = vunpack.c.0.s8 %v307
    %v309 = vlaneseq
    %v310 = vshrl.u32 %v309, 7
    %v311 = vsub.s32 %v308, %v310
    %v312 = vrot.slane %v81, %v311
    %v314 = vunpack.c.l.s4 1983009808
    %v315 = vunpack.c.0.s8 %v314
    %v316 = vlaneseq
    %v317 = vshrl.u32 %v316, 7
    %v318 = vsub.s32 %v315, %v317
    %v319 = vrot.slane %v305, %v318
    %v320 = vcombine.high %v312, %v312
    %v321 = vcombine.high %v319, %v319
    %v322 = vcombine.high %v82, %v82
    %v324 = vunpack.c.l.s4 1983009808
    %v325 = vunpack.c.0.s8 %v324
    %v326 = vlaneseq
    %v327 = vshrl.u32 %v326, 7
    %v328 = vsub.s32 %v325, %v327
    %v329 = vrot.slane %v82, %v328
    %v331 = vunpack.c.l.s4 1983009808
    %v332 = vunpack.c.0.s8 %v331
    %v333 = vlaneseq
    %v334 = vshrl.u32 %v333, 7
    %v335 = vsub.s32 %v332, %v334
    %v336 = vrot.slane %v322, %v335
    %v337 = vcombine.high %v329, %v329
    %v338 = vcombine.high %v336, %v336
    %v339 = vcombine.high %v83, %v83
    %v341 = vunpack.c.l.s4 1983009808
    %v342 = vunpack.c.0.s8 %v341
    %v343 = vlaneseq
    %v344 = vshrl.u32 %v343, 7
    %v345 = vsub.s32 %v342, %v344
    %v346 = vrot.slane %v83, %v345
    %v348 = vunpack.c.l.s4 1983009808
    %v349 = vunpack.c.0.s8 %v348
    %v350 = vlaneseq
    %v351 = vshrl.u32 %v350, 7
    %v352 = vsub.s32 %v349, %v351
    %v353 = vrot.slane %v339, %v352
    %v354 = vcombine.high %v346, %v346
    %v355 = vcombine.high %v353, %v353
    %v356 = vcombine.high %v84, %v84
    %v358 = vunpack.c.l.s4 1983009808
    %v359 = vunpack.c.0.s8 %v358
    %v360 = vlaneseq
    %v361 = vshrl.u32 %v360, 7
    %v362 = vsub.s32 %v359, %v361
    %v363 = vrot.slane %v84, %v362
    %v365 = vunpack.c.l.s4 1983009808
    %v366 = vunpack.c.0.s8 %v365
    %v367 = vlaneseq
    %v368 = vshrl.u32 %v367, 7
    %v369 = vsub.s32 %v366, %v368
    %v370 = vrot.slane %v356, %v369
    %v371 = vcombine.high %v363, %v363
    %v372 = vcombine.high %v370, %v370
    %v373 = vcombine.high %v85, %v85
    %v375 = vunpack.c.l.s4 1983009808
    %v376 = vunpack.c.0.s8 %v375
    %v377 = vlaneseq
    %v378 = vshrl.u32 %v377, 7
    %v379 = vsub.s32 %v376, %v378
    %v380 = vrot.slane %v85, %v379
    %v382 = vunpack.c.l.s4 1983009808
    %v383 = vunpack.c.0.s8 %v382
    %v384 = vlaneseq
    %v385 = vshrl.u32 %v384, 7
    %v386 = vsub.s32 %v383, %v385
    %v387 = vrot.slane %v373, %v386
    %v388 = vcombine.high %v380, %v380
    %v389 = vcombine.high %v387, %v387
    %v390 = vcombine.high %v86, %v86
    %v392 = vunpack.c.l.s4 1983009808
    %v393 = vunpack.c.0.s8 %v392
    %v394 = vlaneseq
    %v395 = vshrl.u32 %v394, 7
    %v396 = vsub.s32 %v393, %v395
    %v397 = vrot.slane %v86, %v396
    %v399 = vunpack.c.l.s4 1983009808
    %v400 = vunpack.c.0.s8 %v399
    %v401 = vlaneseq
    %v402 = vshrl.u32 %v401, 7
    %v403 = vsub.s32 %v400, %v402
    %v404 = vrot.slane %v390, %v403
    %v405 = vcombine.high %v397, %v397
    %v406 = vcombine.high %v404, %v404
    %v407 = vcombine.high %v87, %v87
    %v409 = vunpack.c.l.s4 1983009808
    %v410 = vunpack.c.0.s8 %v409
    %v411 = vlaneseq
    %v412 = vshrl.u32 %v411, 7
    %v413 = vsub.s32 %v410, %v412
    %v414 = vrot.slane %v87, %v413
    %v416 = vunpack.c.l.s4 1983009808
    %v417 = vunpack.c.0.s8 %v416
    %v418 = vlaneseq
    %v419 = vshrl.u32 %v418, 7
    %v420 = vsub.s32 %v417, %v419
    %v421 = vrot.slane %v407, %v420
    %v422 = vcombine.high %v414, %v414
    %v423 = vcombine.high %v421, %v421
    %v424 = vcombine.high %v88, %v88
    %v426 = vunpack.c.l.s4 1983009808
    %v427 = vunpack.c.0.s8 %v426
    %v428 = vlaneseq
    %v429 = vshrl.u32 %v428, 7
    %v430 = vsub.s32 %v427, %v429
    %v431 = vrot.slane %v88, %v430
    %v433 = vunpack.c.l.s4 1983009808
    %v434 = vunpack.c.0.s8 %v433
    %v435 = vlaneseq
    %v436 = vshrl.u32 %v435, 7
    %v437 = vsub.s32 %v434, %v436
    %v438 = vrot.slane %v424, %v437
    %v439 = vcombine.high %v431, %v431
    %v440 = vcombine.high %v438, %v438
    %v441 = vcombine.high %v89, %v89
    %v443 = vunpack.c.l.s4 1983009808
    %v444 = vunpack.c.0.s8 %v443
    %v445 = vlaneseq
    %v446 = vshrl.u32 %v445, 7
    %v447 = vsub.s32 %v444, %v446
    %v448 = vrot.slane %v89, %v447
    %v450 = vunpack.c.l.s4 1983009808
    %v451 = vunpack.c.0.s8 %v450
    %v452 = vlaneseq
    %v453 = vshrl.u32 %v452, 7
    %v454 = vsub.s32 %v451, %v453
    %v455 = vrot.slane %v441, %v454
    %v456 = vcombine.high %v448, %v448
    %v457 = vcombine.high %v455, %v455
    %v458 = vcombine.high %v90, %v90
    %v460 = vunpack.c.l.s4 1983009808
    %v461 = vunpack.c.0.s8 %v460
    %v462 = vlaneseq
    %v463 = vshrl.u32 %v462, 7
    %v464 = vsub.s32 %v461, %v463
    %v465 = vrot.slane %v90, %v464
    %v467 = vunpack.c.l.s4 1983009808
    %v468 = vunpack.c.0.s8 %v467
    %v469 = vlaneseq
    %v470 = vshrl.u32 %v469, 7
    %v471 = vsub.s32 %v468, %v470
    %v472 = vrot.slane %v458, %v471
    %v473 = vcombine.high %v465, %v465
    %v474 = vcombine.high %v472, %v472
    %v475 = vcombine.high %v91, %v91
    %v477 = vunpack.c.l.s4 1983009808
    %v478 = vunpack.c.0.s8 %v477
    %v479 = vlaneseq
    %v480 = vshrl.u32 %v479, 7
    %v481 = vsub.s32 %v478, %v480
    %v482 = vrot.slane %v91, %v481
    %v484 = vunpack.c.l.s4 1983009808
    %v485 = vunpack.c.0.s8 %v484
    %v486 = vlaneseq
    %v487 = vshrl.u32 %v486, 7
    %v488 = vsub.s32 %v485, %v487
    %v489 = vrot.slane %v475, %v488
    %v490 = vcombine.high %v482, %v482
    %v491 = vcombine.high %v489, %v489
    %v492 = vcombine.high %v92, %v92
    %v494 = vunpack.c.l.s4 1983009808
    %v495 = vunpack.c.0.s8 %v494
    %v496 = vlaneseq
    %v497 = vshrl.u32 %v496, 7
    %v498 = vsub.s32 %v495, %v497
    %v499 = vrot.slane %v92, %v498
    %v501 = vunpack.c.l.s4 1983009808
    %v502 = vunpack.c.0.s8 %v501
    %v503 = vlaneseq
    %v504 = vshrl.u32 %v503, 7
    %v505 = vsub.s32 %v502, %v504
    %v506 = vrot.slane %v492, %v505
    %v507 = vcombine.high %v499, %v499
    %v508 = vcombine.high %v506, %v506
    %v509 = vcombine.high %v93, %v93
    %v511 = vunpack.c.l.s4 1983009808
    %v512 = vunpack.c.0.s8 %v511
    %v513 = vlaneseq
    %v514 = vshrl.u32 %v513, 7
    %v515 = vsub.s32 %v512, %v514
    %v516 = vrot.slane %v93, %v515
    %v518 = vunpack.c.l.s4 1983009808
    %v519 = vunpack.c.0.s8 %v518
    %v520 = vlaneseq
    %v521 = vshrl.u32 %v520, 7
    %v522 = vsub.s32 %v519, %v521
    %v523 = vrot.slane %v509, %v522
    %v524 = vcombine.high %v516, %v516
    %v525 = vcombine.high %v523, %v523
    %v622 = vpack.c.bf16 %v125, %v125
    %v623 = vpack.c.bf16 %v133, %v133
    %v624 = vpack.c.bf16 %v132, %v132
    %v625 = vpack.c.bf16 %v134, %v134
    %v626 = vpack.c.bf16 %v142, %v142
    %v627 = vpack.c.bf16 %v150, %v150
    %v628 = vpack.c.bf16 %v149, %v149
    %v629 = vpack.c.bf16 %v151, %v151
    %v630 = vpack.c.bf16 %v159, %v159
    %v631 = vpack.c.bf16 %v167, %v167
    %v632 = vpack.c.bf16 %v166, %v166
    %v633 = vpack.c.bf16 %v168, %v168
    %v634 = vpack.c.bf16 %v176, %v176
    %v635 = vpack.c.bf16 %v184, %v184
    %v636 = vpack.c.bf16 %v183, %v183
    %v637 = vpack.c.bf16 %v185, %v185
    %v638 = vpack.c.bf16 %v193, %v193
    %v639 = vpack.c.bf16 %v201, %v201
    %v640 = vpack.c.bf16 %v200, %v200
    %v641 = vpack.c.bf16 %v202, %v202
    %v642 = vpack.c.bf16 %v210, %v210
    %v643 = vpack.c.bf16 %v218, %v218
    %v644 = vpack.c.bf16 %v217, %v217
    %v645 = vpack.c.bf16 %v219, %v219
    %v646 = vpack.c.bf16 %v227, %v227
    %v647 = vpack.c.bf16 %v235, %v235
    %v648 = vpack.c.bf16 %v234, %v234
    %v649 = vpack.c.bf16 %v236, %v236
    %v650 = vpack.c.bf16 %v244, %v244
    %v651 = vpack.c.bf16 %v252, %v252
    %v652 = vpack.c.bf16 %v251, %v251
    %v653 = vpack.c.bf16 %v253, %v253
    %v654 = vpack.c.bf16 %v261, %v261
    %v655 = vpack.c.bf16 %v269, %v269
    %v656 = vpack.c.bf16 %v268, %v268
    %v657 = vpack.c.bf16 %v270, %v270
    %v658 = vpack.c.bf16 %v278, %v278
    %v659 = vpack.c.bf16 %v286, %v286
    %v660 = vpack.c.bf16 %v285, %v285
    %v661 = vpack.c.bf16 %v287, %v287
    %v662 = vpack.c.bf16 %v295, %v295
    %v663 = vpack.c.bf16 %v303, %v303
    %v664 = vpack.c.bf16 %v302, %v302
    %v665 = vpack.c.bf16 %v304, %v304
    %v666 = vpack.c.bf16 %v312, %v312
    %v667 = vpack.c.bf16 %v320, %v320
    %v668 = vpack.c.bf16 %v319, %v319
    %v669 = vpack.c.bf16 %v321, %v321
    %v670 = vpack.c.bf16 %v329, %v329
    %v671 = vpack.c.bf16 %v337, %v337
    %v672 = vpack.c.bf16 %v336, %v336
    %v673 = vpack.c.bf16 %v338, %v338
    %v674 = vpack.c.bf16 %v346, %v346
    %v675 = vpack.c.bf16 %v354, %v354
    %v676 = vpack.c.bf16 %v353, %v353
    %v677 = vpack.c.bf16 %v355, %v355
    %v678 = vpack.c.bf16 %v363, %v363
    %v679 = vpack.c.bf16 %v371, %v371
    %v680 = vpack.c.bf16 %v370, %v370
    %v681 = vpack.c.bf16 %v372, %v372
    %v682 = vpack.c.bf16 %v380, %v380
    %v683 = vpack.c.bf16 %v388, %v388
    %v684 = vpack.c.bf16 %v387, %v387
    %v685 = vpack.c.bf16 %v389, %v389
    %v686 = vpack.c.bf16 %v397, %v397
    %v687 = vpack.c.bf16 %v405, %v405
    %v688 = vpack.c.bf16 %v404, %v404
    %v689 = vpack.c.bf16 %v406, %v406
    %v690 = vpack.c.bf16 %v414, %v414
    %v691 = vpack.c.bf16 %v422, %v422
    %v692 = vpack.c.bf16 %v421, %v421
    %v693 = vpack.c.bf16 %v423, %v423
    %v694 = vpack.c.bf16 %v431, %v431
    %v695 = vpack.c.bf16 %v439, %v439
    %v696 = vpack.c.bf16 %v438, %v438
    %v697 = vpack.c.bf16 %v440, %v440
    %v698 = vpack.c.bf16 %v448, %v448
    %v699 = vpack.c.bf16 %v456, %v456
    %v700 = vpack.c.bf16 %v455, %v455
    %v701 = vpack.c.bf16 %v457, %v457
    %v702 = vpack.c.bf16 %v465, %v465
    %v703 = vpack.c.bf16 %v473, %v473
    %v704 = vpack.c.bf16 %v472, %v472
    %v705 = vpack.c.bf16 %v474, %v474
    %v706 = vpack.c.bf16 %v482, %v482
    %v707 = vpack.c.bf16 %v490, %v490
    %v708 = vpack.c.bf16 %v489, %v489
    %v709 = vpack.c.bf16 %v491, %v491
    %v710 = vpack.c.bf16 %v499, %v499
    %v711 = vpack.c.bf16 %v507, %v507
    %v712 = vpack.c.bf16 %v506, %v506
    %v713 = vpack.c.bf16 %v508, %v508
    %v714 = vpack.c.bf16 %v516, %v516
    %v715 = vpack.c.bf16 %v524, %v524
    %v716 = vpack.c.bf16 %v523, %v523
    %v717 = vpack.c.bf16 %v525, %v525
    %v718 = vld [vmem:[#allocation5] sm:$0xff]
    %v719 = vld [vmem:[#allocation5 + $0x8] sm:$0xff]
    %v720 = vld [vmem:[#allocation5 + $0x10] sm:$0xff]
    %v721 = vld [vmem:[#allocation5 + $0x18] sm:$0xff]
    %v722 = vld [vmem:[#allocation5 + $0x20] sm:$0xff]
    %v723 = vld [vmem:[#allocation5 + $0x28] sm:$0xff]
    %v724 = vld [vmem:[#allocation5 + $0x30] sm:$0xff]
    %v725 = vld [vmem:[#allocation5 + $0x38] sm:$0xff]
    %v726 = vld [vmem:[#allocation5 + $0x40] sm:$0xff]
    %v727 = vld [vmem:[#allocation5 + $0x48] sm:$0xff]
    %v728 = vld [vmem:[#allocation5 + $0x50] sm:$0xff]
    %v729 = vld [vmem:[#allocation5 + $0x58] sm:$0xff]
    %v730 = vld [vmem:[#allocation5 + $0x60] sm:$0xff]
    %v731 = vld [vmem:[#allocation5 + $0x68] sm:$0xff]
    %v732 = vld [vmem:[#allocation5 + $0x70] sm:$0xff]
    %v733 = vld [vmem:[#allocation5 + $0x78] sm:$0xff]
    %v734 = vld [vmem:[#allocation5 + $0x80] sm:$0xff]
    %v735 = vld [vmem:[#allocation5 + $0x88] sm:$0xff]
    %v736 = vld [vmem:[#allocation5 + $0x90] sm:$0xff]
    %v737 = vld [vmem:[#allocation5 + $0x98] sm:$0xff]
    %v738 = vld [vmem:[#allocation5 + $0xa0] sm:$0xff]
    %v739 = vld [vmem:[#allocation5 + $0xa8] sm:$0xff]
    %v740 = vld [vmem:[#allocation5 + $0xb0] sm:$0xff]
    %v741 = vld [vmem:[#allocation5 + $0xb8] sm:$0xff]
    %v742 = vld [vmem:[#allocation5 + $0xc0] sm:$0xff]
    %v743 = vld [vmem:[#allocation5 + $0xc8] sm:$0xff]
    %v744 = vld [vmem:[#allocation5 + $0xd0] sm:$0xff]
    %v745 = vld [vmem:[#allocation5 + $0xd8] sm:$0xff]
    %v746 = vld [vmem:[#allocation5 + $0xe0] sm:$0xff]
    %v747 = vld [vmem:[#allocation5 + $0xe8] sm:$0xff]
    %v748 = vld [vmem:[#allocation5 + $0xf0] sm:$0xff]
    %v749 = vld [vmem:[#allocation5 + $0xf8] sm:$0xff]
    %v750 = vld [vmem:[#allocation5 + $0x100] sm:$0xff]
    %v751 = vld [vmem:[#allocation5 + $0x108] sm:$0xff]
    %v752 = vld [vmem:[#allocation5 + $0x110] sm:$0xff]
    %v753 = vld [vmem:[#allocation5 + $0x118] sm:$0xff]
    %v754 = vld [vmem:[#allocation5 + $0x120] sm:$0xff]
    %v755 = vld [vmem:[#allocation5 + $0x128] sm:$0xff]
    %v756 = vld [vmem:[#allocation5 + $0x130] sm:$0xff]
    %v757 = vld [vmem:[#allocation5 + $0x138] sm:$0xff]
    %v758 = vld [vmem:[#allocation5 + $0x140] sm:$0xff]
    %v759 = vld [vmem:[#allocation5 + $0x148] sm:$0xff]
    %v760 = vld [vmem:[#allocation5 + $0x150] sm:$0xff]
    %v761 = vld [vmem:[#allocation5 + $0x158] sm:$0xff]
    %v762 = vld [vmem:[#allocation5 + $0x160] sm:$0xff]
    %v763 = vld [vmem:[#allocation5 + $0x168] sm:$0xff]
    %v764 = vld [vmem:[#allocation5 + $0x170] sm:$0xff]
    %v765 = vld [vmem:[#allocation5 + $0x178] sm:$0xff]
    %v766 = vld [vmem:[#allocation5 + $0x180] sm:$0xff]
    %v767 = vld [vmem:[#allocation5 + $0x188] sm:$0xff]
    %v768 = vld [vmem:[#allocation5 + $0x190] sm:$0xff]
    %v769 = vld [vmem:[#allocation5 + $0x198] sm:$0xff]
    %v770 = vld [vmem:[#allocation5 + $0x1a0] sm:$0xff]
    %v771 = vld [vmem:[#allocation5 + $0x1a8] sm:$0xff]
    %v772 = vld [vmem:[#allocation5 + $0x1b0] sm:$0xff]
    %v773 = vld [vmem:[#allocation5 + $0x1b8] sm:$0xff]
    %v774 = vld [vmem:[#allocation5 + $0x1c0] sm:$0xff]
    %v775 = vld [vmem:[#allocation5 + $0x1c8] sm:$0xff]
    %v776 = vld [vmem:[#allocation5 + $0x1d0] sm:$0xff]
    %v777 = vld [vmem:[#allocation5 + $0x1d8] sm:$0xff]
    %v778 = vld [vmem:[#allocation5 + $0x1e0] sm:$0xff]
    %v779 = vld [vmem:[#allocation5 + $0x1e8] sm:$0xff]
    %v780 = vld [vmem:[#allocation5 + $0x1f0] sm:$0xff]
    %v781 = vld [vmem:[#allocation5 + $0x1f8] sm:$0xff]
    %v782 = vld [vmem:[#allocation5 + $0x200] sm:$0xff]
    %v783 = vld [vmem:[#allocation5 + $0x208] sm:$0xff]
    %v784 = vld [vmem:[#allocation5 + $0x210] sm:$0xff]
    %v785 = vld [vmem:[#allocation5 + $0x218] sm:$0xff]
    %v786 = vld [vmem:[#allocation5 + $0x220] sm:$0xff]
    %v787 = vld [vmem:[#allocation5 + $0x228] sm:$0xff]
    %v788 = vld [vmem:[#allocation5 + $0x230] sm:$0xff]
    %v789 = vld [vmem:[#allocation5 + $0x238] sm:$0xff]
    %v790 = vld [vmem:[#allocation5 + $0x240] sm:$0xff]
    %v791 = vld [vmem:[#allocation5 + $0x248] sm:$0xff]
    %v792 = vld [vmem:[#allocation5 + $0x250] sm:$0xff]
    %v793 = vld [vmem:[#allocation5 + $0x258] sm:$0xff]
    %v794 = vld [vmem:[#allocation5 + $0x260] sm:$0xff]
    %v795 = vld [vmem:[#allocation5 + $0x268] sm:$0xff]
    %v796 = vld [vmem:[#allocation5 + $0x270] sm:$0xff]
    %v797 = vld [vmem:[#allocation5 + $0x278] sm:$0xff]
    %v798 = vld [vmem:[#allocation5 + $0x280] sm:$0xff]
    %v799 = vld [vmem:[#allocation5 + $0x288] sm:$0xff]
    %v800 = vld [vmem:[#allocation5 + $0x290] sm:$0xff]
    %v801 = vld [vmem:[#allocation5 + $0x298] sm:$0xff]
    %v802 = vld [vmem:[#allocation5 + $0x2a0] sm:$0xff]
    %v803 = vld [vmem:[#allocation5 + $0x2a8] sm:$0xff]
    %v804 = vld [vmem:[#allocation5 + $0x2b0] sm:$0xff]
    %v805 = vld [vmem:[#allocation5 + $0x2b8] sm:$0xff]
    %v806 = vld [vmem:[#allocation5 + $0x2c0] sm:$0xff]
    %v807 = vld [vmem:[#allocation5 + $0x2c8] sm:$0xff]
    %v808 = vld [vmem:[#allocation5 + $0x2d0] sm:$0xff]
    %v809 = vld [vmem:[#allocation5 + $0x2d8] sm:$0xff]
    %v810 = vld [vmem:[#allocation5 + $0x2e0] sm:$0xff]
    %v811 = vld [vmem:[#allocation5 + $0x2e8] sm:$0xff]
    %v812 = vld [vmem:[#allocation5 + $0x2f0] sm:$0xff]
    %v813 = vld [vmem:[#allocation5 + $0x2f8] sm:$0xff]
    %v814 = vld [vmem:[#allocation5 + $0x300] sm:$0xff]
    %v815 = vld [vmem:[#allocation5 + $0x308] sm:$0xff]
    %v816 = vld [vmem:[#allocation5 + $0x310] sm:$0xff]
    %v817 = vld [vmem:[#allocation5 + $0x318] sm:$0xff]
    %v818 = vld [vmem:[#allocation5 + $0x320] sm:$0xff]
    %v819 = vld [vmem:[#allocation5 + $0x328] sm:$0xff]
    %v820 = vld [vmem:[#allocation5 + $0x330] sm:$0xff]
    %v821 = vld [vmem:[#allocation5 + $0x338] sm:$0xff]
    %v822 = vld [vmem:[#allocation5 + $0x340] sm:$0xff]
    %v823 = vld [vmem:[#allocation5 + $0x348] sm:$0xff]
    %v824 = vld [vmem:[#allocation5 + $0x350] sm:$0xff]
    %v825 = vld [vmem:[#allocation5 + $0x358] sm:$0xff]
    %v826 = vld [vmem:[#allocation5 + $0x360] sm:$0xff]
    %v827 = vld [vmem:[#allocation5 + $0x368] sm:$0xff]
    %v828 = vld [vmem:[#allocation5 + $0x370] sm:$0xff]
    %v829 = vld [vmem:[#allocation5 + $0x378] sm:$0xff]
    %v830 = vld [vmem:[#allocation5 + $0x380] sm:$0xff]
    %v831 = vld [vmem:[#allocation5 + $0x388] sm:$0xff]
    %v832 = vld [vmem:[#allocation5 + $0x390] sm:$0xff]
    %v833 = vld [vmem:[#allocation5 + $0x398] sm:$0xff]
    %v834 = vld [vmem:[#allocation5 + $0x3a0] sm:$0xff]
    %v835 = vld [vmem:[#allocation5 + $0x3a8] sm:$0xff]
    %v836 = vld [vmem:[#allocation5 + $0x3b0] sm:$0xff]
    %v837 = vld [vmem:[#allocation5 + $0x3b8] sm:$0xff]
    %v838 = vld [vmem:[#allocation5 + $0x3c0] sm:$0xff]
    %v839 = vld [vmem:[#allocation5 + $0x3c8] sm:$0xff]
    %v840 = vld [vmem:[#allocation5 + $0x3d0] sm:$0xff]
    %v841 = vld [vmem:[#allocation5 + $0x3d8] sm:$0xff]
    %v842 = vld [vmem:[#allocation5 + $0x3e0] sm:$0xff]
    %v843 = vld [vmem:[#allocation5 + $0x3e8] sm:$0xff]
    %v844 = vld [vmem:[#allocation5 + $0x3f0] sm:$0xff]
    %v845 = vld [vmem:[#allocation5 + $0x3f8] sm:$0xff]
    %v846 = vld [vmem:[#allocation5 + $0x400] sm:$0xff]
    %v847 = vld [vmem:[#allocation5 + $0x408] sm:$0xff]
    %v848 = vld [vmem:[#allocation5 + $0x410] sm:$0xff]
    %v849 = vld [vmem:[#allocation5 + $0x418] sm:$0xff]
    %v850 = vld [vmem:[#allocation5 + $0x420] sm:$0xff]
    %v851 = vld [vmem:[#allocation5 + $0x428] sm:$0xff]
    %v852 = vld [vmem:[#allocation5 + $0x430] sm:$0xff]
    %v853 = vld [vmem:[#allocation5 + $0x438] sm:$0xff]
    %v854 = vld [vmem:[#allocation5 + $0x440] sm:$0xff]
    %v855 = vld [vmem:[#allocation5 + $0x448] sm:$0xff]
    %v856 = vld [vmem:[#allocation5 + $0x450] sm:$0xff]
    %v857 = vld [vmem:[#allocation5 + $0x458] sm:$0xff]
    %v858 = vld [vmem:[#allocation5 + $0x460] sm:$0xff]
    %v859 = vld [vmem:[#allocation5 + $0x468] sm:$0xff]
    %v860 = vld [vmem:[#allocation5 + $0x470] sm:$0xff]
    %v861 = vld [vmem:[#allocation5 + $0x478] sm:$0xff]
    %v862 = vld [vmem:[#allocation5 + $0x480] sm:$0xff]
    %v863 = vld [vmem:[#allocation5 + $0x488] sm:$0xff]
    %v864 = vld [vmem:[#allocation5 + $0x490] sm:$0xff]
    %v865 = vld [vmem:[#allocation5 + $0x498] sm:$0xff]
    %v866 = vld [vmem:[#allocation5 + $0x4a0] sm:$0xff]
    %v867 = vld [vmem:[#allocation5 + $0x4a8] sm:$0xff]
    %v868 = vld [vmem:[#allocation5 + $0x4b0] sm:$0xff]
    %v869 = vld [vmem:[#allocation5 + $0x4b8] sm:$0xff]
    %v870 = vld [vmem:[#allocation5 + $0x4c0] sm:$0xff]
    %v871 = vld [vmem:[#allocation5 + $0x4c8] sm:$0xff]
    %v872 = vld [vmem:[#allocation5 + $0x4d0] sm:$0xff]
    %v873 = vld [vmem:[#allocation5 + $0x4d8] sm:$0xff]
    %v874 = vld [vmem:[#allocation5 + $0x4e0] sm:$0xff]
    %v875 = vld [vmem:[#allocation5 + $0x4e8] sm:$0xff]
    %v876 = vld [vmem:[#allocation5 + $0x4f0] sm:$0xff]
    %v877 = vld [vmem:[#allocation5 + $0x4f8] sm:$0xff]
    %v878 = vld [vmem:[#allocation5 + $0x500] sm:$0xff]
    %v879 = vld [vmem:[#allocation5 + $0x508] sm:$0xff]
    %v880 = vld [vmem:[#allocation5 + $0x510] sm:$0xff]
    %v881 = vld [vmem:[#allocation5 + $0x518] sm:$0xff]
    %v882 = vld [vmem:[#allocation5 + $0x520] sm:$0xff]
    %v883 = vld [vmem:[#allocation5 + $0x528] sm:$0xff]
    %v884 = vld [vmem:[#allocation5 + $0x530] sm:$0xff]
    %v885 = vld [vmem:[#allocation5 + $0x538] sm:$0xff]
    %v886 = vld [vmem:[#allocation5 + $0x540] sm:$0xff]
    %v887 = vld [vmem:[#allocation5 + $0x548] sm:$0xff]
    %v888 = vld [vmem:[#allocation5 + $0x550] sm:$0xff]
    %v889 = vld [vmem:[#allocation5 + $0x558] sm:$0xff]
    %v890 = vld [vmem:[#allocation5 + $0x560] sm:$0xff]
    %v891 = vld [vmem:[#allocation5 + $0x568] sm:$0xff]
    %v892 = vld [vmem:[#allocation5 + $0x570] sm:$0xff]
    %v893 = vld [vmem:[#allocation5 + $0x578] sm:$0xff]
    %v894 = vld [vmem:[#allocation5 + $0x580] sm:$0xff]
    %v895 = vld [vmem:[#allocation5 + $0x588] sm:$0xff]
    %v896 = vld [vmem:[#allocation5 + $0x590] sm:$0xff]
    %v897 = vld [vmem:[#allocation5 + $0x598] sm:$0xff]
    %v898 = vld [vmem:[#allocation5 + $0x5a0] sm:$0xff]
    %v899 = vld [vmem:[#allocation5 + $0x5a8] sm:$0xff]
    %v900 = vld [vmem:[#allocation5 + $0x5b0] sm:$0xff]
    %v901 = vld [vmem:[#allocation5 + $0x5b8] sm:$0xff]
    %v902 = vld [vmem:[#allocation5 + $0x5c0] sm:$0xff]
    %v903 = vld [vmem:[#allocation5 + $0x5c8] sm:$0xff]
    %v904 = vld [vmem:[#allocation5 + $0x5d0] sm:$0xff]
    %v905 = vld [vmem:[#allocation5 + $0x5d8] sm:$0xff]
    %v906 = vld [vmem:[#allocation5 + $0x5e0] sm:$0xff]
    %v907 = vld [vmem:[#allocation5 + $0x5e8] sm:$0xff]
    %v908 = vld [vmem:[#allocation5 + $0x5f0] sm:$0xff]
    %v909 = vld [vmem:[#allocation5 + $0x5f8] sm:$0xff]
    %v910 = vld [vmem:[#allocation5 + $0x600] sm:$0xff]
    %v911 = vld [vmem:[#allocation5 + $0x608] sm:$0xff]
    %v912 = vld [vmem:[#allocation5 + $0x610] sm:$0xff]
    %v913 = vld [vmem:[#allocation5 + $0x618] sm:$0xff]
    %v914 = vld [vmem:[#allocation5 + $0x620] sm:$0xff]
    %v915 = vld [vmem:[#allocation5 + $0x628] sm:$0xff]
    %v916 = vld [vmem:[#allocation5 + $0x630] sm:$0xff]
    %v917 = vld [vmem:[#allocation5 + $0x638] sm:$0xff]
    %v918 = vld [vmem:[#allocation5 + $0x640] sm:$0xff]
    %v919 = vld [vmem:[#allocation5 + $0x648] sm:$0xff]
    %v920 = vld [vmem:[#allocation5 + $0x650] sm:$0xff]
    %v921 = vld [vmem:[#allocation5 + $0x658] sm:$0xff]
    %v922 = vld [vmem:[#allocation5 + $0x660] sm:$0xff]
    %v923 = vld [vmem:[#allocation5 + $0x668] sm:$0xff]
    %v924 = vld [vmem:[#allocation5 + $0x670] sm:$0xff]
    %v925 = vld [vmem:[#allocation5 + $0x678] sm:$0xff]
    %v926 = vld [vmem:[#allocation5 + $0x680] sm:$0xff]
    %v927 = vld [vmem:[#allocation5 + $0x688] sm:$0xff]
    %v928 = vld [vmem:[#allocation5 + $0x690] sm:$0xff]
    %v929 = vld [vmem:[#allocation5 + $0x698] sm:$0xff]
    %v930 = vld [vmem:[#allocation5 + $0x6a0] sm:$0xff]
    %v931 = vld [vmem:[#allocation5 + $0x6a8] sm:$0xff]
    %v932 = vld [vmem:[#allocation5 + $0x6b0] sm:$0xff]
    %v933 = vld [vmem:[#allocation5 + $0x6b8] sm:$0xff]
    %v934 = vld [vmem:[#allocation5 + $0x6c0] sm:$0xff]
    %v935 = vld [vmem:[#allocation5 + $0x6c8] sm:$0xff]
    %v936 = vld [vmem:[#allocation5 + $0x6d0] sm:$0xff]
    %v937 = vld [vmem:[#allocation5 + $0x6d8] sm:$0xff]
    %v938 = vld [vmem:[#allocation5 + $0x6e0] sm:$0xff]
    %v939 = vld [vmem:[#allocation5 + $0x6e8] sm:$0xff]
    %v940 = vld [vmem:[#allocation5 + $0x6f0] sm:$0xff]
    %v941 = vld [vmem:[#allocation5 + $0x6f8] sm:$0xff]
    %v942 = vld [vmem:[#allocation5 + $0x700] sm:$0xff]
    %v943 = vld [vmem:[#allocation5 + $0x708] sm:$0xff]
    %v944 = vld [vmem:[#allocation5 + $0x710] sm:$0xff]
    %v945 = vld [vmem:[#allocation5 + $0x718] sm:$0xff]
    %v946 = vld [vmem:[#allocation5 + $0x720] sm:$0xff]
    %v947 = vld [vmem:[#allocation5 + $0x728] sm:$0xff]
    %v948 = vld [vmem:[#allocation5 + $0x730] sm:$0xff]
    %v949 = vld [vmem:[#allocation5 + $0x738] sm:$0xff]
    %v950 = vld [vmem:[#allocation5 + $0x740] sm:$0xff]
    %v951 = vld [vmem:[#allocation5 + $0x748] sm:$0xff]
    %v952 = vld [vmem:[#allocation5 + $0x750] sm:$0xff]
    %v953 = vld [vmem:[#allocation5 + $0x758] sm:$0xff]
    %v954 = vld [vmem:[#allocation5 + $0x760] sm:$0xff]
    %v955 = vld [vmem:[#allocation5 + $0x768] sm:$0xff]
    %v956 = vld [vmem:[#allocation5 + $0x770] sm:$0xff]
    %v957 = vld [vmem:[#allocation5 + $0x778] sm:$0xff]
    %v958 = vld [vmem:[#allocation5 + $0x780] sm:$0xff]
    %v959 = vld [vmem:[#allocation5 + $0x788] sm:$0xff]
    %v960 = vld [vmem:[#allocation5 + $0x790] sm:$0xff]
    %v961 = vld [vmem:[#allocation5 + $0x798] sm:$0xff]
    %v962 = vld [vmem:[#allocation5 + $0x7a0] sm:$0xff]
    %v963 = vld [vmem:[#allocation5 + $0x7a8] sm:$0xff]
    %v964 = vld [vmem:[#allocation5 + $0x7b0] sm:$0xff]
    %v965 = vld [vmem:[#allocation5 + $0x7b8] sm:$0xff]
    %v966 = vld [vmem:[#allocation5 + $0x7c0] sm:$0xff]
    %v967 = vld [vmem:[#allocation5 + $0x7c8] sm:$0xff]
    %v968 = vld [vmem:[#allocation5 + $0x7d0] sm:$0xff]
    %v969 = vld [vmem:[#allocation5 + $0x7d8] sm:$0xff]
    %v970 = vld [vmem:[#allocation5 + $0x7e0] sm:$0xff]
    %v971 = vld [vmem:[#allocation5 + $0x7e8] sm:$0xff]
    %v972 = vld [vmem:[#allocation5 + $0x7f0] sm:$0xff]
    %v973 = vld [vmem:[#allocation5 + $0x7f8] sm:$0xff]
    %v974 = vld [vmem:[#allocation5 + $0x800] sm:$0xff]
    %v975 = vld [vmem:[#allocation5 + $0x808] sm:$0xff]
    %v976 = vld [vmem:[#allocation5 + $0x810] sm:$0xff]
    %v977 = vld [vmem:[#allocation5 + $0x818] sm:$0xff]
    %v978 = vld [vmem:[#allocation5 + $0x820] sm:$0xff]
    %v979 = vld [vmem:[#allocation5 + $0x828] sm:$0xff]
    %v980 = vld [vmem:[#allocation5 + $0x830] sm:$0xff]
    %v981 = vld [vmem:[#allocation5 + $0x838] sm:$0xff]
    %v982 = vld [vmem:[#allocation5 + $0x840] sm:$0xff]
    %v983 = vld [vmem:[#allocation5 + $0x848] sm:$0xff]
    %v984 = vld [vmem:[#allocation5 + $0x850] sm:$0xff]
    %v985 = vld [vmem:[#allocation5 + $0x858] sm:$0xff]
    %v986 = vld [vmem:[#allocation5 + $0x860] sm:$0xff]
    %v987 = vld [vmem:[#allocation5 + $0x868] sm:$0xff]
    %v988 = vld [vmem:[#allocation5 + $0x870] sm:$0xff]
    %v989 = vld [vmem:[#allocation5 + $0x878] sm:$0xff]
    %v990 = vld [vmem:[#allocation5 + $0x880] sm:$0xff]
    %v991 = vld [vmem:[#allocation5 + $0x888] sm:$0xff]
    %v992 = vld [vmem:[#allocation5 + $0x890] sm:$0xff]
    %v993 = vld [vmem:[#allocation5 + $0x898] sm:$0xff]
    %v994 = vld [vmem:[#allocation5 + $0x8a0] sm:$0xff]
    %v995 = vld [vmem:[#allocation5 + $0x8a8] sm:$0xff]
    %v996 = vld [vmem:[#allocation5 + $0x8b0] sm:$0xff]
    %v997 = vld [vmem:[#allocation5 + $0x8b8] sm:$0xff]
    %v998 = vld [vmem:[#allocation5 + $0x8c0] sm:$0xff]
    %v999 = vld [vmem:[#allocation5 + $0x8c8] sm:$0xff]
    %v1000 = vld [vmem:[#allocation5 + $0x8d0] sm:$0xff]
    %v1001 = vld [vmem:[#allocation5 + $0x8d8] sm:$0xff]
    %v1002 = vld [vmem:[#allocation5 + $0x8e0] sm:$0xff]
    %v1003 = vld [vmem:[#allocation5 + $0x8e8] sm:$0xff]
    %v1004 = vld [vmem:[#allocation5 + $0x8f0] sm:$0xff]
    %v1005 = vld [vmem:[#allocation5 + $0x8f8] sm:$0xff]
    %v1006 = vld [vmem:[#allocation5 + $0x900] sm:$0xff]
    %v1007 = vld [vmem:[#allocation5 + $0x908] sm:$0xff]
    %v1008 = vld [vmem:[#allocation5 + $0x910] sm:$0xff]
    %v1009 = vld [vmem:[#allocation5 + $0x918] sm:$0xff]
    %v1010 = vld [vmem:[#allocation5 + $0x920] sm:$0xff]
    %v1011 = vld [vmem:[#allocation5 + $0x928] sm:$0xff]
    %v1012 = vld [vmem:[#allocation5 + $0x930] sm:$0xff]
    %v1013 = vld [vmem:[#allocation5 + $0x938] sm:$0xff]
    %v1014 = vld [vmem:[#allocation5 + $0x940] sm:$0xff]
    %v1015 = vld [vmem:[#allocation5 + $0x948] sm:$0xff]
    %v1016 = vld [vmem:[#allocation5 + $0x950] sm:$0xff]
    %v1017 = vld [vmem:[#allocation5 + $0x958] sm:$0xff]
    %v1018 = vld [vmem:[#allocation5 + $0x960] sm:$0xff]
    %v1019 = vld [vmem:[#allocation5 + $0x968] sm:$0xff]
    %v1020 = vld [vmem:[#allocation5 + $0x970] sm:$0xff]
    %v1021 = vld [vmem:[#allocation5 + $0x978] sm:$0xff]
    %v1022 = vld [vmem:[#allocation5 + $0x980] sm:$0xff]
    %v1023 = vld [vmem:[#allocation5 + $0x988] sm:$0xff]
    %v1024 = vld [vmem:[#allocation5 + $0x990] sm:$0xff]
    %v1025 = vld [vmem:[#allocation5 + $0x998] sm:$0xff]
    %v1026 = vld [vmem:[#allocation5 + $0x9a0] sm:$0xff]
    %v1027 = vld [vmem:[#allocation5 + $0x9a8] sm:$0xff]
    %v1028 = vld [vmem:[#allocation5 + $0x9b0] sm:$0xff]
    %v1029 = vld [vmem:[#allocation5 + $0x9b8] sm:$0xff]
    %v1030 = vld [vmem:[#allocation5 + $0x9c0] sm:$0xff]
    %v1031 = vld [vmem:[#allocation5 + $0x9c8] sm:$0xff]
    %v1032 = vld [vmem:[#allocation5 + $0x9d0] sm:$0xff]
    %v1033 = vld [vmem:[#allocation5 + $0x9d8] sm:$0xff]
    %v1034 = vld [vmem:[#allocation5 + $0x9e0] sm:$0xff]
    %v1035 = vld [vmem:[#allocation5 + $0x9e8] sm:$0xff]
    %v1036 = vld [vmem:[#allocation5 + $0x9f0] sm:$0xff]
    %v1037 = vld [vmem:[#allocation5 + $0x9f8] sm:$0xff]
    %v1038 = vld [vmem:[#allocation5 + $0xa00] sm:$0xff]
    %v1039 = vld [vmem:[#allocation5 + $0xa08] sm:$0xff]
    %v1040 = vld [vmem:[#allocation5 + $0xa10] sm:$0xff]
    %v1041 = vld [vmem:[#allocation5 + $0xa18] sm:$0xff]
    %v1042 = vld [vmem:[#allocation5 + $0xa20] sm:$0xff]
    %v1043 = vld [vmem:[#allocation5 + $0xa28] sm:$0xff]
    %v1044 = vld [vmem:[#allocation5 + $0xa30] sm:$0xff]
    %v1045 = vld [vmem:[#allocation5 + $0xa38] sm:$0xff]
    %v1046 = vld [vmem:[#allocation5 + $0xa40] sm:$0xff]
    %v1047 = vld [vmem:[#allocation5 + $0xa48] sm:$0xff]
    %v1048 = vld [vmem:[#allocation5 + $0xa50] sm:$0xff]
    %v1049 = vld [vmem:[#allocation5 + $0xa58] sm:$0xff]
    %v1050 = vld [vmem:[#allocation5 + $0xa60] sm:$0xff]
    %v1051 = vld [vmem:[#allocation5 + $0xa68] sm:$0xff]
    %v1052 = vld [vmem:[#allocation5 + $0xa70] sm:$0xff]
    %v1053 = vld [vmem:[#allocation5 + $0xa78] sm:$0xff]
    %v1054 = vld [vmem:[#allocation5 + $0xa80] sm:$0xff]
    %v1055 = vld [vmem:[#allocation5 + $0xa88] sm:$0xff]
    %v1056 = vld [vmem:[#allocation5 + $0xa90] sm:$0xff]
    %v1057 = vld [vmem:[#allocation5 + $0xa98] sm:$0xff]
    %v1058 = vld [vmem:[#allocation5 + $0xaa0] sm:$0xff]
    %v1059 = vld [vmem:[#allocation5 + $0xaa8] sm:$0xff]
    %v1060 = vld [vmem:[#allocation5 + $0xab0] sm:$0xff]
    %v1061 = vld [vmem:[#allocation5 + $0xab8] sm:$0xff]
    %v1062 = vld [vmem:[#allocation5 + $0xac0] sm:$0xff]
    %v1063 = vld [vmem:[#allocation5 + $0xac8] sm:$0xff]
    %v1064 = vld [vmem:[#allocation5 + $0xad0] sm:$0xff]
    %v1065 = vld [vmem:[#allocation5 + $0xad8] sm:$0xff]
    %v1066 = vld [vmem:[#allocation5 + $0xae0] sm:$0xff]
    %v1067 = vld [vmem:[#allocation5 + $0xae8] sm:$0xff]
    %v1068 = vld [vmem:[#allocation5 + $0xaf0] sm:$0xff]
    %v1069 = vld [vmem:[#allocation5 + $0xaf8] sm:$0xff]
    %v1070 = vld [vmem:[#allocation5 + $0xb00] sm:$0xff]
    %v1071 = vld [vmem:[#allocation5 + $0xb08] sm:$0xff]
    %v1072 = vld [vmem:[#allocation5 + $0xb10] sm:$0xff]
    %v1073 = vld [vmem:[#allocation5 + $0xb18] sm:$0xff]
    %v1074 = vld [vmem:[#allocation5 + $0xb20] sm:$0xff]
    %v1075 = vld [vmem:[#allocation5 + $0xb28] sm:$0xff]
    %v1076 = vld [vmem:[#allocation5 + $0xb30] sm:$0xff]
    %v1077 = vld [vmem:[#allocation5 + $0xb38] sm:$0xff]
    %v1078 = vld [vmem:[#allocation5 + $0xb40] sm:$0xff]
    %v1079 = vld [vmem:[#allocation5 + $0xb48] sm:$0xff]
    %v1080 = vld [vmem:[#allocation5 + $0xb50] sm:$0xff]
    %v1081 = vld [vmem:[#allocation5 + $0xb58] sm:$0xff]
    %v1082 = vld [vmem:[#allocation5 + $0xb60] sm:$0xff]
    %v1083 = vld [vmem:[#allocation5 + $0xb68] sm:$0xff]
    %v1084 = vld [vmem:[#allocation5 + $0xb70] sm:$0xff]
    %v1085 = vld [vmem:[#allocation5 + $0xb78] sm:$0xff]
    %v1086 = vld [vmem:[#allocation5 + $0xb80] sm:$0xff]
    %v1087 = vld [vmem:[#allocation5 + $0xb88] sm:$0xff]
    %v1088 = vld [vmem:[#allocation5 + $0xb90] sm:$0xff]
    %v1089 = vld [vmem:[#allocation5 + $0xb98] sm:$0xff]
    %v1090 = vld [vmem:[#allocation5 + $0xba0] sm:$0xff]
    %v1091 = vld [vmem:[#allocation5 + $0xba8] sm:$0xff]
    %v1092 = vld [vmem:[#allocation5 + $0xbb0] sm:$0xff]
    %v1093 = vld [vmem:[#allocation5 + $0xbb8] sm:$0xff]
    %v1094 = vld [vmem:[#allocation5 + $0xbc0] sm:$0xff]
    %v1095 = vld [vmem:[#allocation5 + $0xbc8] sm:$0xff]
    %v1096 = vld [vmem:[#allocation5 + $0xbd0] sm:$0xff]
    %v1097 = vld [vmem:[#allocation5 + $0xbd8] sm:$0xff]
    %v1098 = vld [vmem:[#allocation5 + $0xbe0] sm:$0xff]
    %v1099 = vld [vmem:[#allocation5 + $0xbe8] sm:$0xff]
    %v1100 = vld [vmem:[#allocation5 + $0xbf0] sm:$0xff]
    %v1101 = vld [vmem:[#allocation5 + $0xbf8] sm:$0xff]
    %v1102 = vld [vmem:[#allocation5 + $0xc00] sm:$0xff]
    %v1103 = vld [vmem:[#allocation5 + $0xc08] sm:$0xff]
    %v1104 = vld [vmem:[#allocation5 + $0xc10] sm:$0xff]
    %v1105 = vld [vmem:[#allocation5 + $0xc18] sm:$0xff]
    %v1106 = vld [vmem:[#allocation5 + $0xc20] sm:$0xff]
    %v1107 = vld [vmem:[#allocation5 + $0xc28] sm:$0xff]
    %v1108 = vld [vmem:[#allocation5 + $0xc30] sm:$0xff]
    %v1109 = vld [vmem:[#allocation5 + $0xc38] sm:$0xff]
    %v1110 = vld [vmem:[#allocation5 + $0xc40] sm:$0xff]
    %v1111 = vld [vmem:[#allocation5 + $0xc48] sm:$0xff]
    %v1112 = vld [vmem:[#allocation5 + $0xc50] sm:$0xff]
    %v1113 = vld [vmem:[#allocation5 + $0xc58] sm:$0xff]
    %v1114 = vld [vmem:[#allocation5 + $0xc60] sm:$0xff]
    %v1115 = vld [vmem:[#allocation5 + $0xc68] sm:$0xff]
    %v1116 = vld [vmem:[#allocation5 + $0xc70] sm:$0xff]
    %v1117 = vld [vmem:[#allocation5 + $0xc78] sm:$0xff]
    %v1118 = vld [vmem:[#allocation5 + $0xc80] sm:$0xff]
    %v1119 = vld [vmem:[#allocation5 + $0xc88] sm:$0xff]
    %v1120 = vld [vmem:[#allocation5 + $0xc90] sm:$0xff]
    %v1121 = vld [vmem:[#allocation5 + $0xc98] sm:$0xff]
    %v1122 = vld [vmem:[#allocation5 + $0xca0] sm:$0xff]
    %v1123 = vld [vmem:[#allocation5 + $0xca8] sm:$0xff]
    %v1124 = vld [vmem:[#allocation5 + $0xcb0] sm:$0xff]
    %v1125 = vld [vmem:[#allocation5 + $0xcb8] sm:$0xff]
    %v1126 = vld [vmem:[#allocation5 + $0xcc0] sm:$0xff]
    %v1127 = vld [vmem:[#allocation5 + $0xcc8] sm:$0xff]
    %v1128 = vld [vmem:[#allocation5 + $0xcd0] sm:$0xff]
    %v1129 = vld [vmem:[#allocation5 + $0xcd8] sm:$0xff]
    %v1130 = vld [vmem:[#allocation5 + $0xce0] sm:$0xff]
    %v1131 = vld [vmem:[#allocation5 + $0xce8] sm:$0xff]
    %v1132 = vld [vmem:[#allocation5 + $0xcf0] sm:$0xff]
    %v1133 = vld [vmem:[#allocation5 + $0xcf8] sm:$0xff]
    %v1134 = vld [vmem:[#allocation5 + $0xd00] sm:$0xff]
    %v1135 = vld [vmem:[#allocation5 + $0xd08] sm:$0xff]
    %v1136 = vld [vmem:[#allocation5 + $0xd10] sm:$0xff]
    %v1137 = vld [vmem:[#allocation5 + $0xd18] sm:$0xff]
    %v1138 = vld [vmem:[#allocation5 + $0xd20] sm:$0xff]
    %v1139 = vld [vmem:[#allocation5 + $0xd28] sm:$0xff]
    %v1140 = vld [vmem:[#allocation5 + $0xd30] sm:$0xff]
    %v1141 = vld [vmem:[#allocation5 + $0xd38] sm:$0xff]
    %v1142 = vld [vmem:[#allocation5 + $0xd40] sm:$0xff]
    %v1143 = vld [vmem:[#allocation5 + $0xd48] sm:$0xff]
    %v1144 = vld [vmem:[#allocation5 + $0xd50] sm:$0xff]
    %v1145 = vld [vmem:[#allocation5 + $0xd58] sm:$0xff]
    %v1146 = vld [vmem:[#allocation5 + $0xd60] sm:$0xff]
    %v1147 = vld [vmem:[#allocation5 + $0xd68] sm:$0xff]
    %v1148 = vld [vmem:[#allocation5 + $0xd70] sm:$0xff]
    %v1149 = vld [vmem:[#allocation5 + $0xd78] sm:$0xff]
    %v1150 = vld [vmem:[#allocation5 + $0xd80] sm:$0xff]
    %v1151 = vld [vmem:[#allocation5 + $0xd88] sm:$0xff]
    %v1152 = vld [vmem:[#allocation5 + $0xd90] sm:$0xff]
    %v1153 = vld [vmem:[#allocation5 + $0xd98] sm:$0xff]
    %v1154 = vld [vmem:[#allocation5 + $0xda0] sm:$0xff]
    %v1155 = vld [vmem:[#allocation5 + $0xda8] sm:$0xff]
    %v1156 = vld [vmem:[#allocation5 + $0xdb0] sm:$0xff]
    %v1157 = vld [vmem:[#allocation5 + $0xdb8] sm:$0xff]
    %v1158 = vld [vmem:[#allocation5 + $0xdc0] sm:$0xff]
    %v1159 = vld [vmem:[#allocation5 + $0xdc8] sm:$0xff]
    %v1160 = vld [vmem:[#allocation5 + $0xdd0] sm:$0xff]
    %v1161 = vld [vmem:[#allocation5 + $0xdd8] sm:$0xff]
    %v1162 = vld [vmem:[#allocation5 + $0xde0] sm:$0xff]
    %v1163 = vld [vmem:[#allocation5 + $0xde8] sm:$0xff]
    %v1164 = vld [vmem:[#allocation5 + $0xdf0] sm:$0xff]
    %v1165 = vld [vmem:[#allocation5 + $0xdf8] sm:$0xff]
    %v1166 = vld [vmem:[#allocation5 + $0xe00] sm:$0xff]
    %v1167 = vld [vmem:[#allocation5 + $0xe08] sm:$0xff]
    %v1168 = vld [vmem:[#allocation5 + $0xe10] sm:$0xff]
    %v1169 = vld [vmem:[#allocation5 + $0xe18] sm:$0xff]
    %v1170 = vld [vmem:[#allocation5 + $0xe20] sm:$0xff]
    %v1171 = vld [vmem:[#allocation5 + $0xe28] sm:$0xff]
    %v1172 = vld [vmem:[#allocation5 + $0xe30] sm:$0xff]
    %v1173 = vld [vmem:[#allocation5 + $0xe38] sm:$0xff]
    %v1174 = vld [vmem:[#allocation5 + $0xe40] sm:$0xff]
    %v1175 = vld [vmem:[#allocation5 + $0xe48] sm:$0xff]
    %v1176 = vld [vmem:[#allocation5 + $0xe50] sm:$0xff]
    %v1177 = vld [vmem:[#allocation5 + $0xe58] sm:$0xff]
    %v1178 = vld [vmem:[#allocation5 + $0xe60] sm:$0xff]
    %v1179 = vld [vmem:[#allocation5 + $0xe68] sm:$0xff]
    %v1180 = vld [vmem:[#allocation5 + $0xe70] sm:$0xff]
    %v1181 = vld [vmem:[#allocation5 + $0xe78] sm:$0xff]
    %v1182 = vld [vmem:[#allocation5 + $0xe80] sm:$0xff]
    %v1183 = vld [vmem:[#allocation5 + $0xe88] sm:$0xff]
    %v1184 = vld [vmem:[#allocation5 + $0xe90] sm:$0xff]
    %v1185 = vld [vmem:[#allocation5 + $0xe98] sm:$0xff]
    %v1186 = vld [vmem:[#allocation5 + $0xea0] sm:$0xff]
    %v1187 = vld [vmem:[#allocation5 + $0xea8] sm:$0xff]
    %v1188 = vld [vmem:[#allocation5 + $0xeb0] sm:$0xff]
    %v1189 = vld [vmem:[#allocation5 + $0xeb8] sm:$0xff]
    %v1190 = vld [vmem:[#allocation5 + $0xec0] sm:$0xff]
    %v1191 = vld [vmem:[#allocation5 + $0xec8] sm:$0xff]
    %v1192 = vld [vmem:[#allocation5 + $0xed0] sm:$0xff]
    %v1193 = vld [vmem:[#allocation5 + $0xed8] sm:$0xff]
    %v1194 = vld [vmem:[#allocation5 + $0xee0] sm:$0xff]
    %v1195 = vld [vmem:[#allocation5 + $0xee8] sm:$0xff]
    %v1196 = vld [vmem:[#allocation5 + $0xef0] sm:$0xff]
    %v1197 = vld [vmem:[#allocation5 + $0xef8] sm:$0xff]
    %v1198 = vld [vmem:[#allocation5 + $0xf00] sm:$0xff]
    %v1199 = vld [vmem:[#allocation5 + $0xf08] sm:$0xff]
    %v1200 = vld [vmem:[#allocation5 + $0xf10] sm:$0xff]
    %v1201 = vld [vmem:[#allocation5 + $0xf18] sm:$0xff]
    %v1202 = vld [vmem:[#allocation5 + $0xf20] sm:$0xff]
    %v1203 = vld [vmem:[#allocation5 + $0xf28] sm:$0xff]
    %v1204 = vld [vmem:[#allocation5 + $0xf30] sm:$0xff]
    %v1205 = vld [vmem:[#allocation5 + $0xf38] sm:$0xff]
    %v1206 = vld [vmem:[#allocation5 + $0xf40] sm:$0xff]
    %v1207 = vld [vmem:[#allocation5 + $0xf48] sm:$0xff]
    %v1208 = vld [vmem:[#allocation5 + $0xf50] sm:$0xff]
    %v1209 = vld [vmem:[#allocation5 + $0xf58] sm:$0xff]
    %v1210 = vld [vmem:[#allocation5 + $0xf60] sm:$0xff]
    %v1211 = vld [vmem:[#allocation5 + $0xf68] sm:$0xff]
    %v1212 = vld [vmem:[#allocation5 + $0xf70] sm:$0xff]
    %v1213 = vld [vmem:[#allocation5 + $0xf78] sm:$0xff]
    %v1214 = vld [vmem:[#allocation5 + $0xf80] sm:$0xff]
    %v1215 = vld [vmem:[#allocation5 + $0xf88] sm:$0xff]
    %v1216 = vld [vmem:[#allocation5 + $0xf90] sm:$0xff]
    %v1217 = vld [vmem:[#allocation5 + $0xf98] sm:$0xff]
    %v1218 = vld [vmem:[#allocation5 + $0xfa0] sm:$0xff]
    %v1219 = vld [vmem:[#allocation5 + $0xfa8] sm:$0xff]
    %v1220 = vld [vmem:[#allocation5 + $0xfb0] sm:$0xff]
    %v1221 = vld [vmem:[#allocation5 + $0xfb8] sm:$0xff]
    %v1222 = vld [vmem:[#allocation5 + $0xfc0] sm:$0xff]
    %v1223 = vld [vmem:[#allocation5 + $0xfc8] sm:$0xff]
    %v1224 = vld [vmem:[#allocation5 + $0xfd0] sm:$0xff]
    %v1225 = vld [vmem:[#allocation5 + $0xfd8] sm:$0xff]
    %v1226 = vld [vmem:[#allocation5 + $0xfe0] sm:$0xff]
    %v1227 = vld [vmem:[#allocation5 + $0xfe8] sm:$0xff]
    %v1228 = vld [vmem:[#allocation5 + $0xff0] sm:$0xff]
    %v1229 = vld [vmem:[#allocation5 + $0xff8] sm:$0xff]
    %v1230 = vld [vmem:[#allocation5 + $0x1000] sm:$0xff]
    %v1231 = vld [vmem:[#allocation5 + $0x1008] sm:$0xff]
    %v1232 = vld [vmem:[#allocation5 + $0x1010] sm:$0xff]
    %v1233 = vld [vmem:[#allocation5 + $0x1018] sm:$0xff]
    %v1234 = vld [vmem:[#allocation5 + $0x1020] sm:$0xff]
    %v1235 = vld [vmem:[#allocation5 + $0x1028] sm:$0xff]
    %v1236 = vld [vmem:[#allocation5 + $0x1030] sm:$0xff]
    %v1237 = vld [vmem:[#allocation5 + $0x1038] sm:$0xff]
    %v1238 = vld [vmem:[#allocation5 + $0x1040] sm:$0xff]
    %v1239 = vld [vmem:[#allocation5 + $0x1048] sm:$0xff]
    %v1240 = vld [vmem:[#allocation5 + $0x1050] sm:$0xff]
    %v1241 = vld [vmem:[#allocation5 + $0x1058] sm:$0xff]
    %v1242 = vld [vmem:[#allocation5 + $0x1060] sm:$0xff]
    %v1243 = vld [vmem:[#allocation5 + $0x1068] sm:$0xff]
    %v1244 = vld [vmem:[#allocation5 + $0x1070] sm:$0xff]
    %v1245 = vld [vmem:[#allocation5 + $0x1078] sm:$0xff]
    %v1246 = vld [vmem:[#allocation5 + $0x1080] sm:$0xff]
    %v1247 = vld [vmem:[#allocation5 + $0x1088] sm:$0xff]
    %v1248 = vld [vmem:[#allocation5 + $0x1090] sm:$0xff]
    %v1249 = vld [vmem:[#allocation5 + $0x1098] sm:$0xff]
    %v1250 = vld [vmem:[#allocation5 + $0x10a0] sm:$0xff]
    %v1251 = vld [vmem:[#allocation5 + $0x10a8] sm:$0xff]
    %v1252 = vld [vmem:[#allocation5 + $0x10b0] sm:$0xff]
    %v1253 = vld [vmem:[#allocation5 + $0x10b8] sm:$0xff]
    %v1254 = vld [vmem:[#allocation5 + $0x10c0] sm:$0xff]
    %v1255 = vld [vmem:[#allocation5 + $0x10c8] sm:$0xff]
    %v1256 = vld [vmem:[#allocation5 + $0x10d0] sm:$0xff]
    %v1257 = vld [vmem:[#allocation5 + $0x10d8] sm:$0xff]
    %v1258 = vld [vmem:[#allocation5 + $0x10e0] sm:$0xff]
    %v1259 = vld [vmem:[#allocation5 + $0x10e8] sm:$0xff]
    %v1260 = vld [vmem:[#allocation5 + $0x10f0] sm:$0xff]
    %v1261 = vld [vmem:[#allocation5 + $0x10f8] sm:$0xff]
    %v1262 = vld [vmem:[#allocation5 + $0x1100] sm:$0xff]
    %v1263 = vld [vmem:[#allocation5 + $0x1108] sm:$0xff]
    %v1264 = vld [vmem:[#allocation5 + $0x1110] sm:$0xff]
    %v1265 = vld [vmem:[#allocation5 + $0x1118] sm:$0xff]
    %v1266 = vld [vmem:[#allocation5 + $0x1120] sm:$0xff]
    %v1267 = vld [vmem:[#allocation5 + $0x1128] sm:$0xff]
    %v1268 = vld [vmem:[#allocation5 + $0x1130] sm:$0xff]
    %v1269 = vld [vmem:[#allocation5 + $0x1138] sm:$0xff]
    %v1270 = vld [vmem:[#allocation5 + $0x1140] sm:$0xff]
    %v1271 = vld [vmem:[#allocation5 + $0x1148] sm:$0xff]
    %v1272 = vld [vmem:[#allocation5 + $0x1150] sm:$0xff]
    %v1273 = vld [vmem:[#allocation5 + $0x1158] sm:$0xff]
    %v1274 = vld [vmem:[#allocation5 + $0x1160] sm:$0xff]
    %v1275 = vld [vmem:[#allocation5 + $0x1168] sm:$0xff]
    %v1276 = vld [vmem:[#allocation5 + $0x1170] sm:$0xff]
    %v1277 = vld [vmem:[#allocation5 + $0x1178] sm:$0xff]
    %v1278 = vld [vmem:[#allocation5 + $0x1180] sm:$0xff]
    %v1279 = vld [vmem:[#allocation5 + $0x1188] sm:$0xff]
    %v1280 = vld [vmem:[#allocation5 + $0x1190] sm:$0xff]
    %v1281 = vld [vmem:[#allocation5 + $0x1198] sm:$0xff]
    %v1282 = vld [vmem:[#allocation5 + $0x11a0] sm:$0xff]
    %v1283 = vld [vmem:[#allocation5 + $0x11a8] sm:$0xff]
    %v1284 = vld [vmem:[#allocation5 + $0x11b0] sm:$0xff]
    %v1285 = vld [vmem:[#allocation5 + $0x11b8] sm:$0xff]
    %v1286 = vld [vmem:[#allocation5 + $0x11c0] sm:$0xff]
    %v1287 = vld [vmem:[#allocation5 + $0x11c8] sm:$0xff]
    %v1288 = vld [vmem:[#allocation5 + $0x11d0] sm:$0xff]
    %v1289 = vld [vmem:[#allocation5 + $0x11d8] sm:$0xff]
    %v1290 = vld [vmem:[#allocation5 + $0x11e0] sm:$0xff]
    %v1291 = vld [vmem:[#allocation5 + $0x11e8] sm:$0xff]
    %v1292 = vld [vmem:[#allocation5 + $0x11f0] sm:$0xff]
    %v1293 = vld [vmem:[#allocation5 + $0x11f8] sm:$0xff]
    %v1294 = vld [vmem:[#allocation5 + $0x1200] sm:$0xff]
    %v1295 = vld [vmem:[#allocation5 + $0x1208] sm:$0xff]
    %v1296 = vld [vmem:[#allocation5 + $0x1210] sm:$0xff]
    %v1297 = vld [vmem:[#allocation5 + $0x1218] sm:$0xff]
    %v1298 = vld [vmem:[#allocation5 + $0x1220] sm:$0xff]
    %v1299 = vld [vmem:[#allocation5 + $0x1228] sm:$0xff]
    %v1300 = vld [vmem:[#allocation5 + $0x1230] sm:$0xff]
    %v1301 = vld [vmem:[#allocation5 + $0x1238] sm:$0xff]
    %v1302 = vld [vmem:[#allocation5 + $0x1240] sm:$0xff]
    %v1303 = vld [vmem:[#allocation5 + $0x1248] sm:$0xff]
    %v1304 = vld [vmem:[#allocation5 + $0x1250] sm:$0xff]
    %v1305 = vld [vmem:[#allocation5 + $0x1258] sm:$0xff]
    %v1306 = vld [vmem:[#allocation5 + $0x1260] sm:$0xff]
    %v1307 = vld [vmem:[#allocation5 + $0x1268] sm:$0xff]
    %v1308 = vld [vmem:[#allocation5 + $0x1270] sm:$0xff]
    %v1309 = vld [vmem:[#allocation5 + $0x1278] sm:$0xff]
    %v1310 = vld [vmem:[#allocation5 + $0x1280] sm:$0xff]
    %v1311 = vld [vmem:[#allocation5 + $0x1288] sm:$0xff]
    %v1312 = vld [vmem:[#allocation5 + $0x1290] sm:$0xff]
    %v1313 = vld [vmem:[#allocation5 + $0x1298] sm:$0xff]
    %v1314 = vld [vmem:[#allocation5 + $0x12a0] sm:$0xff]
    %v1315 = vld [vmem:[#allocation5 + $0x12a8] sm:$0xff]
    %v1316 = vld [vmem:[#allocation5 + $0x12b0] sm:$0xff]
    %v1317 = vld [vmem:[#allocation5 + $0x12b8] sm:$0xff]
    %v1318 = vld [vmem:[#allocation5 + $0x12c0] sm:$0xff]
    %v1319 = vld [vmem:[#allocation5 + $0x12c8] sm:$0xff]
    %v1320 = vld [vmem:[#allocation5 + $0x12d0] sm:$0xff]
    %v1321 = vld [vmem:[#allocation5 + $0x12d8] sm:$0xff]
    %v1322 = vld [vmem:[#allocation5 + $0x12e0] sm:$0xff]
    %v1323 = vld [vmem:[#allocation5 + $0x12e8] sm:$0xff]
    %v1324 = vld [vmem:[#allocation5 + $0x12f0] sm:$0xff]
    %v1325 = vld [vmem:[#allocation5 + $0x12f8] sm:$0xff]
    %v1326 = vld [vmem:[#allocation5 + $0x1300] sm:$0xff]
    %v1327 = vld [vmem:[#allocation5 + $0x1308] sm:$0xff]
    %v1328 = vld [vmem:[#allocation5 + $0x1310] sm:$0xff]
    %v1329 = vld [vmem:[#allocation5 + $0x1318] sm:$0xff]
    %v1330 = vld [vmem:[#allocation5 + $0x1320] sm:$0xff]
    %v1331 = vld [vmem:[#allocation5 + $0x1328] sm:$0xff]
    %v1332 = vld [vmem:[#allocation5 + $0x1330] sm:$0xff]
    %v1333 = vld [vmem:[#allocation5 + $0x1338] sm:$0xff]
    %v1334 = vld [vmem:[#allocation5 + $0x1340] sm:$0xff]
    %v1335 = vld [vmem:[#allocation5 + $0x1348] sm:$0xff]
    %v1336 = vld [vmem:[#allocation5 + $0x1350] sm:$0xff]
    %v1337 = vld [vmem:[#allocation5 + $0x1358] sm:$0xff]
    %v1338 = vld [vmem:[#allocation5 + $0x1360] sm:$0xff]
    %v1339 = vld [vmem:[#allocation5 + $0x1368] sm:$0xff]
    %v1340 = vld [vmem:[#allocation5 + $0x1370] sm:$0xff]
    %v1341 = vld [vmem:[#allocation5 + $0x1378] sm:$0xff]
    %v1342 = vld [vmem:[#allocation5 + $0x1380] sm:$0xff]
    %v1343 = vld [vmem:[#allocation5 + $0x1388] sm:$0xff]
    %v1344 = vld [vmem:[#allocation5 + $0x1390] sm:$0xff]
    %v1345 = vld [vmem:[#allocation5 + $0x1398] sm:$0xff]
    %v1346 = vld [vmem:[#allocation5 + $0x13a0] sm:$0xff]
    %v1347 = vld [vmem:[#allocation5 + $0x13a8] sm:$0xff]
    %v1348 = vld [vmem:[#allocation5 + $0x13b0] sm:$0xff]
    %v1349 = vld [vmem:[#allocation5 + $0x13b8] sm:$0xff]
    %v1350 = vld [vmem:[#allocation5 + $0x13c0] sm:$0xff]
    %v1351 = vld [vmem:[#allocation5 + $0x13c8] sm:$0xff]
    %v1352 = vld [vmem:[#allocation5 + $0x13d0] sm:$0xff]
    %v1353 = vld [vmem:[#allocation5 + $0x13d8] sm:$0xff]
    %v1354 = vld [vmem:[#allocation5 + $0x13e0] sm:$0xff]
    %v1355 = vld [vmem:[#allocation5 + $0x13e8] sm:$0xff]
    %v1356 = vld [vmem:[#allocation5 + $0x13f0] sm:$0xff]
    %v1357 = vld [vmem:[#allocation5 + $0x13f8] sm:$0xff]
    %v1358 = vld [vmem:[#allocation5 + $0x1400] sm:$0xff]
    %v1359 = vld [vmem:[#allocation5 + $0x1408] sm:$0xff]
    %v1360 = vld [vmem:[#allocation5 + $0x1410] sm:$0xff]
    %v1361 = vld [vmem:[#allocation5 + $0x1418] sm:$0xff]
    %v1362 = vld [vmem:[#allocation5 + $0x1420] sm:$0xff]
    %v1363 = vld [vmem:[#allocation5 + $0x1428] sm:$0xff]
    %v1364 = vld [vmem:[#allocation5 + $0x1430] sm:$0xff]
    %v1365 = vld [vmem:[#allocation5 + $0x1438] sm:$0xff]
    %v1366 = vld [vmem:[#allocation5 + $0x1440] sm:$0xff]
    %v1367 = vld [vmem:[#allocation5 + $0x1448] sm:$0xff]
    %v1368 = vld [vmem:[#allocation5 + $0x1450] sm:$0xff]
    %v1369 = vld [vmem:[#allocation5 + $0x1458] sm:$0xff]
    %v1370 = vld [vmem:[#allocation5 + $0x1460] sm:$0xff]
    %v1371 = vld [vmem:[#allocation5 + $0x1468] sm:$0xff]
    %v1372 = vld [vmem:[#allocation5 + $0x1470] sm:$0xff]
    %v1373 = vld [vmem:[#allocation5 + $0x1478] sm:$0xff]
    %v1374 = vld [vmem:[#allocation5 + $0x1480] sm:$0xff]
    %v1375 = vld [vmem:[#allocation5 + $0x1488] sm:$0xff]
    %v1376 = vld [vmem:[#allocation5 + $0x1490] sm:$0xff]
    %v1377 = vld [vmem:[#allocation5 + $0x1498] sm:$0xff]
    %v1378 = vld [vmem:[#allocation5 + $0x14a0] sm:$0xff]
    %v1379 = vld [vmem:[#allocation5 + $0x14a8] sm:$0xff]
    %v1380 = vld [vmem:[#allocation5 + $0x14b0] sm:$0xff]
    %v1381 = vld [vmem:[#allocation5 + $0x14b8] sm:$0xff]
    %v1382 = vld [vmem:[#allocation5 + $0x14c0] sm:$0xff]
    %v1383 = vld [vmem:[#allocation5 + $0x14c8] sm:$0xff]
    %v1384 = vld [vmem:[#allocation5 + $0x14d0] sm:$0xff]
    %v1385 = vld [vmem:[#allocation5 + $0x14d8] sm:$0xff]
    %v1386 = vld [vmem:[#allocation5 + $0x14e0] sm:$0xff]
    %v1387 = vld [vmem:[#allocation5 + $0x14e8] sm:$0xff]
    %v1388 = vld [vmem:[#allocation5 + $0x14f0] sm:$0xff]
    %v1389 = vld [vmem:[#allocation5 + $0x14f8] sm:$0xff]
    %v1390 = vld [vmem:[#allocation5 + $0x1500] sm:$0xff]
    %v1391 = vld [vmem:[#allocation5 + $0x1508] sm:$0xff]
    %v1392 = vld [vmem:[#allocation5 + $0x1510] sm:$0xff]
    %v1393 = vld [vmem:[#allocation5 + $0x1518] sm:$0xff]
    %v1394 = vld [vmem:[#allocation5 + $0x1520] sm:$0xff]
    %v1395 = vld [vmem:[#allocation5 + $0x1528] sm:$0xff]
    %v1396 = vld [vmem:[#allocation5 + $0x1530] sm:$0xff]
    %v1397 = vld [vmem:[#allocation5 + $0x1538] sm:$0xff]
    %v1398 = vld [vmem:[#allocation5 + $0x1540] sm:$0xff]
    %v1399 = vld [vmem:[#allocation5 + $0x1548] sm:$0xff]
    %v1400 = vld [vmem:[#allocation5 + $0x1550] sm:$0xff]
    %v1401 = vld [vmem:[#allocation5 + $0x1558] sm:$0xff]
    %v1402 = vld [vmem:[#allocation5 + $0x1560] sm:$0xff]
    %v1403 = vld [vmem:[#allocation5 + $0x1568] sm:$0xff]
    %v1404 = vld [vmem:[#allocation5 + $0x1570] sm:$0xff]
    %v1405 = vld [vmem:[#allocation5 + $0x1578] sm:$0xff]
    %v1406 = vld [vmem:[#allocation5 + $0x1580] sm:$0xff]
    %v1407 = vld [vmem:[#allocation5 + $0x1588] sm:$0xff]
    %v1408 = vld [vmem:[#allocation5 + $0x1590] sm:$0xff]
    %v1409 = vld [vmem:[#allocation5 + $0x1598] sm:$0xff]
    %v1410 = vld [vmem:[#allocation5 + $0x15a0] sm:$0xff]
    %v1411 = vld [vmem:[#allocation5 + $0x15a8] sm:$0xff]
    %v1412 = vld [vmem:[#allocation5 + $0x15b0] sm:$0xff]
    %v1413 = vld [vmem:[#allocation5 + $0x15b8] sm:$0xff]
    %v1414 = vld [vmem:[#allocation5 + $0x15c0] sm:$0xff]
    %v1415 = vld [vmem:[#allocation5 + $0x15c8] sm:$0xff]
    %v1416 = vld [vmem:[#allocation5 + $0x15d0] sm:$0xff]
    %v1417 = vld [vmem:[#allocation5 + $0x15d8] sm:$0xff]
    %v1418 = vld [vmem:[#allocation5 + $0x15e0] sm:$0xff]
    %v1419 = vld [vmem:[#allocation5 + $0x15e8] sm:$0xff]
    %v1420 = vld [vmem:[#allocation5 + $0x15f0] sm:$0xff]
    %v1421 = vld [vmem:[#allocation5 + $0x15f8] sm:$0xff]
    %v1422 = vld [vmem:[#allocation5 + $0x1600] sm:$0xff]
    %v1423 = vld [vmem:[#allocation5 + $0x1608] sm:$0xff]
    %v1424 = vld [vmem:[#allocation5 + $0x1610] sm:$0xff]
    %v1425 = vld [vmem:[#allocation5 + $0x1618] sm:$0xff]
    %v1426 = vld [vmem:[#allocation5 + $0x1620] sm:$0xff]
    %v1427 = vld [vmem:[#allocation5 + $0x1628] sm:$0xff]
    %v1428 = vld [vmem:[#allocation5 + $0x1630] sm:$0xff]
    %v1429 = vld [vmem:[#allocation5 + $0x1638] sm:$0xff]
    %v1430 = vld [vmem:[#allocation5 + $0x1640] sm:$0xff]
    %v1431 = vld [vmem:[#allocation5 + $0x1648] sm:$0xff]
    %v1432 = vld [vmem:[#allocation5 + $0x1650] sm:$0xff]
    %v1433 = vld [vmem:[#allocation5 + $0x1658] sm:$0xff]
    %v1434 = vld [vmem:[#allocation5 + $0x1660] sm:$0xff]
    %v1435 = vld [vmem:[#allocation5 + $0x1668] sm:$0xff]
    %v1436 = vld [vmem:[#allocation5 + $0x1670] sm:$0xff]
    %v1437 = vld [vmem:[#allocation5 + $0x1678] sm:$0xff]
    %v1438 = vld [vmem:[#allocation5 + $0x1680] sm:$0xff]
    %v1439 = vld [vmem:[#allocation5 + $0x1688] sm:$0xff]
    %v1440 = vld [vmem:[#allocation5 + $0x1690] sm:$0xff]
    %v1441 = vld [vmem:[#allocation5 + $0x1698] sm:$0xff]
    %v1442 = vld [vmem:[#allocation5 + $0x16a0] sm:$0xff]
    %v1443 = vld [vmem:[#allocation5 + $0x16a8] sm:$0xff]
    %v1444 = vld [vmem:[#allocation5 + $0x16b0] sm:$0xff]
    %v1445 = vld [vmem:[#allocation5 + $0x16b8] sm:$0xff]
    %v1446 = vld [vmem:[#allocation5 + $0x16c0] sm:$0xff]
    %v1447 = vld [vmem:[#allocation5 + $0x16c8] sm:$0xff]
    %v1448 = vld [vmem:[#allocation5 + $0x16d0] sm:$0xff]
    %v1449 = vld [vmem:[#allocation5 + $0x16d8] sm:$0xff]
    %v1450 = vld [vmem:[#allocation5 + $0x16e0] sm:$0xff]
    %v1451 = vld [vmem:[#allocation5 + $0x16e8] sm:$0xff]
    %v1452 = vld [vmem:[#allocation5 + $0x16f0] sm:$0xff]
    %v1453 = vld [vmem:[#allocation5 + $0x16f8] sm:$0xff]
    %v1454 = vld [vmem:[#allocation5 + $0x1700] sm:$0xff]
    %v1455 = vld [vmem:[#allocation5 + $0x1708] sm:$0xff]
    %v1456 = vld [vmem:[#allocation5 + $0x1710] sm:$0xff]
    %v1457 = vld [vmem:[#allocation5 + $0x1718] sm:$0xff]
    %v1458 = vld [vmem:[#allocation5 + $0x1720] sm:$0xff]
    %v1459 = vld [vmem:[#allocation5 + $0x1728] sm:$0xff]
    %v1460 = vld [vmem:[#allocation5 + $0x1730] sm:$0xff]
    %v1461 = vld [vmem:[#allocation5 + $0x1738] sm:$0xff]
    %v1462 = vld [vmem:[#allocation5 + $0x1740] sm:$0xff]
    %v1463 = vld [vmem:[#allocation5 + $0x1748] sm:$0xff]
    %v1464 = vld [vmem:[#allocation5 + $0x1750] sm:$0xff]
    %v1465 = vld [vmem:[#allocation5 + $0x1758] sm:$0xff]
    %v1466 = vld [vmem:[#allocation5 + $0x1760] sm:$0xff]
    %v1467 = vld [vmem:[#allocation5 + $0x1768] sm:$0xff]
    %v1468 = vld [vmem:[#allocation5 + $0x1770] sm:$0xff]
    %v1469 = vld [vmem:[#allocation5 + $0x1778] sm:$0xff]
    %v1470 = vld [vmem:[#allocation5 + $0x1780] sm:$0xff]
    %v1471 = vld [vmem:[#allocation5 + $0x1788] sm:$0xff]
    %v1472 = vld [vmem:[#allocation5 + $0x1790] sm:$0xff]
    %v1473 = vld [vmem:[#allocation5 + $0x1798] sm:$0xff]
    %v1474 = vld [vmem:[#allocation5 + $0x17a0] sm:$0xff]
    %v1475 = vld [vmem:[#allocation5 + $0x17a8] sm:$0xff]
    %v1476 = vld [vmem:[#allocation5 + $0x17b0] sm:$0xff]
    %v1477 = vld [vmem:[#allocation5 + $0x17b8] sm:$0xff]
    %v1478 = vld [vmem:[#allocation5 + $0x17c0] sm:$0xff]
    %v1479 = vld [vmem:[#allocation5 + $0x17c8] sm:$0xff]
    %v1480 = vld [vmem:[#allocation5 + $0x17d0] sm:$0xff]
    %v1481 = vld [vmem:[#allocation5 + $0x17d8] sm:$0xff]
    %v1482 = vld [vmem:[#allocation5 + $0x17e0] sm:$0xff]
    %v1483 = vld [vmem:[#allocation5 + $0x17e8] sm:$0xff]
    %v1484 = vld [vmem:[#allocation5 + $0x17f0] sm:$0xff]
    %v1485 = vld [vmem:[#allocation5 + $0x17f8] sm:$0xff]
    %v1486 = vld [vmem:[#allocation5 + $0x1800] sm:$0xff]
    %v1487 = vld [vmem:[#allocation5 + $0x1808] sm:$0xff]
    %v1488 = vld [vmem:[#allocation5 + $0x1810] sm:$0xff]
    %v1489 = vld [vmem:[#allocation5 + $0x1818] sm:$0xff]
    %v1490 = vld [vmem:[#allocation5 + $0x1820] sm:$0xff]
    %v1491 = vld [vmem:[#allocation5 + $0x1828] sm:$0xff]
    %v1492 = vld [vmem:[#allocation5 + $0x1830] sm:$0xff]
    %v1493 = vld [vmem:[#allocation5 + $0x1838] sm:$0xff]
    %v1494 = vld [vmem:[#allocation5 + $0x1840] sm:$0xff]
    %v1495 = vld [vmem:[#allocation5 + $0x1848] sm:$0xff]
    %v1496 = vld [vmem:[#allocation5 + $0x1850] sm:$0xff]
    %v1497 = vld [vmem:[#allocation5 + $0x1858] sm:$0xff]
    %v1498 = vld [vmem:[#allocation5 + $0x1860] sm:$0xff]
    %v1499 = vld [vmem:[#allocation5 + $0x1868] sm:$0xff]
    %v1500 = vld [vmem:[#allocation5 + $0x1870] sm:$0xff]
    %v1501 = vld [vmem:[#allocation5 + $0x1878] sm:$0xff]
    %v1502 = vld [vmem:[#allocation5 + $0x1880] sm:$0xff]
    %v1503 = vld [vmem:[#allocation5 + $0x1888] sm:$0xff]
    %v1504 = vld [vmem:[#allocation5 + $0x1890] sm:$0xff]
    %v1505 = vld [vmem:[#allocation5 + $0x1898] sm:$0xff]
    %v1506 = vld [vmem:[#allocation5 + $0x18a0] sm:$0xff]
    %v1507 = vld [vmem:[#allocation5 + $0x18a8] sm:$0xff]
    %v1508 = vld [vmem:[#allocation5 + $0x18b0] sm:$0xff]
    %v1509 = vld [vmem:[#allocation5 + $0x18b8] sm:$0xff]
    %v1510 = vld [vmem:[#allocation5 + $0x18c0] sm:$0xff]
    %v1511 = vld [vmem:[#allocation5 + $0x18c8] sm:$0xff]
    %v1512 = vld [vmem:[#allocation5 + $0x18d0] sm:$0xff]
    %v1513 = vld [vmem:[#allocation5 + $0x18d8] sm:$0xff]
    %v1514 = vld [vmem:[#allocation5 + $0x18e0] sm:$0xff]
    %v1515 = vld [vmem:[#allocation5 + $0x18e8] sm:$0xff]
    %v1516 = vld [vmem:[#allocation5 + $0x18f0] sm:$0xff]
    %v1517 = vld [vmem:[#allocation5 + $0x18f8] sm:$0xff]
    %v1518 = vld [vmem:[#allocation5 + $0x1900] sm:$0xff]
    %v1519 = vld [vmem:[#allocation5 + $0x1908] sm:$0xff]
    %v1520 = vld [vmem:[#allocation5 + $0x1910] sm:$0xff]
    %v1521 = vld [vmem:[#allocation5 + $0x1918] sm:$0xff]
    %v1522 = vld [vmem:[#allocation5 + $0x1920] sm:$0xff]
    %v1523 = vld [vmem:[#allocation5 + $0x1928] sm:$0xff]
    %v1524 = vld [vmem:[#allocation5 + $0x1930] sm:$0xff]
    %v1525 = vld [vmem:[#allocation5 + $0x1938] sm:$0xff]
    %v1526 = vld [vmem:[#allocation5 + $0x1940] sm:$0xff]
    %v1527 = vld [vmem:[#allocation5 + $0x1948] sm:$0xff]
    %v1528 = vld [vmem:[#allocation5 + $0x1950] sm:$0xff]
    %v1529 = vld [vmem:[#allocation5 + $0x1958] sm:$0xff]
    %v1530 = vld [vmem:[#allocation5 + $0x1960] sm:$0xff]
    %v1531 = vld [vmem:[#allocation5 + $0x1968] sm:$0xff]
    %v1532 = vld [vmem:[#allocation5 + $0x1970] sm:$0xff]
    %v1533 = vld [vmem:[#allocation5 + $0x1978] sm:$0xff]
    %v1534 = vld [vmem:[#allocation5 + $0x1980] sm:$0xff]
    %v1535 = vld [vmem:[#allocation5 + $0x1988] sm:$0xff]
    %v1536 = vld [vmem:[#allocation5 + $0x1990] sm:$0xff]
    %v1537 = vld [vmem:[#allocation5 + $0x1998] sm:$0xff]
    %v1538 = vld [vmem:[#allocation5 + $0x19a0] sm:$0xff]
    %v1539 = vld [vmem:[#allocation5 + $0x19a8] sm:$0xff]
    %v1540 = vld [vmem:[#allocation5 + $0x19b0] sm:$0xff]
    %v1541 = vld [vmem:[#allocation5 + $0x19b8] sm:$0xff]
    %v1542 = vld [vmem:[#allocation5 + $0x19c0] sm:$0xff]
    %v1543 = vld [vmem:[#allocation5 + $0x19c8] sm:$0xff]
    %v1544 = vld [vmem:[#allocation5 + $0x19d0] sm:$0xff]
    %v1545 = vld [vmem:[#allocation5 + $0x19d8] sm:$0xff]
    %v1546 = vld [vmem:[#allocation5 + $0x19e0] sm:$0xff]
    %v1547 = vld [vmem:[#allocation5 + $0x19e8] sm:$0xff]
    %v1548 = vld [vmem:[#allocation5 + $0x19f0] sm:$0xff]
    %v1549 = vld [vmem:[#allocation5 + $0x19f8] sm:$0xff]
    %v1550 = vld [vmem:[#allocation5 + $0x1a00] sm:$0xff]
    %v1551 = vld [vmem:[#allocation5 + $0x1a08] sm:$0xff]
    %v1552 = vld [vmem:[#allocation5 + $0x1a10] sm:$0xff]
    %v1553 = vld [vmem:[#allocation5 + $0x1a18] sm:$0xff]
    %v1554 = vld [vmem:[#allocation5 + $0x1a20] sm:$0xff]
    %v1555 = vld [vmem:[#allocation5 + $0x1a28] sm:$0xff]
    %v1556 = vld [vmem:[#allocation5 + $0x1a30] sm:$0xff]
    %v1557 = vld [vmem:[#allocation5 + $0x1a38] sm:$0xff]
    %v1558 = vld [vmem:[#allocation5 + $0x1a40] sm:$0xff]
    %v1559 = vld [vmem:[#allocation5 + $0x1a48] sm:$0xff]
    %v1560 = vld [vmem:[#allocation5 + $0x1a50] sm:$0xff]
    %v1561 = vld [vmem:[#allocation5 + $0x1a58] sm:$0xff]
    %v1562 = vld [vmem:[#allocation5 + $0x1a60] sm:$0xff]
    %v1563 = vld [vmem:[#allocation5 + $0x1a68] sm:$0xff]
    %v1564 = vld [vmem:[#allocation5 + $0x1a70] sm:$0xff]
    %v1565 = vld [vmem:[#allocation5 + $0x1a78] sm:$0xff]
    %v1566 = vld [vmem:[#allocation5 + $0x1a80] sm:$0xff]
    %v1567 = vld [vmem:[#allocation5 + $0x1a88] sm:$0xff]
    %v1568 = vld [vmem:[#allocation5 + $0x1a90] sm:$0xff]
    %v1569 = vld [vmem:[#allocation5 + $0x1a98] sm:$0xff]
    %v1570 = vld [vmem:[#allocation5 + $0x1aa0] sm:$0xff]
    %v1571 = vld [vmem:[#allocation5 + $0x1aa8] sm:$0xff]
    %v1572 = vld [vmem:[#allocation5 + $0x1ab0] sm:$0xff]
    %v1573 = vld [vmem:[#allocation5 + $0x1ab8] sm:$0xff]
    %v1574 = vld [vmem:[#allocation5 + $0x1ac0] sm:$0xff]
    %v1575 = vld [vmem:[#allocation5 + $0x1ac8] sm:$0xff]
    %v1576 = vld [vmem:[#allocation5 + $0x1ad0] sm:$0xff]
    %v1577 = vld [vmem:[#allocation5 + $0x1ad8] sm:$0xff]
    %v1578 = vld [vmem:[#allocation5 + $0x1ae0] sm:$0xff]
    %v1579 = vld [vmem:[#allocation5 + $0x1ae8] sm:$0xff]
    %v1580 = vld [vmem:[#allocation5 + $0x1af0] sm:$0xff]
    %v1581 = vld [vmem:[#allocation5 + $0x1af8] sm:$0xff]
    %v1582 = vld [vmem:[#allocation5 + $0x1b00] sm:$0xff]
    %v1583 = vld [vmem:[#allocation5 + $0x1b08] sm:$0xff]
    %v1584 = vld [vmem:[#allocation5 + $0x1b10] sm:$0xff]
    %v1585 = vld [vmem:[#allocation5 + $0x1b18] sm:$0xff]
    %v1586 = vld [vmem:[#allocation5 + $0x1b20] sm:$0xff]
    %v1587 = vld [vmem:[#allocation5 + $0x1b28] sm:$0xff]
    %v1588 = vld [vmem:[#allocation5 + $0x1b30] sm:$0xff]
    %v1589 = vld [vmem:[#allocation5 + $0x1b38] sm:$0xff]
    %v1590 = vld [vmem:[#allocation5 + $0x1b40] sm:$0xff]
    %v1591 = vld [vmem:[#allocation5 + $0x1b48] sm:$0xff]
    %v1592 = vld [vmem:[#allocation5 + $0x1b50] sm:$0xff]
    %v1593 = vld [vmem:[#allocation5 + $0x1b58] sm:$0xff]
    %v1594 = vld [vmem:[#allocation5 + $0x1b60] sm:$0xff]
    %v1595 = vld [vmem:[#allocation5 + $0x1b68] sm:$0xff]
    %v1596 = vld [vmem:[#allocation5 + $0x1b70] sm:$0xff]
    %v1597 = vld [vmem:[#allocation5 + $0x1b78] sm:$0xff]
    %v1598 = vld [vmem:[#allocation5 + $0x1b80] sm:$0xff]
    %v1599 = vld [vmem:[#allocation5 + $0x1b88] sm:$0xff]
    %v1600 = vld [vmem:[#allocation5 + $0x1b90] sm:$0xff]
    %v1601 = vld [vmem:[#allocation5 + $0x1b98] sm:$0xff]
    %v1602 = vld [vmem:[#allocation5 + $0x1ba0] sm:$0xff]
    %v1603 = vld [vmem:[#allocation5 + $0x1ba8] sm:$0xff]
    %v1604 = vld [vmem:[#allocation5 + $0x1bb0] sm:$0xff]
    %v1605 = vld [vmem:[#allocation5 + $0x1bb8] sm:$0xff]
    %v1606 = vld [vmem:[#allocation5 + $0x1bc0] sm:$0xff]
    %v1607 = vld [vmem:[#allocation5 + $0x1bc8] sm:$0xff]
    %v1608 = vld [vmem:[#allocation5 + $0x1bd0] sm:$0xff]
    %v1609 = vld [vmem:[#allocation5 + $0x1bd8] sm:$0xff]
    %v1610 = vld [vmem:[#allocation5 + $0x1be0] sm:$0xff]
    %v1611 = vld [vmem:[#allocation5 + $0x1be8] sm:$0xff]
    %v1612 = vld [vmem:[#allocation5 + $0x1bf0] sm:$0xff]
    %v1613 = vld [vmem:[#allocation5 + $0x1bf8] sm:$0xff]
    %v1614 = vld [vmem:[#allocation5 + $0x1c00] sm:$0xff]
    %v1615 = vld [vmem:[#allocation5 + $0x1c08] sm:$0xff]
    %v1616 = vld [vmem:[#allocation5 + $0x1c10] sm:$0xff]
    %v1617 = vld [vmem:[#allocation5 + $0x1c18] sm:$0xff]
    %v1618 = vld [vmem:[#allocation5 + $0x1c20] sm:$0xff]
    %v1619 = vld [vmem:[#allocation5 + $0x1c28] sm:$0xff]
    %v1620 = vld [vmem:[#allocation5 + $0x1c30] sm:$0xff]
    %v1621 = vld [vmem:[#allocation5 + $0x1c38] sm:$0xff]
    %v1622 = vld [vmem:[#allocation5 + $0x1c40] sm:$0xff]
    %v1623 = vld [vmem:[#allocation5 + $0x1c48] sm:$0xff]
    %v1624 = vld [vmem:[#allocation5 + $0x1c50] sm:$0xff]
    %v1625 = vld [vmem:[#allocation5 + $0x1c58] sm:$0xff]
    %v1626 = vld [vmem:[#allocation5 + $0x1c60] sm:$0xff]
    %v1627 = vld [vmem:[#allocation5 + $0x1c68] sm:$0xff]
    %v1628 = vld [vmem:[#allocation5 + $0x1c70] sm:$0xff]
    %v1629 = vld [vmem:[#allocation5 + $0x1c78] sm:$0xff]
    %v1630 = vld [vmem:[#allocation5 + $0x1c80] sm:$0xff]
    %v1631 = vld [vmem:[#allocation5 + $0x1c88] sm:$0xff]
    %v1632 = vld [vmem:[#allocation5 + $0x1c90] sm:$0xff]
    %v1633 = vld [vmem:[#allocation5 + $0x1c98] sm:$0xff]
    %v1634 = vld [vmem:[#allocation5 + $0x1ca0] sm:$0xff]
    %v1635 = vld [vmem:[#allocation5 + $0x1ca8] sm:$0xff]
    %v1636 = vld [vmem:[#allocation5 + $0x1cb0] sm:$0xff]
    %v1637 = vld [vmem:[#allocation5 + $0x1cb8] sm:$0xff]
    %v1638 = vld [vmem:[#allocation5 + $0x1cc0] sm:$0xff]
    %v1639 = vld [vmem:[#allocation5 + $0x1cc8] sm:$0xff]
    %v1640 = vld [vmem:[#allocation5 + $0x1cd0] sm:$0xff]
    %v1641 = vld [vmem:[#allocation5 + $0x1cd8] sm:$0xff]
    %v1642 = vld [vmem:[#allocation5 + $0x1ce0] sm:$0xff]
    %v1643 = vld [vmem:[#allocation5 + $0x1ce8] sm:$0xff]
    %v1644 = vld [vmem:[#allocation5 + $0x1cf0] sm:$0xff]
    %v1645 = vld [vmem:[#allocation5 + $0x1cf8] sm:$0xff]
    %v1646 = vld [vmem:[#allocation5 + $0x1d00] sm:$0xff]
    %v1647 = vld [vmem:[#allocation5 + $0x1d08] sm:$0xff]
    %v1648 = vld [vmem:[#allocation5 + $0x1d10] sm:$0xff]
    %v1649 = vld [vmem:[#allocation5 + $0x1d18] sm:$0xff]
    %v1650 = vld [vmem:[#allocation5 + $0x1d20] sm:$0xff]
    %v1651 = vld [vmem:[#allocation5 + $0x1d28] sm:$0xff]
    %v1652 = vld [vmem:[#allocation5 + $0x1d30] sm:$0xff]
    %v1653 = vld [vmem:[#allocation5 + $0x1d38] sm:$0xff]
    %v1654 = vld [vmem:[#allocation5 + $0x1d40] sm:$0xff]
    %v1655 = vld [vmem:[#allocation5 + $0x1d48] sm:$0xff]
    %v1656 = vld [vmem:[#allocation5 + $0x1d50] sm:$0xff]
    %v1657 = vld [vmem:[#allocation5 + $0x1d58] sm:$0xff]
    %v1658 = vld [vmem:[#allocation5 + $0x1d60] sm:$0xff]
    %v1659 = vld [vmem:[#allocation5 + $0x1d68] sm:$0xff]
    %v1660 = vld [vmem:[#allocation5 + $0x1d70] sm:$0xff]
    %v1661 = vld [vmem:[#allocation5 + $0x1d78] sm:$0xff]
    %v1662 = vld [vmem:[#allocation5 + $0x1d80] sm:$0xff]
    %v1663 = vld [vmem:[#allocation5 + $0x1d88] sm:$0xff]
    %v1664 = vld [vmem:[#allocation5 + $0x1d90] sm:$0xff]
    %v1665 = vld [vmem:[#allocation5 + $0x1d98] sm:$0xff]
    %v1666 = vld [vmem:[#allocation5 + $0x1da0] sm:$0xff]
    %v1667 = vld [vmem:[#allocation5 + $0x1da8] sm:$0xff]
    %v1668 = vld [vmem:[#allocation5 + $0x1db0] sm:$0xff]
    %v1669 = vld [vmem:[#allocation5 + $0x1db8] sm:$0xff]
    %v1670 = vld [vmem:[#allocation5 + $0x1dc0] sm:$0xff]
    %v1671 = vld [vmem:[#allocation5 + $0x1dc8] sm:$0xff]
    %v1672 = vld [vmem:[#allocation5 + $0x1dd0] sm:$0xff]
    %v1673 = vld [vmem:[#allocation5 + $0x1dd8] sm:$0xff]
    %v1674 = vld [vmem:[#allocation5 + $0x1de0] sm:$0xff]
    %v1675 = vld [vmem:[#allocation5 + $0x1de8] sm:$0xff]
    %v1676 = vld [vmem:[#allocation5 + $0x1df0] sm:$0xff]
    %v1677 = vld [vmem:[#allocation5 + $0x1df8] sm:$0xff]
    %v1678 = vld [vmem:[#allocation5 + $0x1e00] sm:$0xff]
    %v1679 = vld [vmem:[#allocation5 + $0x1e08] sm:$0xff]
    %v1680 = vld [vmem:[#allocation5 + $0x1e10] sm:$0xff]
    %v1681 = vld [vmem:[#allocation5 + $0x1e18] sm:$0xff]
    %v1682 = vld [vmem:[#allocation5 + $0x1e20] sm:$0xff]
    %v1683 = vld [vmem:[#allocation5 + $0x1e28] sm:$0xff]
    %v1684 = vld [vmem:[#allocation5 + $0x1e30] sm:$0xff]
    %v1685 = vld [vmem:[#allocation5 + $0x1e38] sm:$0xff]
    %v1686 = vld [vmem:[#allocation5 + $0x1e40] sm:$0xff]
    %v1687 = vld [vmem:[#allocation5 + $0x1e48] sm:$0xff]
    %v1688 = vld [vmem:[#allocation5 + $0x1e50] sm:$0xff]
    %v1689 = vld [vmem:[#allocation5 + $0x1e58] sm:$0xff]
    %v1690 = vld [vmem:[#allocation5 + $0x1e60] sm:$0xff]
    %v1691 = vld [vmem:[#allocation5 + $0x1e68] sm:$0xff]
    %v1692 = vld [vmem:[#allocation5 + $0x1e70] sm:$0xff]
    %v1693 = vld [vmem:[#allocation5 + $0x1e78] sm:$0xff]
    %v1694 = vld [vmem:[#allocation5 + $0x1e80] sm:$0xff]
    %v1695 = vld [vmem:[#allocation5 + $0x1e88] sm:$0xff]
    %v1696 = vld [vmem:[#allocation5 + $0x1e90] sm:$0xff]
    %v1697 = vld [vmem:[#allocation5 + $0x1e98] sm:$0xff]
    %v1698 = vld [vmem:[#allocation5 + $0x1ea0] sm:$0xff]
    %v1699 = vld [vmem:[#allocation5 + $0x1ea8] sm:$0xff]
    %v1700 = vld [vmem:[#allocation5 + $0x1eb0] sm:$0xff]
    %v1701 = vld [vmem:[#allocation5 + $0x1eb8] sm:$0xff]
    %v1702 = vld [vmem:[#allocation5 + $0x1ec0] sm:$0xff]
    %v1703 = vld [vmem:[#allocation5 + $0x1ec8] sm:$0xff]
    %v1704 = vld [vmem:[#allocation5 + $0x1ed0] sm:$0xff]
    %v1705 = vld [vmem:[#allocation5 + $0x1ed8] sm:$0xff]
    %v1706 = vld [vmem:[#allocation5 + $0x1ee0] sm:$0xff]
    %v1707 = vld [vmem:[#allocation5 + $0x1ee8] sm:$0xff]
    %v1708 = vld [vmem:[#allocation5 + $0x1ef0] sm:$0xff]
    %v1709 = vld [vmem:[#allocation5 + $0x1ef8] sm:$0xff]
    %v1710 = vld [vmem:[#allocation5 + $0x1f00] sm:$0xff]
    %v1711 = vld [vmem:[#allocation5 + $0x1f08] sm:$0xff]
    %v1712 = vld [vmem:[#allocation5 + $0x1f10] sm:$0xff]
    %v1713 = vld [vmem:[#allocation5 + $0x1f18] sm:$0xff]
    %v1714 = vld [vmem:[#allocation5 + $0x1f20] sm:$0xff]
    %v1715 = vld [vmem:[#allocation5 + $0x1f28] sm:$0xff]
    %v1716 = vld [vmem:[#allocation5 + $0x1f30] sm:$0xff]
    %v1717 = vld [vmem:[#allocation5 + $0x1f38] sm:$0xff]
    %v1718 = vld [vmem:[#allocation5 + $0x1f40] sm:$0xff]
    %v1719 = vld [vmem:[#allocation5 + $0x1f48] sm:$0xff]
    %v1720 = vld [vmem:[#allocation5 + $0x1f50] sm:$0xff]
    %v1721 = vld [vmem:[#allocation5 + $0x1f58] sm:$0xff]
    %v1722 = vld [vmem:[#allocation5 + $0x1f60] sm:$0xff]
    %v1723 = vld [vmem:[#allocation5 + $0x1f68] sm:$0xff]
    %v1724 = vld [vmem:[#allocation5 + $0x1f70] sm:$0xff]
    %v1725 = vld [vmem:[#allocation5 + $0x1f78] sm:$0xff]
    %v1726 = vld [vmem:[#allocation5 + $0x1f80] sm:$0xff]
    %v1727 = vld [vmem:[#allocation5 + $0x1f88] sm:$0xff]
    %v1728 = vld [vmem:[#allocation5 + $0x1f90] sm:$0xff]
    %v1729 = vld [vmem:[#allocation5 + $0x1f98] sm:$0xff]
    %v1730 = vld [vmem:[#allocation5 + $0x1fa0] sm:$0xff]
    %v1731 = vld [vmem:[#allocation5 + $0x1fa8] sm:$0xff]
    %v1732 = vld [vmem:[#allocation5 + $0x1fb0] sm:$0xff]
    %v1733 = vld [vmem:[#allocation5 + $0x1fb8] sm:$0xff]
    %v1734 = vld [vmem:[#allocation5 + $0x1fc0] sm:$0xff]
    %v1735 = vld [vmem:[#allocation5 + $0x1fc8] sm:$0xff]
    %v1736 = vld [vmem:[#allocation5 + $0x1fd0] sm:$0xff]
    %v1737 = vld [vmem:[#allocation5 + $0x1fd8] sm:$0xff]
    %v1738 = vld [vmem:[#allocation5 + $0x1fe0] sm:$0xff]
    %v1739 = vld [vmem:[#allocation5 + $0x1fe8] sm:$0xff]
    %v1740 = vld [vmem:[#allocation5 + $0x1ff0] sm:$0xff]
    %v1741 = vld [vmem:[#allocation5 + $0x1ff8] sm:$0xff]
    %v1742 = vld [vmem:[#allocation5 + $0x2000] sm:$0xff]
    %v1743 = vld [vmem:[#allocation5 + $0x2008] sm:$0xff]
    %v1744 = vld [vmem:[#allocation5 + $0x2010] sm:$0xff]
    %v1745 = vld [vmem:[#allocation5 + $0x2018] sm:$0xff]
    %v1746 = vld [vmem:[#allocation5 + $0x2020] sm:$0xff]
    %v1747 = vld [vmem:[#allocation5 + $0x2028] sm:$0xff]
    %v1748 = vld [vmem:[#allocation5 + $0x2030] sm:$0xff]
    %v1749 = vld [vmem:[#allocation5 + $0x2038] sm:$0xff]
    %v1750 = vld [vmem:[#allocation5 + $0x2040] sm:$0xff]
    %v1751 = vld [vmem:[#allocation5 + $0x2048] sm:$0xff]
    %v1752 = vld [vmem:[#allocation5 + $0x2050] sm:$0xff]
    %v1753 = vld [vmem:[#allocation5 + $0x2058] sm:$0xff]
    %v1754 = vld [vmem:[#allocation5 + $0x2060] sm:$0xff]
    %v1755 = vld [vmem:[#allocation5 + $0x2068] sm:$0xff]
    %v1756 = vld [vmem:[#allocation5 + $0x2070] sm:$0xff]
    %v1757 = vld [vmem:[#allocation5 + $0x2078] sm:$0xff]
    %v1758 = vld [vmem:[#allocation5 + $0x2080] sm:$0xff]
    %v1759 = vld [vmem:[#allocation5 + $0x2088] sm:$0xff]
    %v1760 = vld [vmem:[#allocation5 + $0x2090] sm:$0xff]
    %v1761 = vld [vmem:[#allocation5 + $0x2098] sm:$0xff]
    %v1762 = vld [vmem:[#allocation5 + $0x20a0] sm:$0xff]
    %v1763 = vld [vmem:[#allocation5 + $0x20a8] sm:$0xff]
    %v1764 = vld [vmem:[#allocation5 + $0x20b0] sm:$0xff]
    %v1765 = vld [vmem:[#allocation5 + $0x20b8] sm:$0xff]
    %v1766 = vld [vmem:[#allocation5 + $0x20c0] sm:$0xff]
    %v1767 = vld [vmem:[#allocation5 + $0x20c8] sm:$0xff]
    %v1768 = vld [vmem:[#allocation5 + $0x20d0] sm:$0xff]
    %v1769 = vld [vmem:[#allocation5 + $0x20d8] sm:$0xff]
    %v1770 = vld [vmem:[#allocation5 + $0x20e0] sm:$0xff]
    %v1771 = vld [vmem:[#allocation5 + $0x20e8] sm:$0xff]
    %v1772 = vld [vmem:[#allocation5 + $0x20f0] sm:$0xff]
    %v1773 = vld [vmem:[#allocation5 + $0x20f8] sm:$0xff]
    %v1774 = vld [vmem:[#allocation5 + $0x2100] sm:$0xff]
    %v1775 = vld [vmem:[#allocation5 + $0x2108] sm:$0xff]
    %v1776 = vld [vmem:[#allocation5 + $0x2110] sm:$0xff]
    %v1777 = vld [vmem:[#allocation5 + $0x2118] sm:$0xff]
    %v1778 = vld [vmem:[#allocation5 + $0x2120] sm:$0xff]
    %v1779 = vld [vmem:[#allocation5 + $0x2128] sm:$0xff]
    %v1780 = vld [vmem:[#allocation5 + $0x2130] sm:$0xff]
    %v1781 = vld [vmem:[#allocation5 + $0x2138] sm:$0xff]
    %v1782 = vld [vmem:[#allocation5 + $0x2140] sm:$0xff]
    %v1783 = vld [vmem:[#allocation5 + $0x2148] sm:$0xff]
    %v1784 = vld [vmem:[#allocation5 + $0x2150] sm:$0xff]
    %v1785 = vld [vmem:[#allocation5 + $0x2158] sm:$0xff]
    %v1786 = vld [vmem:[#allocation5 + $0x2160] sm:$0xff]
    %v1787 = vld [vmem:[#allocation5 + $0x2168] sm:$0xff]
    %v1788 = vld [vmem:[#allocation5 + $0x2170] sm:$0xff]
    %v1789 = vld [vmem:[#allocation5 + $0x2178] sm:$0xff]
    %v1790 = vld [vmem:[#allocation5 + $0x2180] sm:$0xff]
    %v1791 = vld [vmem:[#allocation5 + $0x2188] sm:$0xff]
    %v1792 = vld [vmem:[#allocation5 + $0x2190] sm:$0xff]
    %v1793 = vld [vmem:[#allocation5 + $0x2198] sm:$0xff]
    %v1794 = vld [vmem:[#allocation5 + $0x21a0] sm:$0xff]
    %v1795 = vld [vmem:[#allocation5 + $0x21a8] sm:$0xff]
    %v1796 = vld [vmem:[#allocation5 + $0x21b0] sm:$0xff]
    %v1797 = vld [vmem:[#allocation5 + $0x21b8] sm:$0xff]
    %v1798 = vld [vmem:[#allocation5 + $0x21c0] sm:$0xff]
    %v1799 = vld [vmem:[#allocation5 + $0x21c8] sm:$0xff]
    %v1800 = vld [vmem:[#allocation5 + $0x21d0] sm:$0xff]
    %v1801 = vld [vmem:[#allocation5 + $0x21d8] sm:$0xff]
    %v1802 = vld [vmem:[#allocation5 + $0x21e0] sm:$0xff]
    %v1803 = vld [vmem:[#allocation5 + $0x21e8] sm:$0xff]
    %v1804 = vld [vmem:[#allocation5 + $0x21f0] sm:$0xff]
    %v1805 = vld [vmem:[#allocation5 + $0x21f8] sm:$0xff]
    %v1806 = vld [vmem:[#allocation5 + $0x2200] sm:$0xff]
    %v1807 = vld [vmem:[#allocation5 + $0x2208] sm:$0xff]
    %v1808 = vld [vmem:[#allocation5 + $0x2210] sm:$0xff]
    %v1809 = vld [vmem:[#allocation5 + $0x2218] sm:$0xff]
    %v1810 = vld [vmem:[#allocation5 + $0x2220] sm:$0xff]
    %v1811 = vld [vmem:[#allocation5 + $0x2228] sm:$0xff]
    %v1812 = vld [vmem:[#allocation5 + $0x2230] sm:$0xff]
    %v1813 = vld [vmem:[#allocation5 + $0x2238] sm:$0xff]
    %v1814 = vld [vmem:[#allocation5 + $0x2240] sm:$0xff]
    %v1815 = vld [vmem:[#allocation5 + $0x2248] sm:$0xff]
    %v1816 = vld [vmem:[#allocation5 + $0x2250] sm:$0xff]
    %v1817 = vld [vmem:[#allocation5 + $0x2258] sm:$0xff]
    %v1818 = vld [vmem:[#allocation5 + $0x2260] sm:$0xff]
    %v1819 = vld [vmem:[#allocation5 + $0x2268] sm:$0xff]
    %v1820 = vld [vmem:[#allocation5 + $0x2270] sm:$0xff]
    %v1821 = vld [vmem:[#allocation5 + $0x2278] sm:$0xff]
    %v1822 = vld [vmem:[#allocation5 + $0x2280] sm:$0xff]
    %v1823 = vld [vmem:[#allocation5 + $0x2288] sm:$0xff]
    %v1824 = vld [vmem:[#allocation5 + $0x2290] sm:$0xff]
    %v1825 = vld [vmem:[#allocation5 + $0x2298] sm:$0xff]
    %v1826 = vld [vmem:[#allocation5 + $0x22a0] sm:$0xff]
    %v1827 = vld [vmem:[#allocation5 + $0x22a8] sm:$0xff]
    %v1828 = vld [vmem:[#allocation5 + $0x22b0] sm:$0xff]
    %v1829 = vld [vmem:[#allocation5 + $0x22b8] sm:$0xff]
    %v1830 = vld [vmem:[#allocation5 + $0x22c0] sm:$0xff]
    %v1831 = vld [vmem:[#allocation5 + $0x22c8] sm:$0xff]
    %v1832 = vld [vmem:[#allocation5 + $0x22d0] sm:$0xff]
    %v1833 = vld [vmem:[#allocation5 + $0x22d8] sm:$0xff]
    %v1834 = vld [vmem:[#allocation5 + $0x22e0] sm:$0xff]
    %v1835 = vld [vmem:[#allocation5 + $0x22e8] sm:$0xff]
    %v1836 = vld [vmem:[#allocation5 + $0x22f0] sm:$0xff]
    %v1837 = vld [vmem:[#allocation5 + $0x22f8] sm:$0xff]
    %v1838 = vld [vmem:[#allocation5 + $0x2300] sm:$0xff]
    %v1839 = vld [vmem:[#allocation5 + $0x2308] sm:$0xff]
    %v1840 = vld [vmem:[#allocation5 + $0x2310] sm:$0xff]
    %v1841 = vld [vmem:[#allocation5 + $0x2318] sm:$0xff]
    %v1842 = vld [vmem:[#allocation5 + $0x2320] sm:$0xff]
    %v1843 = vld [vmem:[#allocation5 + $0x2328] sm:$0xff]
    %v1844 = vld [vmem:[#allocation5 + $0x2330] sm:$0xff]
    %v1845 = vld [vmem:[#allocation5 + $0x2338] sm:$0xff]
    %v1846 = vld [vmem:[#allocation5 + $0x2340] sm:$0xff]
    %v1847 = vld [vmem:[#allocation5 + $0x2348] sm:$0xff]
    %v1848 = vld [vmem:[#allocation5 + $0x2350] sm:$0xff]
    %v1849 = vld [vmem:[#allocation5 + $0x2358] sm:$0xff]
    %v1850 = vld [vmem:[#allocation5 + $0x2360] sm:$0xff]
    %v1851 = vld [vmem:[#allocation5 + $0x2368] sm:$0xff]
    %v1852 = vld [vmem:[#allocation5 + $0x2370] sm:$0xff]
    %v1853 = vld [vmem:[#allocation5 + $0x2378] sm:$0xff]
    %v1854 = vld [vmem:[#allocation5 + $0x2380] sm:$0xff]
    %v1855 = vld [vmem:[#allocation5 + $0x2388] sm:$0xff]
    %v1856 = vld [vmem:[#allocation5 + $0x2390] sm:$0xff]
    %v1857 = vld [vmem:[#allocation5 + $0x2398] sm:$0xff]
    %v1858 = vld [vmem:[#allocation5 + $0x23a0] sm:$0xff]
    %v1859 = vld [vmem:[#allocation5 + $0x23a8] sm:$0xff]
    %v1860 = vld [vmem:[#allocation5 + $0x23b0] sm:$0xff]
    %v1861 = vld [vmem:[#allocation5 + $0x23b8] sm:$0xff]
    %v1862 = vld [vmem:[#allocation5 + $0x23c0] sm:$0xff]
    %v1863 = vld [vmem:[#allocation5 + $0x23c8] sm:$0xff]
    %v1864 = vld [vmem:[#allocation5 + $0x23d0] sm:$0xff]
    %v1865 = vld [vmem:[#allocation5 + $0x23d8] sm:$0xff]
    %v1866 = vld [vmem:[#allocation5 + $0x23e0] sm:$0xff]
    %v1867 = vld [vmem:[#allocation5 + $0x23e8] sm:$0xff]
    %v1868 = vld [vmem:[#allocation5 + $0x23f0] sm:$0xff]
    %v1869 = vld [vmem:[#allocation5 + $0x23f8] sm:$0xff]
    %v1870 = vld [vmem:[#allocation5 + $0x2400] sm:$0xff]
    %v1871 = vld [vmem:[#allocation5 + $0x2408] sm:$0xff]
    %v1872 = vld [vmem:[#allocation5 + $0x2410] sm:$0xff]
    %v1873 = vld [vmem:[#allocation5 + $0x2418] sm:$0xff]
    %v1874 = vld [vmem:[#allocation5 + $0x2420] sm:$0xff]
    %v1875 = vld [vmem:[#allocation5 + $0x2428] sm:$0xff]
    %v1876 = vld [vmem:[#allocation5 + $0x2430] sm:$0xff]
    %v1877 = vld [vmem:[#allocation5 + $0x2438] sm:$0xff]
    %v1878 = vld [vmem:[#allocation5 + $0x2440] sm:$0xff]
    %v1879 = vld [vmem:[#allocation5 + $0x2448] sm:$0xff]
    %v1880 = vld [vmem:[#allocation5 + $0x2450] sm:$0xff]
    %v1881 = vld [vmem:[#allocation5 + $0x2458] sm:$0xff]
    %v1882 = vld [vmem:[#allocation5 + $0x2460] sm:$0xff]
    %v1883 = vld [vmem:[#allocation5 + $0x2468] sm:$0xff]
    %v1884 = vld [vmem:[#allocation5 + $0x2470] sm:$0xff]
    %v1885 = vld [vmem:[#allocation5 + $0x2478] sm:$0xff]
    %v1886 = vld [vmem:[#allocation5 + $0x2480] sm:$0xff]
    %v1887 = vld [vmem:[#allocation5 + $0x2488] sm:$0xff]
    %v1888 = vld [vmem:[#allocation5 + $0x2490] sm:$0xff]
    %v1889 = vld [vmem:[#allocation5 + $0x2498] sm:$0xff]
    %v1890 = vld [vmem:[#allocation5 + $0x24a0] sm:$0xff]
    %v1891 = vld [vmem:[#allocation5 + $0x24a8] sm:$0xff]
    %v1892 = vld [vmem:[#allocation5 + $0x24b0] sm:$0xff]
    %v1893 = vld [vmem:[#allocation5 + $0x24b8] sm:$0xff]
    %v1894 = vld [vmem:[#allocation5 + $0x24c0] sm:$0xff]
    %v1895 = vld [vmem:[#allocation5 + $0x24c8] sm:$0xff]
    %v1896 = vld [vmem:[#allocation5 + $0x24d0] sm:$0xff]
    %v1897 = vld [vmem:[#allocation5 + $0x24d8] sm:$0xff]
    %v1898 = vld [vmem:[#allocation5 + $0x24e0] sm:$0xff]
    %v1899 = vld [vmem:[#allocation5 + $0x24e8] sm:$0xff]
    %v1900 = vld [vmem:[#allocation5 + $0x24f0] sm:$0xff]
    %v1901 = vld [vmem:[#allocation5 + $0x24f8] sm:$0xff]
    %v1902 = vld [vmem:[#allocation5 + $0x2500] sm:$0xff]
    %v1903 = vld [vmem:[#allocation5 + $0x2508] sm:$0xff]
    %v1904 = vld [vmem:[#allocation5 + $0x2510] sm:$0xff]
    %v1905 = vld [vmem:[#allocation5 + $0x2518] sm:$0xff]
    %v1906 = vld [vmem:[#allocation5 + $0x2520] sm:$0xff]
    %v1907 = vld [vmem:[#allocation5 + $0x2528] sm:$0xff]
    %v1908 = vld [vmem:[#allocation5 + $0x2530] sm:$0xff]
    %v1909 = vld [vmem:[#allocation5 + $0x2538] sm:$0xff]
    %v1910 = vld [vmem:[#allocation5 + $0x2540] sm:$0xff]
    %v1911 = vld [vmem:[#allocation5 + $0x2548] sm:$0xff]
    %v1912 = vld [vmem:[#allocation5 + $0x2550] sm:$0xff]
    %v1913 = vld [vmem:[#allocation5 + $0x2558] sm:$0xff]
    %v1914 = vld [vmem:[#allocation5 + $0x2560] sm:$0xff]
    %v1915 = vld [vmem:[#allocation5 + $0x2568] sm:$0xff]
    %v1916 = vld [vmem:[#allocation5 + $0x2570] sm:$0xff]
    %v1917 = vld [vmem:[#allocation5 + $0x2578] sm:$0xff]
    %v1918 = vld [vmem:[#allocation5 + $0x2580] sm:$0xff]
    %v1919 = vld [vmem:[#allocation5 + $0x2588] sm:$0xff]
    %v1920 = vld [vmem:[#allocation5 + $0x2590] sm:$0xff]
    %v1921 = vld [vmem:[#allocation5 + $0x2598] sm:$0xff]
    %v1922 = vld [vmem:[#allocation5 + $0x25a0] sm:$0xff]
    %v1923 = vld [vmem:[#allocation5 + $0x25a8] sm:$0xff]
    %v1924 = vld [vmem:[#allocation5 + $0x25b0] sm:$0xff]
    %v1925 = vld [vmem:[#allocation5 + $0x25b8] sm:$0xff]
    %v1926 = vld [vmem:[#allocation5 + $0x25c0] sm:$0xff]
    %v1927 = vld [vmem:[#allocation5 + $0x25c8] sm:$0xff]
    %v1928 = vld [vmem:[#allocation5 + $0x25d0] sm:$0xff]
    %v1929 = vld [vmem:[#allocation5 + $0x25d8] sm:$0xff]
    %v1930 = vld [vmem:[#allocation5 + $0x25e0] sm:$0xff]
    %v1931 = vld [vmem:[#allocation5 + $0x25e8] sm:$0xff]
    %v1932 = vld [vmem:[#allocation5 + $0x25f0] sm:$0xff]
    %v1933 = vld [vmem:[#allocation5 + $0x25f8] sm:$0xff]
    %v1934 = vld [vmem:[#allocation5 + $0x2600] sm:$0xff]
    %v1935 = vld [vmem:[#allocation5 + $0x2608] sm:$0xff]
    %v1936 = vld [vmem:[#allocation5 + $0x2610] sm:$0xff]
    %v1937 = vld [vmem:[#allocation5 + $0x2618] sm:$0xff]
    %v1938 = vld [vmem:[#allocation5 + $0x2620] sm:$0xff]
    %v1939 = vld [vmem:[#allocation5 + $0x2628] sm:$0xff]
    %v1940 = vld [vmem:[#allocation5 + $0x2630] sm:$0xff]
    %v1941 = vld [vmem:[#allocation5 + $0x2638] sm:$0xff]
    %v1942 = vld [vmem:[#allocation5 + $0x2640] sm:$0xff]
    %v1943 = vld [vmem:[#allocation5 + $0x2648] sm:$0xff]
    %v1944 = vld [vmem:[#allocation5 + $0x2650] sm:$0xff]
    %v1945 = vld [vmem:[#allocation5 + $0x2658] sm:$0xff]
    %v1946 = vld [vmem:[#allocation5 + $0x2660] sm:$0xff]
    %v1947 = vld [vmem:[#allocation5 + $0x2668] sm:$0xff]
    %v1948 = vld [vmem:[#allocation5 + $0x2670] sm:$0xff]
    %v1949 = vld [vmem:[#allocation5 + $0x2678] sm:$0xff]
    %v1950 = vld [vmem:[#allocation5 + $0x2680] sm:$0xff]
    %v1951 = vld [vmem:[#allocation5 + $0x2688] sm:$0xff]
    %v1952 = vld [vmem:[#allocation5 + $0x2690] sm:$0xff]
    %v1953 = vld [vmem:[#allocation5 + $0x2698] sm:$0xff]
    %v1954 = vld [vmem:[#allocation5 + $0x26a0] sm:$0xff]
    %v1955 = vld [vmem:[#allocation5 + $0x26a8] sm:$0xff]
    %v1956 = vld [vmem:[#allocation5 + $0x26b0] sm:$0xff]
    %v1957 = vld [vmem:[#allocation5 + $0x26b8] sm:$0xff]
    %v1958 = vld [vmem:[#allocation5 + $0x26c0] sm:$0xff]
    %v1959 = vld [vmem:[#allocation5 + $0x26c8] sm:$0xff]
    %v1960 = vld [vmem:[#allocation5 + $0x26d0] sm:$0xff]
    %v1961 = vld [vmem:[#allocation5 + $0x26d8] sm:$0xff]
    %v1962 = vld [vmem:[#allocation5 + $0x26e0] sm:$0xff]
    %v1963 = vld [vmem:[#allocation5 + $0x26e8] sm:$0xff]
    %v1964 = vld [vmem:[#allocation5 + $0x26f0] sm:$0xff]
    %v1965 = vld [vmem:[#allocation5 + $0x26f8] sm:$0xff]
    %v1966 = vld [vmem:[#allocation5 + $0x2700] sm:$0xff]
    %v1967 = vld [vmem:[#allocation5 + $0x2708] sm:$0xff]
    %v1968 = vld [vmem:[#allocation5 + $0x2710] sm:$0xff]
    %v1969 = vld [vmem:[#allocation5 + $0x2718] sm:$0xff]
    %v1970 = vld [vmem:[#allocation5 + $0x2720] sm:$0xff]
    %v1971 = vld [vmem:[#allocation5 + $0x2728] sm:$0xff]
    %v1972 = vld [vmem:[#allocation5 + $0x2730] sm:$0xff]
    %v1973 = vld [vmem:[#allocation5 + $0x2738] sm:$0xff]
    %v1974 = vld [vmem:[#allocation5 + $0x2740] sm:$0xff]
    %v1975 = vld [vmem:[#allocation5 + $0x2748] sm:$0xff]
    %v1976 = vld [vmem:[#allocation5 + $0x2750] sm:$0xff]
    %v1977 = vld [vmem:[#allocation5 + $0x2758] sm:$0xff]
    %v1978 = vld [vmem:[#allocation5 + $0x2760] sm:$0xff]
    %v1979 = vld [vmem:[#allocation5 + $0x2768] sm:$0xff]
    %v1980 = vld [vmem:[#allocation5 + $0x2770] sm:$0xff]
    %v1981 = vld [vmem:[#allocation5 + $0x2778] sm:$0xff]
    %v1982 = vld [vmem:[#allocation5 + $0x2780] sm:$0xff]
    %v1983 = vld [vmem:[#allocation5 + $0x2788] sm:$0xff]
    %v1984 = vld [vmem:[#allocation5 + $0x2790] sm:$0xff]
    %v1985 = vld [vmem:[#allocation5 + $0x2798] sm:$0xff]
    %v1986 = vld [vmem:[#allocation5 + $0x27a0] sm:$0xff]
    %v1987 = vld [vmem:[#allocation5 + $0x27a8] sm:$0xff]
    %v1988 = vld [vmem:[#allocation5 + $0x27b0] sm:$0xff]
    %v1989 = vld [vmem:[#allocation5 + $0x27b8] sm:$0xff]
    %v1990 = vld [vmem:[#allocation5 + $0x27c0] sm:$0xff]
    %v1991 = vld [vmem:[#allocation5 + $0x27c8] sm:$0xff]
    %v1992 = vld [vmem:[#allocation5 + $0x27d0] sm:$0xff]
    %v1993 = vld [vmem:[#allocation5 + $0x27d8] sm:$0xff]
    %v1994 = vld [vmem:[#allocation5 + $0x27e0] sm:$0xff]
    %v1995 = vld [vmem:[#allocation5 + $0x27e8] sm:$0xff]
    %v1996 = vld [vmem:[#allocation5 + $0x27f0] sm:$0xff]
    %v1997 = vld [vmem:[#allocation5 + $0x27f8] sm:$0xff]
    %v1998 = vld [vmem:[#allocation5 + $0x2800] sm:$0xff]
    %v1999 = vld [vmem:[#allocation5 + $0x2808] sm:$0xff]
    %v2000 = vld [vmem:[#allocation5 + $0x2810] sm:$0xff]
    %v2001 = vld [vmem:[#allocation5 + $0x2818] sm:$0xff]
    %v2002 = vld [vmem:[#allocation5 + $0x2820] sm:$0xff]
    %v2003 = vld [vmem:[#allocation5 + $0x2828] sm:$0xff]
    %v2004 = vld [vmem:[#allocation5 + $0x2830] sm:$0xff]
    %v2005 = vld [vmem:[#allocation5 + $0x2838] sm:$0xff]
    %v2006 = vld [vmem:[#allocation5 + $0x2840] sm:$0xff]
    %v2007 = vld [vmem:[#allocation5 + $0x2848] sm:$0xff]
    %v2008 = vld [vmem:[#allocation5 + $0x2850] sm:$0xff]
    %v2009 = vld [vmem:[#allocation5 + $0x2858] sm:$0xff]
    %v2010 = vld [vmem:[#allocation5 + $0x2860] sm:$0xff]
    %v2011 = vld [vmem:[#allocation5 + $0x2868] sm:$0xff]
    %v2012 = vld [vmem:[#allocation5 + $0x2870] sm:$0xff]
    %v2013 = vld [vmem:[#allocation5 + $0x2878] sm:$0xff]
    %v2014 = vld [vmem:[#allocation5 + $0x2880] sm:$0xff]
    %v2015 = vld [vmem:[#allocation5 + $0x2888] sm:$0xff]
    %v2016 = vld [vmem:[#allocation5 + $0x2890] sm:$0xff]
    %v2017 = vld [vmem:[#allocation5 + $0x2898] sm:$0xff]
    %v2018 = vld [vmem:[#allocation5 + $0x28a0] sm:$0xff]
    %v2019 = vld [vmem:[#allocation5 + $0x28a8] sm:$0xff]
    %v2020 = vld [vmem:[#allocation5 + $0x28b0] sm:$0xff]
    %v2021 = vld [vmem:[#allocation5 + $0x28b8] sm:$0xff]
    %v2022 = vld [vmem:[#allocation5 + $0x28c0] sm:$0xff]
    %v2023 = vld [vmem:[#allocation5 + $0x28c8] sm:$0xff]
    %v2024 = vld [vmem:[#allocation5 + $0x28d0] sm:$0xff]
    %v2025 = vld [vmem:[#allocation5 + $0x28d8] sm:$0xff]
    %v2026 = vld [vmem:[#allocation5 + $0x28e0] sm:$0xff]
    %v2027 = vld [vmem:[#allocation5 + $0x28e8] sm:$0xff]
    %v2028 = vld [vmem:[#allocation5 + $0x28f0] sm:$0xff]
    %v2029 = vld [vmem:[#allocation5 + $0x28f8] sm:$0xff]
    %v2030 = vld [vmem:[#allocation5 + $0x2900] sm:$0xff]
    %v2031 = vld [vmem:[#allocation5 + $0x2908] sm:$0xff]
    %v2032 = vld [vmem:[#allocation5 + $0x2910] sm:$0xff]
    %v2033 = vld [vmem:[#allocation5 + $0x2918] sm:$0xff]
    %v2034 = vld [vmem:[#allocation5 + $0x2920] sm:$0xff]
    %v2035 = vld [vmem:[#allocation5 + $0x2928] sm:$0xff]
    %v2036 = vld [vmem:[#allocation5 + $0x2930] sm:$0xff]
    %v2037 = vld [vmem:[#allocation5 + $0x2938] sm:$0xff]
    %v2038 = vld [vmem:[#allocation5 + $0x2940] sm:$0xff]
    %v2039 = vld [vmem:[#allocation5 + $0x2948] sm:$0xff]
    %v2040 = vld [vmem:[#allocation5 + $0x2950] sm:$0xff]
    %v2041 = vld [vmem:[#allocation5 + $0x2958] sm:$0xff]
    %v2042 = vld [vmem:[#allocation5 + $0x2960] sm:$0xff]
    %v2043 = vld [vmem:[#allocation5 + $0x2968] sm:$0xff]
    %v2044 = vld [vmem:[#allocation5 + $0x2970] sm:$0xff]
    %v2045 = vld [vmem:[#allocation5 + $0x2978] sm:$0xff]
    %v2046 = vld [vmem:[#allocation5 + $0x2980] sm:$0xff]
    %v2047 = vld [vmem:[#allocation5 + $0x2988] sm:$0xff]
    %v2048 = vld [vmem:[#allocation5 + $0x2990] sm:$0xff]
    %v2049 = vld [vmem:[#allocation5 + $0x2998] sm:$0xff]
    %v2050 = vld [vmem:[#allocation5 + $0x29a0] sm:$0xff]
    %v2051 = vld [vmem:[#allocation5 + $0x29a8] sm:$0xff]
    %v2052 = vld [vmem:[#allocation5 + $0x29b0] sm:$0xff]
    %v2053 = vld [vmem:[#allocation5 + $0x29b8] sm:$0xff]
    %v2054 = vld [vmem:[#allocation5 + $0x29c0] sm:$0xff]
    %v2055 = vld [vmem:[#allocation5 + $0x29c8] sm:$0xff]
    %v2056 = vld [vmem:[#allocation5 + $0x29d0] sm:$0xff]
    %v2057 = vld [vmem:[#allocation5 + $0x29d8] sm:$0xff]
    %v2058 = vld [vmem:[#allocation5 + $0x29e0] sm:$0xff]
    %v2059 = vld [vmem:[#allocation5 + $0x29e8] sm:$0xff]
    %v2060 = vld [vmem:[#allocation5 + $0x29f0] sm:$0xff]
    %v2061 = vld [vmem:[#allocation5 + $0x29f8] sm:$0xff]
    %v2062 = vld [vmem:[#allocation5 + $0x2a00] sm:$0xff]
    %v2063 = vld [vmem:[#allocation5 + $0x2a08] sm:$0xff]
    %v2064 = vld [vmem:[#allocation5 + $0x2a10] sm:$0xff]
    %v2065 = vld [vmem:[#allocation5 + $0x2a18] sm:$0xff]
    %v2066 = vld [vmem:[#allocation5 + $0x2a20] sm:$0xff]
    %v2067 = vld [vmem:[#allocation5 + $0x2a28] sm:$0xff]
    %v2068 = vld [vmem:[#allocation5 + $0x2a30] sm:$0xff]
    %v2069 = vld [vmem:[#allocation5 + $0x2a38] sm:$0xff]
    %v2070 = vld [vmem:[#allocation5 + $0x2a40] sm:$0xff]
    %v2071 = vld [vmem:[#allocation5 + $0x2a48] sm:$0xff]
    %v2072 = vld [vmem:[#allocation5 + $0x2a50] sm:$0xff]
    %v2073 = vld [vmem:[#allocation5 + $0x2a58] sm:$0xff]
    %v2074 = vld [vmem:[#allocation5 + $0x2a60] sm:$0xff]
    %v2075 = vld [vmem:[#allocation5 + $0x2a68] sm:$0xff]
    %v2076 = vld [vmem:[#allocation5 + $0x2a70] sm:$0xff]
    %v2077 = vld [vmem:[#allocation5 + $0x2a78] sm:$0xff]
    %v2078 = vld [vmem:[#allocation5 + $0x2a80] sm:$0xff]
    %v2079 = vld [vmem:[#allocation5 + $0x2a88] sm:$0xff]
    %v2080 = vld [vmem:[#allocation5 + $0x2a90] sm:$0xff]
    %v2081 = vld [vmem:[#allocation5 + $0x2a98] sm:$0xff]
    %v2082 = vld [vmem:[#allocation5 + $0x2aa0] sm:$0xff]
    %v2083 = vld [vmem:[#allocation5 + $0x2aa8] sm:$0xff]
    %v2084 = vld [vmem:[#allocation5 + $0x2ab0] sm:$0xff]
    %v2085 = vld [vmem:[#allocation5 + $0x2ab8] sm:$0xff]
    %v2086 = vld [vmem:[#allocation5 + $0x2ac0] sm:$0xff]
    %v2087 = vld [vmem:[#allocation5 + $0x2ac8] sm:$0xff]
    %v2088 = vld [vmem:[#allocation5 + $0x2ad0] sm:$0xff]
    %v2089 = vld [vmem:[#allocation5 + $0x2ad8] sm:$0xff]
    %v2090 = vld [vmem:[#allocation5 + $0x2ae0] sm:$0xff]
    %v2091 = vld [vmem:[#allocation5 + $0x2ae8] sm:$0xff]
    %v2092 = vld [vmem:[#allocation5 + $0x2af0] sm:$0xff]
    %v2093 = vld [vmem:[#allocation5 + $0x2af8] sm:$0xff]
    %v2094 = vld [vmem:[#allocation5 + $0x2b00] sm:$0xff]
    %v2095 = vld [vmem:[#allocation5 + $0x2b08] sm:$0xff]
    %v2096 = vld [vmem:[#allocation5 + $0x2b10] sm:$0xff]
    %v2097 = vld [vmem:[#allocation5 + $0x2b18] sm:$0xff]
    %v2098 = vld [vmem:[#allocation5 + $0x2b20] sm:$0xff]
    %v2099 = vld [vmem:[#allocation5 + $0x2b28] sm:$0xff]
    %v2100 = vld [vmem:[#allocation5 + $0x2b30] sm:$0xff]
    %v2101 = vld [vmem:[#allocation5 + $0x2b38] sm:$0xff]
    %v2102 = vld [vmem:[#allocation5 + $0x2b40] sm:$0xff]
    %v2103 = vld [vmem:[#allocation5 + $0x2b48] sm:$0xff]
    %v2104 = vld [vmem:[#allocation5 + $0x2b50] sm:$0xff]
    %v2105 = vld [vmem:[#allocation5 + $0x2b58] sm:$0xff]
    %v2106 = vld [vmem:[#allocation5 + $0x2b60] sm:$0xff]
    %v2107 = vld [vmem:[#allocation5 + $0x2b68] sm:$0xff]
    %v2108 = vld [vmem:[#allocation5 + $0x2b70] sm:$0xff]
    %v2109 = vld [vmem:[#allocation5 + $0x2b78] sm:$0xff]
    %v2110 = vld [vmem:[#allocation5 + $0x2b80] sm:$0xff]
    %v2111 = vld [vmem:[#allocation5 + $0x2b88] sm:$0xff]
    %v2112 = vld [vmem:[#allocation5 + $0x2b90] sm:$0xff]
    %v2113 = vld [vmem:[#allocation5 + $0x2b98] sm:$0xff]
    %v2114 = vld [vmem:[#allocation5 + $0x2ba0] sm:$0xff]
    %v2115 = vld [vmem:[#allocation5 + $0x2ba8] sm:$0xff]
    %v2116 = vld [vmem:[#allocation5 + $0x2bb0] sm:$0xff]
    %v2117 = vld [vmem:[#allocation5 + $0x2bb8] sm:$0xff]
    %v2118 = vld [vmem:[#allocation5 + $0x2bc0] sm:$0xff]
    %v2119 = vld [vmem:[#allocation5 + $0x2bc8] sm:$0xff]
    %v2120 = vld [vmem:[#allocation5 + $0x2bd0] sm:$0xff]
    %v2121 = vld [vmem:[#allocation5 + $0x2bd8] sm:$0xff]
    %v2122 = vld [vmem:[#allocation5 + $0x2be0] sm:$0xff]
    %v2123 = vld [vmem:[#allocation5 + $0x2be8] sm:$0xff]
    %v2124 = vld [vmem:[#allocation5 + $0x2bf0] sm:$0xff]
    %v2125 = vld [vmem:[#allocation5 + $0x2bf8] sm:$0xff]
    %v2126 = vld [vmem:[#allocation5 + $0x2c00] sm:$0xff]
    %v2127 = vld [vmem:[#allocation5 + $0x2c08] sm:$0xff]
    %v2128 = vld [vmem:[#allocation5 + $0x2c10] sm:$0xff]
    %v2129 = vld [vmem:[#allocation5 + $0x2c18] sm:$0xff]
    %v2130 = vld [vmem:[#allocation5 + $0x2c20] sm:$0xff]
    %v2131 = vld [vmem:[#allocation5 + $0x2c28] sm:$0xff]
    %v2132 = vld [vmem:[#allocation5 + $0x2c30] sm:$0xff]
    %v2133 = vld [vmem:[#allocation5 + $0x2c38] sm:$0xff]
    %v2134 = vld [vmem:[#allocation5 + $0x2c40] sm:$0xff]
    %v2135 = vld [vmem:[#allocation5 + $0x2c48] sm:$0xff]
    %v2136 = vld [vmem:[#allocation5 + $0x2c50] sm:$0xff]
    %v2137 = vld [vmem:[#allocation5 + $0x2c58] sm:$0xff]
    %v2138 = vld [vmem:[#allocation5 + $0x2c60] sm:$0xff]
    %v2139 = vld [vmem:[#allocation5 + $0x2c68] sm:$0xff]
    %v2140 = vld [vmem:[#allocation5 + $0x2c70] sm:$0xff]
    %v2141 = vld [vmem:[#allocation5 + $0x2c78] sm:$0xff]
    %v2142 = vld [vmem:[#allocation5 + $0x2c80] sm:$0xff]
    %v2143 = vld [vmem:[#allocation5 + $0x2c88] sm:$0xff]
    %v2144 = vld [vmem:[#allocation5 + $0x2c90] sm:$0xff]
    %v2145 = vld [vmem:[#allocation5 + $0x2c98] sm:$0xff]
    %v2146 = vld [vmem:[#allocation5 + $0x2ca0] sm:$0xff]
    %v2147 = vld [vmem:[#allocation5 + $0x2ca8] sm:$0xff]
    %v2148 = vld [vmem:[#allocation5 + $0x2cb0] sm:$0xff]
    %v2149 = vld [vmem:[#allocation5 + $0x2cb8] sm:$0xff]
    %v2150 = vld [vmem:[#allocation5 + $0x2cc0] sm:$0xff]
    %v2151 = vld [vmem:[#allocation5 + $0x2cc8] sm:$0xff]
    %v2152 = vld [vmem:[#allocation5 + $0x2cd0] sm:$0xff]
    %v2153 = vld [vmem:[#allocation5 + $0x2cd8] sm:$0xff]
    %v2154 = vld [vmem:[#allocation5 + $0x2ce0] sm:$0xff]
    %v2155 = vld [vmem:[#allocation5 + $0x2ce8] sm:$0xff]
    %v2156 = vld [vmem:[#allocation5 + $0x2cf0] sm:$0xff]
    %v2157 = vld [vmem:[#allocation5 + $0x2cf8] sm:$0xff]
    %v2158 = vld [vmem:[#allocation5 + $0x2d00] sm:$0xff]
    %v2159 = vld [vmem:[#allocation5 + $0x2d08] sm:$0xff]
    %v2160 = vld [vmem:[#allocation5 + $0x2d10] sm:$0xff]
    %v2161 = vld [vmem:[#allocation5 + $0x2d18] sm:$0xff]
    %v2162 = vld [vmem:[#allocation5 + $0x2d20] sm:$0xff]
    %v2163 = vld [vmem:[#allocation5 + $0x2d28] sm:$0xff]
    %v2164 = vld [vmem:[#allocation5 + $0x2d30] sm:$0xff]
    %v2165 = vld [vmem:[#allocation5 + $0x2d38] sm:$0xff]
    %v2166 = vld [vmem:[#allocation5 + $0x2d40] sm:$0xff]
    %v2167 = vld [vmem:[#allocation5 + $0x2d48] sm:$0xff]
    %v2168 = vld [vmem:[#allocation5 + $0x2d50] sm:$0xff]
    %v2169 = vld [vmem:[#allocation5 + $0x2d58] sm:$0xff]
    %v2170 = vld [vmem:[#allocation5 + $0x2d60] sm:$0xff]
    %v2171 = vld [vmem:[#allocation5 + $0x2d68] sm:$0xff]
    %v2172 = vld [vmem:[#allocation5 + $0x2d70] sm:$0xff]
    %v2173 = vld [vmem:[#allocation5 + $0x2d78] sm:$0xff]
    %v2174 = vld [vmem:[#allocation5 + $0x2d80] sm:$0xff]
    %v2175 = vld [vmem:[#allocation5 + $0x2d88] sm:$0xff]
    %v2176 = vld [vmem:[#allocation5 + $0x2d90] sm:$0xff]
    %v2177 = vld [vmem:[#allocation5 + $0x2d98] sm:$0xff]
    %v2178 = vld [vmem:[#allocation5 + $0x2da0] sm:$0xff]
    %v2179 = vld [vmem:[#allocation5 + $0x2da8] sm:$0xff]
    %v2180 = vld [vmem:[#allocation5 + $0x2db0] sm:$0xff]
    %v2181 = vld [vmem:[#allocation5 + $0x2db8] sm:$0xff]
    %v2182 = vld [vmem:[#allocation5 + $0x2dc0] sm:$0xff]
    %v2183 = vld [vmem:[#allocation5 + $0x2dc8] sm:$0xff]
    %v2184 = vld [vmem:[#allocation5 + $0x2dd0] sm:$0xff]
    %v2185 = vld [vmem:[#allocation5 + $0x2dd8] sm:$0xff]
    %v2186 = vld [vmem:[#allocation5 + $0x2de0] sm:$0xff]
    %v2187 = vld [vmem:[#allocation5 + $0x2de8] sm:$0xff]
    %v2188 = vld [vmem:[#allocation5 + $0x2df0] sm:$0xff]
    %v2189 = vld [vmem:[#allocation5 + $0x2df8] sm:$0xff]
    %v2190 = vld [vmem:[#allocation5 + $0x2e00] sm:$0xff]
    %v2191 = vld [vmem:[#allocation5 + $0x2e08] sm:$0xff]
    %v2192 = vld [vmem:[#allocation5 + $0x2e10] sm:$0xff]
    %v2193 = vld [vmem:[#allocation5 + $0x2e18] sm:$0xff]
    %v2194 = vld [vmem:[#allocation5 + $0x2e20] sm:$0xff]
    %v2195 = vld [vmem:[#allocation5 + $0x2e28] sm:$0xff]
    %v2196 = vld [vmem:[#allocation5 + $0x2e30] sm:$0xff]
    %v2197 = vld [vmem:[#allocation5 + $0x2e38] sm:$0xff]
    %v2198 = vld [vmem:[#allocation5 + $0x2e40] sm:$0xff]
    %v2199 = vld [vmem:[#allocation5 + $0x2e48] sm:$0xff]
    %v2200 = vld [vmem:[#allocation5 + $0x2e50] sm:$0xff]
    %v2201 = vld [vmem:[#allocation5 + $0x2e58] sm:$0xff]
    %v2202 = vld [vmem:[#allocation5 + $0x2e60] sm:$0xff]
    %v2203 = vld [vmem:[#allocation5 + $0x2e68] sm:$0xff]
    %v2204 = vld [vmem:[#allocation5 + $0x2e70] sm:$0xff]
    %v2205 = vld [vmem:[#allocation5 + $0x2e78] sm:$0xff]
    %v2206 = vld [vmem:[#allocation5 + $0x2e80] sm:$0xff]
    %v2207 = vld [vmem:[#allocation5 + $0x2e88] sm:$0xff]
    %v2208 = vld [vmem:[#allocation5 + $0x2e90] sm:$0xff]
    %v2209 = vld [vmem:[#allocation5 + $0x2e98] sm:$0xff]
    %v2210 = vld [vmem:[#allocation5 + $0x2ea0] sm:$0xff]
    %v2211 = vld [vmem:[#allocation5 + $0x2ea8] sm:$0xff]
    %v2212 = vld [vmem:[#allocation5 + $0x2eb0] sm:$0xff]
    %v2213 = vld [vmem:[#allocation5 + $0x2eb8] sm:$0xff]
    %v2214 = vld [vmem:[#allocation5 + $0x2ec0] sm:$0xff]
    %v2215 = vld [vmem:[#allocation5 + $0x2ec8] sm:$0xff]
    %v2216 = vld [vmem:[#allocation5 + $0x2ed0] sm:$0xff]
    %v2217 = vld [vmem:[#allocation5 + $0x2ed8] sm:$0xff]
    %v2218 = vld [vmem:[#allocation5 + $0x2ee0] sm:$0xff]
    %v2219 = vld [vmem:[#allocation5 + $0x2ee8] sm:$0xff]
    %v2220 = vld [vmem:[#allocation5 + $0x2ef0] sm:$0xff]
    %v2221 = vld [vmem:[#allocation5 + $0x2ef8] sm:$0xff]
    %v2222 = vld [vmem:[#allocation5 + $0x2f00] sm:$0xff]
    %v2223 = vld [vmem:[#allocation5 + $0x2f08] sm:$0xff]
    %v2224 = vld [vmem:[#allocation5 + $0x2f10] sm:$0xff]
    %v2225 = vld [vmem:[#allocation5 + $0x2f18] sm:$0xff]
    %v2226 = vld [vmem:[#allocation5 + $0x2f20] sm:$0xff]
    %v2227 = vld [vmem:[#allocation5 + $0x2f28] sm:$0xff]
    %v2228 = vld [vmem:[#allocation5 + $0x2f30] sm:$0xff]
    %v2229 = vld [vmem:[#allocation5 + $0x2f38] sm:$0xff]
    %v2230 = vld [vmem:[#allocation5 + $0x2f40] sm:$0xff]
    %v2231 = vld [vmem:[#allocation5 + $0x2f48] sm:$0xff]
    %v2232 = vld [vmem:[#allocation5 + $0x2f50] sm:$0xff]
    %v2233 = vld [vmem:[#allocation5 + $0x2f58] sm:$0xff]
    %v2234 = vld [vmem:[#allocation5 + $0x2f60] sm:$0xff]
    %v2235 = vld [vmem:[#allocation5 + $0x2f68] sm:$0xff]
    %v2236 = vld [vmem:[#allocation5 + $0x2f70] sm:$0xff]
    %v2237 = vld [vmem:[#allocation5 + $0x2f78] sm:$0xff]
    %v2238 = vld [vmem:[#allocation5 + $0x2f80] sm:$0xff]
    %v2239 = vld [vmem:[#allocation5 + $0x2f88] sm:$0xff]
    %v2240 = vld [vmem:[#allocation5 + $0x2f90] sm:$0xff]
    %v2241 = vld [vmem:[#allocation5 + $0x2f98] sm:$0xff]
    %v2242 = vld [vmem:[#allocation5 + $0x2fa0] sm:$0xff]
    %v2243 = vld [vmem:[#allocation5 + $0x2fa8] sm:$0xff]
    %v2244 = vld [vmem:[#allocation5 + $0x2fb0] sm:$0xff]
    %v2245 = vld [vmem:[#allocation5 + $0x2fb8] sm:$0xff]
    %v2246 = vld [vmem:[#allocation5 + $0x2fc0] sm:$0xff]
    %v2247 = vld [vmem:[#allocation5 + $0x2fc8] sm:$0xff]
    %v2248 = vld [vmem:[#allocation5 + $0x2fd0] sm:$0xff]
    %v2249 = vld [vmem:[#allocation5 + $0x2fd8] sm:$0xff]
    %v2250 = vld [vmem:[#allocation5 + $0x2fe0] sm:$0xff]
    %v2251 = vld [vmem:[#allocation5 + $0x2fe8] sm:$0xff]
    %v2252 = vld [vmem:[#allocation5 + $0x2ff0] sm:$0xff]
    %v2253 = vld [vmem:[#allocation5 + $0x2ff8] sm:$0xff]
    %v2254 = vld [vmem:[#allocation7] sm:$0x3]
    %v2256 = vlaneseq
    %v2257 = vshrl.u32 %v2256, 7
    %v2258 = vsub.s32 0, %v2257
    %v2259 = vrot.slane %v2254, %v2258
    %v2260 = vlaneseq
    %v2261 = vshrl.u32 %v2260, 7
    %v2262 = vsub.s32 1, %v2261
    %v2263 = vrot.slane %v2254, %v2262
    %v3802 = vunpack.c.l.b16 %v718
    %v3803 = vunpack.c.h.b16 %v718
    %v3804 = vunpack.c.l.b16 %v719
    %v3805 = vunpack.c.h.b16 %v719
    %v3806 = vunpack.c.l.b16 %v720
    %v3807 = vunpack.c.h.b16 %v720
    %v3808 = vunpack.c.l.b16 %v721
    %v3809 = vunpack.c.h.b16 %v721
    %v3810 = vunpack.c.l.b16 %v722
    %v3811 = vunpack.c.h.b16 %v722
    %v3812 = vunpack.c.l.b16 %v723
    %v3813 = vunpack.c.h.b16 %v723
    %v3814 = vunpack.c.l.b16 %v724
    %v3815 = vunpack.c.h.b16 %v724
    %v3816 = vunpack.c.l.b16 %v725
    %v3817 = vunpack.c.h.b16 %v725
    %v3818 = vunpack.c.l.b16 %v726
    %v3819 = vunpack.c.h.b16 %v726
    %v3820 = vunpack.c.l.b16 %v727
    %v3821 = vunpack.c.h.b16 %v727
    %v3822 = vunpack.c.l.b16 %v728
    %v3823 = vunpack.c.h.b16 %v728
    %v3824 = vunpack.c.l.b16 %v729
    %v3825 = vunpack.c.h.b16 %v729
    %v3826 = vunpack.c.l.b16 %v730
    %v3827 = vunpack.c.h.b16 %v730
    %v3828 = vunpack.c.l.b16 %v731
    %v3829 = vunpack.c.h.b16 %v731
    %v3830 = vunpack.c.l.b16 %v732
    %v3831 = vunpack.c.h.b16 %v732
    %v3832 = vunpack.c.l.b16 %v733
    %v3833 = vunpack.c.h.b16 %v733
    %v3834 = vunpack.c.l.b16 %v734
    %v3835 = vunpack.c.h.b16 %v734
    %v3836 = vunpack.c.l.b16 %v735
    %v3837 = vunpack.c.h.b16 %v735
    %v3838 = vunpack.c.l.b16 %v736
    %v3839 = vunpack.c.h.b16 %v736
    %v3840 = vunpack.c.l.b16 %v737
    %v3841 = vunpack.c.h.b16 %v737
    %v3842 = vunpack.c.l.b16 %v738
    %v3843 = vunpack.c.h.b16 %v738
    %v3844 = vunpack.c.l.b16 %v739
    %v3845 = vunpack.c.h.b16 %v739
    %v3846 = vunpack.c.l.b16 %v740
    %v3847 = vunpack.c.h.b16 %v740
    %v3848 = vunpack.c.l.b16 %v741
    %v3849 = vunpack.c.h.b16 %v741
    %v3850 = vunpack.c.l.b16 %v742
    %v3851 = vunpack.c.h.b16 %v742
    %v3852 = vunpack.c.l.b16 %v743
    %v3853 = vunpack.c.h.b16 %v743
    %v3854 = vunpack.c.l.b16 %v744
    %v3855 = vunpack.c.h.b16 %v744
    %v3856 = vunpack.c.l.b16 %v745
    %v3857 = vunpack.c.h.b16 %v745
    %v3858 = vunpack.c.l.b16 %v746
    %v3859 = vunpack.c.h.b16 %v746
    %v3860 = vunpack.c.l.b16 %v747
    %v3861 = vunpack.c.h.b16 %v747
    %v3862 = vunpack.c.l.b16 %v748
    %v3863 = vunpack.c.h.b16 %v748
    %v3864 = vunpack.c.l.b16 %v749
    %v3865 = vunpack.c.h.b16 %v749
    %v3866 = vunpack.c.l.b16 %v750
    %v3867 = vunpack.c.h.b16 %v750
    %v3868 = vunpack.c.l.b16 %v751
    %v3869 = vunpack.c.h.b16 %v751
    %v3870 = vunpack.c.l.b16 %v752
    %v3871 = vunpack.c.h.b16 %v752
    %v3872 = vunpack.c.l.b16 %v753
    %v3873 = vunpack.c.h.b16 %v753
    %v3874 = vunpack.c.l.b16 %v754
    %v3875 = vunpack.c.h.b16 %v754
    %v3876 = vunpack.c.l.b16 %v755
    %v3877 = vunpack.c.h.b16 %v755
    %v3878 = vunpack.c.l.b16 %v756
    %v3879 = vunpack.c.h.b16 %v756
    %v3880 = vunpack.c.l.b16 %v757
    %v3881 = vunpack.c.h.b16 %v757
    %v3882 = vunpack.c.l.b16 %v758
    %v3883 = vunpack.c.h.b16 %v758
    %v3884 = vunpack.c.l.b16 %v759
    %v3885 = vunpack.c.h.b16 %v759
    %v3886 = vunpack.c.l.b16 %v760
    %v3887 = vunpack.c.h.b16 %v760
    %v3888 = vunpack.c.l.b16 %v761
    %v3889 = vunpack.c.h.b16 %v761
    %v3890 = vunpack.c.l.b16 %v762
    %v3891 = vunpack.c.h.b16 %v762
    %v3892 = vunpack.c.l.b16 %v763
    %v3893 = vunpack.c.h.b16 %v763
    %v3894 = vunpack.c.l.b16 %v764
    %v3895 = vunpack.c.h.b16 %v764
    %v3896 = vunpack.c.l.b16 %v765
    %v3897 = vunpack.c.h.b16 %v765
    %v3898 = vunpack.c.l.b16 %v766
    %v3899 = vunpack.c.h.b16 %v766
    %v3900 = vunpack.c.l.b16 %v767
    %v3901 = vunpack.c.h.b16 %v767
    %v3902 = vunpack.c.l.b16 %v768
    %v3903 = vunpack.c.h.b16 %v768
    %v3904 = vunpack.c.l.b16 %v769
    %v3905 = vunpack.c.h.b16 %v769
    %v3906 = vunpack.c.l.b16 %v770
    %v3907 = vunpack.c.h.b16 %v770
    %v3908 = vunpack.c.l.b16 %v771
    %v3909 = vunpack.c.h.b16 %v771
    %v3910 = vunpack.c.l.b16 %v772
    %v3911 = vunpack.c.h.b16 %v772
    %v3912 = vunpack.c.l.b16 %v773
    %v3913 = vunpack.c.h.b16 %v773
    %v3914 = vunpack.c.l.b16 %v774
    %v3915 = vunpack.c.h.b16 %v774
    %v3916 = vunpack.c.l.b16 %v775
    %v3917 = vunpack.c.h.b16 %v775
    %v3918 = vunpack.c.l.b16 %v776
    %v3919 = vunpack.c.h.b16 %v776
    %v3920 = vunpack.c.l.b16 %v777
    %v3921 = vunpack.c.h.b16 %v777
    %v3922 = vunpack.c.l.b16 %v778
    %v3923 = vunpack.c.h.b16 %v778
    %v3924 = vunpack.c.l.b16 %v779
    %v3925 = vunpack.c.h.b16 %v779
    %v3926 = vunpack.c.l.b16 %v780
    %v3927 = vunpack.c.h.b16 %v780
    %v3928 = vunpack.c.l.b16 %v781
    %v3929 = vunpack.c.h.b16 %v781
    %v3930 = vunpack.c.l.b16 %v782
    %v3931 = vunpack.c.h.b16 %v782
    %v3932 = vunpack.c.l.b16 %v783
    %v3933 = vunpack.c.h.b16 %v783
    %v3934 = vunpack.c.l.b16 %v784
    %v3935 = vunpack.c.h.b16 %v784
    %v3936 = vunpack.c.l.b16 %v785
    %v3937 = vunpack.c.h.b16 %v785
    %v3938 = vunpack.c.l.b16 %v786
    %v3939 = vunpack.c.h.b16 %v786
    %v3940 = vunpack.c.l.b16 %v787
    %v3941 = vunpack.c.h.b16 %v787
    %v3942 = vunpack.c.l.b16 %v788
    %v3943 = vunpack.c.h.b16 %v788
    %v3944 = vunpack.c.l.b16 %v789
    %v3945 = vunpack.c.h.b16 %v789
    %v3946 = vunpack.c.l.b16 %v790
    %v3947 = vunpack.c.h.b16 %v790
    %v3948 = vunpack.c.l.b16 %v791
    %v3949 = vunpack.c.h.b16 %v791
    %v3950 = vunpack.c.l.b16 %v792
    %v3951 = vunpack.c.h.b16 %v792
    %v3952 = vunpack.c.l.b16 %v793
    %v3953 = vunpack.c.h.b16 %v793
    %v3954 = vunpack.c.l.b16 %v794
    %v3955 = vunpack.c.h.b16 %v794
    %v3956 = vunpack.c.l.b16 %v795
    %v3957 = vunpack.c.h.b16 %v795
    %v3958 = vunpack.c.l.b16 %v796
    %v3959 = vunpack.c.h.b16 %v796
    %v3960 = vunpack.c.l.b16 %v797
    %v3961 = vunpack.c.h.b16 %v797
    %v3962 = vunpack.c.l.b16 %v798
    %v3963 = vunpack.c.h.b16 %v798
    %v3964 = vunpack.c.l.b16 %v799
    %v3965 = vunpack.c.h.b16 %v799
    %v3966 = vunpack.c.l.b16 %v800
    %v3967 = vunpack.c.h.b16 %v800
    %v3968 = vunpack.c.l.b16 %v801
    %v3969 = vunpack.c.h.b16 %v801
    %v3970 = vunpack.c.l.b16 %v802
    %v3971 = vunpack.c.h.b16 %v802
    %v3972 = vunpack.c.l.b16 %v803
    %v3973 = vunpack.c.h.b16 %v803
    %v3974 = vunpack.c.l.b16 %v804
    %v3975 = vunpack.c.h.b16 %v804
    %v3976 = vunpack.c.l.b16 %v805
    %v3977 = vunpack.c.h.b16 %v805
    %v3978 = vunpack.c.l.b16 %v806
    %v3979 = vunpack.c.h.b16 %v806
    %v3980 = vunpack.c.l.b16 %v807
    %v3981 = vunpack.c.h.b16 %v807
    %v3982 = vunpack.c.l.b16 %v808
    %v3983 = vunpack.c.h.b16 %v808
    %v3984 = vunpack.c.l.b16 %v809
    %v3985 = vunpack.c.h.b16 %v809
    %v3986 = vunpack.c.l.b16 %v810
    %v3987 = vunpack.c.h.b16 %v810
    %v3988 = vunpack.c.l.b16 %v811
    %v3989 = vunpack.c.h.b16 %v811
    %v3990 = vunpack.c.l.b16 %v812
    %v3991 = vunpack.c.h.b16 %v812
    %v3992 = vunpack.c.l.b16 %v813
    %v3993 = vunpack.c.h.b16 %v813
    %v3994 = vunpack.c.l.b16 %v814
    %v3995 = vunpack.c.h.b16 %v814
    %v3996 = vunpack.c.l.b16 %v815
    %v3997 = vunpack.c.h.b16 %v815
    %v3998 = vunpack.c.l.b16 %v816
    %v3999 = vunpack.c.h.b16 %v816
    %v4000 = vunpack.c.l.b16 %v817
    %v4001 = vunpack.c.h.b16 %v817
    %v4002 = vunpack.c.l.b16 %v818
    %v4003 = vunpack.c.h.b16 %v818
    %v4004 = vunpack.c.l.b16 %v819
    %v4005 = vunpack.c.h.b16 %v819
    %v4006 = vunpack.c.l.b16 %v820
    %v4007 = vunpack.c.h.b16 %v820
    %v4008 = vunpack.c.l.b16 %v821
    %v4009 = vunpack.c.h.b16 %v821
    %v4010 = vunpack.c.l.b16 %v822
    %v4011 = vunpack.c.h.b16 %v822
    %v4012 = vunpack.c.l.b16 %v823
    %v4013 = vunpack.c.h.b16 %v823
    %v4014 = vunpack.c.l.b16 %v824
    %v4015 = vunpack.c.h.b16 %v824
    %v4016 = vunpack.c.l.b16 %v825
    %v4017 = vunpack.c.h.b16 %v825
    %v4018 = vunpack.c.l.b16 %v826
    %v4019 = vunpack.c.h.b16 %v826
    %v4020 = vunpack.c.l.b16 %v827
    %v4021 = vunpack.c.h.b16 %v827
    %v4022 = vunpack.c.l.b16 %v828
    %v4023 = vunpack.c.h.b16 %v828
    %v4024 = vunpack.c.l.b16 %v829
    %v4025 = vunpack.c.h.b16 %v829
    %v4026 = vunpack.c.l.b16 %v830
    %v4027 = vunpack.c.h.b16 %v830
    %v4028 = vunpack.c.l.b16 %v831
    %v4029 = vunpack.c.h.b16 %v831
    %v4030 = vunpack.c.l.b16 %v832
    %v4031 = vunpack.c.h.b16 %v832
    %v4032 = vunpack.c.l.b16 %v833
    %v4033 = vunpack.c.h.b16 %v833
    %v4034 = vunpack.c.l.b16 %v834
    %v4035 = vunpack.c.h.b16 %v834
    %v4036 = vunpack.c.l.b16 %v835
    %v4037 = vunpack.c.h.b16 %v835
    %v4038 = vunpack.c.l.b16 %v836
    %v4039 = vunpack.c.h.b16 %v836
    %v4040 = vunpack.c.l.b16 %v837
    %v4041 = vunpack.c.h.b16 %v837
    %v4042 = vunpack.c.l.b16 %v838
    %v4043 = vunpack.c.h.b16 %v838
    %v4044 = vunpack.c.l.b16 %v839
    %v4045 = vunpack.c.h.b16 %v839
    %v4046 = vunpack.c.l.b16 %v840
    %v4047 = vunpack.c.h.b16 %v840
    %v4048 = vunpack.c.l.b16 %v841
    %v4049 = vunpack.c.h.b16 %v841
    %v4050 = vunpack.c.l.b16 %v842
    %v4051 = vunpack.c.h.b16 %v842
    %v4052 = vunpack.c.l.b16 %v843
    %v4053 = vunpack.c.h.b16 %v843
    %v4054 = vunpack.c.l.b16 %v844
    %v4055 = vunpack.c.h.b16 %v844
    %v4056 = vunpack.c.l.b16 %v845
    %v4057 = vunpack.c.h.b16 %v845
    %v4058 = vunpack.c.l.b16 %v846
    %v4059 = vunpack.c.h.b16 %v846
    %v4060 = vunpack.c.l.b16 %v847
    %v4061 = vunpack.c.h.b16 %v847
    %v4062 = vunpack.c.l.b16 %v848
    %v4063 = vunpack.c.h.b16 %v848
    %v4064 = vunpack.c.l.b16 %v849
    %v4065 = vunpack.c.h.b16 %v849
    %v4066 = vunpack.c.l.b16 %v850
    %v4067 = vunpack.c.h.b16 %v850
    %v4068 = vunpack.c.l.b16 %v851
    %v4069 = vunpack.c.h.b16 %v851
    %v4070 = vunpack.c.l.b16 %v852
    %v4071 = vunpack.c.h.b16 %v852
    %v4072 = vunpack.c.l.b16 %v853
    %v4073 = vunpack.c.h.b16 %v853
    %v4074 = vunpack.c.l.b16 %v854
    %v4075 = vunpack.c.h.b16 %v854
    %v4076 = vunpack.c.l.b16 %v855
    %v4077 = vunpack.c.h.b16 %v855
    %v4078 = vunpack.c.l.b16 %v856
    %v4079 = vunpack.c.h.b16 %v856
    %v4080 = vunpack.c.l.b16 %v857
    %v4081 = vunpack.c.h.b16 %v857
    %v4082 = vunpack.c.l.b16 %v858
    %v4083 = vunpack.c.h.b16 %v858
    %v4084 = vunpack.c.l.b16 %v859
    %v4085 = vunpack.c.h.b16 %v859
    %v4086 = vunpack.c.l.b16 %v860
    %v4087 = vunpack.c.h.b16 %v860
    %v4088 = vunpack.c.l.b16 %v861
    %v4089 = vunpack.c.h.b16 %v861
    %v4090 = vunpack.c.l.b16 %v862
    %v4091 = vunpack.c.h.b16 %v862
    %v4092 = vunpack.c.l.b16 %v863
    %v4093 = vunpack.c.h.b16 %v863
    %v4094 = vunpack.c.l.b16 %v864
    %v4095 = vunpack.c.h.b16 %v864
    %v4096 = vunpack.c.l.b16 %v865
    %v4097 = vunpack.c.h.b16 %v865
    %v4098 = vunpack.c.l.b16 %v866
    %v4099 = vunpack.c.h.b16 %v866
    %v4100 = vunpack.c.l.b16 %v867
    %v4101 = vunpack.c.h.b16 %v867
    %v4102 = vunpack.c.l.b16 %v868
    %v4103 = vunpack.c.h.b16 %v868
    %v4104 = vunpack.c.l.b16 %v869
    %v4105 = vunpack.c.h.b16 %v869
    %v4106 = vunpack.c.l.b16 %v870
    %v4107 = vunpack.c.h.b16 %v870
    %v4108 = vunpack.c.l.b16 %v871
    %v4109 = vunpack.c.h.b16 %v871
    %v4110 = vunpack.c.l.b16 %v872
    %v4111 = vunpack.c.h.b16 %v872
    %v4112 = vunpack.c.l.b16 %v873
    %v4113 = vunpack.c.h.b16 %v873
    %v4114 = vunpack.c.l.b16 %v874
    %v4115 = vunpack.c.h.b16 %v874
    %v4116 = vunpack.c.l.b16 %v875
    %v4117 = vunpack.c.h.b16 %v875
    %v4118 = vunpack.c.l.b16 %v876
    %v4119 = vunpack.c.h.b16 %v876
    %v4120 = vunpack.c.l.b16 %v877
    %v4121 = vunpack.c.h.b16 %v877
    %v4122 = vunpack.c.l.b16 %v878
    %v4123 = vunpack.c.h.b16 %v878
    %v4124 = vunpack.c.l.b16 %v879
    %v4125 = vunpack.c.h.b16 %v879
    %v4126 = vunpack.c.l.b16 %v880
    %v4127 = vunpack.c.h.b16 %v880
    %v4128 = vunpack.c.l.b16 %v881
    %v4129 = vunpack.c.h.b16 %v881
    %v4130 = vunpack.c.l.b16 %v882
    %v4131 = vunpack.c.h.b16 %v882
    %v4132 = vunpack.c.l.b16 %v883
    %v4133 = vunpack.c.h.b16 %v883
    %v4134 = vunpack.c.l.b16 %v884
    %v4135 = vunpack.c.h.b16 %v884
    %v4136 = vunpack.c.l.b16 %v885
    %v4137 = vunpack.c.h.b16 %v885
    %v4138 = vunpack.c.l.b16 %v886
    %v4139 = vunpack.c.h.b16 %v886
    %v4140 = vunpack.c.l.b16 %v887
    %v4141 = vunpack.c.h.b16 %v887
    %v4142 = vunpack.c.l.b16 %v888
    %v4143 = vunpack.c.h.b16 %v888
    %v4144 = vunpack.c.l.b16 %v889
    %v4145 = vunpack.c.h.b16 %v889
    %v4146 = vunpack.c.l.b16 %v890
    %v4147 = vunpack.c.h.b16 %v890
    %v4148 = vunpack.c.l.b16 %v891
    %v4149 = vunpack.c.h.b16 %v891
    %v4150 = vunpack.c.l.b16 %v892
    %v4151 = vunpack.c.h.b16 %v892
    %v4152 = vunpack.c.l.b16 %v893
    %v4153 = vunpack.c.h.b16 %v893
    %v4154 = vunpack.c.l.b16 %v894
    %v4155 = vunpack.c.h.b16 %v894
    %v4156 = vunpack.c.l.b16 %v895
    %v4157 = vunpack.c.h.b16 %v895
    %v4158 = vunpack.c.l.b16 %v896
    %v4159 = vunpack.c.h.b16 %v896
    %v4160 = vunpack.c.l.b16 %v897
    %v4161 = vunpack.c.h.b16 %v897
    %v4162 = vunpack.c.l.b16 %v898
    %v4163 = vunpack.c.h.b16 %v898
    %v4164 = vunpack.c.l.b16 %v899
    %v4165 = vunpack.c.h.b16 %v899
    %v4166 = vunpack.c.l.b16 %v900
    %v4167 = vunpack.c.h.b16 %v900
    %v4168 = vunpack.c.l.b16 %v901
    %v4169 = vunpack.c.h.b16 %v901
    %v4170 = vunpack.c.l.b16 %v902
    %v4171 = vunpack.c.h.b16 %v902
    %v4172 = vunpack.c.l.b16 %v903
    %v4173 = vunpack.c.h.b16 %v903
    %v4174 = vunpack.c.l.b16 %v904
    %v4175 = vunpack.c.h.b16 %v904
    %v4176 = vunpack.c.l.b16 %v905
    %v4177 = vunpack.c.h.b16 %v905
    %v4178 = vunpack.c.l.b16 %v906
    %v4179 = vunpack.c.h.b16 %v906
    %v4180 = vunpack.c.l.b16 %v907
    %v4181 = vunpack.c.h.b16 %v907
    %v4182 = vunpack.c.l.b16 %v908
    %v4183 = vunpack.c.h.b16 %v908
    %v4184 = vunpack.c.l.b16 %v909
    %v4185 = vunpack.c.h.b16 %v909
    %v4186 = vunpack.c.l.b16 %v910
    %v4187 = vunpack.c.h.b16 %v910
    %v4188 = vunpack.c.l.b16 %v911
    %v4189 = vunpack.c.h.b16 %v911
    %v4190 = vunpack.c.l.b16 %v912
    %v4191 = vunpack.c.h.b16 %v912
    %v4192 = vunpack.c.l.b16 %v913
    %v4193 = vunpack.c.h.b16 %v913
    %v4194 = vunpack.c.l.b16 %v914
    %v4195 = vunpack.c.h.b16 %v914
    %v4196 = vunpack.c.l.b16 %v915
    %v4197 = vunpack.c.h.b16 %v915
    %v4198 = vunpack.c.l.b16 %v916
    %v4199 = vunpack.c.h.b16 %v916
    %v4200 = vunpack.c.l.b16 %v917
    %v4201 = vunpack.c.h.b16 %v917
    %v4202 = vunpack.c.l.b16 %v918
    %v4203 = vunpack.c.h.b16 %v918
    %v4204 = vunpack.c.l.b16 %v919
    %v4205 = vunpack.c.h.b16 %v919
    %v4206 = vunpack.c.l.b16 %v920
    %v4207 = vunpack.c.h.b16 %v920
    %v4208 = vunpack.c.l.b16 %v921
    %v4209 = vunpack.c.h.b16 %v921
    %v4210 = vunpack.c.l.b16 %v922
    %v4211 = vunpack.c.h.b16 %v922
    %v4212 = vunpack.c.l.b16 %v923
    %v4213 = vunpack.c.h.b16 %v923
    %v4214 = vunpack.c.l.b16 %v924
    %v4215 = vunpack.c.h.b16 %v924
    %v4216 = vunpack.c.l.b16 %v925
    %v4217 = vunpack.c.h.b16 %v925
    %v4218 = vunpack.c.l.b16 %v926
    %v4219 = vunpack.c.h.b16 %v926
    %v4220 = vunpack.c.l.b16 %v927
    %v4221 = vunpack.c.h.b16 %v927
    %v4222 = vunpack.c.l.b16 %v928
    %v4223 = vunpack.c.h.b16 %v928
    %v4224 = vunpack.c.l.b16 %v929
    %v4225 = vunpack.c.h.b16 %v929
    %v4226 = vunpack.c.l.b16 %v930
    %v4227 = vunpack.c.h.b16 %v930
    %v4228 = vunpack.c.l.b16 %v931
    %v4229 = vunpack.c.h.b16 %v931
    %v4230 = vunpack.c.l.b16 %v932
    %v4231 = vunpack.c.h.b16 %v932
    %v4232 = vunpack.c.l.b16 %v933
    %v4233 = vunpack.c.h.b16 %v933
    %v4234 = vunpack.c.l.b16 %v934
    %v4235 = vunpack.c.h.b16 %v934
    %v4236 = vunpack.c.l.b16 %v935
    %v4237 = vunpack.c.h.b16 %v935
    %v4238 = vunpack.c.l.b16 %v936
    %v4239 = vunpack.c.h.b16 %v936
    %v4240 = vunpack.c.l.b16 %v937
    %v4241 = vunpack.c.h.b16 %v937
    %v4242 = vunpack.c.l.b16 %v938
    %v4243 = vunpack.c.h.b16 %v938
    %v4244 = vunpack.c.l.b16 %v939
    %v4245 = vunpack.c.h.b16 %v939
    %v4246 = vunpack.c.l.b16 %v940
    %v4247 = vunpack.c.h.b16 %v940
    %v4248 = vunpack.c.l.b16 %v941
    %v4249 = vunpack.c.h.b16 %v941
    %v4250 = vunpack.c.l.b16 %v942
    %v4251 = vunpack.c.h.b16 %v942
    %v4252 = vunpack.c.l.b16 %v943
    %v4253 = vunpack.c.h.b16 %v943
    %v4254 = vunpack.c.l.b16 %v944
    %v4255 = vunpack.c.h.b16 %v944
    %v4256 = vunpack.c.l.b16 %v945
    %v4257 = vunpack.c.h.b16 %v945
    %v4258 = vunpack.c.l.b16 %v946
    %v4259 = vunpack.c.h.b16 %v946
    %v4260 = vunpack.c.l.b16 %v947
    %v4261 = vunpack.c.h.b16 %v947
    %v4262 = vunpack.c.l.b16 %v948
    %v4263 = vunpack.c.h.b16 %v948
    %v4264 = vunpack.c.l.b16 %v949
    %v4265 = vunpack.c.h.b16 %v949
    %v4266 = vunpack.c.l.b16 %v950
    %v4267 = vunpack.c.h.b16 %v950
    %v4268 = vunpack.c.l.b16 %v951
    %v4269 = vunpack.c.h.b16 %v951
    %v4270 = vunpack.c.l.b16 %v952
    %v4271 = vunpack.c.h.b16 %v952
    %v4272 = vunpack.c.l.b16 %v953
    %v4273 = vunpack.c.h.b16 %v953
    %v4274 = vunpack.c.l.b16 %v954
    %v4275 = vunpack.c.h.b16 %v954
    %v4276 = vunpack.c.l.b16 %v955
    %v4277 = vunpack.c.h.b16 %v955
    %v4278 = vunpack.c.l.b16 %v956
    %v4279 = vunpack.c.h.b16 %v956
    %v4280 = vunpack.c.l.b16 %v957
    %v4281 = vunpack.c.h.b16 %v957
    %v4282 = vunpack.c.l.b16 %v958
    %v4283 = vunpack.c.h.b16 %v958
    %v4284 = vunpack.c.l.b16 %v959
    %v4285 = vunpack.c.h.b16 %v959
    %v4286 = vunpack.c.l.b16 %v960
    %v4287 = vunpack.c.h.b16 %v960
    %v4288 = vunpack.c.l.b16 %v961
    %v4289 = vunpack.c.h.b16 %v961
    %v4290 = vunpack.c.l.b16 %v962
    %v4291 = vunpack.c.h.b16 %v962
    %v4292 = vunpack.c.l.b16 %v963
    %v4293 = vunpack.c.h.b16 %v963
    %v4294 = vunpack.c.l.b16 %v964
    %v4295 = vunpack.c.h.b16 %v964
    %v4296 = vunpack.c.l.b16 %v965
    %v4297 = vunpack.c.h.b16 %v965
    %v4298 = vunpack.c.l.b16 %v966
    %v4299 = vunpack.c.h.b16 %v966
    %v4300 = vunpack.c.l.b16 %v967
    %v4301 = vunpack.c.h.b16 %v967
    %v4302 = vunpack.c.l.b16 %v968
    %v4303 = vunpack.c.h.b16 %v968
    %v4304 = vunpack.c.l.b16 %v969
    %v4305 = vunpack.c.h.b16 %v969
    %v4306 = vunpack.c.l.b16 %v970
    %v4307 = vunpack.c.h.b16 %v970
    %v4308 = vunpack.c.l.b16 %v971
    %v4309 = vunpack.c.h.b16 %v971
    %v4310 = vunpack.c.l.b16 %v972
    %v4311 = vunpack.c.h.b16 %v972
    %v4312 = vunpack.c.l.b16 %v973
    %v4313 = vunpack.c.h.b16 %v973
    %v4314 = vunpack.c.l.b16 %v974
    %v4315 = vunpack.c.h.b16 %v974
    %v4316 = vunpack.c.l.b16 %v975
    %v4317 = vunpack.c.h.b16 %v975
    %v4318 = vunpack.c.l.b16 %v976
    %v4319 = vunpack.c.h.b16 %v976
    %v4320 = vunpack.c.l.b16 %v977
    %v4321 = vunpack.c.h.b16 %v977
    %v4322 = vunpack.c.l.b16 %v978
    %v4323 = vunpack.c.h.b16 %v978
    %v4324 = vunpack.c.l.b16 %v979
    %v4325 = vunpack.c.h.b16 %v979
    %v4326 = vunpack.c.l.b16 %v980
    %v4327 = vunpack.c.h.b16 %v980
    %v4328 = vunpack.c.l.b16 %v981
    %v4329 = vunpack.c.h.b16 %v981
    %v4330 = vunpack.c.l.b16 %v982
    %v4331 = vunpack.c.h.b16 %v982
    %v4332 = vunpack.c.l.b16 %v983
    %v4333 = vunpack.c.h.b16 %v983
    %v4334 = vunpack.c.l.b16 %v984
    %v4335 = vunpack.c.h.b16 %v984
    %v4336 = vunpack.c.l.b16 %v985
    %v4337 = vunpack.c.h.b16 %v985
    %v4338 = vunpack.c.l.b16 %v986
    %v4339 = vunpack.c.h.b16 %v986
    %v4340 = vunpack.c.l.b16 %v987
    %v4341 = vunpack.c.h.b16 %v987
    %v4342 = vunpack.c.l.b16 %v988
    %v4343 = vunpack.c.h.b16 %v988
    %v4344 = vunpack.c.l.b16 %v989
    %v4345 = vunpack.c.h.b16 %v989
    %v4346 = vunpack.c.l.b16 %v990
    %v4347 = vunpack.c.h.b16 %v990
    %v4348 = vunpack.c.l.b16 %v991
    %v4349 = vunpack.c.h.b16 %v991
    %v4350 = vunpack.c.l.b16 %v992
    %v4351 = vunpack.c.h.b16 %v992
    %v4352 = vunpack.c.l.b16 %v993
    %v4353 = vunpack.c.h.b16 %v993
    %v4354 = vunpack.c.l.b16 %v994
    %v4355 = vunpack.c.h.b16 %v994
    %v4356 = vunpack.c.l.b16 %v995
    %v4357 = vunpack.c.h.b16 %v995
    %v4358 = vunpack.c.l.b16 %v996
    %v4359 = vunpack.c.h.b16 %v996
    %v4360 = vunpack.c.l.b16 %v997
    %v4361 = vunpack.c.h.b16 %v997
    %v4362 = vunpack.c.l.b16 %v998
    %v4363 = vunpack.c.h.b16 %v998
    %v4364 = vunpack.c.l.b16 %v999
    %v4365 = vunpack.c.h.b16 %v999
    %v4366 = vunpack.c.l.b16 %v1000
    %v4367 = vunpack.c.h.b16 %v1000
    %v4368 = vunpack.c.l.b16 %v1001
    %v4369 = vunpack.c.h.b16 %v1001
    %v4370 = vunpack.c.l.b16 %v1002
    %v4371 = vunpack.c.h.b16 %v1002
    %v4372 = vunpack.c.l.b16 %v1003
    %v4373 = vunpack.c.h.b16 %v1003
    %v4374 = vunpack.c.l.b16 %v1004
    %v4375 = vunpack.c.h.b16 %v1004
    %v4376 = vunpack.c.l.b16 %v1005
    %v4377 = vunpack.c.h.b16 %v1005
    %v4378 = vunpack.c.l.b16 %v1006
    %v4379 = vunpack.c.h.b16 %v1006
    %v4380 = vunpack.c.l.b16 %v1007
    %v4381 = vunpack.c.h.b16 %v1007
    %v4382 = vunpack.c.l.b16 %v1008
    %v4383 = vunpack.c.h.b16 %v1008
    %v4384 = vunpack.c.l.b16 %v1009
    %v4385 = vunpack.c.h.b16 %v1009
    %v4386 = vunpack.c.l.b16 %v1010
    %v4387 = vunpack.c.h.b16 %v1010
    %v4388 = vunpack.c.l.b16 %v1011
    %v4389 = vunpack.c.h.b16 %v1011
    %v4390 = vunpack.c.l.b16 %v1012
    %v4391 = vunpack.c.h.b16 %v1012
    %v4392 = vunpack.c.l.b16 %v1013
    %v4393 = vunpack.c.h.b16 %v1013
    %v4394 = vunpack.c.l.b16 %v1014
    %v4395 = vunpack.c.h.b16 %v1014
    %v4396 = vunpack.c.l.b16 %v1015
    %v4397 = vunpack.c.h.b16 %v1015
    %v4398 = vunpack.c.l.b16 %v1016
    %v4399 = vunpack.c.h.b16 %v1016
    %v4400 = vunpack.c.l.b16 %v1017
    %v4401 = vunpack.c.h.b16 %v1017
    %v4402 = vunpack.c.l.b16 %v1018
    %v4403 = vunpack.c.h.b16 %v1018
    %v4404 = vunpack.c.l.b16 %v1019
    %v4405 = vunpack.c.h.b16 %v1019
    %v4406 = vunpack.c.l.b16 %v1020
    %v4407 = vunpack.c.h.b16 %v1020
    %v4408 = vunpack.c.l.b16 %v1021
    %v4409 = vunpack.c.h.b16 %v1021
    %v4410 = vunpack.c.l.b16 %v1022
    %v4411 = vunpack.c.h.b16 %v1022
    %v4412 = vunpack.c.l.b16 %v1023
    %v4413 = vunpack.c.h.b16 %v1023
    %v4414 = vunpack.c.l.b16 %v1024
    %v4415 = vunpack.c.h.b16 %v1024
    %v4416 = vunpack.c.l.b16 %v1025
    %v4417 = vunpack.c.h.b16 %v1025
    %v4418 = vunpack.c.l.b16 %v1026
    %v4419 = vunpack.c.h.b16 %v1026
    %v4420 = vunpack.c.l.b16 %v1027
    %v4421 = vunpack.c.h.b16 %v1027
    %v4422 = vunpack.c.l.b16 %v1028
    %v4423 = vunpack.c.h.b16 %v1028
    %v4424 = vunpack.c.l.b16 %v1029
    %v4425 = vunpack.c.h.b16 %v1029
    %v4426 = vunpack.c.l.b16 %v1030
    %v4427 = vunpack.c.h.b16 %v1030
    %v4428 = vunpack.c.l.b16 %v1031
    %v4429 = vunpack.c.h.b16 %v1031
    %v4430 = vunpack.c.l.b16 %v1032
    %v4431 = vunpack.c.h.b16 %v1032
    %v4432 = vunpack.c.l.b16 %v1033
    %v4433 = vunpack.c.h.b16 %v1033
    %v4434 = vunpack.c.l.b16 %v1034
    %v4435 = vunpack.c.h.b16 %v1034
    %v4436 = vunpack.c.l.b16 %v1035
    %v4437 = vunpack.c.h.b16 %v1035
    %v4438 = vunpack.c.l.b16 %v1036
    %v4439 = vunpack.c.h.b16 %v1036
    %v4440 = vunpack.c.l.b16 %v1037
    %v4441 = vunpack.c.h.b16 %v1037
    %v4442 = vunpack.c.l.b16 %v1038
    %v4443 = vunpack.c.h.b16 %v1038
    %v4444 = vunpack.c.l.b16 %v1039
    %v4445 = vunpack.c.h.b16 %v1039
    %v4446 = vunpack.c.l.b16 %v1040
    %v4447 = vunpack.c.h.b16 %v1040
    %v4448 = vunpack.c.l.b16 %v1041
    %v4449 = vunpack.c.h.b16 %v1041
    %v4450 = vunpack.c.l.b16 %v1042
    %v4451 = vunpack.c.h.b16 %v1042
    %v4452 = vunpack.c.l.b16 %v1043
    %v4453 = vunpack.c.h.b16 %v1043
    %v4454 = vunpack.c.l.b16 %v1044
    %v4455 = vunpack.c.h.b16 %v1044
    %v4456 = vunpack.c.l.b16 %v1045
    %v4457 = vunpack.c.h.b16 %v1045
    %v4458 = vunpack.c.l.b16 %v1046
    %v4459 = vunpack.c.h.b16 %v1046
    %v4460 = vunpack.c.l.b16 %v1047
    %v4461 = vunpack.c.h.b16 %v1047
    %v4462 = vunpack.c.l.b16 %v1048
    %v4463 = vunpack.c.h.b16 %v1048
    %v4464 = vunpack.c.l.b16 %v1049
    %v4465 = vunpack.c.h.b16 %v1049
    %v4466 = vunpack.c.l.b16 %v1050
    %v4467 = vunpack.c.h.b16 %v1050
    %v4468 = vunpack.c.l.b16 %v1051
    %v4469 = vunpack.c.h.b16 %v1051
    %v4470 = vunpack.c.l.b16 %v1052
    %v4471 = vunpack.c.h.b16 %v1052
    %v4472 = vunpack.c.l.b16 %v1053
    %v4473 = vunpack.c.h.b16 %v1053
    %v4474 = vunpack.c.l.b16 %v1054
    %v4475 = vunpack.c.h.b16 %v1054
    %v4476 = vunpack.c.l.b16 %v1055
    %v4477 = vunpack.c.h.b16 %v1055
    %v4478 = vunpack.c.l.b16 %v1056
    %v4479 = vunpack.c.h.b16 %v1056
    %v4480 = vunpack.c.l.b16 %v1057
    %v4481 = vunpack.c.h.b16 %v1057
    %v4482 = vunpack.c.l.b16 %v1058
    %v4483 = vunpack.c.h.b16 %v1058
    %v4484 = vunpack.c.l.b16 %v1059
    %v4485 = vunpack.c.h.b16 %v1059
    %v4486 = vunpack.c.l.b16 %v1060
    %v4487 = vunpack.c.h.b16 %v1060
    %v4488 = vunpack.c.l.b16 %v1061
    %v4489 = vunpack.c.h.b16 %v1061
    %v4490 = vunpack.c.l.b16 %v1062
    %v4491 = vunpack.c.h.b16 %v1062
    %v4492 = vunpack.c.l.b16 %v1063
    %v4493 = vunpack.c.h.b16 %v1063
    %v4494 = vunpack.c.l.b16 %v1064
    %v4495 = vunpack.c.h.b16 %v1064
    %v4496 = vunpack.c.l.b16 %v1065
    %v4497 = vunpack.c.h.b16 %v1065
    %v4498 = vunpack.c.l.b16 %v1066
    %v4499 = vunpack.c.h.b16 %v1066
    %v4500 = vunpack.c.l.b16 %v1067
    %v4501 = vunpack.c.h.b16 %v1067
    %v4502 = vunpack.c.l.b16 %v1068
    %v4503 = vunpack.c.h.b16 %v1068
    %v4504 = vunpack.c.l.b16 %v1069
    %v4505 = vunpack.c.h.b16 %v1069
    %v4506 = vunpack.c.l.b16 %v1070
    %v4507 = vunpack.c.h.b16 %v1070
    %v4508 = vunpack.c.l.b16 %v1071
    %v4509 = vunpack.c.h.b16 %v1071
    %v4510 = vunpack.c.l.b16 %v1072
    %v4511 = vunpack.c.h.b16 %v1072
    %v4512 = vunpack.c.l.b16 %v1073
    %v4513 = vunpack.c.h.b16 %v1073
    %v4514 = vunpack.c.l.b16 %v1074
    %v4515 = vunpack.c.h.b16 %v1074
    %v4516 = vunpack.c.l.b16 %v1075
    %v4517 = vunpack.c.h.b16 %v1075
    %v4518 = vunpack.c.l.b16 %v1076
    %v4519 = vunpack.c.h.b16 %v1076
    %v4520 = vunpack.c.l.b16 %v1077
    %v4521 = vunpack.c.h.b16 %v1077
    %v4522 = vunpack.c.l.b16 %v1078
    %v4523 = vunpack.c.h.b16 %v1078
    %v4524 = vunpack.c.l.b16 %v1079
    %v4525 = vunpack.c.h.b16 %v1079
    %v4526 = vunpack.c.l.b16 %v1080
    %v4527 = vunpack.c.h.b16 %v1080
    %v4528 = vunpack.c.l.b16 %v1081
    %v4529 = vunpack.c.h.b16 %v1081
    %v4530 = vunpack.c.l.b16 %v1082
    %v4531 = vunpack.c.h.b16 %v1082
    %v4532 = vunpack.c.l.b16 %v1083
    %v4533 = vunpack.c.h.b16 %v1083
    %v4534 = vunpack.c.l.b16 %v1084
    %v4535 = vunpack.c.h.b16 %v1084
    %v4536 = vunpack.c.l.b16 %v1085
    %v4537 = vunpack.c.h.b16 %v1085
    %v4538 = vunpack.c.l.b16 %v1086
    %v4539 = vunpack.c.h.b16 %v1086
    %v4540 = vunpack.c.l.b16 %v1087
    %v4541 = vunpack.c.h.b16 %v1087
    %v4542 = vunpack.c.l.b16 %v1088
    %v4543 = vunpack.c.h.b16 %v1088
    %v4544 = vunpack.c.l.b16 %v1089
    %v4545 = vunpack.c.h.b16 %v1089
    %v4546 = vunpack.c.l.b16 %v1090
    %v4547 = vunpack.c.h.b16 %v1090
    %v4548 = vunpack.c.l.b16 %v1091
    %v4549 = vunpack.c.h.b16 %v1091
    %v4550 = vunpack.c.l.b16 %v1092
    %v4551 = vunpack.c.h.b16 %v1092
    %v4552 = vunpack.c.l.b16 %v1093
    %v4553 = vunpack.c.h.b16 %v1093
    %v4554 = vunpack.c.l.b16 %v1094
    %v4555 = vunpack.c.h.b16 %v1094
    %v4556 = vunpack.c.l.b16 %v1095
    %v4557 = vunpack.c.h.b16 %v1095
    %v4558 = vunpack.c.l.b16 %v1096
    %v4559 = vunpack.c.h.b16 %v1096
    %v4560 = vunpack.c.l.b16 %v1097
    %v4561 = vunpack.c.h.b16 %v1097
    %v4562 = vunpack.c.l.b16 %v1098
    %v4563 = vunpack.c.h.b16 %v1098
    %v4564 = vunpack.c.l.b16 %v1099
    %v4565 = vunpack.c.h.b16 %v1099
    %v4566 = vunpack.c.l.b16 %v1100
    %v4567 = vunpack.c.h.b16 %v1100
    %v4568 = vunpack.c.l.b16 %v1101
    %v4569 = vunpack.c.h.b16 %v1101
    %v4570 = vunpack.c.l.b16 %v1102
    %v4571 = vunpack.c.h.b16 %v1102
    %v4572 = vunpack.c.l.b16 %v1103
    %v4573 = vunpack.c.h.b16 %v1103
    %v4574 = vunpack.c.l.b16 %v1104
    %v4575 = vunpack.c.h.b16 %v1104
    %v4576 = vunpack.c.l.b16 %v1105
    %v4577 = vunpack.c.h.b16 %v1105
    %v4578 = vunpack.c.l.b16 %v1106
    %v4579 = vunpack.c.h.b16 %v1106
    %v4580 = vunpack.c.l.b16 %v1107
    %v4581 = vunpack.c.h.b16 %v1107
    %v4582 = vunpack.c.l.b16 %v1108
    %v4583 = vunpack.c.h.b16 %v1108
    %v4584 = vunpack.c.l.b16 %v1109
    %v4585 = vunpack.c.h.b16 %v1109
    %v4586 = vunpack.c.l.b16 %v1110
    %v4587 = vunpack.c.h.b16 %v1110
    %v4588 = vunpack.c.l.b16 %v1111
    %v4589 = vunpack.c.h.b16 %v1111
    %v4590 = vunpack.c.l.b16 %v1112
    %v4591 = vunpack.c.h.b16 %v1112
    %v4592 = vunpack.c.l.b16 %v1113
    %v4593 = vunpack.c.h.b16 %v1113
    %v4594 = vunpack.c.l.b16 %v1114
    %v4595 = vunpack.c.h.b16 %v1114
    %v4596 = vunpack.c.l.b16 %v1115
    %v4597 = vunpack.c.h.b16 %v1115
    %v4598 = vunpack.c.l.b16 %v1116
    %v4599 = vunpack.c.h.b16 %v1116
    %v4600 = vunpack.c.l.b16 %v1117
    %v4601 = vunpack.c.h.b16 %v1117
    %v4602 = vunpack.c.l.b16 %v1118
    %v4603 = vunpack.c.h.b16 %v1118
    %v4604 = vunpack.c.l.b16 %v1119
    %v4605 = vunpack.c.h.b16 %v1119
    %v4606 = vunpack.c.l.b16 %v1120
    %v4607 = vunpack.c.h.b16 %v1120
    %v4608 = vunpack.c.l.b16 %v1121
    %v4609 = vunpack.c.h.b16 %v1121
    %v4610 = vunpack.c.l.b16 %v1122
    %v4611 = vunpack.c.h.b16 %v1122
    %v4612 = vunpack.c.l.b16 %v1123
    %v4613 = vunpack.c.h.b16 %v1123
    %v4614 = vunpack.c.l.b16 %v1124
    %v4615 = vunpack.c.h.b16 %v1124
    %v4616 = vunpack.c.l.b16 %v1125
    %v4617 = vunpack.c.h.b16 %v1125
    %v4618 = vunpack.c.l.b16 %v1126
    %v4619 = vunpack.c.h.b16 %v1126
    %v4620 = vunpack.c.l.b16 %v1127
    %v4621 = vunpack.c.h.b16 %v1127
    %v4622 = vunpack.c.l.b16 %v1128
    %v4623 = vunpack.c.h.b16 %v1128
    %v4624 = vunpack.c.l.b16 %v1129
    %v4625 = vunpack.c.h.b16 %v1129
    %v4626 = vunpack.c.l.b16 %v1130
    %v4627 = vunpack.c.h.b16 %v1130
    %v4628 = vunpack.c.l.b16 %v1131
    %v4629 = vunpack.c.h.b16 %v1131
    %v4630 = vunpack.c.l.b16 %v1132
    %v4631 = vunpack.c.h.b16 %v1132
    %v4632 = vunpack.c.l.b16 %v1133
    %v4633 = vunpack.c.h.b16 %v1133
    %v4634 = vunpack.c.l.b16 %v1134
    %v4635 = vunpack.c.h.b16 %v1134
    %v4636 = vunpack.c.l.b16 %v1135
    %v4637 = vunpack.c.h.b16 %v1135
    %v4638 = vunpack.c.l.b16 %v1136
    %v4639 = vunpack.c.h.b16 %v1136
    %v4640 = vunpack.c.l.b16 %v1137
    %v4641 = vunpack.c.h.b16 %v1137
    %v4642 = vunpack.c.l.b16 %v1138
    %v4643 = vunpack.c.h.b16 %v1138
    %v4644 = vunpack.c.l.b16 %v1139
    %v4645 = vunpack.c.h.b16 %v1139
    %v4646 = vunpack.c.l.b16 %v1140
    %v4647 = vunpack.c.h.b16 %v1140
    %v4648 = vunpack.c.l.b16 %v1141
    %v4649 = vunpack.c.h.b16 %v1141
    %v4650 = vunpack.c.l.b16 %v1142
    %v4651 = vunpack.c.h.b16 %v1142
    %v4652 = vunpack.c.l.b16 %v1143
    %v4653 = vunpack.c.h.b16 %v1143
    %v4654 = vunpack.c.l.b16 %v1144
    %v4655 = vunpack.c.h.b16 %v1144
    %v4656 = vunpack.c.l.b16 %v1145
    %v4657 = vunpack.c.h.b16 %v1145
    %v4658 = vunpack.c.l.b16 %v1146
    %v4659 = vunpack.c.h.b16 %v1146
    %v4660 = vunpack.c.l.b16 %v1147
    %v4661 = vunpack.c.h.b16 %v1147
    %v4662 = vunpack.c.l.b16 %v1148
    %v4663 = vunpack.c.h.b16 %v1148
    %v4664 = vunpack.c.l.b16 %v1149
    %v4665 = vunpack.c.h.b16 %v1149
    %v4666 = vunpack.c.l.b16 %v1150
    %v4667 = vunpack.c.h.b16 %v1150
    %v4668 = vunpack.c.l.b16 %v1151
    %v4669 = vunpack.c.h.b16 %v1151
    %v4670 = vunpack.c.l.b16 %v1152
    %v4671 = vunpack.c.h.b16 %v1152
    %v4672 = vunpack.c.l.b16 %v1153
    %v4673 = vunpack.c.h.b16 %v1153
    %v4674 = vunpack.c.l.b16 %v1154
    %v4675 = vunpack.c.h.b16 %v1154
    %v4676 = vunpack.c.l.b16 %v1155
    %v4677 = vunpack.c.h.b16 %v1155
    %v4678 = vunpack.c.l.b16 %v1156
    %v4679 = vunpack.c.h.b16 %v1156
    %v4680 = vunpack.c.l.b16 %v1157
    %v4681 = vunpack.c.h.b16 %v1157
    %v4682 = vunpack.c.l.b16 %v1158
    %v4683 = vunpack.c.h.b16 %v1158
    %v4684 = vunpack.c.l.b16 %v1159
    %v4685 = vunpack.c.h.b16 %v1159
    %v4686 = vunpack.c.l.b16 %v1160
    %v4687 = vunpack.c.h.b16 %v1160
    %v4688 = vunpack.c.l.b16 %v1161
    %v4689 = vunpack.c.h.b16 %v1161
    %v4690 = vunpack.c.l.b16 %v1162
    %v4691 = vunpack.c.h.b16 %v1162
    %v4692 = vunpack.c.l.b16 %v1163
    %v4693 = vunpack.c.h.b16 %v1163
    %v4694 = vunpack.c.l.b16 %v1164
    %v4695 = vunpack.c.h.b16 %v1164
    %v4696 = vunpack.c.l.b16 %v1165
    %v4697 = vunpack.c.h.b16 %v1165
    %v4698 = vunpack.c.l.b16 %v1166
    %v4699 = vunpack.c.h.b16 %v1166
    %v4700 = vunpack.c.l.b16 %v1167
    %v4701 = vunpack.c.h.b16 %v1167
    %v4702 = vunpack.c.l.b16 %v1168
    %v4703 = vunpack.c.h.b16 %v1168
    %v4704 = vunpack.c.l.b16 %v1169
    %v4705 = vunpack.c.h.b16 %v1169
    %v4706 = vunpack.c.l.b16 %v1170
    %v4707 = vunpack.c.h.b16 %v1170
    %v4708 = vunpack.c.l.b16 %v1171
    %v4709 = vunpack.c.h.b16 %v1171
    %v4710 = vunpack.c.l.b16 %v1172
    %v4711 = vunpack.c.h.b16 %v1172
    %v4712 = vunpack.c.l.b16 %v1173
    %v4713 = vunpack.c.h.b16 %v1173
    %v4714 = vunpack.c.l.b16 %v1174
    %v4715 = vunpack.c.h.b16 %v1174
    %v4716 = vunpack.c.l.b16 %v1175
    %v4717 = vunpack.c.h.b16 %v1175
    %v4718 = vunpack.c.l.b16 %v1176
    %v4719 = vunpack.c.h.b16 %v1176
    %v4720 = vunpack.c.l.b16 %v1177
    %v4721 = vunpack.c.h.b16 %v1177
    %v4722 = vunpack.c.l.b16 %v1178
    %v4723 = vunpack.c.h.b16 %v1178
    %v4724 = vunpack.c.l.b16 %v1179
    %v4725 = vunpack.c.h.b16 %v1179
    %v4726 = vunpack.c.l.b16 %v1180
    %v4727 = vunpack.c.h.b16 %v1180
    %v4728 = vunpack.c.l.b16 %v1181
    %v4729 = vunpack.c.h.b16 %v1181
    %v4730 = vunpack.c.l.b16 %v1182
    %v4731 = vunpack.c.h.b16 %v1182
    %v4732 = vunpack.c.l.b16 %v1183
    %v4733 = vunpack.c.h.b16 %v1183
    %v4734 = vunpack.c.l.b16 %v1184
    %v4735 = vunpack.c.h.b16 %v1184
    %v4736 = vunpack.c.l.b16 %v1185
    %v4737 = vunpack.c.h.b16 %v1185
    %v4738 = vunpack.c.l.b16 %v1186
    %v4739 = vunpack.c.h.b16 %v1186
    %v4740 = vunpack.c.l.b16 %v1187
    %v4741 = vunpack.c.h.b16 %v1187
    %v4742 = vunpack.c.l.b16 %v1188
    %v4743 = vunpack.c.h.b16 %v1188
    %v4744 = vunpack.c.l.b16 %v1189
    %v4745 = vunpack.c.h.b16 %v1189
    %v4746 = vunpack.c.l.b16 %v1190
    %v4747 = vunpack.c.h.b16 %v1190
    %v4748 = vunpack.c.l.b16 %v1191
    %v4749 = vunpack.c.h.b16 %v1191
    %v4750 = vunpack.c.l.b16 %v1192
    %v4751 = vunpack.c.h.b16 %v1192
    %v4752 = vunpack.c.l.b16 %v1193
    %v4753 = vunpack.c.h.b16 %v1193
    %v4754 = vunpack.c.l.b16 %v1194
    %v4755 = vunpack.c.h.b16 %v1194
    %v4756 = vunpack.c.l.b16 %v1195
    %v4757 = vunpack.c.h.b16 %v1195
    %v4758 = vunpack.c.l.b16 %v1196
    %v4759 = vunpack.c.h.b16 %v1196
    %v4760 = vunpack.c.l.b16 %v1197
    %v4761 = vunpack.c.h.b16 %v1197
    %v4762 = vunpack.c.l.b16 %v1198
    %v4763 = vunpack.c.h.b16 %v1198
    %v4764 = vunpack.c.l.b16 %v1199
    %v4765 = vunpack.c.h.b16 %v1199
    %v4766 = vunpack.c.l.b16 %v1200
    %v4767 = vunpack.c.h.b16 %v1200
    %v4768 = vunpack.c.l.b16 %v1201
    %v4769 = vunpack.c.h.b16 %v1201
    %v4770 = vunpack.c.l.b16 %v1202
    %v4771 = vunpack.c.h.b16 %v1202
    %v4772 = vunpack.c.l.b16 %v1203
    %v4773 = vunpack.c.h.b16 %v1203
    %v4774 = vunpack.c.l.b16 %v1204
    %v4775 = vunpack.c.h.b16 %v1204
    %v4776 = vunpack.c.l.b16 %v1205
    %v4777 = vunpack.c.h.b16 %v1205
    %v4778 = vunpack.c.l.b16 %v1206
    %v4779 = vunpack.c.h.b16 %v1206
    %v4780 = vunpack.c.l.b16 %v1207
    %v4781 = vunpack.c.h.b16 %v1207
    %v4782 = vunpack.c.l.b16 %v1208
    %v4783 = vunpack.c.h.b16 %v1208
    %v4784 = vunpack.c.l.b16 %v1209
    %v4785 = vunpack.c.h.b16 %v1209
    %v4786 = vunpack.c.l.b16 %v1210
    %v4787 = vunpack.c.h.b16 %v1210
    %v4788 = vunpack.c.l.b16 %v1211
    %v4789 = vunpack.c.h.b16 %v1211
    %v4790 = vunpack.c.l.b16 %v1212
    %v4791 = vunpack.c.h.b16 %v1212
    %v4792 = vunpack.c.l.b16 %v1213
    %v4793 = vunpack.c.h.b16 %v1213
    %v4794 = vunpack.c.l.b16 %v1214
    %v4795 = vunpack.c.h.b16 %v1214
    %v4796 = vunpack.c.l.b16 %v1215
    %v4797 = vunpack.c.h.b16 %v1215
    %v4798 = vunpack.c.l.b16 %v1216
    %v4799 = vunpack.c.h.b16 %v1216
    %v4800 = vunpack.c.l.b16 %v1217
    %v4801 = vunpack.c.h.b16 %v1217
    %v4802 = vunpack.c.l.b16 %v1218
    %v4803 = vunpack.c.h.b16 %v1218
    %v4804 = vunpack.c.l.b16 %v1219
    %v4805 = vunpack.c.h.b16 %v1219
    %v4806 = vunpack.c.l.b16 %v1220
    %v4807 = vunpack.c.h.b16 %v1220
    %v4808 = vunpack.c.l.b16 %v1221
    %v4809 = vunpack.c.h.b16 %v1221
    %v4810 = vunpack.c.l.b16 %v1222
    %v4811 = vunpack.c.h.b16 %v1222
    %v4812 = vunpack.c.l.b16 %v1223
    %v4813 = vunpack.c.h.b16 %v1223
    %v4814 = vunpack.c.l.b16 %v1224
    %v4815 = vunpack.c.h.b16 %v1224
    %v4816 = vunpack.c.l.b16 %v1225
    %v4817 = vunpack.c.h.b16 %v1225
    %v4818 = vunpack.c.l.b16 %v1226
    %v4819 = vunpack.c.h.b16 %v1226
    %v4820 = vunpack.c.l.b16 %v1227
    %v4821 = vunpack.c.h.b16 %v1227
    %v4822 = vunpack.c.l.b16 %v1228
    %v4823 = vunpack.c.h.b16 %v1228
    %v4824 = vunpack.c.l.b16 %v1229
    %v4825 = vunpack.c.h.b16 %v1229
    %v4826 = vunpack.c.l.b16 %v1230
    %v4827 = vunpack.c.h.b16 %v1230
    %v4828 = vunpack.c.l.b16 %v1231
    %v4829 = vunpack.c.h.b16 %v1231
    %v4830 = vunpack.c.l.b16 %v1232
    %v4831 = vunpack.c.h.b16 %v1232
    %v4832 = vunpack.c.l.b16 %v1233
    %v4833 = vunpack.c.h.b16 %v1233
    %v4834 = vunpack.c.l.b16 %v1234
    %v4835 = vunpack.c.h.b16 %v1234
    %v4836 = vunpack.c.l.b16 %v1235
    %v4837 = vunpack.c.h.b16 %v1235
    %v4838 = vunpack.c.l.b16 %v1236
    %v4839 = vunpack.c.h.b16 %v1236
    %v4840 = vunpack.c.l.b16 %v1237
    %v4841 = vunpack.c.h.b16 %v1237
    %v4842 = vunpack.c.l.b16 %v1238
    %v4843 = vunpack.c.h.b16 %v1238
    %v4844 = vunpack.c.l.b16 %v1239
    %v4845 = vunpack.c.h.b16 %v1239
    %v4846 = vunpack.c.l.b16 %v1240
    %v4847 = vunpack.c.h.b16 %v1240
    %v4848 = vunpack.c.l.b16 %v1241
    %v4849 = vunpack.c.h.b16 %v1241
    %v4850 = vunpack.c.l.b16 %v1242
    %v4851 = vunpack.c.h.b16 %v1242
    %v4852 = vunpack.c.l.b16 %v1243
    %v4853 = vunpack.c.h.b16 %v1243
    %v4854 = vunpack.c.l.b16 %v1244
    %v4855 = vunpack.c.h.b16 %v1244
    %v4856 = vunpack.c.l.b16 %v1245
    %v4857 = vunpack.c.h.b16 %v1245
    %v4858 = vunpack.c.l.b16 %v1246
    %v4859 = vunpack.c.h.b16 %v1246
    %v4860 = vunpack.c.l.b16 %v1247
    %v4861 = vunpack.c.h.b16 %v1247
    %v4862 = vunpack.c.l.b16 %v1248
    %v4863 = vunpack.c.h.b16 %v1248
    %v4864 = vunpack.c.l.b16 %v1249
    %v4865 = vunpack.c.h.b16 %v1249
    %v4866 = vunpack.c.l.b16 %v1250
    %v4867 = vunpack.c.h.b16 %v1250
    %v4868 = vunpack.c.l.b16 %v1251
    %v4869 = vunpack.c.h.b16 %v1251
    %v4870 = vunpack.c.l.b16 %v1252
    %v4871 = vunpack.c.h.b16 %v1252
    %v4872 = vunpack.c.l.b16 %v1253
    %v4873 = vunpack.c.h.b16 %v1253
    %v4874 = vunpack.c.l.b16 %v1254
    %v4875 = vunpack.c.h.b16 %v1254
    %v4876 = vunpack.c.l.b16 %v1255
    %v4877 = vunpack.c.h.b16 %v1255
    %v4878 = vunpack.c.l.b16 %v1256
    %v4879 = vunpack.c.h.b16 %v1256
    %v4880 = vunpack.c.l.b16 %v1257
    %v4881 = vunpack.c.h.b16 %v1257
    %v4882 = vunpack.c.l.b16 %v1258
    %v4883 = vunpack.c.h.b16 %v1258
    %v4884 = vunpack.c.l.b16 %v1259
    %v4885 = vunpack.c.h.b16 %v1259
    %v4886 = vunpack.c.l.b16 %v1260
    %v4887 = vunpack.c.h.b16 %v1260
    %v4888 = vunpack.c.l.b16 %v1261
    %v4889 = vunpack.c.h.b16 %v1261
    %v4890 = vunpack.c.l.b16 %v1262
    %v4891 = vunpack.c.h.b16 %v1262
    %v4892 = vunpack.c.l.b16 %v1263
    %v4893 = vunpack.c.h.b16 %v1263
    %v4894 = vunpack.c.l.b16 %v1264
    %v4895 = vunpack.c.h.b16 %v1264
    %v4896 = vunpack.c.l.b16 %v1265
    %v4897 = vunpack.c.h.b16 %v1265
    %v4898 = vunpack.c.l.b16 %v1266
    %v4899 = vunpack.c.h.b16 %v1266
    %v4900 = vunpack.c.l.b16 %v1267
    %v4901 = vunpack.c.h.b16 %v1267
    %v4902 = vunpack.c.l.b16 %v1268
    %v4903 = vunpack.c.h.b16 %v1268
    %v4904 = vunpack.c.l.b16 %v1269
    %v4905 = vunpack.c.h.b16 %v1269
    %v4906 = vunpack.c.l.b16 %v1270
    %v4907 = vunpack.c.h.b16 %v1270
    %v4908 = vunpack.c.l.b16 %v1271
    %v4909 = vunpack.c.h.b16 %v1271
    %v4910 = vunpack.c.l.b16 %v1272
    %v4911 = vunpack.c.h.b16 %v1272
    %v4912 = vunpack.c.l.b16 %v1273
    %v4913 = vunpack.c.h.b16 %v1273
    %v4914 = vunpack.c.l.b16 %v1274
    %v4915 = vunpack.c.h.b16 %v1274
    %v4916 = vunpack.c.l.b16 %v1275
    %v4917 = vunpack.c.h.b16 %v1275
    %v4918 = vunpack.c.l.b16 %v1276
    %v4919 = vunpack.c.h.b16 %v1276
    %v4920 = vunpack.c.l.b16 %v1277
    %v4921 = vunpack.c.h.b16 %v1277
    %v4922 = vunpack.c.l.b16 %v1278
    %v4923 = vunpack.c.h.b16 %v1278
    %v4924 = vunpack.c.l.b16 %v1279
    %v4925 = vunpack.c.h.b16 %v1279
    %v4926 = vunpack.c.l.b16 %v1280
    %v4927 = vunpack.c.h.b16 %v1280
    %v4928 = vunpack.c.l.b16 %v1281
    %v4929 = vunpack.c.h.b16 %v1281
    %v4930 = vunpack.c.l.b16 %v1282
    %v4931 = vunpack.c.h.b16 %v1282
    %v4932 = vunpack.c.l.b16 %v1283
    %v4933 = vunpack.c.h.b16 %v1283
    %v4934 = vunpack.c.l.b16 %v1284
    %v4935 = vunpack.c.h.b16 %v1284
    %v4936 = vunpack.c.l.b16 %v1285
    %v4937 = vunpack.c.h.b16 %v1285
    %v4938 = vunpack.c.l.b16 %v1286
    %v4939 = vunpack.c.h.b16 %v1286
    %v4940 = vunpack.c.l.b16 %v1287
    %v4941 = vunpack.c.h.b16 %v1287
    %v4942 = vunpack.c.l.b16 %v1288
    %v4943 = vunpack.c.h.b16 %v1288
    %v4944 = vunpack.c.l.b16 %v1289
    %v4945 = vunpack.c.h.b16 %v1289
    %v4946 = vunpack.c.l.b16 %v1290
    %v4947 = vunpack.c.h.b16 %v1290
    %v4948 = vunpack.c.l.b16 %v1291
    %v4949 = vunpack.c.h.b16 %v1291
    %v4950 = vunpack.c.l.b16 %v1292
    %v4951 = vunpack.c.h.b16 %v1292
    %v4952 = vunpack.c.l.b16 %v1293
    %v4953 = vunpack.c.h.b16 %v1293
    %v4954 = vunpack.c.l.b16 %v1294
    %v4955 = vunpack.c.h.b16 %v1294
    %v4956 = vunpack.c.l.b16 %v1295
    %v4957 = vunpack.c.h.b16 %v1295
    %v4958 = vunpack.c.l.b16 %v1296
    %v4959 = vunpack.c.h.b16 %v1296
    %v4960 = vunpack.c.l.b16 %v1297
    %v4961 = vunpack.c.h.b16 %v1297
    %v4962 = vunpack.c.l.b16 %v1298
    %v4963 = vunpack.c.h.b16 %v1298
    %v4964 = vunpack.c.l.b16 %v1299
    %v4965 = vunpack.c.h.b16 %v1299
    %v4966 = vunpack.c.l.b16 %v1300
    %v4967 = vunpack.c.h.b16 %v1300
    %v4968 = vunpack.c.l.b16 %v1301
    %v4969 = vunpack.c.h.b16 %v1301
    %v4970 = vunpack.c.l.b16 %v1302
    %v4971 = vunpack.c.h.b16 %v1302
    %v4972 = vunpack.c.l.b16 %v1303
    %v4973 = vunpack.c.h.b16 %v1303
    %v4974 = vunpack.c.l.b16 %v1304
    %v4975 = vunpack.c.h.b16 %v1304
    %v4976 = vunpack.c.l.b16 %v1305
    %v4977 = vunpack.c.h.b16 %v1305
    %v4978 = vunpack.c.l.b16 %v1306
    %v4979 = vunpack.c.h.b16 %v1306
    %v4980 = vunpack.c.l.b16 %v1307
    %v4981 = vunpack.c.h.b16 %v1307
    %v4982 = vunpack.c.l.b16 %v1308
    %v4983 = vunpack.c.h.b16 %v1308
    %v4984 = vunpack.c.l.b16 %v1309
    %v4985 = vunpack.c.h.b16 %v1309
    %v4986 = vunpack.c.l.b16 %v1310
    %v4987 = vunpack.c.h.b16 %v1310
    %v4988 = vunpack.c.l.b16 %v1311
    %v4989 = vunpack.c.h.b16 %v1311
    %v4990 = vunpack.c.l.b16 %v1312
    %v4991 = vunpack.c.h.b16 %v1312
    %v4992 = vunpack.c.l.b16 %v1313
    %v4993 = vunpack.c.h.b16 %v1313
    %v4994 = vunpack.c.l.b16 %v1314
    %v4995 = vunpack.c.h.b16 %v1314
    %v4996 = vunpack.c.l.b16 %v1315
    %v4997 = vunpack.c.h.b16 %v1315
    %v4998 = vunpack.c.l.b16 %v1316
    %v4999 = vunpack.c.h.b16 %v1316
    %v5000 = vunpack.c.l.b16 %v1317
    %v5001 = vunpack.c.h.b16 %v1317
    %v5002 = vunpack.c.l.b16 %v1318
    %v5003 = vunpack.c.h.b16 %v1318
    %v5004 = vunpack.c.l.b16 %v1319
    %v5005 = vunpack.c.h.b16 %v1319
    %v5006 = vunpack.c.l.b16 %v1320
    %v5007 = vunpack.c.h.b16 %v1320
    %v5008 = vunpack.c.l.b16 %v1321
    %v5009 = vunpack.c.h.b16 %v1321
    %v5010 = vunpack.c.l.b16 %v1322
    %v5011 = vunpack.c.h.b16 %v1322
    %v5012 = vunpack.c.l.b16 %v1323
    %v5013 = vunpack.c.h.b16 %v1323
    %v5014 = vunpack.c.l.b16 %v1324
    %v5015 = vunpack.c.h.b16 %v1324
    %v5016 = vunpack.c.l.b16 %v1325
    %v5017 = vunpack.c.h.b16 %v1325
    %v5018 = vunpack.c.l.b16 %v1326
    %v5019 = vunpack.c.h.b16 %v1326
    %v5020 = vunpack.c.l.b16 %v1327
    %v5021 = vunpack.c.h.b16 %v1327
    %v5022 = vunpack.c.l.b16 %v1328
    %v5023 = vunpack.c.h.b16 %v1328
    %v5024 = vunpack.c.l.b16 %v1329
    %v5025 = vunpack.c.h.b16 %v1329
    %v5026 = vunpack.c.l.b16 %v1330
    %v5027 = vunpack.c.h.b16 %v1330
    %v5028 = vunpack.c.l.b16 %v1331
    %v5029 = vunpack.c.h.b16 %v1331
    %v5030 = vunpack.c.l.b16 %v1332
    %v5031 = vunpack.c.h.b16 %v1332
    %v5032 = vunpack.c.l.b16 %v1333
    %v5033 = vunpack.c.h.b16 %v1333
    %v5034 = vunpack.c.l.b16 %v1334
    %v5035 = vunpack.c.h.b16 %v1334
    %v5036 = vunpack.c.l.b16 %v1335
    %v5037 = vunpack.c.h.b16 %v1335
    %v5038 = vunpack.c.l.b16 %v1336
    %v5039 = vunpack.c.h.b16 %v1336
    %v5040 = vunpack.c.l.b16 %v1337
    %v5041 = vunpack.c.h.b16 %v1337
    %v5042 = vunpack.c.l.b16 %v1338
    %v5043 = vunpack.c.h.b16 %v1338
    %v5044 = vunpack.c.l.b16 %v1339
    %v5045 = vunpack.c.h.b16 %v1339
    %v5046 = vunpack.c.l.b16 %v1340
    %v5047 = vunpack.c.h.b16 %v1340
    %v5048 = vunpack.c.l.b16 %v1341
    %v5049 = vunpack.c.h.b16 %v1341
    %v5050 = vunpack.c.l.b16 %v1342
    %v5051 = vunpack.c.h.b16 %v1342
    %v5052 = vunpack.c.l.b16 %v1343
    %v5053 = vunpack.c.h.b16 %v1343
    %v5054 = vunpack.c.l.b16 %v1344
    %v5055 = vunpack.c.h.b16 %v1344
    %v5056 = vunpack.c.l.b16 %v1345
    %v5057 = vunpack.c.h.b16 %v1345
    %v5058 = vunpack.c.l.b16 %v1346
    %v5059 = vunpack.c.h.b16 %v1346
    %v5060 = vunpack.c.l.b16 %v1347
    %v5061 = vunpack.c.h.b16 %v1347
    %v5062 = vunpack.c.l.b16 %v1348
    %v5063 = vunpack.c.h.b16 %v1348
    %v5064 = vunpack.c.l.b16 %v1349
    %v5065 = vunpack.c.h.b16 %v1349
    %v5066 = vunpack.c.l.b16 %v1350
    %v5067 = vunpack.c.h.b16 %v1350
    %v5068 = vunpack.c.l.b16 %v1351
    %v5069 = vunpack.c.h.b16 %v1351
    %v5070 = vunpack.c.l.b16 %v1352
    %v5071 = vunpack.c.h.b16 %v1352
    %v5072 = vunpack.c.l.b16 %v1353
    %v5073 = vunpack.c.h.b16 %v1353
    %v5074 = vunpack.c.l.b16 %v1354
    %v5075 = vunpack.c.h.b16 %v1354
    %v5076 = vunpack.c.l.b16 %v1355
    %v5077 = vunpack.c.h.b16 %v1355
    %v5078 = vunpack.c.l.b16 %v1356
    %v5079 = vunpack.c.h.b16 %v1356
    %v5080 = vunpack.c.l.b16 %v1357
    %v5081 = vunpack.c.h.b16 %v1357
    %v5082 = vunpack.c.l.b16 %v1358
    %v5083 = vunpack.c.h.b16 %v1358
    %v5084 = vunpack.c.l.b16 %v1359
    %v5085 = vunpack.c.h.b16 %v1359
    %v5086 = vunpack.c.l.b16 %v1360
    %v5087 = vunpack.c.h.b16 %v1360
    %v5088 = vunpack.c.l.b16 %v1361
    %v5089 = vunpack.c.h.b16 %v1361
    %v5090 = vunpack.c.l.b16 %v1362
    %v5091 = vunpack.c.h.b16 %v1362
    %v5092 = vunpack.c.l.b16 %v1363
    %v5093 = vunpack.c.h.b16 %v1363
    %v5094 = vunpack.c.l.b16 %v1364
    %v5095 = vunpack.c.h.b16 %v1364
    %v5096 = vunpack.c.l.b16 %v1365
    %v5097 = vunpack.c.h.b16 %v1365
    %v5098 = vunpack.c.l.b16 %v1366
    %v5099 = vunpack.c.h.b16 %v1366
    %v5100 = vunpack.c.l.b16 %v1367
    %v5101 = vunpack.c.h.b16 %v1367
    %v5102 = vunpack.c.l.b16 %v1368
    %v5103 = vunpack.c.h.b16 %v1368
    %v5104 = vunpack.c.l.b16 %v1369
    %v5105 = vunpack.c.h.b16 %v1369
    %v5106 = vunpack.c.l.b16 %v1370
    %v5107 = vunpack.c.h.b16 %v1370
    %v5108 = vunpack.c.l.b16 %v1371
    %v5109 = vunpack.c.h.b16 %v1371
    %v5110 = vunpack.c.l.b16 %v1372
    %v5111 = vunpack.c.h.b16 %v1372
    %v5112 = vunpack.c.l.b16 %v1373
    %v5113 = vunpack.c.h.b16 %v1373
    %v5114 = vunpack.c.l.b16 %v1374
    %v5115 = vunpack.c.h.b16 %v1374
    %v5116 = vunpack.c.l.b16 %v1375
    %v5117 = vunpack.c.h.b16 %v1375
    %v5118 = vunpack.c.l.b16 %v1376
    %v5119 = vunpack.c.h.b16 %v1376
    %v5120 = vunpack.c.l.b16 %v1377
    %v5121 = vunpack.c.h.b16 %v1377
    %v5122 = vunpack.c.l.b16 %v1378
    %v5123 = vunpack.c.h.b16 %v1378
    %v5124 = vunpack.c.l.b16 %v1379
    %v5125 = vunpack.c.h.b16 %v1379
    %v5126 = vunpack.c.l.b16 %v1380
    %v5127 = vunpack.c.h.b16 %v1380
    %v5128 = vunpack.c.l.b16 %v1381
    %v5129 = vunpack.c.h.b16 %v1381
    %v5130 = vunpack.c.l.b16 %v1382
    %v5131 = vunpack.c.h.b16 %v1382
    %v5132 = vunpack.c.l.b16 %v1383
    %v5133 = vunpack.c.h.b16 %v1383
    %v5134 = vunpack.c.l.b16 %v1384
    %v5135 = vunpack.c.h.b16 %v1384
    %v5136 = vunpack.c.l.b16 %v1385
    %v5137 = vunpack.c.h.b16 %v1385
    %v5138 = vunpack.c.l.b16 %v1386
    %v5139 = vunpack.c.h.b16 %v1386
    %v5140 = vunpack.c.l.b16 %v1387
    %v5141 = vunpack.c.h.b16 %v1387
    %v5142 = vunpack.c.l.b16 %v1388
    %v5143 = vunpack.c.h.b16 %v1388
    %v5144 = vunpack.c.l.b16 %v1389
    %v5145 = vunpack.c.h.b16 %v1389
    %v5146 = vunpack.c.l.b16 %v1390
    %v5147 = vunpack.c.h.b16 %v1390
    %v5148 = vunpack.c.l.b16 %v1391
    %v5149 = vunpack.c.h.b16 %v1391
    %v5150 = vunpack.c.l.b16 %v1392
    %v5151 = vunpack.c.h.b16 %v1392
    %v5152 = vunpack.c.l.b16 %v1393
    %v5153 = vunpack.c.h.b16 %v1393
    %v5154 = vunpack.c.l.b16 %v1394
    %v5155 = vunpack.c.h.b16 %v1394
    %v5156 = vunpack.c.l.b16 %v1395
    %v5157 = vunpack.c.h.b16 %v1395
    %v5158 = vunpack.c.l.b16 %v1396
    %v5159 = vunpack.c.h.b16 %v1396
    %v5160 = vunpack.c.l.b16 %v1397
    %v5161 = vunpack.c.h.b16 %v1397
    %v5162 = vunpack.c.l.b16 %v1398
    %v5163 = vunpack.c.h.b16 %v1398
    %v5164 = vunpack.c.l.b16 %v1399
    %v5165 = vunpack.c.h.b16 %v1399
    %v5166 = vunpack.c.l.b16 %v1400
    %v5167 = vunpack.c.h.b16 %v1400
    %v5168 = vunpack.c.l.b16 %v1401
    %v5169 = vunpack.c.h.b16 %v1401
    %v5170 = vunpack.c.l.b16 %v1402
    %v5171 = vunpack.c.h.b16 %v1402
    %v5172 = vunpack.c.l.b16 %v1403
    %v5173 = vunpack.c.h.b16 %v1403
    %v5174 = vunpack.c.l.b16 %v1404
    %v5175 = vunpack.c.h.b16 %v1404
    %v5176 = vunpack.c.l.b16 %v1405
    %v5177 = vunpack.c.h.b16 %v1405
    %v5178 = vunpack.c.l.b16 %v1406
    %v5179 = vunpack.c.h.b16 %v1406
    %v5180 = vunpack.c.l.b16 %v1407
    %v5181 = vunpack.c.h.b16 %v1407
    %v5182 = vunpack.c.l.b16 %v1408
    %v5183 = vunpack.c.h.b16 %v1408
    %v5184 = vunpack.c.l.b16 %v1409
    %v5185 = vunpack.c.h.b16 %v1409
    %v5186 = vunpack.c.l.b16 %v1410
    %v5187 = vunpack.c.h.b16 %v1410
    %v5188 = vunpack.c.l.b16 %v1411
    %v5189 = vunpack.c.h.b16 %v1411
    %v5190 = vunpack.c.l.b16 %v1412
    %v5191 = vunpack.c.h.b16 %v1412
    %v5192 = vunpack.c.l.b16 %v1413
    %v5193 = vunpack.c.h.b16 %v1413
    %v5194 = vunpack.c.l.b16 %v1414
    %v5195 = vunpack.c.h.b16 %v1414
    %v5196 = vunpack.c.l.b16 %v1415
    %v5197 = vunpack.c.h.b16 %v1415
    %v5198 = vunpack.c.l.b16 %v1416
    %v5199 = vunpack.c.h.b16 %v1416
    %v5200 = vunpack.c.l.b16 %v1417
    %v5201 = vunpack.c.h.b16 %v1417
    %v5202 = vunpack.c.l.b16 %v1418
    %v5203 = vunpack.c.h.b16 %v1418
    %v5204 = vunpack.c.l.b16 %v1419
    %v5205 = vunpack.c.h.b16 %v1419
    %v5206 = vunpack.c.l.b16 %v1420
    %v5207 = vunpack.c.h.b16 %v1420
    %v5208 = vunpack.c.l.b16 %v1421
    %v5209 = vunpack.c.h.b16 %v1421
    %v5210 = vunpack.c.l.b16 %v1422
    %v5211 = vunpack.c.h.b16 %v1422
    %v5212 = vunpack.c.l.b16 %v1423
    %v5213 = vunpack.c.h.b16 %v1423
    %v5214 = vunpack.c.l.b16 %v1424
    %v5215 = vunpack.c.h.b16 %v1424
    %v5216 = vunpack.c.l.b16 %v1425
    %v5217 = vunpack.c.h.b16 %v1425
    %v5218 = vunpack.c.l.b16 %v1426
    %v5219 = vunpack.c.h.b16 %v1426
    %v5220 = vunpack.c.l.b16 %v1427
    %v5221 = vunpack.c.h.b16 %v1427
    %v5222 = vunpack.c.l.b16 %v1428
    %v5223 = vunpack.c.h.b16 %v1428
    %v5224 = vunpack.c.l.b16 %v1429
    %v5225 = vunpack.c.h.b16 %v1429
    %v5226 = vunpack.c.l.b16 %v1430
    %v5227 = vunpack.c.h.b16 %v1430
    %v5228 = vunpack.c.l.b16 %v1431
    %v5229 = vunpack.c.h.b16 %v1431
    %v5230 = vunpack.c.l.b16 %v1432
    %v5231 = vunpack.c.h.b16 %v1432
    %v5232 = vunpack.c.l.b16 %v1433
    %v5233 = vunpack.c.h.b16 %v1433
    %v5234 = vunpack.c.l.b16 %v1434
    %v5235 = vunpack.c.h.b16 %v1434
    %v5236 = vunpack.c.l.b16 %v1435
    %v5237 = vunpack.c.h.b16 %v1435
    %v5238 = vunpack.c.l.b16 %v1436
    %v5239 = vunpack.c.h.b16 %v1436
    %v5240 = vunpack.c.l.b16 %v1437
    %v5241 = vunpack.c.h.b16 %v1437
    %v5242 = vunpack.c.l.b16 %v1438
    %v5243 = vunpack.c.h.b16 %v1438
    %v5244 = vunpack.c.l.b16 %v1439
    %v5245 = vunpack.c.h.b16 %v1439
    %v5246 = vunpack.c.l.b16 %v1440
    %v5247 = vunpack.c.h.b16 %v1440
    %v5248 = vunpack.c.l.b16 %v1441
    %v5249 = vunpack.c.h.b16 %v1441
    %v5250 = vunpack.c.l.b16 %v1442
    %v5251 = vunpack.c.h.b16 %v1442
    %v5252 = vunpack.c.l.b16 %v1443
    %v5253 = vunpack.c.h.b16 %v1443
    %v5254 = vunpack.c.l.b16 %v1444
    %v5255 = vunpack.c.h.b16 %v1444
    %v5256 = vunpack.c.l.b16 %v1445
    %v5257 = vunpack.c.h.b16 %v1445
    %v5258 = vunpack.c.l.b16 %v1446
    %v5259 = vunpack.c.h.b16 %v1446
    %v5260 = vunpack.c.l.b16 %v1447
    %v5261 = vunpack.c.h.b16 %v1447
    %v5262 = vunpack.c.l.b16 %v1448
    %v5263 = vunpack.c.h.b16 %v1448
    %v5264 = vunpack.c.l.b16 %v1449
    %v5265 = vunpack.c.h.b16 %v1449
    %v5266 = vunpack.c.l.b16 %v1450
    %v5267 = vunpack.c.h.b16 %v1450
    %v5268 = vunpack.c.l.b16 %v1451
    %v5269 = vunpack.c.h.b16 %v1451
    %v5270 = vunpack.c.l.b16 %v1452
    %v5271 = vunpack.c.h.b16 %v1452
    %v5272 = vunpack.c.l.b16 %v1453
    %v5273 = vunpack.c.h.b16 %v1453
    %v5274 = vunpack.c.l.b16 %v1454
    %v5275 = vunpack.c.h.b16 %v1454
    %v5276 = vunpack.c.l.b16 %v1455
    %v5277 = vunpack.c.h.b16 %v1455
    %v5278 = vunpack.c.l.b16 %v1456
    %v5279 = vunpack.c.h.b16 %v1456
    %v5280 = vunpack.c.l.b16 %v1457
    %v5281 = vunpack.c.h.b16 %v1457
    %v5282 = vunpack.c.l.b16 %v1458
    %v5283 = vunpack.c.h.b16 %v1458
    %v5284 = vunpack.c.l.b16 %v1459
    %v5285 = vunpack.c.h.b16 %v1459
    %v5286 = vunpack.c.l.b16 %v1460
    %v5287 = vunpack.c.h.b16 %v1460
    %v5288 = vunpack.c.l.b16 %v1461
    %v5289 = vunpack.c.h.b16 %v1461
    %v5290 = vunpack.c.l.b16 %v1462
    %v5291 = vunpack.c.h.b16 %v1462
    %v5292 = vunpack.c.l.b16 %v1463
    %v5293 = vunpack.c.h.b16 %v1463
    %v5294 = vunpack.c.l.b16 %v1464
    %v5295 = vunpack.c.h.b16 %v1464
    %v5296 = vunpack.c.l.b16 %v1465
    %v5297 = vunpack.c.h.b16 %v1465
    %v5298 = vunpack.c.l.b16 %v1466
    %v5299 = vunpack.c.h.b16 %v1466
    %v5300 = vunpack.c.l.b16 %v1467
    %v5301 = vunpack.c.h.b16 %v1467
    %v5302 = vunpack.c.l.b16 %v1468
    %v5303 = vunpack.c.h.b16 %v1468
    %v5304 = vunpack.c.l.b16 %v1469
    %v5305 = vunpack.c.h.b16 %v1469
    %v5306 = vunpack.c.l.b16 %v1470
    %v5307 = vunpack.c.h.b16 %v1470
    %v5308 = vunpack.c.l.b16 %v1471
    %v5309 = vunpack.c.h.b16 %v1471
    %v5310 = vunpack.c.l.b16 %v1472
    %v5311 = vunpack.c.h.b16 %v1472
    %v5312 = vunpack.c.l.b16 %v1473
    %v5313 = vunpack.c.h.b16 %v1473
    %v5314 = vunpack.c.l.b16 %v1474
    %v5315 = vunpack.c.h.b16 %v1474
    %v5316 = vunpack.c.l.b16 %v1475
    %v5317 = vunpack.c.h.b16 %v1475
    %v5318 = vunpack.c.l.b16 %v1476
    %v5319 = vunpack.c.h.b16 %v1476
    %v5320 = vunpack.c.l.b16 %v1477
    %v5321 = vunpack.c.h.b16 %v1477
    %v5322 = vunpack.c.l.b16 %v1478
    %v5323 = vunpack.c.h.b16 %v1478
    %v5324 = vunpack.c.l.b16 %v1479
    %v5325 = vunpack.c.h.b16 %v1479
    %v5326 = vunpack.c.l.b16 %v1480
    %v5327 = vunpack.c.h.b16 %v1480
    %v5328 = vunpack.c.l.b16 %v1481
    %v5329 = vunpack.c.h.b16 %v1481
    %v5330 = vunpack.c.l.b16 %v1482
    %v5331 = vunpack.c.h.b16 %v1482
    %v5332 = vunpack.c.l.b16 %v1483
    %v5333 = vunpack.c.h.b16 %v1483
    %v5334 = vunpack.c.l.b16 %v1484
    %v5335 = vunpack.c.h.b16 %v1484
    %v5336 = vunpack.c.l.b16 %v1485
    %v5337 = vunpack.c.h.b16 %v1485
    %v5338 = vunpack.c.l.b16 %v1486
    %v5339 = vunpack.c.h.b16 %v1486
    %v5340 = vunpack.c.l.b16 %v1487
    %v5341 = vunpack.c.h.b16 %v1487
    %v5342 = vunpack.c.l.b16 %v1488
    %v5343 = vunpack.c.h.b16 %v1488
    %v5344 = vunpack.c.l.b16 %v1489
    %v5345 = vunpack.c.h.b16 %v1489
    %v5346 = vunpack.c.l.b16 %v1490
    %v5347 = vunpack.c.h.b16 %v1490
    %v5348 = vunpack.c.l.b16 %v1491
    %v5349 = vunpack.c.h.b16 %v1491
    %v5350 = vunpack.c.l.b16 %v1492
    %v5351 = vunpack.c.h.b16 %v1492
    %v5352 = vunpack.c.l.b16 %v1493
    %v5353 = vunpack.c.h.b16 %v1493
    %v5354 = vunpack.c.l.b16 %v1494
    %v5355 = vunpack.c.h.b16 %v1494
    %v5356 = vunpack.c.l.b16 %v1495
    %v5357 = vunpack.c.h.b16 %v1495
    %v5358 = vunpack.c.l.b16 %v1496
    %v5359 = vunpack.c.h.b16 %v1496
    %v5360 = vunpack.c.l.b16 %v1497
    %v5361 = vunpack.c.h.b16 %v1497
    %v5362 = vunpack.c.l.b16 %v1498
    %v5363 = vunpack.c.h.b16 %v1498
    %v5364 = vunpack.c.l.b16 %v1499
    %v5365 = vunpack.c.h.b16 %v1499
    %v5366 = vunpack.c.l.b16 %v1500
    %v5367 = vunpack.c.h.b16 %v1500
    %v5368 = vunpack.c.l.b16 %v1501
    %v5369 = vunpack.c.h.b16 %v1501
    %v5370 = vunpack.c.l.b16 %v1502
    %v5371 = vunpack.c.h.b16 %v1502
    %v5372 = vunpack.c.l.b16 %v1503
    %v5373 = vunpack.c.h.b16 %v1503
    %v5374 = vunpack.c.l.b16 %v1504
    %v5375 = vunpack.c.h.b16 %v1504
    %v5376 = vunpack.c.l.b16 %v1505
    %v5377 = vunpack.c.h.b16 %v1505
    %v5378 = vunpack.c.l.b16 %v1506
    %v5379 = vunpack.c.h.b16 %v1506
    %v5380 = vunpack.c.l.b16 %v1507
    %v5381 = vunpack.c.h.b16 %v1507
    %v5382 = vunpack.c.l.b16 %v1508
    %v5383 = vunpack.c.h.b16 %v1508
    %v5384 = vunpack.c.l.b16 %v1509
    %v5385 = vunpack.c.h.b16 %v1509
    %v5386 = vunpack.c.l.b16 %v1510
    %v5387 = vunpack.c.h.b16 %v1510
    %v5388 = vunpack.c.l.b16 %v1511
    %v5389 = vunpack.c.h.b16 %v1511
    %v5390 = vunpack.c.l.b16 %v1512
    %v5391 = vunpack.c.h.b16 %v1512
    %v5392 = vunpack.c.l.b16 %v1513
    %v5393 = vunpack.c.h.b16 %v1513
    %v5394 = vunpack.c.l.b16 %v1514
    %v5395 = vunpack.c.h.b16 %v1514
    %v5396 = vunpack.c.l.b16 %v1515
    %v5397 = vunpack.c.h.b16 %v1515
    %v5398 = vunpack.c.l.b16 %v1516
    %v5399 = vunpack.c.h.b16 %v1516
    %v5400 = vunpack.c.l.b16 %v1517
    %v5401 = vunpack.c.h.b16 %v1517
    %v5402 = vunpack.c.l.b16 %v1518
    %v5403 = vunpack.c.h.b16 %v1518
    %v5404 = vunpack.c.l.b16 %v1519
    %v5405 = vunpack.c.h.b16 %v1519
    %v5406 = vunpack.c.l.b16 %v1520
    %v5407 = vunpack.c.h.b16 %v1520
    %v5408 = vunpack.c.l.b16 %v1521
    %v5409 = vunpack.c.h.b16 %v1521
    %v5410 = vunpack.c.l.b16 %v1522
    %v5411 = vunpack.c.h.b16 %v1522
    %v5412 = vunpack.c.l.b16 %v1523
    %v5413 = vunpack.c.h.b16 %v1523
    %v5414 = vunpack.c.l.b16 %v1524
    %v5415 = vunpack.c.h.b16 %v1524
    %v5416 = vunpack.c.l.b16 %v1525
    %v5417 = vunpack.c.h.b16 %v1525
    %v5418 = vunpack.c.l.b16 %v1526
    %v5419 = vunpack.c.h.b16 %v1526
    %v5420 = vunpack.c.l.b16 %v1527
    %v5421 = vunpack.c.h.b16 %v1527
    %v5422 = vunpack.c.l.b16 %v1528
    %v5423 = vunpack.c.h.b16 %v1528
    %v5424 = vunpack.c.l.b16 %v1529
    %v5425 = vunpack.c.h.b16 %v1529
    %v5426 = vunpack.c.l.b16 %v1530
    %v5427 = vunpack.c.h.b16 %v1530
    %v5428 = vunpack.c.l.b16 %v1531
    %v5429 = vunpack.c.h.b16 %v1531
    %v5430 = vunpack.c.l.b16 %v1532
    %v5431 = vunpack.c.h.b16 %v1532
    %v5432 = vunpack.c.l.b16 %v1533
    %v5433 = vunpack.c.h.b16 %v1533
    %v5434 = vunpack.c.l.b16 %v1534
    %v5435 = vunpack.c.h.b16 %v1534
    %v5436 = vunpack.c.l.b16 %v1535
    %v5437 = vunpack.c.h.b16 %v1535
    %v5438 = vunpack.c.l.b16 %v1536
    %v5439 = vunpack.c.h.b16 %v1536
    %v5440 = vunpack.c.l.b16 %v1537
    %v5441 = vunpack.c.h.b16 %v1537
    %v5442 = vunpack.c.l.b16 %v1538
    %v5443 = vunpack.c.h.b16 %v1538
    %v5444 = vunpack.c.l.b16 %v1539
    %v5445 = vunpack.c.h.b16 %v1539
    %v5446 = vunpack.c.l.b16 %v1540
    %v5447 = vunpack.c.h.b16 %v1540
    %v5448 = vunpack.c.l.b16 %v1541
    %v5449 = vunpack.c.h.b16 %v1541
    %v5450 = vunpack.c.l.b16 %v1542
    %v5451 = vunpack.c.h.b16 %v1542
    %v5452 = vunpack.c.l.b16 %v1543
    %v5453 = vunpack.c.h.b16 %v1543
    %v5454 = vunpack.c.l.b16 %v1544
    %v5455 = vunpack.c.h.b16 %v1544
    %v5456 = vunpack.c.l.b16 %v1545
    %v5457 = vunpack.c.h.b16 %v1545
    %v5458 = vunpack.c.l.b16 %v1546
    %v5459 = vunpack.c.h.b16 %v1546
    %v5460 = vunpack.c.l.b16 %v1547
    %v5461 = vunpack.c.h.b16 %v1547
    %v5462 = vunpack.c.l.b16 %v1548
    %v5463 = vunpack.c.h.b16 %v1548
    %v5464 = vunpack.c.l.b16 %v1549
    %v5465 = vunpack.c.h.b16 %v1549
    %v5466 = vunpack.c.l.b16 %v1550
    %v5467 = vunpack.c.h.b16 %v1550
    %v5468 = vunpack.c.l.b16 %v1551
    %v5469 = vunpack.c.h.b16 %v1551
    %v5470 = vunpack.c.l.b16 %v1552
    %v5471 = vunpack.c.h.b16 %v1552
    %v5472 = vunpack.c.l.b16 %v1553
    %v5473 = vunpack.c.h.b16 %v1553
    %v5474 = vunpack.c.l.b16 %v1554
    %v5475 = vunpack.c.h.b16 %v1554
    %v5476 = vunpack.c.l.b16 %v1555
    %v5477 = vunpack.c.h.b16 %v1555
    %v5478 = vunpack.c.l.b16 %v1556
    %v5479 = vunpack.c.h.b16 %v1556
    %v5480 = vunpack.c.l.b16 %v1557
    %v5481 = vunpack.c.h.b16 %v1557
    %v5482 = vunpack.c.l.b16 %v1558
    %v5483 = vunpack.c.h.b16 %v1558
    %v5484 = vunpack.c.l.b16 %v1559
    %v5485 = vunpack.c.h.b16 %v1559
    %v5486 = vunpack.c.l.b16 %v1560
    %v5487 = vunpack.c.h.b16 %v1560
    %v5488 = vunpack.c.l.b16 %v1561
    %v5489 = vunpack.c.h.b16 %v1561
    %v5490 = vunpack.c.l.b16 %v1562
    %v5491 = vunpack.c.h.b16 %v1562
    %v5492 = vunpack.c.l.b16 %v1563
    %v5493 = vunpack.c.h.b16 %v1563
    %v5494 = vunpack.c.l.b16 %v1564
    %v5495 = vunpack.c.h.b16 %v1564
    %v5496 = vunpack.c.l.b16 %v1565
    %v5497 = vunpack.c.h.b16 %v1565
    %v5498 = vunpack.c.l.b16 %v1566
    %v5499 = vunpack.c.h.b16 %v1566
    %v5500 = vunpack.c.l.b16 %v1567
    %v5501 = vunpack.c.h.b16 %v1567
    %v5502 = vunpack.c.l.b16 %v1568
    %v5503 = vunpack.c.h.b16 %v1568
    %v5504 = vunpack.c.l.b16 %v1569
    %v5505 = vunpack.c.h.b16 %v1569
    %v5506 = vunpack.c.l.b16 %v1570
    %v5507 = vunpack.c.h.b16 %v1570
    %v5508 = vunpack.c.l.b16 %v1571
    %v5509 = vunpack.c.h.b16 %v1571
    %v5510 = vunpack.c.l.b16 %v1572
    %v5511 = vunpack.c.h.b16 %v1572
    %v5512 = vunpack.c.l.b16 %v1573
    %v5513 = vunpack.c.h.b16 %v1573
    %v5514 = vunpack.c.l.b16 %v1574
    %v5515 = vunpack.c.h.b16 %v1574
    %v5516 = vunpack.c.l.b16 %v1575
    %v5517 = vunpack.c.h.b16 %v1575
    %v5518 = vunpack.c.l.b16 %v1576
    %v5519 = vunpack.c.h.b16 %v1576
    %v5520 = vunpack.c.l.b16 %v1577
    %v5521 = vunpack.c.h.b16 %v1577
    %v5522 = vunpack.c.l.b16 %v1578
    %v5523 = vunpack.c.h.b16 %v1578
    %v5524 = vunpack.c.l.b16 %v1579
    %v5525 = vunpack.c.h.b16 %v1579
    %v5526 = vunpack.c.l.b16 %v1580
    %v5527 = vunpack.c.h.b16 %v1580
    %v5528 = vunpack.c.l.b16 %v1581
    %v5529 = vunpack.c.h.b16 %v1581
    %v5530 = vunpack.c.l.b16 %v1582
    %v5531 = vunpack.c.h.b16 %v1582
    %v5532 = vunpack.c.l.b16 %v1583
    %v5533 = vunpack.c.h.b16 %v1583
    %v5534 = vunpack.c.l.b16 %v1584
    %v5535 = vunpack.c.h.b16 %v1584
    %v5536 = vunpack.c.l.b16 %v1585
    %v5537 = vunpack.c.h.b16 %v1585
    %v5538 = vunpack.c.l.b16 %v1586
    %v5539 = vunpack.c.h.b16 %v1586
    %v5540 = vunpack.c.l.b16 %v1587
    %v5541 = vunpack.c.h.b16 %v1587
    %v5542 = vunpack.c.l.b16 %v1588
    %v5543 = vunpack.c.h.b16 %v1588
    %v5544 = vunpack.c.l.b16 %v1589
    %v5545 = vunpack.c.h.b16 %v1589
    %v5546 = vunpack.c.l.b16 %v1590
    %v5547 = vunpack.c.h.b16 %v1590
    %v5548 = vunpack.c.l.b16 %v1591
    %v5549 = vunpack.c.h.b16 %v1591
    %v5550 = vunpack.c.l.b16 %v1592
    %v5551 = vunpack.c.h.b16 %v1592
    %v5552 = vunpack.c.l.b16 %v1593
    %v5553 = vunpack.c.h.b16 %v1593
    %v5554 = vunpack.c.l.b16 %v1594
    %v5555 = vunpack.c.h.b16 %v1594
    %v5556 = vunpack.c.l.b16 %v1595
    %v5557 = vunpack.c.h.b16 %v1595
    %v5558 = vunpack.c.l.b16 %v1596
    %v5559 = vunpack.c.h.b16 %v1596
    %v5560 = vunpack.c.l.b16 %v1597
    %v5561 = vunpack.c.h.b16 %v1597
    %v5562 = vunpack.c.l.b16 %v1598
    %v5563 = vunpack.c.h.b16 %v1598
    %v5564 = vunpack.c.l.b16 %v1599
    %v5565 = vunpack.c.h.b16 %v1599
    %v5566 = vunpack.c.l.b16 %v1600
    %v5567 = vunpack.c.h.b16 %v1600
    %v5568 = vunpack.c.l.b16 %v1601
    %v5569 = vunpack.c.h.b16 %v1601
    %v5570 = vunpack.c.l.b16 %v1602
    %v5571 = vunpack.c.h.b16 %v1602
    %v5572 = vunpack.c.l.b16 %v1603
    %v5573 = vunpack.c.h.b16 %v1603
    %v5574 = vunpack.c.l.b16 %v1604
    %v5575 = vunpack.c.h.b16 %v1604
    %v5576 = vunpack.c.l.b16 %v1605
    %v5577 = vunpack.c.h.b16 %v1605
    %v5578 = vunpack.c.l.b16 %v1606
    %v5579 = vunpack.c.h.b16 %v1606
    %v5580 = vunpack.c.l.b16 %v1607
    %v5581 = vunpack.c.h.b16 %v1607
    %v5582 = vunpack.c.l.b16 %v1608
    %v5583 = vunpack.c.h.b16 %v1608
    %v5584 = vunpack.c.l.b16 %v1609
    %v5585 = vunpack.c.h.b16 %v1609
    %v5586 = vunpack.c.l.b16 %v1610
    %v5587 = vunpack.c.h.b16 %v1610
    %v5588 = vunpack.c.l.b16 %v1611
    %v5589 = vunpack.c.h.b16 %v1611
    %v5590 = vunpack.c.l.b16 %v1612
    %v5591 = vunpack.c.h.b16 %v1612
    %v5592 = vunpack.c.l.b16 %v1613
    %v5593 = vunpack.c.h.b16 %v1613
    %v5594 = vunpack.c.l.b16 %v1614
    %v5595 = vunpack.c.h.b16 %v1614
    %v5596 = vunpack.c.l.b16 %v1615
    %v5597 = vunpack.c.h.b16 %v1615
    %v5598 = vunpack.c.l.b16 %v1616
    %v5599 = vunpack.c.h.b16 %v1616
    %v5600 = vunpack.c.l.b16 %v1617
    %v5601 = vunpack.c.h.b16 %v1617
    %v5602 = vunpack.c.l.b16 %v1618
    %v5603 = vunpack.c.h.b16 %v1618
    %v5604 = vunpack.c.l.b16 %v1619
    %v5605 = vunpack.c.h.b16 %v1619
    %v5606 = vunpack.c.l.b16 %v1620
    %v5607 = vunpack.c.h.b16 %v1620
    %v5608 = vunpack.c.l.b16 %v1621
    %v5609 = vunpack.c.h.b16 %v1621
    %v5610 = vunpack.c.l.b16 %v1622
    %v5611 = vunpack.c.h.b16 %v1622
    %v5612 = vunpack.c.l.b16 %v1623
    %v5613 = vunpack.c.h.b16 %v1623
    %v5614 = vunpack.c.l.b16 %v1624
    %v5615 = vunpack.c.h.b16 %v1624
    %v5616 = vunpack.c.l.b16 %v1625
    %v5617 = vunpack.c.h.b16 %v1625
    %v5618 = vunpack.c.l.b16 %v1626
    %v5619 = vunpack.c.h.b16 %v1626
    %v5620 = vunpack.c.l.b16 %v1627
    %v5621 = vunpack.c.h.b16 %v1627
    %v5622 = vunpack.c.l.b16 %v1628
    %v5623 = vunpack.c.h.b16 %v1628
    %v5624 = vunpack.c.l.b16 %v1629
    %v5625 = vunpack.c.h.b16 %v1629
    %v5626 = vunpack.c.l.b16 %v1630
    %v5627 = vunpack.c.h.b16 %v1630
    %v5628 = vunpack.c.l.b16 %v1631
    %v5629 = vunpack.c.h.b16 %v1631
    %v5630 = vunpack.c.l.b16 %v1632
    %v5631 = vunpack.c.h.b16 %v1632
    %v5632 = vunpack.c.l.b16 %v1633
    %v5633 = vunpack.c.h.b16 %v1633
    %v5634 = vunpack.c.l.b16 %v1634
    %v5635 = vunpack.c.h.b16 %v1634
    %v5636 = vunpack.c.l.b16 %v1635
    %v5637 = vunpack.c.h.b16 %v1635
    %v5638 = vunpack.c.l.b16 %v1636
    %v5639 = vunpack.c.h.b16 %v1636
    %v5640 = vunpack.c.l.b16 %v1637
    %v5641 = vunpack.c.h.b16 %v1637
    %v5642 = vunpack.c.l.b16 %v1638
    %v5643 = vunpack.c.h.b16 %v1638
    %v5644 = vunpack.c.l.b16 %v1639
    %v5645 = vunpack.c.h.b16 %v1639
    %v5646 = vunpack.c.l.b16 %v1640
    %v5647 = vunpack.c.h.b16 %v1640
    %v5648 = vunpack.c.l.b16 %v1641
    %v5649 = vunpack.c.h.b16 %v1641
    %v5650 = vunpack.c.l.b16 %v1642
    %v5651 = vunpack.c.h.b16 %v1642
    %v5652 = vunpack.c.l.b16 %v1643
    %v5653 = vunpack.c.h.b16 %v1643
    %v5654 = vunpack.c.l.b16 %v1644
    %v5655 = vunpack.c.h.b16 %v1644
    %v5656 = vunpack.c.l.b16 %v1645
    %v5657 = vunpack.c.h.b16 %v1645
    %v5658 = vunpack.c.l.b16 %v1646
    %v5659 = vunpack.c.h.b16 %v1646
    %v5660 = vunpack.c.l.b16 %v1647
    %v5661 = vunpack.c.h.b16 %v1647
    %v5662 = vunpack.c.l.b16 %v1648
    %v5663 = vunpack.c.h.b16 %v1648
    %v5664 = vunpack.c.l.b16 %v1649
    %v5665 = vunpack.c.h.b16 %v1649
    %v5666 = vunpack.c.l.b16 %v1650
    %v5667 = vunpack.c.h.b16 %v1650
    %v5668 = vunpack.c.l.b16 %v1651
    %v5669 = vunpack.c.h.b16 %v1651
    %v5670 = vunpack.c.l.b16 %v1652
    %v5671 = vunpack.c.h.b16 %v1652
    %v5672 = vunpack.c.l.b16 %v1653
    %v5673 = vunpack.c.h.b16 %v1653
    %v5674 = vunpack.c.l.b16 %v1654
    %v5675 = vunpack.c.h.b16 %v1654
    %v5676 = vunpack.c.l.b16 %v1655
    %v5677 = vunpack.c.h.b16 %v1655
    %v5678 = vunpack.c.l.b16 %v1656
    %v5679 = vunpack.c.h.b16 %v1656
    %v5680 = vunpack.c.l.b16 %v1657
    %v5681 = vunpack.c.h.b16 %v1657
    %v5682 = vunpack.c.l.b16 %v1658
    %v5683 = vunpack.c.h.b16 %v1658
    %v5684 = vunpack.c.l.b16 %v1659
    %v5685 = vunpack.c.h.b16 %v1659
    %v5686 = vunpack.c.l.b16 %v1660
    %v5687 = vunpack.c.h.b16 %v1660
    %v5688 = vunpack.c.l.b16 %v1661
    %v5689 = vunpack.c.h.b16 %v1661
    %v5690 = vunpack.c.l.b16 %v1662
    %v5691 = vunpack.c.h.b16 %v1662
    %v5692 = vunpack.c.l.b16 %v1663
    %v5693 = vunpack.c.h.b16 %v1663
    %v5694 = vunpack.c.l.b16 %v1664
    %v5695 = vunpack.c.h.b16 %v1664
    %v5696 = vunpack.c.l.b16 %v1665
    %v5697 = vunpack.c.h.b16 %v1665
    %v5698 = vunpack.c.l.b16 %v1666
    %v5699 = vunpack.c.h.b16 %v1666
    %v5700 = vunpack.c.l.b16 %v1667
    %v5701 = vunpack.c.h.b16 %v1667
    %v5702 = vunpack.c.l.b16 %v1668
    %v5703 = vunpack.c.h.b16 %v1668
    %v5704 = vunpack.c.l.b16 %v1669
    %v5705 = vunpack.c.h.b16 %v1669
    %v5706 = vunpack.c.l.b16 %v1670
    %v5707 = vunpack.c.h.b16 %v1670
    %v5708 = vunpack.c.l.b16 %v1671
    %v5709 = vunpack.c.h.b16 %v1671
    %v5710 = vunpack.c.l.b16 %v1672
    %v5711 = vunpack.c.h.b16 %v1672
    %v5712 = vunpack.c.l.b16 %v1673
    %v5713 = vunpack.c.h.b16 %v1673
    %v5714 = vunpack.c.l.b16 %v1674
    %v5715 = vunpack.c.h.b16 %v1674
    %v5716 = vunpack.c.l.b16 %v1675
    %v5717 = vunpack.c.h.b16 %v1675
    %v5718 = vunpack.c.l.b16 %v1676
    %v5719 = vunpack.c.h.b16 %v1676
    %v5720 = vunpack.c.l.b16 %v1677
    %v5721 = vunpack.c.h.b16 %v1677
    %v5722 = vunpack.c.l.b16 %v1678
    %v5723 = vunpack.c.h.b16 %v1678
    %v5724 = vunpack.c.l.b16 %v1679
    %v5725 = vunpack.c.h.b16 %v1679
    %v5726 = vunpack.c.l.b16 %v1680
    %v5727 = vunpack.c.h.b16 %v1680
    %v5728 = vunpack.c.l.b16 %v1681
    %v5729 = vunpack.c.h.b16 %v1681
    %v5730 = vunpack.c.l.b16 %v1682
    %v5731 = vunpack.c.h.b16 %v1682
    %v5732 = vunpack.c.l.b16 %v1683
    %v5733 = vunpack.c.h.b16 %v1683
    %v5734 = vunpack.c.l.b16 %v1684
    %v5735 = vunpack.c.h.b16 %v1684
    %v5736 = vunpack.c.l.b16 %v1685
    %v5737 = vunpack.c.h.b16 %v1685
    %v5738 = vunpack.c.l.b16 %v1686
    %v5739 = vunpack.c.h.b16 %v1686
    %v5740 = vunpack.c.l.b16 %v1687
    %v5741 = vunpack.c.h.b16 %v1687
    %v5742 = vunpack.c.l.b16 %v1688
    %v5743 = vunpack.c.h.b16 %v1688
    %v5744 = vunpack.c.l.b16 %v1689
    %v5745 = vunpack.c.h.b16 %v1689
    %v5746 = vunpack.c.l.b16 %v1690
    %v5747 = vunpack.c.h.b16 %v1690
    %v5748 = vunpack.c.l.b16 %v1691
    %v5749 = vunpack.c.h.b16 %v1691
    %v5750 = vunpack.c.l.b16 %v1692
    %v5751 = vunpack.c.h.b16 %v1692
    %v5752 = vunpack.c.l.b16 %v1693
    %v5753 = vunpack.c.h.b16 %v1693
    %v5754 = vunpack.c.l.b16 %v1694
    %v5755 = vunpack.c.h.b16 %v1694
    %v5756 = vunpack.c.l.b16 %v1695
    %v5757 = vunpack.c.h.b16 %v1695
    %v5758 = vunpack.c.l.b16 %v1696
    %v5759 = vunpack.c.h.b16 %v1696
    %v5760 = vunpack.c.l.b16 %v1697
    %v5761 = vunpack.c.h.b16 %v1697
    %v5762 = vunpack.c.l.b16 %v1698
    %v5763 = vunpack.c.h.b16 %v1698
    %v5764 = vunpack.c.l.b16 %v1699
    %v5765 = vunpack.c.h.b16 %v1699
    %v5766 = vunpack.c.l.b16 %v1700
    %v5767 = vunpack.c.h.b16 %v1700
    %v5768 = vunpack.c.l.b16 %v1701
    %v5769 = vunpack.c.h.b16 %v1701
    %v5770 = vunpack.c.l.b16 %v1702
    %v5771 = vunpack.c.h.b16 %v1702
    %v5772 = vunpack.c.l.b16 %v1703
    %v5773 = vunpack.c.h.b16 %v1703
    %v5774 = vunpack.c.l.b16 %v1704
    %v5775 = vunpack.c.h.b16 %v1704
    %v5776 = vunpack.c.l.b16 %v1705
    %v5777 = vunpack.c.h.b16 %v1705
    %v5778 = vunpack.c.l.b16 %v1706
    %v5779 = vunpack.c.h.b16 %v1706
    %v5780 = vunpack.c.l.b16 %v1707
    %v5781 = vunpack.c.h.b16 %v1707
    %v5782 = vunpack.c.l.b16 %v1708
    %v5783 = vunpack.c.h.b16 %v1708
    %v5784 = vunpack.c.l.b16 %v1709
    %v5785 = vunpack.c.h.b16 %v1709
    %v5786 = vunpack.c.l.b16 %v1710
    %v5787 = vunpack.c.h.b16 %v1710
    %v5788 = vunpack.c.l.b16 %v1711
    %v5789 = vunpack.c.h.b16 %v1711
    %v5790 = vunpack.c.l.b16 %v1712
    %v5791 = vunpack.c.h.b16 %v1712
    %v5792 = vunpack.c.l.b16 %v1713
    %v5793 = vunpack.c.h.b16 %v1713
    %v5794 = vunpack.c.l.b16 %v1714
    %v5795 = vunpack.c.h.b16 %v1714
    %v5796 = vunpack.c.l.b16 %v1715
    %v5797 = vunpack.c.h.b16 %v1715
    %v5798 = vunpack.c.l.b16 %v1716
    %v5799 = vunpack.c.h.b16 %v1716
    %v5800 = vunpack.c.l.b16 %v1717
    %v5801 = vunpack.c.h.b16 %v1717
    %v5802 = vunpack.c.l.b16 %v1718
    %v5803 = vunpack.c.h.b16 %v1718
    %v5804 = vunpack.c.l.b16 %v1719
    %v5805 = vunpack.c.h.b16 %v1719
    %v5806 = vunpack.c.l.b16 %v1720
    %v5807 = vunpack.c.h.b16 %v1720
    %v5808 = vunpack.c.l.b16 %v1721
    %v5809 = vunpack.c.h.b16 %v1721
    %v5810 = vunpack.c.l.b16 %v1722
    %v5811 = vunpack.c.h.b16 %v1722
    %v5812 = vunpack.c.l.b16 %v1723
    %v5813 = vunpack.c.h.b16 %v1723
    %v5814 = vunpack.c.l.b16 %v1724
    %v5815 = vunpack.c.h.b16 %v1724
    %v5816 = vunpack.c.l.b16 %v1725
    %v5817 = vunpack.c.h.b16 %v1725
    %v5818 = vunpack.c.l.b16 %v1726
    %v5819 = vunpack.c.h.b16 %v1726
    %v5820 = vunpack.c.l.b16 %v1727
    %v5821 = vunpack.c.h.b16 %v1727
    %v5822 = vunpack.c.l.b16 %v1728
    %v5823 = vunpack.c.h.b16 %v1728
    %v5824 = vunpack.c.l.b16 %v1729
    %v5825 = vunpack.c.h.b16 %v1729
    %v5826 = vunpack.c.l.b16 %v1730
    %v5827 = vunpack.c.h.b16 %v1730
    %v5828 = vunpack.c.l.b16 %v1731
    %v5829 = vunpack.c.h.b16 %v1731
    %v5830 = vunpack.c.l.b16 %v1732
    %v5831 = vunpack.c.h.b16 %v1732
    %v5832 = vunpack.c.l.b16 %v1733
    %v5833 = vunpack.c.h.b16 %v1733
    %v5834 = vunpack.c.l.b16 %v1734
    %v5835 = vunpack.c.h.b16 %v1734
    %v5836 = vunpack.c.l.b16 %v1735
    %v5837 = vunpack.c.h.b16 %v1735
    %v5838 = vunpack.c.l.b16 %v1736
    %v5839 = vunpack.c.h.b16 %v1736
    %v5840 = vunpack.c.l.b16 %v1737
    %v5841 = vunpack.c.h.b16 %v1737
    %v5842 = vunpack.c.l.b16 %v1738
    %v5843 = vunpack.c.h.b16 %v1738
    %v5844 = vunpack.c.l.b16 %v1739
    %v5845 = vunpack.c.h.b16 %v1739
    %v5846 = vunpack.c.l.b16 %v1740
    %v5847 = vunpack.c.h.b16 %v1740
    %v5848 = vunpack.c.l.b16 %v1741
    %v5849 = vunpack.c.h.b16 %v1741
    %v5850 = vunpack.c.l.b16 %v1742
    %v5851 = vunpack.c.h.b16 %v1742
    %v5852 = vunpack.c.l.b16 %v1743
    %v5853 = vunpack.c.h.b16 %v1743
    %v5854 = vunpack.c.l.b16 %v1744
    %v5855 = vunpack.c.h.b16 %v1744
    %v5856 = vunpack.c.l.b16 %v1745
    %v5857 = vunpack.c.h.b16 %v1745
    %v5858 = vunpack.c.l.b16 %v1746
    %v5859 = vunpack.c.h.b16 %v1746
    %v5860 = vunpack.c.l.b16 %v1747
    %v5861 = vunpack.c.h.b16 %v1747
    %v5862 = vunpack.c.l.b16 %v1748
    %v5863 = vunpack.c.h.b16 %v1748
    %v5864 = vunpack.c.l.b16 %v1749
    %v5865 = vunpack.c.h.b16 %v1749
    %v5866 = vunpack.c.l.b16 %v1750
    %v5867 = vunpack.c.h.b16 %v1750
    %v5868 = vunpack.c.l.b16 %v1751
    %v5869 = vunpack.c.h.b16 %v1751
    %v5870 = vunpack.c.l.b16 %v1752
    %v5871 = vunpack.c.h.b16 %v1752
    %v5872 = vunpack.c.l.b16 %v1753
    %v5873 = vunpack.c.h.b16 %v1753
    %v5874 = vunpack.c.l.b16 %v1754
    %v5875 = vunpack.c.h.b16 %v1754
    %v5876 = vunpack.c.l.b16 %v1755
    %v5877 = vunpack.c.h.b16 %v1755
    %v5878 = vunpack.c.l.b16 %v1756
    %v5879 = vunpack.c.h.b16 %v1756
    %v5880 = vunpack.c.l.b16 %v1757
    %v5881 = vunpack.c.h.b16 %v1757
    %v5882 = vunpack.c.l.b16 %v1758
    %v5883 = vunpack.c.h.b16 %v1758
    %v5884 = vunpack.c.l.b16 %v1759
    %v5885 = vunpack.c.h.b16 %v1759
    %v5886 = vunpack.c.l.b16 %v1760
    %v5887 = vunpack.c.h.b16 %v1760
    %v5888 = vunpack.c.l.b16 %v1761
    %v5889 = vunpack.c.h.b16 %v1761
    %v5890 = vunpack.c.l.b16 %v1762
    %v5891 = vunpack.c.h.b16 %v1762
    %v5892 = vunpack.c.l.b16 %v1763
    %v5893 = vunpack.c.h.b16 %v1763
    %v5894 = vunpack.c.l.b16 %v1764
    %v5895 = vunpack.c.h.b16 %v1764
    %v5896 = vunpack.c.l.b16 %v1765
    %v5897 = vunpack.c.h.b16 %v1765
    %v5898 = vunpack.c.l.b16 %v1766
    %v5899 = vunpack.c.h.b16 %v1766
    %v5900 = vunpack.c.l.b16 %v1767
    %v5901 = vunpack.c.h.b16 %v1767
    %v5902 = vunpack.c.l.b16 %v1768
    %v5903 = vunpack.c.h.b16 %v1768
    %v5904 = vunpack.c.l.b16 %v1769
    %v5905 = vunpack.c.h.b16 %v1769
    %v5906 = vunpack.c.l.b16 %v1770
    %v5907 = vunpack.c.h.b16 %v1770
    %v5908 = vunpack.c.l.b16 %v1771
    %v5909 = vunpack.c.h.b16 %v1771
    %v5910 = vunpack.c.l.b16 %v1772
    %v5911 = vunpack.c.h.b16 %v1772
    %v5912 = vunpack.c.l.b16 %v1773
    %v5913 = vunpack.c.h.b16 %v1773
    %v5914 = vunpack.c.l.b16 %v1774
    %v5915 = vunpack.c.h.b16 %v1774
    %v5916 = vunpack.c.l.b16 %v1775
    %v5917 = vunpack.c.h.b16 %v1775
    %v5918 = vunpack.c.l.b16 %v1776
    %v5919 = vunpack.c.h.b16 %v1776
    %v5920 = vunpack.c.l.b16 %v1777
    %v5921 = vunpack.c.h.b16 %v1777
    %v5922 = vunpack.c.l.b16 %v1778
    %v5923 = vunpack.c.h.b16 %v1778
    %v5924 = vunpack.c.l.b16 %v1779
    %v5925 = vunpack.c.h.b16 %v1779
    %v5926 = vunpack.c.l.b16 %v1780
    %v5927 = vunpack.c.h.b16 %v1780
    %v5928 = vunpack.c.l.b16 %v1781
    %v5929 = vunpack.c.h.b16 %v1781
    %v5930 = vunpack.c.l.b16 %v1782
    %v5931 = vunpack.c.h.b16 %v1782
    %v5932 = vunpack.c.l.b16 %v1783
    %v5933 = vunpack.c.h.b16 %v1783
    %v5934 = vunpack.c.l.b16 %v1784
    %v5935 = vunpack.c.h.b16 %v1784
    %v5936 = vunpack.c.l.b16 %v1785
    %v5937 = vunpack.c.h.b16 %v1785
    %v5938 = vunpack.c.l.b16 %v1786
    %v5939 = vunpack.c.h.b16 %v1786
    %v5940 = vunpack.c.l.b16 %v1787
    %v5941 = vunpack.c.h.b16 %v1787
    %v5942 = vunpack.c.l.b16 %v1788
    %v5943 = vunpack.c.h.b16 %v1788
    %v5944 = vunpack.c.l.b16 %v1789
    %v5945 = vunpack.c.h.b16 %v1789
    %v5946 = vunpack.c.l.b16 %v1790
    %v5947 = vunpack.c.h.b16 %v1790
    %v5948 = vunpack.c.l.b16 %v1791
    %v5949 = vunpack.c.h.b16 %v1791
    %v5950 = vunpack.c.l.b16 %v1792
    %v5951 = vunpack.c.h.b16 %v1792
    %v5952 = vunpack.c.l.b16 %v1793
    %v5953 = vunpack.c.h.b16 %v1793
    %v5954 = vunpack.c.l.b16 %v1794
    %v5955 = vunpack.c.h.b16 %v1794
    %v5956 = vunpack.c.l.b16 %v1795
    %v5957 = vunpack.c.h.b16 %v1795
    %v5958 = vunpack.c.l.b16 %v1796
    %v5959 = vunpack.c.h.b16 %v1796
    %v5960 = vunpack.c.l.b16 %v1797
    %v5961 = vunpack.c.h.b16 %v1797
    %v5962 = vunpack.c.l.b16 %v1798
    %v5963 = vunpack.c.h.b16 %v1798
    %v5964 = vunpack.c.l.b16 %v1799
    %v5965 = vunpack.c.h.b16 %v1799
    %v5966 = vunpack.c.l.b16 %v1800
    %v5967 = vunpack.c.h.b16 %v1800
    %v5968 = vunpack.c.l.b16 %v1801
    %v5969 = vunpack.c.h.b16 %v1801
    %v5970 = vunpack.c.l.b16 %v1802
    %v5971 = vunpack.c.h.b16 %v1802
    %v5972 = vunpack.c.l.b16 %v1803
    %v5973 = vunpack.c.h.b16 %v1803
    %v5974 = vunpack.c.l.b16 %v1804
    %v5975 = vunpack.c.h.b16 %v1804
    %v5976 = vunpack.c.l.b16 %v1805
    %v5977 = vunpack.c.h.b16 %v1805
    %v5978 = vunpack.c.l.b16 %v1806
    %v5979 = vunpack.c.h.b16 %v1806
    %v5980 = vunpack.c.l.b16 %v1807
    %v5981 = vunpack.c.h.b16 %v1807
    %v5982 = vunpack.c.l.b16 %v1808
    %v5983 = vunpack.c.h.b16 %v1808
    %v5984 = vunpack.c.l.b16 %v1809
    %v5985 = vunpack.c.h.b16 %v1809
    %v5986 = vunpack.c.l.b16 %v1810
    %v5987 = vunpack.c.h.b16 %v1810
    %v5988 = vunpack.c.l.b16 %v1811
    %v5989 = vunpack.c.h.b16 %v1811
    %v5990 = vunpack.c.l.b16 %v1812
    %v5991 = vunpack.c.h.b16 %v1812
    %v5992 = vunpack.c.l.b16 %v1813
    %v5993 = vunpack.c.h.b16 %v1813
    %v5994 = vunpack.c.l.b16 %v1814
    %v5995 = vunpack.c.h.b16 %v1814
    %v5996 = vunpack.c.l.b16 %v1815
    %v5997 = vunpack.c.h.b16 %v1815
    %v5998 = vunpack.c.l.b16 %v1816
    %v5999 = vunpack.c.h.b16 %v1816
    %v6000 = vunpack.c.l.b16 %v1817
    %v6001 = vunpack.c.h.b16 %v1817
    %v6002 = vunpack.c.l.b16 %v1818
    %v6003 = vunpack.c.h.b16 %v1818
    %v6004 = vunpack.c.l.b16 %v1819
    %v6005 = vunpack.c.h.b16 %v1819
    %v6006 = vunpack.c.l.b16 %v1820
    %v6007 = vunpack.c.h.b16 %v1820
    %v6008 = vunpack.c.l.b16 %v1821
    %v6009 = vunpack.c.h.b16 %v1821
    %v6010 = vunpack.c.l.b16 %v1822
    %v6011 = vunpack.c.h.b16 %v1822
    %v6012 = vunpack.c.l.b16 %v1823
    %v6013 = vunpack.c.h.b16 %v1823
    %v6014 = vunpack.c.l.b16 %v1824
    %v6015 = vunpack.c.h.b16 %v1824
    %v6016 = vunpack.c.l.b16 %v1825
    %v6017 = vunpack.c.h.b16 %v1825
    %v6018 = vunpack.c.l.b16 %v1826
    %v6019 = vunpack.c.h.b16 %v1826
    %v6020 = vunpack.c.l.b16 %v1827
    %v6021 = vunpack.c.h.b16 %v1827
    %v6022 = vunpack.c.l.b16 %v1828
    %v6023 = vunpack.c.h.b16 %v1828
    %v6024 = vunpack.c.l.b16 %v1829
    %v6025 = vunpack.c.h.b16 %v1829
    %v6026 = vunpack.c.l.b16 %v1830
    %v6027 = vunpack.c.h.b16 %v1830
    %v6028 = vunpack.c.l.b16 %v1831
    %v6029 = vunpack.c.h.b16 %v1831
    %v6030 = vunpack.c.l.b16 %v1832
    %v6031 = vunpack.c.h.b16 %v1832
    %v6032 = vunpack.c.l.b16 %v1833
    %v6033 = vunpack.c.h.b16 %v1833
    %v6034 = vunpack.c.l.b16 %v1834
    %v6035 = vunpack.c.h.b16 %v1834
    %v6036 = vunpack.c.l.b16 %v1835
    %v6037 = vunpack.c.h.b16 %v1835
    %v6038 = vunpack.c.l.b16 %v1836
    %v6039 = vunpack.c.h.b16 %v1836
    %v6040 = vunpack.c.l.b16 %v1837
    %v6041 = vunpack.c.h.b16 %v1837
    %v6042 = vunpack.c.l.b16 %v1838
    %v6043 = vunpack.c.h.b16 %v1838
    %v6044 = vunpack.c.l.b16 %v1839
    %v6045 = vunpack.c.h.b16 %v1839
    %v6046 = vunpack.c.l.b16 %v1840
    %v6047 = vunpack.c.h.b16 %v1840
    %v6048 = vunpack.c.l.b16 %v1841
    %v6049 = vunpack.c.h.b16 %v1841
    %v6050 = vunpack.c.l.b16 %v1842
    %v6051 = vunpack.c.h.b16 %v1842
    %v6052 = vunpack.c.l.b16 %v1843
    %v6053 = vunpack.c.h.b16 %v1843
    %v6054 = vunpack.c.l.b16 %v1844
    %v6055 = vunpack.c.h.b16 %v1844
    %v6056 = vunpack.c.l.b16 %v1845
    %v6057 = vunpack.c.h.b16 %v1845
    %v6058 = vunpack.c.l.b16 %v1846
    %v6059 = vunpack.c.h.b16 %v1846
    %v6060 = vunpack.c.l.b16 %v1847
    %v6061 = vunpack.c.h.b16 %v1847
    %v6062 = vunpack.c.l.b16 %v1848
    %v6063 = vunpack.c.h.b16 %v1848
    %v6064 = vunpack.c.l.b16 %v1849
    %v6065 = vunpack.c.h.b16 %v1849
    %v6066 = vunpack.c.l.b16 %v1850
    %v6067 = vunpack.c.h.b16 %v1850
    %v6068 = vunpack.c.l.b16 %v1851
    %v6069 = vunpack.c.h.b16 %v1851
    %v6070 = vunpack.c.l.b16 %v1852
    %v6071 = vunpack.c.h.b16 %v1852
    %v6072 = vunpack.c.l.b16 %v1853
    %v6073 = vunpack.c.h.b16 %v1853
    %v6074 = vunpack.c.l.b16 %v1854
    %v6075 = vunpack.c.h.b16 %v1854
    %v6076 = vunpack.c.l.b16 %v1855
    %v6077 = vunpack.c.h.b16 %v1855
    %v6078 = vunpack.c.l.b16 %v1856
    %v6079 = vunpack.c.h.b16 %v1856
    %v6080 = vunpack.c.l.b16 %v1857
    %v6081 = vunpack.c.h.b16 %v1857
    %v6082 = vunpack.c.l.b16 %v1858
    %v6083 = vunpack.c.h.b16 %v1858
    %v6084 = vunpack.c.l.b16 %v1859
    %v6085 = vunpack.c.h.b16 %v1859
    %v6086 = vunpack.c.l.b16 %v1860
    %v6087 = vunpack.c.h.b16 %v1860
    %v6088 = vunpack.c.l.b16 %v1861
    %v6089 = vunpack.c.h.b16 %v1861
    %v6090 = vunpack.c.l.b16 %v1862
    %v6091 = vunpack.c.h.b16 %v1862
    %v6092 = vunpack.c.l.b16 %v1863
    %v6093 = vunpack.c.h.b16 %v1863
    %v6094 = vunpack.c.l.b16 %v1864
    %v6095 = vunpack.c.h.b16 %v1864
    %v6096 = vunpack.c.l.b16 %v1865
    %v6097 = vunpack.c.h.b16 %v1865
    %v6098 = vunpack.c.l.b16 %v1866
    %v6099 = vunpack.c.h.b16 %v1866
    %v6100 = vunpack.c.l.b16 %v1867
    %v6101 = vunpack.c.h.b16 %v1867
    %v6102 = vunpack.c.l.b16 %v1868
    %v6103 = vunpack.c.h.b16 %v1868
    %v6104 = vunpack.c.l.b16 %v1869
    %v6105 = vunpack.c.h.b16 %v1869
    %v6106 = vunpack.c.l.b16 %v1870
    %v6107 = vunpack.c.h.b16 %v1870
    %v6108 = vunpack.c.l.b16 %v1871
    %v6109 = vunpack.c.h.b16 %v1871
    %v6110 = vunpack.c.l.b16 %v1872
    %v6111 = vunpack.c.h.b16 %v1872
    %v6112 = vunpack.c.l.b16 %v1873
    %v6113 = vunpack.c.h.b16 %v1873
    %v6114 = vunpack.c.l.b16 %v1874
    %v6115 = vunpack.c.h.b16 %v1874
    %v6116 = vunpack.c.l.b16 %v1875
    %v6117 = vunpack.c.h.b16 %v1875
    %v6118 = vunpack.c.l.b16 %v1876
    %v6119 = vunpack.c.h.b16 %v1876
    %v6120 = vunpack.c.l.b16 %v1877
    %v6121 = vunpack.c.h.b16 %v1877
    %v6122 = vunpack.c.l.b16 %v1878
    %v6123 = vunpack.c.h.b16 %v1878
    %v6124 = vunpack.c.l.b16 %v1879
    %v6125 = vunpack.c.h.b16 %v1879
    %v6126 = vunpack.c.l.b16 %v1880
    %v6127 = vunpack.c.h.b16 %v1880
    %v6128 = vunpack.c.l.b16 %v1881
    %v6129 = vunpack.c.h.b16 %v1881
    %v6130 = vunpack.c.l.b16 %v1882
    %v6131 = vunpack.c.h.b16 %v1882
    %v6132 = vunpack.c.l.b16 %v1883
    %v6133 = vunpack.c.h.b16 %v1883
    %v6134 = vunpack.c.l.b16 %v1884
    %v6135 = vunpack.c.h.b16 %v1884
    %v6136 = vunpack.c.l.b16 %v1885
    %v6137 = vunpack.c.h.b16 %v1885
    %v6138 = vunpack.c.l.b16 %v1886
    %v6139 = vunpack.c.h.b16 %v1886
    %v6140 = vunpack.c.l.b16 %v1887
    %v6141 = vunpack.c.h.b16 %v1887
    %v6142 = vunpack.c.l.b16 %v1888
    %v6143 = vunpack.c.h.b16 %v1888
    %v6144 = vunpack.c.l.b16 %v1889
    %v6145 = vunpack.c.h.b16 %v1889
    %v6146 = vunpack.c.l.b16 %v1890
    %v6147 = vunpack.c.h.b16 %v1890
    %v6148 = vunpack.c.l.b16 %v1891
    %v6149 = vunpack.c.h.b16 %v1891
    %v6150 = vunpack.c.l.b16 %v1892
    %v6151 = vunpack.c.h.b16 %v1892
    %v6152 = vunpack.c.l.b16 %v1893
    %v6153 = vunpack.c.h.b16 %v1893
    %v6154 = vunpack.c.l.b16 %v1894
    %v6155 = vunpack.c.h.b16 %v1894
    %v6156 = vunpack.c.l.b16 %v1895
    %v6157 = vunpack.c.h.b16 %v1895
    %v6158 = vunpack.c.l.b16 %v1896
    %v6159 = vunpack.c.h.b16 %v1896
    %v6160 = vunpack.c.l.b16 %v1897
    %v6161 = vunpack.c.h.b16 %v1897
    %v6162 = vunpack.c.l.b16 %v1898
    %v6163 = vunpack.c.h.b16 %v1898
    %v6164 = vunpack.c.l.b16 %v1899
    %v6165 = vunpack.c.h.b16 %v1899
    %v6166 = vunpack.c.l.b16 %v1900
    %v6167 = vunpack.c.h.b16 %v1900
    %v6168 = vunpack.c.l.b16 %v1901
    %v6169 = vunpack.c.h.b16 %v1901
    %v6170 = vunpack.c.l.b16 %v1902
    %v6171 = vunpack.c.h.b16 %v1902
    %v6172 = vunpack.c.l.b16 %v1903
    %v6173 = vunpack.c.h.b16 %v1903
    %v6174 = vunpack.c.l.b16 %v1904
    %v6175 = vunpack.c.h.b16 %v1904
    %v6176 = vunpack.c.l.b16 %v1905
    %v6177 = vunpack.c.h.b16 %v1905
    %v6178 = vunpack.c.l.b16 %v1906
    %v6179 = vunpack.c.h.b16 %v1906
    %v6180 = vunpack.c.l.b16 %v1907
    %v6181 = vunpack.c.h.b16 %v1907
    %v6182 = vunpack.c.l.b16 %v1908
    %v6183 = vunpack.c.h.b16 %v1908
    %v6184 = vunpack.c.l.b16 %v1909
    %v6185 = vunpack.c.h.b16 %v1909
    %v6186 = vunpack.c.l.b16 %v1910
    %v6187 = vunpack.c.h.b16 %v1910
    %v6188 = vunpack.c.l.b16 %v1911
    %v6189 = vunpack.c.h.b16 %v1911
    %v6190 = vunpack.c.l.b16 %v1912
    %v6191 = vunpack.c.h.b16 %v1912
    %v6192 = vunpack.c.l.b16 %v1913
    %v6193 = vunpack.c.h.b16 %v1913
    %v6194 = vunpack.c.l.b16 %v1914
    %v6195 = vunpack.c.h.b16 %v1914
    %v6196 = vunpack.c.l.b16 %v1915
    %v6197 = vunpack.c.h.b16 %v1915
    %v6198 = vunpack.c.l.b16 %v1916
    %v6199 = vunpack.c.h.b16 %v1916
    %v6200 = vunpack.c.l.b16 %v1917
    %v6201 = vunpack.c.h.b16 %v1917
    %v6202 = vunpack.c.l.b16 %v1918
    %v6203 = vunpack.c.h.b16 %v1918
    %v6204 = vunpack.c.l.b16 %v1919
    %v6205 = vunpack.c.h.b16 %v1919
    %v6206 = vunpack.c.l.b16 %v1920
    %v6207 = vunpack.c.h.b16 %v1920
    %v6208 = vunpack.c.l.b16 %v1921
    %v6209 = vunpack.c.h.b16 %v1921
    %v6210 = vunpack.c.l.b16 %v1922
    %v6211 = vunpack.c.h.b16 %v1922
    %v6212 = vunpack.c.l.b16 %v1923
    %v6213 = vunpack.c.h.b16 %v1923
    %v6214 = vunpack.c.l.b16 %v1924
    %v6215 = vunpack.c.h.b16 %v1924
    %v6216 = vunpack.c.l.b16 %v1925
    %v6217 = vunpack.c.h.b16 %v1925
    %v6218 = vunpack.c.l.b16 %v1926
    %v6219 = vunpack.c.h.b16 %v1926
    %v6220 = vunpack.c.l.b16 %v1927
    %v6221 = vunpack.c.h.b16 %v1927
    %v6222 = vunpack.c.l.b16 %v1928
    %v6223 = vunpack.c.h.b16 %v1928
    %v6224 = vunpack.c.l.b16 %v1929
    %v6225 = vunpack.c.h.b16 %v1929
    %v6226 = vunpack.c.l.b16 %v1930
    %v6227 = vunpack.c.h.b16 %v1930
    %v6228 = vunpack.c.l.b16 %v1931
    %v6229 = vunpack.c.h.b16 %v1931
    %v6230 = vunpack.c.l.b16 %v1932
    %v6231 = vunpack.c.h.b16 %v1932
    %v6232 = vunpack.c.l.b16 %v1933
    %v6233 = vunpack.c.h.b16 %v1933
    %v6234 = vunpack.c.l.b16 %v1934
    %v6235 = vunpack.c.h.b16 %v1934
    %v6236 = vunpack.c.l.b16 %v1935
    %v6237 = vunpack.c.h.b16 %v1935
    %v6238 = vunpack.c.l.b16 %v1936
    %v6239 = vunpack.c.h.b16 %v1936
    %v6240 = vunpack.c.l.b16 %v1937
    %v6241 = vunpack.c.h.b16 %v1937
    %v6242 = vunpack.c.l.b16 %v1938
    %v6243 = vunpack.c.h.b16 %v1938
    %v6244 = vunpack.c.l.b16 %v1939
    %v6245 = vunpack.c.h.b16 %v1939
    %v6246 = vunpack.c.l.b16 %v1940
    %v6247 = vunpack.c.h.b16 %v1940
    %v6248 = vunpack.c.l.b16 %v1941
    %v6249 = vunpack.c.h.b16 %v1941
    %v6250 = vunpack.c.l.b16 %v1942
    %v6251 = vunpack.c.h.b16 %v1942
    %v6252 = vunpack.c.l.b16 %v1943
    %v6253 = vunpack.c.h.b16 %v1943
    %v6254 = vunpack.c.l.b16 %v1944
    %v6255 = vunpack.c.h.b16 %v1944
    %v6256 = vunpack.c.l.b16 %v1945
    %v6257 = vunpack.c.h.b16 %v1945
    %v6258 = vunpack.c.l.b16 %v1946
    %v6259 = vunpack.c.h.b16 %v1946
    %v6260 = vunpack.c.l.b16 %v1947
    %v6261 = vunpack.c.h.b16 %v1947
    %v6262 = vunpack.c.l.b16 %v1948
    %v6263 = vunpack.c.h.b16 %v1948
    %v6264 = vunpack.c.l.b16 %v1949
    %v6265 = vunpack.c.h.b16 %v1949
    %v6266 = vunpack.c.l.b16 %v1950
    %v6267 = vunpack.c.h.b16 %v1950
    %v6268 = vunpack.c.l.b16 %v1951
    %v6269 = vunpack.c.h.b16 %v1951
    %v6270 = vunpack.c.l.b16 %v1952
    %v6271 = vunpack.c.h.b16 %v1952
    %v6272 = vunpack.c.l.b16 %v1953
    %v6273 = vunpack.c.h.b16 %v1953
    %v6274 = vunpack.c.l.b16 %v1954
    %v6275 = vunpack.c.h.b16 %v1954
    %v6276 = vunpack.c.l.b16 %v1955
    %v6277 = vunpack.c.h.b16 %v1955
    %v6278 = vunpack.c.l.b16 %v1956
    %v6279 = vunpack.c.h.b16 %v1956
    %v6280 = vunpack.c.l.b16 %v1957
    %v6281 = vunpack.c.h.b16 %v1957
    %v6282 = vunpack.c.l.b16 %v1958
    %v6283 = vunpack.c.h.b16 %v1958
    %v6284 = vunpack.c.l.b16 %v1959
    %v6285 = vunpack.c.h.b16 %v1959
    %v6286 = vunpack.c.l.b16 %v1960
    %v6287 = vunpack.c.h.b16 %v1960
    %v6288 = vunpack.c.l.b16 %v1961
    %v6289 = vunpack.c.h.b16 %v1961
    %v6290 = vunpack.c.l.b16 %v1962
    %v6291 = vunpack.c.h.b16 %v1962
    %v6292 = vunpack.c.l.b16 %v1963
    %v6293 = vunpack.c.h.b16 %v1963
    %v6294 = vunpack.c.l.b16 %v1964
    %v6295 = vunpack.c.h.b16 %v1964
    %v6296 = vunpack.c.l.b16 %v1965
    %v6297 = vunpack.c.h.b16 %v1965
    %v6298 = vunpack.c.l.b16 %v1966
    %v6299 = vunpack.c.h.b16 %v1966
    %v6300 = vunpack.c.l.b16 %v1967
    %v6301 = vunpack.c.h.b16 %v1967
    %v6302 = vunpack.c.l.b16 %v1968
    %v6303 = vunpack.c.h.b16 %v1968
    %v6304 = vunpack.c.l.b16 %v1969
    %v6305 = vunpack.c.h.b16 %v1969
    %v6306 = vunpack.c.l.b16 %v1970
    %v6307 = vunpack.c.h.b16 %v1970
    %v6308 = vunpack.c.l.b16 %v1971
    %v6309 = vunpack.c.h.b16 %v1971
    %v6310 = vunpack.c.l.b16 %v1972
    %v6311 = vunpack.c.h.b16 %v1972
    %v6312 = vunpack.c.l.b16 %v1973
    %v6313 = vunpack.c.h.b16 %v1973
    %v6314 = vunpack.c.l.b16 %v1974
    %v6315 = vunpack.c.h.b16 %v1974
    %v6316 = vunpack.c.l.b16 %v1975
    %v6317 = vunpack.c.h.b16 %v1975
    %v6318 = vunpack.c.l.b16 %v1976
    %v6319 = vunpack.c.h.b16 %v1976
    %v6320 = vunpack.c.l.b16 %v1977
    %v6321 = vunpack.c.h.b16 %v1977
    %v6322 = vunpack.c.l.b16 %v1978
    %v6323 = vunpack.c.h.b16 %v1978
    %v6324 = vunpack.c.l.b16 %v1979
    %v6325 = vunpack.c.h.b16 %v1979
    %v6326 = vunpack.c.l.b16 %v1980
    %v6327 = vunpack.c.h.b16 %v1980
    %v6328 = vunpack.c.l.b16 %v1981
    %v6329 = vunpack.c.h.b16 %v1981
    %v6330 = vunpack.c.l.b16 %v1982
    %v6331 = vunpack.c.h.b16 %v1982
    %v6332 = vunpack.c.l.b16 %v1983
    %v6333 = vunpack.c.h.b16 %v1983
    %v6334 = vunpack.c.l.b16 %v1984
    %v6335 = vunpack.c.h.b16 %v1984
    %v6336 = vunpack.c.l.b16 %v1985
    %v6337 = vunpack.c.h.b16 %v1985
    %v6338 = vunpack.c.l.b16 %v1986
    %v6339 = vunpack.c.h.b16 %v1986
    %v6340 = vunpack.c.l.b16 %v1987
    %v6341 = vunpack.c.h.b16 %v1987
    %v6342 = vunpack.c.l.b16 %v1988
    %v6343 = vunpack.c.h.b16 %v1988
    %v6344 = vunpack.c.l.b16 %v1989
    %v6345 = vunpack.c.h.b16 %v1989
    %v6346 = vunpack.c.l.b16 %v1990
    %v6347 = vunpack.c.h.b16 %v1990
    %v6348 = vunpack.c.l.b16 %v1991
    %v6349 = vunpack.c.h.b16 %v1991
    %v6350 = vunpack.c.l.b16 %v1992
    %v6351 = vunpack.c.h.b16 %v1992
    %v6352 = vunpack.c.l.b16 %v1993
    %v6353 = vunpack.c.h.b16 %v1993
    %v6354 = vunpack.c.l.b16 %v1994
    %v6355 = vunpack.c.h.b16 %v1994
    %v6356 = vunpack.c.l.b16 %v1995
    %v6357 = vunpack.c.h.b16 %v1995
    %v6358 = vunpack.c.l.b16 %v1996
    %v6359 = vunpack.c.h.b16 %v1996
    %v6360 = vunpack.c.l.b16 %v1997
    %v6361 = vunpack.c.h.b16 %v1997
    %v6362 = vunpack.c.l.b16 %v1998
    %v6363 = vunpack.c.h.b16 %v1998
    %v6364 = vunpack.c.l.b16 %v1999
    %v6365 = vunpack.c.h.b16 %v1999
    %v6366 = vunpack.c.l.b16 %v2000
    %v6367 = vunpack.c.h.b16 %v2000
    %v6368 = vunpack.c.l.b16 %v2001
    %v6369 = vunpack.c.h.b16 %v2001
    %v6370 = vunpack.c.l.b16 %v2002
    %v6371 = vunpack.c.h.b16 %v2002
    %v6372 = vunpack.c.l.b16 %v2003
    %v6373 = vunpack.c.h.b16 %v2003
    %v6374 = vunpack.c.l.b16 %v2004
    %v6375 = vunpack.c.h.b16 %v2004
    %v6376 = vunpack.c.l.b16 %v2005
    %v6377 = vunpack.c.h.b16 %v2005
    %v6378 = vunpack.c.l.b16 %v2006
    %v6379 = vunpack.c.h.b16 %v2006
    %v6380 = vunpack.c.l.b16 %v2007
    %v6381 = vunpack.c.h.b16 %v2007
    %v6382 = vunpack.c.l.b16 %v2008
    %v6383 = vunpack.c.h.b16 %v2008
    %v6384 = vunpack.c.l.b16 %v2009
    %v6385 = vunpack.c.h.b16 %v2009
    %v6386 = vunpack.c.l.b16 %v2010
    %v6387 = vunpack.c.h.b16 %v2010
    %v6388 = vunpack.c.l.b16 %v2011
    %v6389 = vunpack.c.h.b16 %v2011
    %v6390 = vunpack.c.l.b16 %v2012
    %v6391 = vunpack.c.h.b16 %v2012
    %v6392 = vunpack.c.l.b16 %v2013
    %v6393 = vunpack.c.h.b16 %v2013
    %v6394 = vunpack.c.l.b16 %v2014
    %v6395 = vunpack.c.h.b16 %v2014
    %v6396 = vunpack.c.l.b16 %v2015
    %v6397 = vunpack.c.h.b16 %v2015
    %v6398 = vunpack.c.l.b16 %v2016
    %v6399 = vunpack.c.h.b16 %v2016
    %v6400 = vunpack.c.l.b16 %v2017
    %v6401 = vunpack.c.h.b16 %v2017
    %v6402 = vunpack.c.l.b16 %v2018
    %v6403 = vunpack.c.h.b16 %v2018
    %v6404 = vunpack.c.l.b16 %v2019
    %v6405 = vunpack.c.h.b16 %v2019
    %v6406 = vunpack.c.l.b16 %v2020
    %v6407 = vunpack.c.h.b16 %v2020
    %v6408 = vunpack.c.l.b16 %v2021
    %v6409 = vunpack.c.h.b16 %v2021
    %v6410 = vunpack.c.l.b16 %v2022
    %v6411 = vunpack.c.h.b16 %v2022
    %v6412 = vunpack.c.l.b16 %v2023
    %v6413 = vunpack.c.h.b16 %v2023
    %v6414 = vunpack.c.l.b16 %v2024
    %v6415 = vunpack.c.h.b16 %v2024
    %v6416 = vunpack.c.l.b16 %v2025
    %v6417 = vunpack.c.h.b16 %v2025
    %v6418 = vunpack.c.l.b16 %v2026
    %v6419 = vunpack.c.h.b16 %v2026
    %v6420 = vunpack.c.l.b16 %v2027
    %v6421 = vunpack.c.h.b16 %v2027
    %v6422 = vunpack.c.l.b16 %v2028
    %v6423 = vunpack.c.h.b16 %v2028
    %v6424 = vunpack.c.l.b16 %v2029
    %v6425 = vunpack.c.h.b16 %v2029
    %v6426 = vunpack.c.l.b16 %v2030
    %v6427 = vunpack.c.h.b16 %v2030
    %v6428 = vunpack.c.l.b16 %v2031
    %v6429 = vunpack.c.h.b16 %v2031
    %v6430 = vunpack.c.l.b16 %v2032
    %v6431 = vunpack.c.h.b16 %v2032
    %v6432 = vunpack.c.l.b16 %v2033
    %v6433 = vunpack.c.h.b16 %v2033
    %v6434 = vunpack.c.l.b16 %v2034
    %v6435 = vunpack.c.h.b16 %v2034
    %v6436 = vunpack.c.l.b16 %v2035
    %v6437 = vunpack.c.h.b16 %v2035
    %v6438 = vunpack.c.l.b16 %v2036
    %v6439 = vunpack.c.h.b16 %v2036
    %v6440 = vunpack.c.l.b16 %v2037
    %v6441 = vunpack.c.h.b16 %v2037
    %v6442 = vunpack.c.l.b16 %v2038
    %v6443 = vunpack.c.h.b16 %v2038
    %v6444 = vunpack.c.l.b16 %v2039
    %v6445 = vunpack.c.h.b16 %v2039
    %v6446 = vunpack.c.l.b16 %v2040
    %v6447 = vunpack.c.h.b16 %v2040
    %v6448 = vunpack.c.l.b16 %v2041
    %v6449 = vunpack.c.h.b16 %v2041
    %v6450 = vunpack.c.l.b16 %v2042
    %v6451 = vunpack.c.h.b16 %v2042
    %v6452 = vunpack.c.l.b16 %v2043
    %v6453 = vunpack.c.h.b16 %v2043
    %v6454 = vunpack.c.l.b16 %v2044
    %v6455 = vunpack.c.h.b16 %v2044
    %v6456 = vunpack.c.l.b16 %v2045
    %v6457 = vunpack.c.h.b16 %v2045
    %v6458 = vunpack.c.l.b16 %v2046
    %v6459 = vunpack.c.h.b16 %v2046
    %v6460 = vunpack.c.l.b16 %v2047
    %v6461 = vunpack.c.h.b16 %v2047
    %v6462 = vunpack.c.l.b16 %v2048
    %v6463 = vunpack.c.h.b16 %v2048
    %v6464 = vunpack.c.l.b16 %v2049
    %v6465 = vunpack.c.h.b16 %v2049
    %v6466 = vunpack.c.l.b16 %v2050
    %v6467 = vunpack.c.h.b16 %v2050
    %v6468 = vunpack.c.l.b16 %v2051
    %v6469 = vunpack.c.h.b16 %v2051
    %v6470 = vunpack.c.l.b16 %v2052
    %v6471 = vunpack.c.h.b16 %v2052
    %v6472 = vunpack.c.l.b16 %v2053
    %v6473 = vunpack.c.h.b16 %v2053
    %v6474 = vunpack.c.l.b16 %v2054
    %v6475 = vunpack.c.h.b16 %v2054
    %v6476 = vunpack.c.l.b16 %v2055
    %v6477 = vunpack.c.h.b16 %v2055
    %v6478 = vunpack.c.l.b16 %v2056
    %v6479 = vunpack.c.h.b16 %v2056
    %v6480 = vunpack.c.l.b16 %v2057
    %v6481 = vunpack.c.h.b16 %v2057
    %v6482 = vunpack.c.l.b16 %v2058
    %v6483 = vunpack.c.h.b16 %v2058
    %v6484 = vunpack.c.l.b16 %v2059
    %v6485 = vunpack.c.h.b16 %v2059
    %v6486 = vunpack.c.l.b16 %v2060
    %v6487 = vunpack.c.h.b16 %v2060
    %v6488 = vunpack.c.l.b16 %v2061
    %v6489 = vunpack.c.h.b16 %v2061
    %v6490 = vunpack.c.l.b16 %v2062
    %v6491 = vunpack.c.h.b16 %v2062
    %v6492 = vunpack.c.l.b16 %v2063
    %v6493 = vunpack.c.h.b16 %v2063
    %v6494 = vunpack.c.l.b16 %v2064
    %v6495 = vunpack.c.h.b16 %v2064
    %v6496 = vunpack.c.l.b16 %v2065
    %v6497 = vunpack.c.h.b16 %v2065
    %v6498 = vunpack.c.l.b16 %v2066
    %v6499 = vunpack.c.h.b16 %v2066
    %v6500 = vunpack.c.l.b16 %v2067
    %v6501 = vunpack.c.h.b16 %v2067
    %v6502 = vunpack.c.l.b16 %v2068
    %v6503 = vunpack.c.h.b16 %v2068
    %v6504 = vunpack.c.l.b16 %v2069
    %v6505 = vunpack.c.h.b16 %v2069
    %v6506 = vunpack.c.l.b16 %v2070
    %v6507 = vunpack.c.h.b16 %v2070
    %v6508 = vunpack.c.l.b16 %v2071
    %v6509 = vunpack.c.h.b16 %v2071
    %v6510 = vunpack.c.l.b16 %v2072
    %v6511 = vunpack.c.h.b16 %v2072
    %v6512 = vunpack.c.l.b16 %v2073
    %v6513 = vunpack.c.h.b16 %v2073
    %v6514 = vunpack.c.l.b16 %v2074
    %v6515 = vunpack.c.h.b16 %v2074
    %v6516 = vunpack.c.l.b16 %v2075
    %v6517 = vunpack.c.h.b16 %v2075
    %v6518 = vunpack.c.l.b16 %v2076
    %v6519 = vunpack.c.h.b16 %v2076
    %v6520 = vunpack.c.l.b16 %v2077
    %v6521 = vunpack.c.h.b16 %v2077
    %v6522 = vunpack.c.l.b16 %v2078
    %v6523 = vunpack.c.h.b16 %v2078
    %v6524 = vunpack.c.l.b16 %v2079
    %v6525 = vunpack.c.h.b16 %v2079
    %v6526 = vunpack.c.l.b16 %v2080
    %v6527 = vunpack.c.h.b16 %v2080
    %v6528 = vunpack.c.l.b16 %v2081
    %v6529 = vunpack.c.h.b16 %v2081
    %v6530 = vunpack.c.l.b16 %v2082
    %v6531 = vunpack.c.h.b16 %v2082
    %v6532 = vunpack.c.l.b16 %v2083
    %v6533 = vunpack.c.h.b16 %v2083
    %v6534 = vunpack.c.l.b16 %v2084
    %v6535 = vunpack.c.h.b16 %v2084
    %v6536 = vunpack.c.l.b16 %v2085
    %v6537 = vunpack.c.h.b16 %v2085
    %v6538 = vunpack.c.l.b16 %v2086
    %v6539 = vunpack.c.h.b16 %v2086
    %v6540 = vunpack.c.l.b16 %v2087
    %v6541 = vunpack.c.h.b16 %v2087
    %v6542 = vunpack.c.l.b16 %v2088
    %v6543 = vunpack.c.h.b16 %v2088
    %v6544 = vunpack.c.l.b16 %v2089
    %v6545 = vunpack.c.h.b16 %v2089
    %v6546 = vunpack.c.l.b16 %v2090
    %v6547 = vunpack.c.h.b16 %v2090
    %v6548 = vunpack.c.l.b16 %v2091
    %v6549 = vunpack.c.h.b16 %v2091
    %v6550 = vunpack.c.l.b16 %v2092
    %v6551 = vunpack.c.h.b16 %v2092
    %v6552 = vunpack.c.l.b16 %v2093
    %v6553 = vunpack.c.h.b16 %v2093
    %v6554 = vunpack.c.l.b16 %v2094
    %v6555 = vunpack.c.h.b16 %v2094
    %v6556 = vunpack.c.l.b16 %v2095
    %v6557 = vunpack.c.h.b16 %v2095
    %v6558 = vunpack.c.l.b16 %v2096
    %v6559 = vunpack.c.h.b16 %v2096
    %v6560 = vunpack.c.l.b16 %v2097
    %v6561 = vunpack.c.h.b16 %v2097
    %v6562 = vunpack.c.l.b16 %v2098
    %v6563 = vunpack.c.h.b16 %v2098
    %v6564 = vunpack.c.l.b16 %v2099
    %v6565 = vunpack.c.h.b16 %v2099
    %v6566 = vunpack.c.l.b16 %v2100
    %v6567 = vunpack.c.h.b16 %v2100
    %v6568 = vunpack.c.l.b16 %v2101
    %v6569 = vunpack.c.h.b16 %v2101
    %v6570 = vunpack.c.l.b16 %v2102
    %v6571 = vunpack.c.h.b16 %v2102
    %v6572 = vunpack.c.l.b16 %v2103
    %v6573 = vunpack.c.h.b16 %v2103
    %v6574 = vunpack.c.l.b16 %v2104
    %v6575 = vunpack.c.h.b16 %v2104
    %v6576 = vunpack.c.l.b16 %v2105
    %v6577 = vunpack.c.h.b16 %v2105
    %v6578 = vunpack.c.l.b16 %v2106
    %v6579 = vunpack.c.h.b16 %v2106
    %v6580 = vunpack.c.l.b16 %v2107
    %v6581 = vunpack.c.h.b16 %v2107
    %v6582 = vunpack.c.l.b16 %v2108
    %v6583 = vunpack.c.h.b16 %v2108
    %v6584 = vunpack.c.l.b16 %v2109
    %v6585 = vunpack.c.h.b16 %v2109
    %v6586 = vunpack.c.l.b16 %v2110
    %v6587 = vunpack.c.h.b16 %v2110
    %v6588 = vunpack.c.l.b16 %v2111
    %v6589 = vunpack.c.h.b16 %v2111
    %v6590 = vunpack.c.l.b16 %v2112
    %v6591 = vunpack.c.h.b16 %v2112
    %v6592 = vunpack.c.l.b16 %v2113
    %v6593 = vunpack.c.h.b16 %v2113
    %v6594 = vunpack.c.l.b16 %v2114
    %v6595 = vunpack.c.h.b16 %v2114
    %v6596 = vunpack.c.l.b16 %v2115
    %v6597 = vunpack.c.h.b16 %v2115
    %v6598 = vunpack.c.l.b16 %v2116
    %v6599 = vunpack.c.h.b16 %v2116
    %v6600 = vunpack.c.l.b16 %v2117
    %v6601 = vunpack.c.h.b16 %v2117
    %v6602 = vunpack.c.l.b16 %v2118
    %v6603 = vunpack.c.h.b16 %v2118
    %v6604 = vunpack.c.l.b16 %v2119
    %v6605 = vunpack.c.h.b16 %v2119
    %v6606 = vunpack.c.l.b16 %v2120
    %v6607 = vunpack.c.h.b16 %v2120
    %v6608 = vunpack.c.l.b16 %v2121
    %v6609 = vunpack.c.h.b16 %v2121
    %v6610 = vunpack.c.l.b16 %v2122
    %v6611 = vunpack.c.h.b16 %v2122
    %v6612 = vunpack.c.l.b16 %v2123
    %v6613 = vunpack.c.h.b16 %v2123
    %v6614 = vunpack.c.l.b16 %v2124
    %v6615 = vunpack.c.h.b16 %v2124
    %v6616 = vunpack.c.l.b16 %v2125
    %v6617 = vunpack.c.h.b16 %v2125
    %v6618 = vunpack.c.l.b16 %v2126
    %v6619 = vunpack.c.h.b16 %v2126
    %v6620 = vunpack.c.l.b16 %v2127
    %v6621 = vunpack.c.h.b16 %v2127
    %v6622 = vunpack.c.l.b16 %v2128
    %v6623 = vunpack.c.h.b16 %v2128
    %v6624 = vunpack.c.l.b16 %v2129
    %v6625 = vunpack.c.h.b16 %v2129
    %v6626 = vunpack.c.l.b16 %v2130
    %v6627 = vunpack.c.h.b16 %v2130
    %v6628 = vunpack.c.l.b16 %v2131
    %v6629 = vunpack.c.h.b16 %v2131
    %v6630 = vunpack.c.l.b16 %v2132
    %v6631 = vunpack.c.h.b16 %v2132
    %v6632 = vunpack.c.l.b16 %v2133
    %v6633 = vunpack.c.h.b16 %v2133
    %v6634 = vunpack.c.l.b16 %v2134
    %v6635 = vunpack.c.h.b16 %v2134
    %v6636 = vunpack.c.l.b16 %v2135
    %v6637 = vunpack.c.h.b16 %v2135
    %v6638 = vunpack.c.l.b16 %v2136
    %v6639 = vunpack.c.h.b16 %v2136
    %v6640 = vunpack.c.l.b16 %v2137
    %v6641 = vunpack.c.h.b16 %v2137
    %v6642 = vunpack.c.l.b16 %v2138
    %v6643 = vunpack.c.h.b16 %v2138
    %v6644 = vunpack.c.l.b16 %v2139
    %v6645 = vunpack.c.h.b16 %v2139
    %v6646 = vunpack.c.l.b16 %v2140
    %v6647 = vunpack.c.h.b16 %v2140
    %v6648 = vunpack.c.l.b16 %v2141
    %v6649 = vunpack.c.h.b16 %v2141
    %v6650 = vunpack.c.l.b16 %v2142
    %v6651 = vunpack.c.h.b16 %v2142
    %v6652 = vunpack.c.l.b16 %v2143
    %v6653 = vunpack.c.h.b16 %v2143
    %v6654 = vunpack.c.l.b16 %v2144
    %v6655 = vunpack.c.h.b16 %v2144
    %v6656 = vunpack.c.l.b16 %v2145
    %v6657 = vunpack.c.h.b16 %v2145
    %v6658 = vunpack.c.l.b16 %v2146
    %v6659 = vunpack.c.h.b16 %v2146
    %v6660 = vunpack.c.l.b16 %v2147
    %v6661 = vunpack.c.h.b16 %v2147
    %v6662 = vunpack.c.l.b16 %v2148
    %v6663 = vunpack.c.h.b16 %v2148
    %v6664 = vunpack.c.l.b16 %v2149
    %v6665 = vunpack.c.h.b16 %v2149
    %v6666 = vunpack.c.l.b16 %v2150
    %v6667 = vunpack.c.h.b16 %v2150
    %v6668 = vunpack.c.l.b16 %v2151
    %v6669 = vunpack.c.h.b16 %v2151
    %v6670 = vunpack.c.l.b16 %v2152
    %v6671 = vunpack.c.h.b16 %v2152
    %v6672 = vunpack.c.l.b16 %v2153
    %v6673 = vunpack.c.h.b16 %v2153
    %v6674 = vunpack.c.l.b16 %v2154
    %v6675 = vunpack.c.h.b16 %v2154
    %v6676 = vunpack.c.l.b16 %v2155
    %v6677 = vunpack.c.h.b16 %v2155
    %v6678 = vunpack.c.l.b16 %v2156
    %v6679 = vunpack.c.h.b16 %v2156
    %v6680 = vunpack.c.l.b16 %v2157
    %v6681 = vunpack.c.h.b16 %v2157
    %v6682 = vunpack.c.l.b16 %v2158
    %v6683 = vunpack.c.h.b16 %v2158
    %v6684 = vunpack.c.l.b16 %v2159
    %v6685 = vunpack.c.h.b16 %v2159
    %v6686 = vunpack.c.l.b16 %v2160
    %v6687 = vunpack.c.h.b16 %v2160
    %v6688 = vunpack.c.l.b16 %v2161
    %v6689 = vunpack.c.h.b16 %v2161
    %v6690 = vunpack.c.l.b16 %v2162
    %v6691 = vunpack.c.h.b16 %v2162
    %v6692 = vunpack.c.l.b16 %v2163
    %v6693 = vunpack.c.h.b16 %v2163
    %v6694 = vunpack.c.l.b16 %v2164
    %v6695 = vunpack.c.h.b16 %v2164
    %v6696 = vunpack.c.l.b16 %v2165
    %v6697 = vunpack.c.h.b16 %v2165
    %v6698 = vunpack.c.l.b16 %v2166
    %v6699 = vunpack.c.h.b16 %v2166
    %v6700 = vunpack.c.l.b16 %v2167
    %v6701 = vunpack.c.h.b16 %v2167
    %v6702 = vunpack.c.l.b16 %v2168
    %v6703 = vunpack.c.h.b16 %v2168
    %v6704 = vunpack.c.l.b16 %v2169
    %v6705 = vunpack.c.h.b16 %v2169
    %v6706 = vunpack.c.l.b16 %v2170
    %v6707 = vunpack.c.h.b16 %v2170
    %v6708 = vunpack.c.l.b16 %v2171
    %v6709 = vunpack.c.h.b16 %v2171
    %v6710 = vunpack.c.l.b16 %v2172
    %v6711 = vunpack.c.h.b16 %v2172
    %v6712 = vunpack.c.l.b16 %v2173
    %v6713 = vunpack.c.h.b16 %v2173
    %v6714 = vunpack.c.l.b16 %v2174
    %v6715 = vunpack.c.h.b16 %v2174
    %v6716 = vunpack.c.l.b16 %v2175
    %v6717 = vunpack.c.h.b16 %v2175
    %v6718 = vunpack.c.l.b16 %v2176
    %v6719 = vunpack.c.h.b16 %v2176
    %v6720 = vunpack.c.l.b16 %v2177
    %v6721 = vunpack.c.h.b16 %v2177
    %v6722 = vunpack.c.l.b16 %v2178
    %v6723 = vunpack.c.h.b16 %v2178
    %v6724 = vunpack.c.l.b16 %v2179
    %v6725 = vunpack.c.h.b16 %v2179
    %v6726 = vunpack.c.l.b16 %v2180
    %v6727 = vunpack.c.h.b16 %v2180
    %v6728 = vunpack.c.l.b16 %v2181
    %v6729 = vunpack.c.h.b16 %v2181
    %v6730 = vunpack.c.l.b16 %v2182
    %v6731 = vunpack.c.h.b16 %v2182
    %v6732 = vunpack.c.l.b16 %v2183
    %v6733 = vunpack.c.h.b16 %v2183
    %v6734 = vunpack.c.l.b16 %v2184
    %v6735 = vunpack.c.h.b16 %v2184
    %v6736 = vunpack.c.l.b16 %v2185
    %v6737 = vunpack.c.h.b16 %v2185
    %v6738 = vunpack.c.l.b16 %v2186
    %v6739 = vunpack.c.h.b16 %v2186
    %v6740 = vunpack.c.l.b16 %v2187
    %v6741 = vunpack.c.h.b16 %v2187
    %v6742 = vunpack.c.l.b16 %v2188
    %v6743 = vunpack.c.h.b16 %v2188
    %v6744 = vunpack.c.l.b16 %v2189
    %v6745 = vunpack.c.h.b16 %v2189
    %v6746 = vunpack.c.l.b16 %v2190
    %v6747 = vunpack.c.h.b16 %v2190
    %v6748 = vunpack.c.l.b16 %v2191
    %v6749 = vunpack.c.h.b16 %v2191
    %v6750 = vunpack.c.l.b16 %v2192
    %v6751 = vunpack.c.h.b16 %v2192
    %v6752 = vunpack.c.l.b16 %v2193
    %v6753 = vunpack.c.h.b16 %v2193
    %v6754 = vunpack.c.l.b16 %v2194
    %v6755 = vunpack.c.h.b16 %v2194
    %v6756 = vunpack.c.l.b16 %v2195
    %v6757 = vunpack.c.h.b16 %v2195
    %v6758 = vunpack.c.l.b16 %v2196
    %v6759 = vunpack.c.h.b16 %v2196
    %v6760 = vunpack.c.l.b16 %v2197
    %v6761 = vunpack.c.h.b16 %v2197
    %v6762 = vunpack.c.l.b16 %v2198
    %v6763 = vunpack.c.h.b16 %v2198
    %v6764 = vunpack.c.l.b16 %v2199
    %v6765 = vunpack.c.h.b16 %v2199
    %v6766 = vunpack.c.l.b16 %v2200
    %v6767 = vunpack.c.h.b16 %v2200
    %v6768 = vunpack.c.l.b16 %v2201
    %v6769 = vunpack.c.h.b16 %v2201
    %v6770 = vunpack.c.l.b16 %v2202
    %v6771 = vunpack.c.h.b16 %v2202
    %v6772 = vunpack.c.l.b16 %v2203
    %v6773 = vunpack.c.h.b16 %v2203
    %v6774 = vunpack.c.l.b16 %v2204
    %v6775 = vunpack.c.h.b16 %v2204
    %v6776 = vunpack.c.l.b16 %v2205
    %v6777 = vunpack.c.h.b16 %v2205
    %v6778 = vunpack.c.l.b16 %v2206
    %v6779 = vunpack.c.h.b16 %v2206
    %v6780 = vunpack.c.l.b16 %v2207
    %v6781 = vunpack.c.h.b16 %v2207
    %v6782 = vunpack.c.l.b16 %v2208
    %v6783 = vunpack.c.h.b16 %v2208
    %v6784 = vunpack.c.l.b16 %v2209
    %v6785 = vunpack.c.h.b16 %v2209
    %v6786 = vunpack.c.l.b16 %v2210
    %v6787 = vunpack.c.h.b16 %v2210
    %v6788 = vunpack.c.l.b16 %v2211
    %v6789 = vunpack.c.h.b16 %v2211
    %v6790 = vunpack.c.l.b16 %v2212
    %v6791 = vunpack.c.h.b16 %v2212
    %v6792 = vunpack.c.l.b16 %v2213
    %v6793 = vunpack.c.h.b16 %v2213
    %v6794 = vunpack.c.l.b16 %v2214
    %v6795 = vunpack.c.h.b16 %v2214
    %v6796 = vunpack.c.l.b16 %v2215
    %v6797 = vunpack.c.h.b16 %v2215
    %v6798 = vunpack.c.l.b16 %v2216
    %v6799 = vunpack.c.h.b16 %v2216
    %v6800 = vunpack.c.l.b16 %v2217
    %v6801 = vunpack.c.h.b16 %v2217
    %v6802 = vunpack.c.l.b16 %v2218
    %v6803 = vunpack.c.h.b16 %v2218
    %v6804 = vunpack.c.l.b16 %v2219
    %v6805 = vunpack.c.h.b16 %v2219
    %v6806 = vunpack.c.l.b16 %v2220
    %v6807 = vunpack.c.h.b16 %v2220
    %v6808 = vunpack.c.l.b16 %v2221
    %v6809 = vunpack.c.h.b16 %v2221
    %v6810 = vunpack.c.l.b16 %v2222
    %v6811 = vunpack.c.h.b16 %v2222
    %v6812 = vunpack.c.l.b16 %v2223
    %v6813 = vunpack.c.h.b16 %v2223
    %v6814 = vunpack.c.l.b16 %v2224
    %v6815 = vunpack.c.h.b16 %v2224
    %v6816 = vunpack.c.l.b16 %v2225
    %v6817 = vunpack.c.h.b16 %v2225
    %v6818 = vunpack.c.l.b16 %v2226
    %v6819 = vunpack.c.h.b16 %v2226
    %v6820 = vunpack.c.l.b16 %v2227
    %v6821 = vunpack.c.h.b16 %v2227
    %v6822 = vunpack.c.l.b16 %v2228
    %v6823 = vunpack.c.h.b16 %v2228
    %v6824 = vunpack.c.l.b16 %v2229
    %v6825 = vunpack.c.h.b16 %v2229
    %v6826 = vunpack.c.l.b16 %v2230
    %v6827 = vunpack.c.h.b16 %v2230
    %v6828 = vunpack.c.l.b16 %v2231
    %v6829 = vunpack.c.h.b16 %v2231
    %v6830 = vunpack.c.l.b16 %v2232
    %v6831 = vunpack.c.h.b16 %v2232
    %v6832 = vunpack.c.l.b16 %v2233
    %v6833 = vunpack.c.h.b16 %v2233
    %v6834 = vunpack.c.l.b16 %v2234
    %v6835 = vunpack.c.h.b16 %v2234
    %v6836 = vunpack.c.l.b16 %v2235
    %v6837 = vunpack.c.h.b16 %v2235
    %v6838 = vunpack.c.l.b16 %v2236
    %v6839 = vunpack.c.h.b16 %v2236
    %v6840 = vunpack.c.l.b16 %v2237
    %v6841 = vunpack.c.h.b16 %v2237
    %v6842 = vunpack.c.l.b16 %v2238
    %v6843 = vunpack.c.h.b16 %v2238
    %v6844 = vunpack.c.l.b16 %v2239
    %v6845 = vunpack.c.h.b16 %v2239
    %v6846 = vunpack.c.l.b16 %v2240
    %v6847 = vunpack.c.h.b16 %v2240
    %v6848 = vunpack.c.l.b16 %v2241
    %v6849 = vunpack.c.h.b16 %v2241
    %v6850 = vunpack.c.l.b16 %v2242
    %v6851 = vunpack.c.h.b16 %v2242
    %v6852 = vunpack.c.l.b16 %v2243
    %v6853 = vunpack.c.h.b16 %v2243
    %v6854 = vunpack.c.l.b16 %v2244
    %v6855 = vunpack.c.h.b16 %v2244
    %v6856 = vunpack.c.l.b16 %v2245
    %v6857 = vunpack.c.h.b16 %v2245
    %v6858 = vunpack.c.l.b16 %v2246
    %v6859 = vunpack.c.h.b16 %v2246
    %v6860 = vunpack.c.l.b16 %v2247
    %v6861 = vunpack.c.h.b16 %v2247
    %v6862 = vunpack.c.l.b16 %v2248
    %v6863 = vunpack.c.h.b16 %v2248
    %v6864 = vunpack.c.l.b16 %v2249
    %v6865 = vunpack.c.h.b16 %v2249
    %v6866 = vunpack.c.l.b16 %v2250
    %v6867 = vunpack.c.h.b16 %v2250
    %v6868 = vunpack.c.l.b16 %v2251
    %v6869 = vunpack.c.h.b16 %v2251
    %v6870 = vunpack.c.l.b16 %v2252
    %v6871 = vunpack.c.h.b16 %v2252
    %v6872 = vunpack.c.l.b16 %v2253
    %v6873 = vunpack.c.h.b16 %v2253
    %v6874 = vpack.c.b16 %v3804, %v3802
    %v6875 = vpack.c.b16 %v3805, %v3803
    %v6876 = vpack.c.b16 %v3808, %v3806
    %v6877 = vpack.c.b16 %v3809, %v3807
    %v6878 = vpack.c.b16 %v3812, %v3810
    %v6879 = vpack.c.b16 %v3813, %v3811
    %v6880 = vpack.c.b16 %v3816, %v3814
    %v6881 = vpack.c.b16 %v3817, %v3815
    %v6882 = vpack.c.b16 %v3820, %v3818
    %v6883 = vpack.c.b16 %v3821, %v3819
    %v6884 = vpack.c.b16 %v3824, %v3822
    %v6885 = vpack.c.b16 %v3825, %v3823
    %v6886 = vpack.c.b16 %v3828, %v3826
    %v6887 = vpack.c.b16 %v3829, %v3827
    %v6888 = vpack.c.b16 %v3832, %v3830
    %v6889 = vpack.c.b16 %v3833, %v3831
    %v6890 = vpack.c.b16 %v3836, %v3834
    %v6891 = vpack.c.b16 %v3837, %v3835
    %v6892 = vpack.c.b16 %v3840, %v3838
    %v6893 = vpack.c.b16 %v3841, %v3839
    %v6894 = vpack.c.b16 %v3844, %v3842
    %v6895 = vpack.c.b16 %v3845, %v3843
    %v6896 = vpack.c.b16 %v3848, %v3846
    %v6897 = vpack.c.b16 %v3849, %v3847
    %v6898 = vpack.c.b16 %v3852, %v3850
    %v6899 = vpack.c.b16 %v3853, %v3851
    %v6900 = vpack.c.b16 %v3856, %v3854
    %v6901 = vpack.c.b16 %v3857, %v3855
    %v6902 = vpack.c.b16 %v3860, %v3858
    %v6903 = vpack.c.b16 %v3861, %v3859
    %v6904 = vpack.c.b16 %v3864, %v3862
    %v6905 = vpack.c.b16 %v3865, %v3863
    %v6906 = vpack.c.b16 %v3868, %v3866
    %v6907 = vpack.c.b16 %v3869, %v3867
    %v6908 = vpack.c.b16 %v3872, %v3870
    %v6909 = vpack.c.b16 %v3873, %v3871
    %v6910 = vpack.c.b16 %v3876, %v3874
    %v6911 = vpack.c.b16 %v3877, %v3875
    %v6912 = vpack.c.b16 %v3880, %v3878
    %v6913 = vpack.c.b16 %v3881, %v3879
    %v6914 = vpack.c.b16 %v3884, %v3882
    %v6915 = vpack.c.b16 %v3885, %v3883
    %v6916 = vpack.c.b16 %v3888, %v3886
    %v6917 = vpack.c.b16 %v3889, %v3887
    %v6918 = vpack.c.b16 %v3892, %v3890
    %v6919 = vpack.c.b16 %v3893, %v3891
    %v6920 = vpack.c.b16 %v3896, %v3894
    %v6921 = vpack.c.b16 %v3897, %v3895
    %v6922 = vpack.c.b16 %v3900, %v3898
    %v6923 = vpack.c.b16 %v3901, %v3899
    %v6924 = vpack.c.b16 %v3904, %v3902
    %v6925 = vpack.c.b16 %v3905, %v3903
    %v6926 = vpack.c.b16 %v3908, %v3906
    %v6927 = vpack.c.b16 %v3909, %v3907
    %v6928 = vpack.c.b16 %v3912, %v3910
    %v6929 = vpack.c.b16 %v3913, %v3911
    %v6930 = vpack.c.b16 %v3916, %v3914
    %v6931 = vpack.c.b16 %v3917, %v3915
    %v6932 = vpack.c.b16 %v3920, %v3918
    %v6933 = vpack.c.b16 %v3921, %v3919
    %v6934 = vpack.c.b16 %v3924, %v3922
    %v6935 = vpack.c.b16 %v3925, %v3923
    %v6936 = vpack.c.b16 %v3928, %v3926
    %v6937 = vpack.c.b16 %v3929, %v3927
    %v6938 = vpack.c.b16 %v3932, %v3930
    %v6939 = vpack.c.b16 %v3933, %v3931
    %v6940 = vpack.c.b16 %v3936, %v3934
    %v6941 = vpack.c.b16 %v3937, %v3935
    %v6942 = vpack.c.b16 %v3940, %v3938
    %v6943 = vpack.c.b16 %v3941, %v3939
    %v6944 = vpack.c.b16 %v3944, %v3942
    %v6945 = vpack.c.b16 %v3945, %v3943
    %v6946 = vpack.c.b16 %v3948, %v3946
    %v6947 = vpack.c.b16 %v3949, %v3947
    %v6948 = vpack.c.b16 %v3952, %v3950
    %v6949 = vpack.c.b16 %v3953, %v3951
    %v6950 = vpack.c.b16 %v3956, %v3954
    %v6951 = vpack.c.b16 %v3957, %v3955
    %v6952 = vpack.c.b16 %v3960, %v3958
    %v6953 = vpack.c.b16 %v3961, %v3959
    %v6954 = vpack.c.b16 %v3964, %v3962
    %v6955 = vpack.c.b16 %v3965, %v3963
    %v6956 = vpack.c.b16 %v3968, %v3966
    %v6957 = vpack.c.b16 %v3969, %v3967
    %v6958 = vpack.c.b16 %v3972, %v3970
    %v6959 = vpack.c.b16 %v3973, %v3971
    %v6960 = vpack.c.b16 %v3976, %v3974
    %v6961 = vpack.c.b16 %v3977, %v3975
    %v6962 = vpack.c.b16 %v3980, %v3978
    %v6963 = vpack.c.b16 %v3981, %v3979
    %v6964 = vpack.c.b16 %v3984, %v3982
    %v6965 = vpack.c.b16 %v3985, %v3983
    %v6966 = vpack.c.b16 %v3988, %v3986
    %v6967 = vpack.c.b16 %v3989, %v3987
    %v6968 = vpack.c.b16 %v3992, %v3990
    %v6969 = vpack.c.b16 %v3993, %v3991
    %v6970 = vpack.c.b16 %v3996, %v3994
    %v6971 = vpack.c.b16 %v3997, %v3995
    %v6972 = vpack.c.b16 %v4000, %v3998
    %v6973 = vpack.c.b16 %v4001, %v3999
    %v6974 = vpack.c.b16 %v4004, %v4002
    %v6975 = vpack.c.b16 %v4005, %v4003
    %v6976 = vpack.c.b16 %v4008, %v4006
    %v6977 = vpack.c.b16 %v4009, %v4007
    %v6978 = vpack.c.b16 %v4012, %v4010
    %v6979 = vpack.c.b16 %v4013, %v4011
    %v6980 = vpack.c.b16 %v4016, %v4014
    %v6981 = vpack.c.b16 %v4017, %v4015
    %v6982 = vpack.c.b16 %v4020, %v4018
    %v6983 = vpack.c.b16 %v4021, %v4019
    %v6984 = vpack.c.b16 %v4024, %v4022
    %v6985 = vpack.c.b16 %v4025, %v4023
    %v6986 = vpack.c.b16 %v4028, %v4026
    %v6987 = vpack.c.b16 %v4029, %v4027
    %v6988 = vpack.c.b16 %v4032, %v4030
    %v6989 = vpack.c.b16 %v4033, %v4031
    %v6990 = vpack.c.b16 %v4036, %v4034
    %v6991 = vpack.c.b16 %v4037, %v4035
    %v6992 = vpack.c.b16 %v4040, %v4038
    %v6993 = vpack.c.b16 %v4041, %v4039
    %v6994 = vpack.c.b16 %v4044, %v4042
    %v6995 = vpack.c.b16 %v4045, %v4043
    %v6996 = vpack.c.b16 %v4048, %v4046
    %v6997 = vpack.c.b16 %v4049, %v4047
    %v6998 = vpack.c.b16 %v4052, %v4050
    %v6999 = vpack.c.b16 %v4053, %v4051
    %v7000 = vpack.c.b16 %v4056, %v4054
    %v7001 = vpack.c.b16 %v4057, %v4055
    %v7002 = vpack.c.b16 %v4060, %v4058
    %v7003 = vpack.c.b16 %v4061, %v4059
    %v7004 = vpack.c.b16 %v4064, %v4062
    %v7005 = vpack.c.b16 %v4065, %v4063
    %v7006 = vpack.c.b16 %v4068, %v4066
    %v7007 = vpack.c.b16 %v4069, %v4067
    %v7008 = vpack.c.b16 %v4072, %v4070
    %v7009 = vpack.c.b16 %v4073, %v4071
    %v7010 = vpack.c.b16 %v4076, %v4074
    %v7011 = vpack.c.b16 %v4077, %v4075
    %v7012 = vpack.c.b16 %v4080, %v4078
    %v7013 = vpack.c.b16 %v4081, %v4079
    %v7014 = vpack.c.b16 %v4084, %v4082
    %v7015 = vpack.c.b16 %v4085, %v4083
    %v7016 = vpack.c.b16 %v4088, %v4086
    %v7017 = vpack.c.b16 %v4089, %v4087
    %v7018 = vpack.c.b16 %v4092, %v4090
    %v7019 = vpack.c.b16 %v4093, %v4091
    %v7020 = vpack.c.b16 %v4096, %v4094
    %v7021 = vpack.c.b16 %v4097, %v4095
    %v7022 = vpack.c.b16 %v4100, %v4098
    %v7023 = vpack.c.b16 %v4101, %v4099
    %v7024 = vpack.c.b16 %v4104, %v4102
    %v7025 = vpack.c.b16 %v4105, %v4103
    %v7026 = vpack.c.b16 %v4108, %v4106
    %v7027 = vpack.c.b16 %v4109, %v4107
    %v7028 = vpack.c.b16 %v4112, %v4110
    %v7029 = vpack.c.b16 %v4113, %v4111
    %v7030 = vpack.c.b16 %v4116, %v4114
    %v7031 = vpack.c.b16 %v4117, %v4115
    %v7032 = vpack.c.b16 %v4120, %v4118
    %v7033 = vpack.c.b16 %v4121, %v4119
    %v7034 = vpack.c.b16 %v4124, %v4122
    %v7035 = vpack.c.b16 %v4125, %v4123
    %v7036 = vpack.c.b16 %v4128, %v4126
    %v7037 = vpack.c.b16 %v4129, %v4127
    %v7038 = vpack.c.b16 %v4132, %v4130
    %v7039 = vpack.c.b16 %v4133, %v4131
    %v7040 = vpack.c.b16 %v4136, %v4134
    %v7041 = vpack.c.b16 %v4137, %v4135
    %v7042 = vpack.c.b16 %v4140, %v4138
    %v7043 = vpack.c.b16 %v4141, %v4139
    %v7044 = vpack.c.b16 %v4144, %v4142
    %v7045 = vpack.c.b16 %v4145, %v4143
    %v7046 = vpack.c.b16 %v4148, %v4146
    %v7047 = vpack.c.b16 %v4149, %v4147
    %v7048 = vpack.c.b16 %v4152, %v4150
    %v7049 = vpack.c.b16 %v4153, %v4151
    %v7050 = vpack.c.b16 %v4156, %v4154
    %v7051 = vpack.c.b16 %v4157, %v4155
    %v7052 = vpack.c.b16 %v4160, %v4158
    %v7053 = vpack.c.b16 %v4161, %v4159
    %v7054 = vpack.c.b16 %v4164, %v4162
    %v7055 = vpack.c.b16 %v4165, %v4163
    %v7056 = vpack.c.b16 %v4168, %v4166
    %v7057 = vpack.c.b16 %v4169, %v4167
    %v7058 = vpack.c.b16 %v4172, %v4170
    %v7059 = vpack.c.b16 %v4173, %v4171
    %v7060 = vpack.c.b16 %v4176, %v4174
    %v7061 = vpack.c.b16 %v4177, %v4175
    %v7062 = vpack.c.b16 %v4180, %v4178
    %v7063 = vpack.c.b16 %v4181, %v4179
    %v7064 = vpack.c.b16 %v4184, %v4182
    %v7065 = vpack.c.b16 %v4185, %v4183
    %v7066 = vpack.c.b16 %v4188, %v4186
    %v7067 = vpack.c.b16 %v4189, %v4187
    %v7068 = vpack.c.b16 %v4192, %v4190
    %v7069 = vpack.c.b16 %v4193, %v4191
    %v7070 = vpack.c.b16 %v4196, %v4194
    %v7071 = vpack.c.b16 %v4197, %v4195
    %v7072 = vpack.c.b16 %v4200, %v4198
    %v7073 = vpack.c.b16 %v4201, %v4199
    %v7074 = vpack.c.b16 %v4204, %v4202
    %v7075 = vpack.c.b16 %v4205, %v4203
    %v7076 = vpack.c.b16 %v4208, %v4206
    %v7077 = vpack.c.b16 %v4209, %v4207
    %v7078 = vpack.c.b16 %v4212, %v4210
    %v7079 = vpack.c.b16 %v4213, %v4211
    %v7080 = vpack.c.b16 %v4216, %v4214
    %v7081 = vpack.c.b16 %v4217, %v4215
    %v7082 = vpack.c.b16 %v4220, %v4218
    %v7083 = vpack.c.b16 %v4221, %v4219
    %v7084 = vpack.c.b16 %v4224, %v4222
    %v7085 = vpack.c.b16 %v4225, %v4223
    %v7086 = vpack.c.b16 %v4228, %v4226
    %v7087 = vpack.c.b16 %v4229, %v4227
    %v7088 = vpack.c.b16 %v4232, %v4230
    %v7089 = vpack.c.b16 %v4233, %v4231
    %v7090 = vpack.c.b16 %v4236, %v4234
    %v7091 = vpack.c.b16 %v4237, %v4235
    %v7092 = vpack.c.b16 %v4240, %v4238
    %v7093 = vpack.c.b16 %v4241, %v4239
    %v7094 = vpack.c.b16 %v4244, %v4242
    %v7095 = vpack.c.b16 %v4245, %v4243
    %v7096 = vpack.c.b16 %v4248, %v4246
    %v7097 = vpack.c.b16 %v4249, %v4247
    %v7098 = vpack.c.b16 %v4252, %v4250
    %v7099 = vpack.c.b16 %v4253, %v4251
    %v7100 = vpack.c.b16 %v4256, %v4254
    %v7101 = vpack.c.b16 %v4257, %v4255
    %v7102 = vpack.c.b16 %v4260, %v4258
    %v7103 = vpack.c.b16 %v4261, %v4259
    %v7104 = vpack.c.b16 %v4264, %v4262
    %v7105 = vpack.c.b16 %v4265, %v4263
    %v7106 = vpack.c.b16 %v4268, %v4266
    %v7107 = vpack.c.b16 %v4269, %v4267
    %v7108 = vpack.c.b16 %v4272, %v4270
    %v7109 = vpack.c.b16 %v4273, %v4271
    %v7110 = vpack.c.b16 %v4276, %v4274
    %v7111 = vpack.c.b16 %v4277, %v4275
    %v7112 = vpack.c.b16 %v4280, %v4278
    %v7113 = vpack.c.b16 %v4281, %v4279
    %v7114 = vpack.c.b16 %v4284, %v4282
    %v7115 = vpack.c.b16 %v4285, %v4283
    %v7116 = vpack.c.b16 %v4288, %v4286
    %v7117 = vpack.c.b16 %v4289, %v4287
    %v7118 = vpack.c.b16 %v4292, %v4290
    %v7119 = vpack.c.b16 %v4293, %v4291
    %v7120 = vpack.c.b16 %v4296, %v4294
    %v7121 = vpack.c.b16 %v4297, %v4295
    %v7122 = vpack.c.b16 %v4300, %v4298
    %v7123 = vpack.c.b16 %v4301, %v4299
    %v7124 = vpack.c.b16 %v4304, %v4302
    %v7125 = vpack.c.b16 %v4305, %v4303
    %v7126 = vpack.c.b16 %v4308, %v4306
    %v7127 = vpack.c.b16 %v4309, %v4307
    %v7128 = vpack.c.b16 %v4312, %v4310
    %v7129 = vpack.c.b16 %v4313, %v4311
    %v7130 = vpack.c.b16 %v4316, %v4314
    %v7131 = vpack.c.b16 %v4317, %v4315
    %v7132 = vpack.c.b16 %v4320, %v4318
    %v7133 = vpack.c.b16 %v4321, %v4319
    %v7134 = vpack.c.b16 %v4324, %v4322
    %v7135 = vpack.c.b16 %v4325, %v4323
    %v7136 = vpack.c.b16 %v4328, %v4326
    %v7137 = vpack.c.b16 %v4329, %v4327
    %v7138 = vpack.c.b16 %v4332, %v4330
    %v7139 = vpack.c.b16 %v4333, %v4331
    %v7140 = vpack.c.b16 %v4336, %v4334
    %v7141 = vpack.c.b16 %v4337, %v4335
    %v7142 = vpack.c.b16 %v4340, %v4338
    %v7143 = vpack.c.b16 %v4341, %v4339
    %v7144 = vpack.c.b16 %v4344, %v4342
    %v7145 = vpack.c.b16 %v4345, %v4343
    %v7146 = vpack.c.b16 %v4348, %v4346
    %v7147 = vpack.c.b16 %v4349, %v4347
    %v7148 = vpack.c.b16 %v4352, %v4350
    %v7149 = vpack.c.b16 %v4353, %v4351
    %v7150 = vpack.c.b16 %v4356, %v4354
    %v7151 = vpack.c.b16 %v4357, %v4355
    %v7152 = vpack.c.b16 %v4360, %v4358
    %v7153 = vpack.c.b16 %v4361, %v4359
    %v7154 = vpack.c.b16 %v4364, %v4362
    %v7155 = vpack.c.b16 %v4365, %v4363
    %v7156 = vpack.c.b16 %v4368, %v4366
    %v7157 = vpack.c.b16 %v4369, %v4367
    %v7158 = vpack.c.b16 %v4372, %v4370
    %v7159 = vpack.c.b16 %v4373, %v4371
    %v7160 = vpack.c.b16 %v4376, %v4374
    %v7161 = vpack.c.b16 %v4377, %v4375
    %v7162 = vpack.c.b16 %v4380, %v4378
    %v7163 = vpack.c.b16 %v4381, %v4379
    %v7164 = vpack.c.b16 %v4384, %v4382
    %v7165 = vpack.c.b16 %v4385, %v4383
    %v7166 = vpack.c.b16 %v4388, %v4386
    %v7167 = vpack.c.b16 %v4389, %v4387
    %v7168 = vpack.c.b16 %v4392, %v4390
    %v7169 = vpack.c.b16 %v4393, %v4391
    %v7170 = vpack.c.b16 %v4396, %v4394
    %v7171 = vpack.c.b16 %v4397, %v4395
    %v7172 = vpack.c.b16 %v4400, %v4398
    %v7173 = vpack.c.b16 %v4401, %v4399
    %v7174 = vpack.c.b16 %v4404, %v4402
    %v7175 = vpack.c.b16 %v4405, %v4403
    %v7176 = vpack.c.b16 %v4408, %v4406
    %v7177 = vpack.c.b16 %v4409, %v4407
    %v7178 = vpack.c.b16 %v4412, %v4410
    %v7179 = vpack.c.b16 %v4413, %v4411
    %v7180 = vpack.c.b16 %v4416, %v4414
    %v7181 = vpack.c.b16 %v4417, %v4415
    %v7182 = vpack.c.b16 %v4420, %v4418
    %v7183 = vpack.c.b16 %v4421, %v4419
    %v7184 = vpack.c.b16 %v4424, %v4422
    %v7185 = vpack.c.b16 %v4425, %v4423
    %v7186 = vpack.c.b16 %v4428, %v4426
    %v7187 = vpack.c.b16 %v4429, %v4427
    %v7188 = vpack.c.b16 %v4432, %v4430
    %v7189 = vpack.c.b16 %v4433, %v4431
    %v7190 = vpack.c.b16 %v4436, %v4434
    %v7191 = vpack.c.b16 %v4437, %v4435
    %v7192 = vpack.c.b16 %v4440, %v4438
    %v7193 = vpack.c.b16 %v4441, %v4439
    %v7194 = vpack.c.b16 %v4444, %v4442
    %v7195 = vpack.c.b16 %v4445, %v4443
    %v7196 = vpack.c.b16 %v4448, %v4446
    %v7197 = vpack.c.b16 %v4449, %v4447
    %v7198 = vpack.c.b16 %v4452, %v4450
    %v7199 = vpack.c.b16 %v4453, %v4451
    %v7200 = vpack.c.b16 %v4456, %v4454
    %v7201 = vpack.c.b16 %v4457, %v4455
    %v7202 = vpack.c.b16 %v4460, %v4458
    %v7203 = vpack.c.b16 %v4461, %v4459
    %v7204 = vpack.c.b16 %v4464, %v4462
    %v7205 = vpack.c.b16 %v4465, %v4463
    %v7206 = vpack.c.b16 %v4468, %v4466
    %v7207 = vpack.c.b16 %v4469, %v4467
    %v7208 = vpack.c.b16 %v4472, %v4470
    %v7209 = vpack.c.b16 %v4473, %v4471
    %v7210 = vpack.c.b16 %v4476, %v4474
    %v7211 = vpack.c.b16 %v4477, %v4475
    %v7212 = vpack.c.b16 %v4480, %v4478
    %v7213 = vpack.c.b16 %v4481, %v4479
    %v7214 = vpack.c.b16 %v4484, %v4482
    %v7215 = vpack.c.b16 %v4485, %v4483
    %v7216 = vpack.c.b16 %v4488, %v4486
    %v7217 = vpack.c.b16 %v4489, %v4487
    %v7218 = vpack.c.b16 %v4492, %v4490
    %v7219 = vpack.c.b16 %v4493, %v4491
    %v7220 = vpack.c.b16 %v4496, %v4494
    %v7221 = vpack.c.b16 %v4497, %v4495
    %v7222 = vpack.c.b16 %v4500, %v4498
    %v7223 = vpack.c.b16 %v4501, %v4499
    %v7224 = vpack.c.b16 %v4504, %v4502
    %v7225 = vpack.c.b16 %v4505, %v4503
    %v7226 = vpack.c.b16 %v4508, %v4506
    %v7227 = vpack.c.b16 %v4509, %v4507
    %v7228 = vpack.c.b16 %v4512, %v4510
    %v7229 = vpack.c.b16 %v4513, %v4511
    %v7230 = vpack.c.b16 %v4516, %v4514
    %v7231 = vpack.c.b16 %v4517, %v4515
    %v7232 = vpack.c.b16 %v4520, %v4518
    %v7233 = vpack.c.b16 %v4521, %v4519
    %v7234 = vpack.c.b16 %v4524, %v4522
    %v7235 = vpack.c.b16 %v4525, %v4523
    %v7236 = vpack.c.b16 %v4528, %v4526
    %v7237 = vpack.c.b16 %v4529, %v4527
    %v7238 = vpack.c.b16 %v4532, %v4530
    %v7239 = vpack.c.b16 %v4533, %v4531
    %v7240 = vpack.c.b16 %v4536, %v4534
    %v7241 = vpack.c.b16 %v4537, %v4535
    %v7242 = vpack.c.b16 %v4540, %v4538
    %v7243 = vpack.c.b16 %v4541, %v4539
    %v7244 = vpack.c.b16 %v4544, %v4542
    %v7245 = vpack.c.b16 %v4545, %v4543
    %v7246 = vpack.c.b16 %v4548, %v4546
    %v7247 = vpack.c.b16 %v4549, %v4547
    %v7248 = vpack.c.b16 %v4552, %v4550
    %v7249 = vpack.c.b16 %v4553, %v4551
    %v7250 = vpack.c.b16 %v4556, %v4554
    %v7251 = vpack.c.b16 %v4557, %v4555
    %v7252 = vpack.c.b16 %v4560, %v4558
    %v7253 = vpack.c.b16 %v4561, %v4559
    %v7254 = vpack.c.b16 %v4564, %v4562
    %v7255 = vpack.c.b16 %v4565, %v4563
    %v7256 = vpack.c.b16 %v4568, %v4566
    %v7257 = vpack.c.b16 %v4569, %v4567
    %v7258 = vpack.c.b16 %v4572, %v4570
    %v7259 = vpack.c.b16 %v4573, %v4571
    %v7260 = vpack.c.b16 %v4576, %v4574
    %v7261 = vpack.c.b16 %v4577, %v4575
    %v7262 = vpack.c.b16 %v4580, %v4578
    %v7263 = vpack.c.b16 %v4581, %v4579
    %v7264 = vpack.c.b16 %v4584, %v4582
    %v7265 = vpack.c.b16 %v4585, %v4583
    %v7266 = vpack.c.b16 %v4588, %v4586
    %v7267 = vpack.c.b16 %v4589, %v4587
    %v7268 = vpack.c.b16 %v4592, %v4590
    %v7269 = vpack.c.b16 %v4593, %v4591
    %v7270 = vpack.c.b16 %v4596, %v4594
    %v7271 = vpack.c.b16 %v4597, %v4595
    %v7272 = vpack.c.b16 %v4600, %v4598
    %v7273 = vpack.c.b16 %v4601, %v4599
    %v7274 = vpack.c.b16 %v4604, %v4602
    %v7275 = vpack.c.b16 %v4605, %v4603
    %v7276 = vpack.c.b16 %v4608, %v4606
    %v7277 = vpack.c.b16 %v4609, %v4607
    %v7278 = vpack.c.b16 %v4612, %v4610
    %v7279 = vpack.c.b16 %v4613, %v4611
    %v7280 = vpack.c.b16 %v4616, %v4614
    %v7281 = vpack.c.b16 %v4617, %v4615
    %v7282 = vpack.c.b16 %v4620, %v4618
    %v7283 = vpack.c.b16 %v4621, %v4619
    %v7284 = vpack.c.b16 %v4624, %v4622
    %v7285 = vpack.c.b16 %v4625, %v4623
    %v7286 = vpack.c.b16 %v4628, %v4626
    %v7287 = vpack.c.b16 %v4629, %v4627
    %v7288 = vpack.c.b16 %v4632, %v4630
    %v7289 = vpack.c.b16 %v4633, %v4631
    %v7290 = vpack.c.b16 %v4636, %v4634
    %v7291 = vpack.c.b16 %v4637, %v4635
    %v7292 = vpack.c.b16 %v4640, %v4638
    %v7293 = vpack.c.b16 %v4641, %v4639
    %v7294 = vpack.c.b16 %v4644, %v4642
    %v7295 = vpack.c.b16 %v4645, %v4643
    %v7296 = vpack.c.b16 %v4648, %v4646
    %v7297 = vpack.c.b16 %v4649, %v4647
    %v7298 = vpack.c.b16 %v4652, %v4650
    %v7299 = vpack.c.b16 %v4653, %v4651
    %v7300 = vpack.c.b16 %v4656, %v4654
    %v7301 = vpack.c.b16 %v4657, %v4655
    %v7302 = vpack.c.b16 %v4660, %v4658
    %v7303 = vpack.c.b16 %v4661, %v4659
    %v7304 = vpack.c.b16 %v4664, %v4662
    %v7305 = vpack.c.b16 %v4665, %v4663
    %v7306 = vpack.c.b16 %v4668, %v4666
    %v7307 = vpack.c.b16 %v4669, %v4667
    %v7308 = vpack.c.b16 %v4672, %v4670
    %v7309 = vpack.c.b16 %v4673, %v4671
    %v7310 = vpack.c.b16 %v4676, %v4674
    %v7311 = vpack.c.b16 %v4677, %v4675
    %v7312 = vpack.c.b16 %v4680, %v4678
    %v7313 = vpack.c.b16 %v4681, %v4679
    %v7314 = vpack.c.b16 %v4684, %v4682
    %v7315 = vpack.c.b16 %v4685, %v4683
    %v7316 = vpack.c.b16 %v4688, %v4686
    %v7317 = vpack.c.b16 %v4689, %v4687
    %v7318 = vpack.c.b16 %v4692, %v4690
    %v7319 = vpack.c.b16 %v4693, %v4691
    %v7320 = vpack.c.b16 %v4696, %v4694
    %v7321 = vpack.c.b16 %v4697, %v4695
    %v7322 = vpack.c.b16 %v4700, %v4698
    %v7323 = vpack.c.b16 %v4701, %v4699
    %v7324 = vpack.c.b16 %v4704, %v4702
    %v7325 = vpack.c.b16 %v4705, %v4703
    %v7326 = vpack.c.b16 %v4708, %v4706
    %v7327 = vpack.c.b16 %v4709, %v4707
    %v7328 = vpack.c.b16 %v4712, %v4710
    %v7329 = vpack.c.b16 %v4713, %v4711
    %v7330 = vpack.c.b16 %v4716, %v4714
    %v7331 = vpack.c.b16 %v4717, %v4715
    %v7332 = vpack.c.b16 %v4720, %v4718
    %v7333 = vpack.c.b16 %v4721, %v4719
    %v7334 = vpack.c.b16 %v4724, %v4722
    %v7335 = vpack.c.b16 %v4725, %v4723
    %v7336 = vpack.c.b16 %v4728, %v4726
    %v7337 = vpack.c.b16 %v4729, %v4727
    %v7338 = vpack.c.b16 %v4732, %v4730
    %v7339 = vpack.c.b16 %v4733, %v4731
    %v7340 = vpack.c.b16 %v4736, %v4734
    %v7341 = vpack.c.b16 %v4737, %v4735
    %v7342 = vpack.c.b16 %v4740, %v4738
    %v7343 = vpack.c.b16 %v4741, %v4739
    %v7344 = vpack.c.b16 %v4744, %v4742
    %v7345 = vpack.c.b16 %v4745, %v4743
    %v7346 = vpack.c.b16 %v4748, %v4746
    %v7347 = vpack.c.b16 %v4749, %v4747
    %v7348 = vpack.c.b16 %v4752, %v4750
    %v7349 = vpack.c.b16 %v4753, %v4751
    %v7350 = vpack.c.b16 %v4756, %v4754
    %v7351 = vpack.c.b16 %v4757, %v4755
    %v7352 = vpack.c.b16 %v4760, %v4758
    %v7353 = vpack.c.b16 %v4761, %v4759
    %v7354 = vpack.c.b16 %v4764, %v4762
    %v7355 = vpack.c.b16 %v4765, %v4763
    %v7356 = vpack.c.b16 %v4768, %v4766
    %v7357 = vpack.c.b16 %v4769, %v4767
    %v7358 = vpack.c.b16 %v4772, %v4770
    %v7359 = vpack.c.b16 %v4773, %v4771
    %v7360 = vpack.c.b16 %v4776, %v4774
    %v7361 = vpack.c.b16 %v4777, %v4775
    %v7362 = vpack.c.b16 %v4780, %v4778
    %v7363 = vpack.c.b16 %v4781, %v4779
    %v7364 = vpack.c.b16 %v4784, %v4782
    %v7365 = vpack.c.b16 %v4785, %v4783
    %v7366 = vpack.c.b16 %v4788, %v4786
    %v7367 = vpack.c.b16 %v4789, %v4787
    %v7368 = vpack.c.b16 %v4792, %v4790
    %v7369 = vpack.c.b16 %v4793, %v4791
    %v7370 = vpack.c.b16 %v4796, %v4794
    %v7371 = vpack.c.b16 %v4797, %v4795
    %v7372 = vpack.c.b16 %v4800, %v4798
    %v7373 = vpack.c.b16 %v4801, %v4799
    %v7374 = vpack.c.b16 %v4804, %v4802
    %v7375 = vpack.c.b16 %v4805, %v4803
    %v7376 = vpack.c.b16 %v4808, %v4806
    %v7377 = vpack.c.b16 %v4809, %v4807
    %v7378 = vpack.c.b16 %v4812, %v4810
    %v7379 = vpack.c.b16 %v4813, %v4811
    %v7380 = vpack.c.b16 %v4816, %v4814
    %v7381 = vpack.c.b16 %v4817, %v4815
    %v7382 = vpack.c.b16 %v4820, %v4818
    %v7383 = vpack.c.b16 %v4821, %v4819
    %v7384 = vpack.c.b16 %v4824, %v4822
    %v7385 = vpack.c.b16 %v4825, %v4823
    %v7386 = vpack.c.b16 %v4828, %v4826
    %v7387 = vpack.c.b16 %v4829, %v4827
    %v7388 = vpack.c.b16 %v4832, %v4830
    %v7389 = vpack.c.b16 %v4833, %v4831
    %v7390 = vpack.c.b16 %v4836, %v4834
    %v7391 = vpack.c.b16 %v4837, %v4835
    %v7392 = vpack.c.b16 %v4840, %v4838
    %v7393 = vpack.c.b16 %v4841, %v4839
    %v7394 = vpack.c.b16 %v4844, %v4842
    %v7395 = vpack.c.b16 %v4845, %v4843
    %v7396 = vpack.c.b16 %v4848, %v4846
    %v7397 = vpack.c.b16 %v4849, %v4847
    %v7398 = vpack.c.b16 %v4852, %v4850
    %v7399 = vpack.c.b16 %v4853, %v4851
    %v7400 = vpack.c.b16 %v4856, %v4854
    %v7401 = vpack.c.b16 %v4857, %v4855
    %v7402 = vpack.c.b16 %v4860, %v4858
    %v7403 = vpack.c.b16 %v4861, %v4859
    %v7404 = vpack.c.b16 %v4864, %v4862
    %v7405 = vpack.c.b16 %v4865, %v4863
    %v7406 = vpack.c.b16 %v4868, %v4866
    %v7407 = vpack.c.b16 %v4869, %v4867
    %v7408 = vpack.c.b16 %v4872, %v4870
    %v7409 = vpack.c.b16 %v4873, %v4871
    %v7410 = vpack.c.b16 %v4876, %v4874
    %v7411 = vpack.c.b16 %v4877, %v4875
    %v7412 = vpack.c.b16 %v4880, %v4878
    %v7413 = vpack.c.b16 %v4881, %v4879
    %v7414 = vpack.c.b16 %v4884, %v4882
    %v7415 = vpack.c.b16 %v4885, %v4883
    %v7416 = vpack.c.b16 %v4888, %v4886
    %v7417 = vpack.c.b16 %v4889, %v4887
    %v7418 = vpack.c.b16 %v4892, %v4890
    %v7419 = vpack.c.b16 %v4893, %v4891
    %v7420 = vpack.c.b16 %v4896, %v4894
    %v7421 = vpack.c.b16 %v4897, %v4895
    %v7422 = vpack.c.b16 %v4900, %v4898
    %v7423 = vpack.c.b16 %v4901, %v4899
    %v7424 = vpack.c.b16 %v4904, %v4902
    %v7425 = vpack.c.b16 %v4905, %v4903
    %v7426 = vpack.c.b16 %v4908, %v4906
    %v7427 = vpack.c.b16 %v4909, %v4907
    %v7428 = vpack.c.b16 %v4912, %v4910
    %v7429 = vpack.c.b16 %v4913, %v4911
    %v7430 = vpack.c.b16 %v4916, %v4914
    %v7431 = vpack.c.b16 %v4917, %v4915
    %v7432 = vpack.c.b16 %v4920, %v4918
    %v7433 = vpack.c.b16 %v4921, %v4919
    %v7434 = vpack.c.b16 %v4924, %v4922
    %v7435 = vpack.c.b16 %v4925, %v4923
    %v7436 = vpack.c.b16 %v4928, %v4926
    %v7437 = vpack.c.b16 %v4929, %v4927
    %v7438 = vpack.c.b16 %v4932, %v4930
    %v7439 = vpack.c.b16 %v4933, %v4931
    %v7440 = vpack.c.b16 %v4936, %v4934
    %v7441 = vpack.c.b16 %v4937, %v4935
    %v7442 = vpack.c.b16 %v4940, %v4938
    %v7443 = vpack.c.b16 %v4941, %v4939
    %v7444 = vpack.c.b16 %v4944, %v4942
    %v7445 = vpack.c.b16 %v4945, %v4943
    %v7446 = vpack.c.b16 %v4948, %v4946
    %v7447 = vpack.c.b16 %v4949, %v4947
    %v7448 = vpack.c.b16 %v4952, %v4950
    %v7449 = vpack.c.b16 %v4953, %v4951
    %v7450 = vpack.c.b16 %v4956, %v4954
    %v7451 = vpack.c.b16 %v4957, %v4955
    %v7452 = vpack.c.b16 %v4960, %v4958
    %v7453 = vpack.c.b16 %v4961, %v4959
    %v7454 = vpack.c.b16 %v4964, %v4962
    %v7455 = vpack.c.b16 %v4965, %v4963
    %v7456 = vpack.c.b16 %v4968, %v4966
    %v7457 = vpack.c.b16 %v4969, %v4967
    %v7458 = vpack.c.b16 %v4972, %v4970
    %v7459 = vpack.c.b16 %v4973, %v4971
    %v7460 = vpack.c.b16 %v4976, %v4974
    %v7461 = vpack.c.b16 %v4977, %v4975
    %v7462 = vpack.c.b16 %v4980, %v4978
    %v7463 = vpack.c.b16 %v4981, %v4979
    %v7464 = vpack.c.b16 %v4984, %v4982
    %v7465 = vpack.c.b16 %v4985, %v4983
    %v7466 = vpack.c.b16 %v4988, %v4986
    %v7467 = vpack.c.b16 %v4989, %v4987
    %v7468 = vpack.c.b16 %v4992, %v4990
    %v7469 = vpack.c.b16 %v4993, %v4991
    %v7470 = vpack.c.b16 %v4996, %v4994
    %v7471 = vpack.c.b16 %v4997, %v4995
    %v7472 = vpack.c.b16 %v5000, %v4998
    %v7473 = vpack.c.b16 %v5001, %v4999
    %v7474 = vpack.c.b16 %v5004, %v5002
    %v7475 = vpack.c.b16 %v5005, %v5003
    %v7476 = vpack.c.b16 %v5008, %v5006
    %v7477 = vpack.c.b16 %v5009, %v5007
    %v7478 = vpack.c.b16 %v5012, %v5010
    %v7479 = vpack.c.b16 %v5013, %v5011
    %v7480 = vpack.c.b16 %v5016, %v5014
    %v7481 = vpack.c.b16 %v5017, %v5015
    %v7482 = vpack.c.b16 %v5020, %v5018
    %v7483 = vpack.c.b16 %v5021, %v5019
    %v7484 = vpack.c.b16 %v5024, %v5022
    %v7485 = vpack.c.b16 %v5025, %v5023
    %v7486 = vpack.c.b16 %v5028, %v5026
    %v7487 = vpack.c.b16 %v5029, %v5027
    %v7488 = vpack.c.b16 %v5032, %v5030
    %v7489 = vpack.c.b16 %v5033, %v5031
    %v7490 = vpack.c.b16 %v5036, %v5034
    %v7491 = vpack.c.b16 %v5037, %v5035
    %v7492 = vpack.c.b16 %v5040, %v5038
    %v7493 = vpack.c.b16 %v5041, %v5039
    %v7494 = vpack.c.b16 %v5044, %v5042
    %v7495 = vpack.c.b16 %v5045, %v5043
    %v7496 = vpack.c.b16 %v5048, %v5046
    %v7497 = vpack.c.b16 %v5049, %v5047
    %v7498 = vpack.c.b16 %v5052, %v5050
    %v7499 = vpack.c.b16 %v5053, %v5051
    %v7500 = vpack.c.b16 %v5056, %v5054
    %v7501 = vpack.c.b16 %v5057, %v5055
    %v7502 = vpack.c.b16 %v5060, %v5058
    %v7503 = vpack.c.b16 %v5061, %v5059
    %v7504 = vpack.c.b16 %v5064, %v5062
    %v7505 = vpack.c.b16 %v5065, %v5063
    %v7506 = vpack.c.b16 %v5068, %v5066
    %v7507 = vpack.c.b16 %v5069, %v5067
    %v7508 = vpack.c.b16 %v5072, %v5070
    %v7509 = vpack.c.b16 %v5073, %v5071
    %v7510 = vpack.c.b16 %v5076, %v5074
    %v7511 = vpack.c.b16 %v5077, %v5075
    %v7512 = vpack.c.b16 %v5080, %v5078
    %v7513 = vpack.c.b16 %v5081, %v5079
    %v7514 = vpack.c.b16 %v5084, %v5082
    %v7515 = vpack.c.b16 %v5085, %v5083
    %v7516 = vpack.c.b16 %v5088, %v5086
    %v7517 = vpack.c.b16 %v5089, %v5087
    %v7518 = vpack.c.b16 %v5092, %v5090
    %v7519 = vpack.c.b16 %v5093, %v5091
    %v7520 = vpack.c.b16 %v5096, %v5094
    %v7521 = vpack.c.b16 %v5097, %v5095
    %v7522 = vpack.c.b16 %v5100, %v5098
    %v7523 = vpack.c.b16 %v5101, %v5099
    %v7524 = vpack.c.b16 %v5104, %v5102
    %v7525 = vpack.c.b16 %v5105, %v5103
    %v7526 = vpack.c.b16 %v5108, %v5106
    %v7527 = vpack.c.b16 %v5109, %v5107
    %v7528 = vpack.c.b16 %v5112, %v5110
    %v7529 = vpack.c.b16 %v5113, %v5111
    %v7530 = vpack.c.b16 %v5116, %v5114
    %v7531 = vpack.c.b16 %v5117, %v5115
    %v7532 = vpack.c.b16 %v5120, %v5118
    %v7533 = vpack.c.b16 %v5121, %v5119
    %v7534 = vpack.c.b16 %v5124, %v5122
    %v7535 = vpack.c.b16 %v5125, %v5123
    %v7536 = vpack.c.b16 %v5128, %v5126
    %v7537 = vpack.c.b16 %v5129, %v5127
    %v7538 = vpack.c.b16 %v5132, %v5130
    %v7539 = vpack.c.b16 %v5133, %v5131
    %v7540 = vpack.c.b16 %v5136, %v5134
    %v7541 = vpack.c.b16 %v5137, %v5135
    %v7542 = vpack.c.b16 %v5140, %v5138
    %v7543 = vpack.c.b16 %v5141, %v5139
    %v7544 = vpack.c.b16 %v5144, %v5142
    %v7545 = vpack.c.b16 %v5145, %v5143
    %v7546 = vpack.c.b16 %v5148, %v5146
    %v7547 = vpack.c.b16 %v5149, %v5147
    %v7548 = vpack.c.b16 %v5152, %v5150
    %v7549 = vpack.c.b16 %v5153, %v5151
    %v7550 = vpack.c.b16 %v5156, %v5154
    %v7551 = vpack.c.b16 %v5157, %v5155
    %v7552 = vpack.c.b16 %v5160, %v5158
    %v7553 = vpack.c.b16 %v5161, %v5159
    %v7554 = vpack.c.b16 %v5164, %v5162
    %v7555 = vpack.c.b16 %v5165, %v5163
    %v7556 = vpack.c.b16 %v5168, %v5166
    %v7557 = vpack.c.b16 %v5169, %v5167
    %v7558 = vpack.c.b16 %v5172, %v5170
    %v7559 = vpack.c.b16 %v5173, %v5171
    %v7560 = vpack.c.b16 %v5176, %v5174
    %v7561 = vpack.c.b16 %v5177, %v5175
    %v7562 = vpack.c.b16 %v5180, %v5178
    %v7563 = vpack.c.b16 %v5181, %v5179
    %v7564 = vpack.c.b16 %v5184, %v5182
    %v7565 = vpack.c.b16 %v5185, %v5183
    %v7566 = vpack.c.b16 %v5188, %v5186
    %v7567 = vpack.c.b16 %v5189, %v5187
    %v7568 = vpack.c.b16 %v5192, %v5190
    %v7569 = vpack.c.b16 %v5193, %v5191
    %v7570 = vpack.c.b16 %v5196, %v5194
    %v7571 = vpack.c.b16 %v5197, %v5195
    %v7572 = vpack.c.b16 %v5200, %v5198
    %v7573 = vpack.c.b16 %v5201, %v5199
    %v7574 = vpack.c.b16 %v5204, %v5202
    %v7575 = vpack.c.b16 %v5205, %v5203
    %v7576 = vpack.c.b16 %v5208, %v5206
    %v7577 = vpack.c.b16 %v5209, %v5207
    %v7578 = vpack.c.b16 %v5212, %v5210
    %v7579 = vpack.c.b16 %v5213, %v5211
    %v7580 = vpack.c.b16 %v5216, %v5214
    %v7581 = vpack.c.b16 %v5217, %v5215
    %v7582 = vpack.c.b16 %v5220, %v5218
    %v7583 = vpack.c.b16 %v5221, %v5219
    %v7584 = vpack.c.b16 %v5224, %v5222
    %v7585 = vpack.c.b16 %v5225, %v5223
    %v7586 = vpack.c.b16 %v5228, %v5226
    %v7587 = vpack.c.b16 %v5229, %v5227
    %v7588 = vpack.c.b16 %v5232, %v5230
    %v7589 = vpack.c.b16 %v5233, %v5231
    %v7590 = vpack.c.b16 %v5236, %v5234
    %v7591 = vpack.c.b16 %v5237, %v5235
    %v7592 = vpack.c.b16 %v5240, %v5238
    %v7593 = vpack.c.b16 %v5241, %v5239
    %v7594 = vpack.c.b16 %v5244, %v5242
    %v7595 = vpack.c.b16 %v5245, %v5243
    %v7596 = vpack.c.b16 %v5248, %v5246
    %v7597 = vpack.c.b16 %v5249, %v5247
    %v7598 = vpack.c.b16 %v5252, %v5250
    %v7599 = vpack.c.b16 %v5253, %v5251
    %v7600 = vpack.c.b16 %v5256, %v5254
    %v7601 = vpack.c.b16 %v5257, %v5255
    %v7602 = vpack.c.b16 %v5260, %v5258
    %v7603 = vpack.c.b16 %v5261, %v5259
    %v7604 = vpack.c.b16 %v5264, %v5262
    %v7605 = vpack.c.b16 %v5265, %v5263
    %v7606 = vpack.c.b16 %v5268, %v5266
    %v7607 = vpack.c.b16 %v5269, %v5267
    %v7608 = vpack.c.b16 %v5272, %v5270
    %v7609 = vpack.c.b16 %v5273, %v5271
    %v7610 = vpack.c.b16 %v5276, %v5274
    %v7611 = vpack.c.b16 %v5277, %v5275
    %v7612 = vpack.c.b16 %v5280, %v5278
    %v7613 = vpack.c.b16 %v5281, %v5279
    %v7614 = vpack.c.b16 %v5284, %v5282
    %v7615 = vpack.c.b16 %v5285, %v5283
    %v7616 = vpack.c.b16 %v5288, %v5286
    %v7617 = vpack.c.b16 %v5289, %v5287
    %v7618 = vpack.c.b16 %v5292, %v5290
    %v7619 = vpack.c.b16 %v5293, %v5291
    %v7620 = vpack.c.b16 %v5296, %v5294
    %v7621 = vpack.c.b16 %v5297, %v5295
    %v7622 = vpack.c.b16 %v5300, %v5298
    %v7623 = vpack.c.b16 %v5301, %v5299
    %v7624 = vpack.c.b16 %v5304, %v5302
    %v7625 = vpack.c.b16 %v5305, %v5303
    %v7626 = vpack.c.b16 %v5308, %v5306
    %v7627 = vpack.c.b16 %v5309, %v5307
    %v7628 = vpack.c.b16 %v5312, %v5310
    %v7629 = vpack.c.b16 %v5313, %v5311
    %v7630 = vpack.c.b16 %v5316, %v5314
    %v7631 = vpack.c.b16 %v5317, %v5315
    %v7632 = vpack.c.b16 %v5320, %v5318
    %v7633 = vpack.c.b16 %v5321, %v5319
    %v7634 = vpack.c.b16 %v5324, %v5322
    %v7635 = vpack.c.b16 %v5325, %v5323
    %v7636 = vpack.c.b16 %v5328, %v5326
    %v7637 = vpack.c.b16 %v5329, %v5327
    %v7638 = vpack.c.b16 %v5332, %v5330
    %v7639 = vpack.c.b16 %v5333, %v5331
    %v7640 = vpack.c.b16 %v5336, %v5334
    %v7641 = vpack.c.b16 %v5337, %v5335
    %v7642 = vpack.c.b16 %v5340, %v5338
    %v7643 = vpack.c.b16 %v5341, %v5339
    %v7644 = vpack.c.b16 %v5344, %v5342
    %v7645 = vpack.c.b16 %v5345, %v5343
    %v7646 = vpack.c.b16 %v5348, %v5346
    %v7647 = vpack.c.b16 %v5349, %v5347
    %v7648 = vpack.c.b16 %v5352, %v5350
    %v7649 = vpack.c.b16 %v5353, %v5351
    %v7650 = vpack.c.b16 %v5356, %v5354
    %v7651 = vpack.c.b16 %v5357, %v5355
    %v7652 = vpack.c.b16 %v5360, %v5358
    %v7653 = vpack.c.b16 %v5361, %v5359
    %v7654 = vpack.c.b16 %v5364, %v5362
    %v7655 = vpack.c.b16 %v5365, %v5363
    %v7656 = vpack.c.b16 %v5368, %v5366
    %v7657 = vpack.c.b16 %v5369, %v5367
    %v7658 = vpack.c.b16 %v5372, %v5370
    %v7659 = vpack.c.b16 %v5373, %v5371
    %v7660 = vpack.c.b16 %v5376, %v5374
    %v7661 = vpack.c.b16 %v5377, %v5375
    %v7662 = vpack.c.b16 %v5380, %v5378
    %v7663 = vpack.c.b16 %v5381, %v5379
    %v7664 = vpack.c.b16 %v5384, %v5382
    %v7665 = vpack.c.b16 %v5385, %v5383
    %v7666 = vpack.c.b16 %v5388, %v5386
    %v7667 = vpack.c.b16 %v5389, %v5387
    %v7668 = vpack.c.b16 %v5392, %v5390
    %v7669 = vpack.c.b16 %v5393, %v5391
    %v7670 = vpack.c.b16 %v5396, %v5394
    %v7671 = vpack.c.b16 %v5397, %v5395
    %v7672 = vpack.c.b16 %v5400, %v5398
    %v7673 = vpack.c.b16 %v5401, %v5399
    %v7674 = vpack.c.b16 %v5404, %v5402
    %v7675 = vpack.c.b16 %v5405, %v5403
    %v7676 = vpack.c.b16 %v5408, %v5406
    %v7677 = vpack.c.b16 %v5409, %v5407
    %v7678 = vpack.c.b16 %v5412, %v5410
    %v7679 = vpack.c.b16 %v5413, %v5411
    %v7680 = vpack.c.b16 %v5416, %v5414
    %v7681 = vpack.c.b16 %v5417, %v5415
    %v7682 = vpack.c.b16 %v5420, %v5418
    %v7683 = vpack.c.b16 %v5421, %v5419
    %v7684 = vpack.c.b16 %v5424, %v5422
    %v7685 = vpack.c.b16 %v5425, %v5423
    %v7686 = vpack.c.b16 %v5428, %v5426
    %v7687 = vpack.c.b16 %v5429, %v5427
    %v7688 = vpack.c.b16 %v5432, %v5430
    %v7689 = vpack.c.b16 %v5433, %v5431
    %v7690 = vpack.c.b16 %v5436, %v5434
    %v7691 = vpack.c.b16 %v5437, %v5435
    %v7692 = vpack.c.b16 %v5440, %v5438
    %v7693 = vpack.c.b16 %v5441, %v5439
    %v7694 = vpack.c.b16 %v5444, %v5442
    %v7695 = vpack.c.b16 %v5445, %v5443
    %v7696 = vpack.c.b16 %v5448, %v5446
    %v7697 = vpack.c.b16 %v5449, %v5447
    %v7698 = vpack.c.b16 %v5452, %v5450
    %v7699 = vpack.c.b16 %v5453, %v5451
    %v7700 = vpack.c.b16 %v5456, %v5454
    %v7701 = vpack.c.b16 %v5457, %v5455
    %v7702 = vpack.c.b16 %v5460, %v5458
    %v7703 = vpack.c.b16 %v5461, %v5459
    %v7704 = vpack.c.b16 %v5464, %v5462
    %v7705 = vpack.c.b16 %v5465, %v5463
    %v7706 = vpack.c.b16 %v5468, %v5466
    %v7707 = vpack.c.b16 %v5469, %v5467
    %v7708 = vpack.c.b16 %v5472, %v5470
    %v7709 = vpack.c.b16 %v5473, %v5471
    %v7710 = vpack.c.b16 %v5476, %v5474
    %v7711 = vpack.c.b16 %v5477, %v5475
    %v7712 = vpack.c.b16 %v5480, %v5478
    %v7713 = vpack.c.b16 %v5481, %v5479
    %v7714 = vpack.c.b16 %v5484, %v5482
    %v7715 = vpack.c.b16 %v5485, %v5483
    %v7716 = vpack.c.b16 %v5488, %v5486
    %v7717 = vpack.c.b16 %v5489, %v5487
    %v7718 = vpack.c.b16 %v5492, %v5490
    %v7719 = vpack.c.b16 %v5493, %v5491
    %v7720 = vpack.c.b16 %v5496, %v5494
    %v7721 = vpack.c.b16 %v5497, %v5495
    %v7722 = vpack.c.b16 %v5500, %v5498
    %v7723 = vpack.c.b16 %v5501, %v5499
    %v7724 = vpack.c.b16 %v5504, %v5502
    %v7725 = vpack.c.b16 %v5505, %v5503
    %v7726 = vpack.c.b16 %v5508, %v5506
    %v7727 = vpack.c.b16 %v5509, %v5507
    %v7728 = vpack.c.b16 %v5512, %v5510
    %v7729 = vpack.c.b16 %v5513, %v5511
    %v7730 = vpack.c.b16 %v5516, %v5514
    %v7731 = vpack.c.b16 %v5517, %v5515
    %v7732 = vpack.c.b16 %v5520, %v5518
    %v7733 = vpack.c.b16 %v5521, %v5519
    %v7734 = vpack.c.b16 %v5524, %v5522
    %v7735 = vpack.c.b16 %v5525, %v5523
    %v7736 = vpack.c.b16 %v5528, %v5526
    %v7737 = vpack.c.b16 %v5529, %v5527
    %v7738 = vpack.c.b16 %v5532, %v5530
    %v7739 = vpack.c.b16 %v5533, %v5531
    %v7740 = vpack.c.b16 %v5536, %v5534
    %v7741 = vpack.c.b16 %v5537, %v5535
    %v7742 = vpack.c.b16 %v5540, %v5538
    %v7743 = vpack.c.b16 %v5541, %v5539
    %v7744 = vpack.c.b16 %v5544, %v5542
    %v7745 = vpack.c.b16 %v5545, %v5543
    %v7746 = vpack.c.b16 %v5548, %v5546
    %v7747 = vpack.c.b16 %v5549, %v5547
    %v7748 = vpack.c.b16 %v5552, %v5550
    %v7749 = vpack.c.b16 %v5553, %v5551
    %v7750 = vpack.c.b16 %v5556, %v5554
    %v7751 = vpack.c.b16 %v5557, %v5555
    %v7752 = vpack.c.b16 %v5560, %v5558
    %v7753 = vpack.c.b16 %v5561, %v5559
    %v7754 = vpack.c.b16 %v5564, %v5562
    %v7755 = vpack.c.b16 %v5565, %v5563
    %v7756 = vpack.c.b16 %v5568, %v5566
    %v7757 = vpack.c.b16 %v5569, %v5567
    %v7758 = vpack.c.b16 %v5572, %v5570
    %v7759 = vpack.c.b16 %v5573, %v5571
    %v7760 = vpack.c.b16 %v5576, %v5574
    %v7761 = vpack.c.b16 %v5577, %v5575
    %v7762 = vpack.c.b16 %v5580, %v5578
    %v7763 = vpack.c.b16 %v5581, %v5579
    %v7764 = vpack.c.b16 %v5584, %v5582
    %v7765 = vpack.c.b16 %v5585, %v5583
    %v7766 = vpack.c.b16 %v5588, %v5586
    %v7767 = vpack.c.b16 %v5589, %v5587
    %v7768 = vpack.c.b16 %v5592, %v5590
    %v7769 = vpack.c.b16 %v5593, %v5591
    %v7770 = vpack.c.b16 %v5596, %v5594
    %v7771 = vpack.c.b16 %v5597, %v5595
    %v7772 = vpack.c.b16 %v5600, %v5598
    %v7773 = vpack.c.b16 %v5601, %v5599
    %v7774 = vpack.c.b16 %v5604, %v5602
    %v7775 = vpack.c.b16 %v5605, %v5603
    %v7776 = vpack.c.b16 %v5608, %v5606
    %v7777 = vpack.c.b16 %v5609, %v5607
    %v7778 = vpack.c.b16 %v5612, %v5610
    %v7779 = vpack.c.b16 %v5613, %v5611
    %v7780 = vpack.c.b16 %v5616, %v5614
    %v7781 = vpack.c.b16 %v5617, %v5615
    %v7782 = vpack.c.b16 %v5620, %v5618
    %v7783 = vpack.c.b16 %v5621, %v5619
    %v7784 = vpack.c.b16 %v5624, %v5622
    %v7785 = vpack.c.b16 %v5625, %v5623
    %v7786 = vpack.c.b16 %v5628, %v5626
    %v7787 = vpack.c.b16 %v5629, %v5627
    %v7788 = vpack.c.b16 %v5632, %v5630
    %v7789 = vpack.c.b16 %v5633, %v5631
    %v7790 = vpack.c.b16 %v5636, %v5634
    %v7791 = vpack.c.b16 %v5637, %v5635
    %v7792 = vpack.c.b16 %v5640, %v5638
    %v7793 = vpack.c.b16 %v5641, %v5639
    %v7794 = vpack.c.b16 %v5644, %v5642
    %v7795 = vpack.c.b16 %v5645, %v5643
    %v7796 = vpack.c.b16 %v5648, %v5646
    %v7797 = vpack.c.b16 %v5649, %v5647
    %v7798 = vpack.c.b16 %v5652, %v5650
    %v7799 = vpack.c.b16 %v5653, %v5651
    %v7800 = vpack.c.b16 %v5656, %v5654
    %v7801 = vpack.c.b16 %v5657, %v5655
    %v7802 = vpack.c.b16 %v5660, %v5658
    %v7803 = vpack.c.b16 %v5661, %v5659
    %v7804 = vpack.c.b16 %v5664, %v5662
    %v7805 = vpack.c.b16 %v5665, %v5663
    %v7806 = vpack.c.b16 %v5668, %v5666
    %v7807 = vpack.c.b16 %v5669, %v5667
    %v7808 = vpack.c.b16 %v5672, %v5670
    %v7809 = vpack.c.b16 %v5673, %v5671
    %v7810 = vpack.c.b16 %v5676, %v5674
    %v7811 = vpack.c.b16 %v5677, %v5675
    %v7812 = vpack.c.b16 %v5680, %v5678
    %v7813 = vpack.c.b16 %v5681, %v5679
    %v7814 = vpack.c.b16 %v5684, %v5682
    %v7815 = vpack.c.b16 %v5685, %v5683
    %v7816 = vpack.c.b16 %v5688, %v5686
    %v7817 = vpack.c.b16 %v5689, %v5687
    %v7818 = vpack.c.b16 %v5692, %v5690
    %v7819 = vpack.c.b16 %v5693, %v5691
    %v7820 = vpack.c.b16 %v5696, %v5694
    %v7821 = vpack.c.b16 %v5697, %v5695
    %v7822 = vpack.c.b16 %v5700, %v5698
    %v7823 = vpack.c.b16 %v5701, %v5699
    %v7824 = vpack.c.b16 %v5704, %v5702
    %v7825 = vpack.c.b16 %v5705, %v5703
    %v7826 = vpack.c.b16 %v5708, %v5706
    %v7827 = vpack.c.b16 %v5709, %v5707
    %v7828 = vpack.c.b16 %v5712, %v5710
    %v7829 = vpack.c.b16 %v5713, %v5711
    %v7830 = vpack.c.b16 %v5716, %v5714
    %v7831 = vpack.c.b16 %v5717, %v5715
    %v7832 = vpack.c.b16 %v5720, %v5718
    %v7833 = vpack.c.b16 %v5721, %v5719
    %v7834 = vpack.c.b16 %v5724, %v5722
    %v7835 = vpack.c.b16 %v5725, %v5723
    %v7836 = vpack.c.b16 %v5728, %v5726
    %v7837 = vpack.c.b16 %v5729, %v5727
    %v7838 = vpack.c.b16 %v5732, %v5730
    %v7839 = vpack.c.b16 %v5733, %v5731
    %v7840 = vpack.c.b16 %v5736, %v5734
    %v7841 = vpack.c.b16 %v5737, %v5735
    %v7842 = vpack.c.b16 %v5740, %v5738
    %v7843 = vpack.c.b16 %v5741, %v5739
    %v7844 = vpack.c.b16 %v5744, %v5742
    %v7845 = vpack.c.b16 %v5745, %v5743
    %v7846 = vpack.c.b16 %v5748, %v5746
    %v7847 = vpack.c.b16 %v5749, %v5747
    %v7848 = vpack.c.b16 %v5752, %v5750
    %v7849 = vpack.c.b16 %v5753, %v5751
    %v7850 = vpack.c.b16 %v5756, %v5754
    %v7851 = vpack.c.b16 %v5757, %v5755
    %v7852 = vpack.c.b16 %v5760, %v5758
    %v7853 = vpack.c.b16 %v5761, %v5759
    %v7854 = vpack.c.b16 %v5764, %v5762
    %v7855 = vpack.c.b16 %v5765, %v5763
    %v7856 = vpack.c.b16 %v5768, %v5766
    %v7857 = vpack.c.b16 %v5769, %v5767
    %v7858 = vpack.c.b16 %v5772, %v5770
    %v7859 = vpack.c.b16 %v5773, %v5771
    %v7860 = vpack.c.b16 %v5776, %v5774
    %v7861 = vpack.c.b16 %v5777, %v5775
    %v7862 = vpack.c.b16 %v5780, %v5778
    %v7863 = vpack.c.b16 %v5781, %v5779
    %v7864 = vpack.c.b16 %v5784, %v5782
    %v7865 = vpack.c.b16 %v5785, %v5783
    %v7866 = vpack.c.b16 %v5788, %v5786
    %v7867 = vpack.c.b16 %v5789, %v5787
    %v7868 = vpack.c.b16 %v5792, %v5790
    %v7869 = vpack.c.b16 %v5793, %v5791
    %v7870 = vpack.c.b16 %v5796, %v5794
    %v7871 = vpack.c.b16 %v5797, %v5795
    %v7872 = vpack.c.b16 %v5800, %v5798
    %v7873 = vpack.c.b16 %v5801, %v5799
    %v7874 = vpack.c.b16 %v5804, %v5802
    %v7875 = vpack.c.b16 %v5805, %v5803
    %v7876 = vpack.c.b16 %v5808, %v5806
    %v7877 = vpack.c.b16 %v5809, %v5807
    %v7878 = vpack.c.b16 %v5812, %v5810
    %v7879 = vpack.c.b16 %v5813, %v5811
    %v7880 = vpack.c.b16 %v5816, %v5814
    %v7881 = vpack.c.b16 %v5817, %v5815
    %v7882 = vpack.c.b16 %v5820, %v5818
    %v7883 = vpack.c.b16 %v5821, %v5819
    %v7884 = vpack.c.b16 %v5824, %v5822
    %v7885 = vpack.c.b16 %v5825, %v5823
    %v7886 = vpack.c.b16 %v5828, %v5826
    %v7887 = vpack.c.b16 %v5829, %v5827
    %v7888 = vpack.c.b16 %v5832, %v5830
    %v7889 = vpack.c.b16 %v5833, %v5831
    %v7890 = vpack.c.b16 %v5836, %v5834
    %v7891 = vpack.c.b16 %v5837, %v5835
    %v7892 = vpack.c.b16 %v5840, %v5838
    %v7893 = vpack.c.b16 %v5841, %v5839
    %v7894 = vpack.c.b16 %v5844, %v5842
    %v7895 = vpack.c.b16 %v5845, %v5843
    %v7896 = vpack.c.b16 %v5848, %v5846
    %v7897 = vpack.c.b16 %v5849, %v5847
    %v7898 = vpack.c.b16 %v5852, %v5850
    %v7899 = vpack.c.b16 %v5853, %v5851
    %v7900 = vpack.c.b16 %v5856, %v5854
    %v7901 = vpack.c.b16 %v5857, %v5855
    %v7902 = vpack.c.b16 %v5860, %v5858
    %v7903 = vpack.c.b16 %v5861, %v5859
    %v7904 = vpack.c.b16 %v5864, %v5862
    %v7905 = vpack.c.b16 %v5865, %v5863
    %v7906 = vpack.c.b16 %v5868, %v5866
    %v7907 = vpack.c.b16 %v5869, %v5867
    %v7908 = vpack.c.b16 %v5872, %v5870
    %v7909 = vpack.c.b16 %v5873, %v5871
    %v7910 = vpack.c.b16 %v5876, %v5874
    %v7911 = vpack.c.b16 %v5877, %v5875
    %v7912 = vpack.c.b16 %v5880, %v5878
    %v7913 = vpack.c.b16 %v5881, %v5879
    %v7914 = vpack.c.b16 %v5884, %v5882
    %v7915 = vpack.c.b16 %v5885, %v5883
    %v7916 = vpack.c.b16 %v5888, %v5886
    %v7917 = vpack.c.b16 %v5889, %v5887
    %v7918 = vpack.c.b16 %v5892, %v5890
    %v7919 = vpack.c.b16 %v5893, %v5891
    %v7920 = vpack.c.b16 %v5896, %v5894
    %v7921 = vpack.c.b16 %v5897, %v5895
    %v7922 = vpack.c.b16 %v5900, %v5898
    %v7923 = vpack.c.b16 %v5901, %v5899
    %v7924 = vpack.c.b16 %v5904, %v5902
    %v7925 = vpack.c.b16 %v5905, %v5903
    %v7926 = vpack.c.b16 %v5908, %v5906
    %v7927 = vpack.c.b16 %v5909, %v5907
    %v7928 = vpack.c.b16 %v5912, %v5910
    %v7929 = vpack.c.b16 %v5913, %v5911
    %v7930 = vpack.c.b16 %v5916, %v5914
    %v7931 = vpack.c.b16 %v5917, %v5915
    %v7932 = vpack.c.b16 %v5920, %v5918
    %v7933 = vpack.c.b16 %v5921, %v5919
    %v7934 = vpack.c.b16 %v5924, %v5922
    %v7935 = vpack.c.b16 %v5925, %v5923
    %v7936 = vpack.c.b16 %v5928, %v5926
    %v7937 = vpack.c.b16 %v5929, %v5927
    %v7938 = vpack.c.b16 %v5932, %v5930
    %v7939 = vpack.c.b16 %v5933, %v5931
    %v7940 = vpack.c.b16 %v5936, %v5934
    %v7941 = vpack.c.b16 %v5937, %v5935
    %v7942 = vpack.c.b16 %v5940, %v5938
    %v7943 = vpack.c.b16 %v5941, %v5939
    %v7944 = vpack.c.b16 %v5944, %v5942
    %v7945 = vpack.c.b16 %v5945, %v5943
    %v7946 = vpack.c.b16 %v5948, %v5946
    %v7947 = vpack.c.b16 %v5949, %v5947
    %v7948 = vpack.c.b16 %v5952, %v5950
    %v7949 = vpack.c.b16 %v5953, %v5951
    %v7950 = vpack.c.b16 %v5956, %v5954
    %v7951 = vpack.c.b16 %v5957, %v5955
    %v7952 = vpack.c.b16 %v5960, %v5958
    %v7953 = vpack.c.b16 %v5961, %v5959
    %v7954 = vpack.c.b16 %v5964, %v5962
    %v7955 = vpack.c.b16 %v5965, %v5963
    %v7956 = vpack.c.b16 %v5968, %v5966
    %v7957 = vpack.c.b16 %v5969, %v5967
    %v7958 = vpack.c.b16 %v5972, %v5970
    %v7959 = vpack.c.b16 %v5973, %v5971
    %v7960 = vpack.c.b16 %v5976, %v5974
    %v7961 = vpack.c.b16 %v5977, %v5975
    %v7962 = vpack.c.b16 %v5980, %v5978
    %v7963 = vpack.c.b16 %v5981, %v5979
    %v7964 = vpack.c.b16 %v5984, %v5982
    %v7965 = vpack.c.b16 %v5985, %v5983
    %v7966 = vpack.c.b16 %v5988, %v5986
    %v7967 = vpack.c.b16 %v5989, %v5987
    %v7968 = vpack.c.b16 %v5992, %v5990
    %v7969 = vpack.c.b16 %v5993, %v5991
    %v7970 = vpack.c.b16 %v5996, %v5994
    %v7971 = vpack.c.b16 %v5997, %v5995
    %v7972 = vpack.c.b16 %v6000, %v5998
    %v7973 = vpack.c.b16 %v6001, %v5999
    %v7974 = vpack.c.b16 %v6004, %v6002
    %v7975 = vpack.c.b16 %v6005, %v6003
    %v7976 = vpack.c.b16 %v6008, %v6006
    %v7977 = vpack.c.b16 %v6009, %v6007
    %v7978 = vpack.c.b16 %v6012, %v6010
    %v7979 = vpack.c.b16 %v6013, %v6011
    %v7980 = vpack.c.b16 %v6016, %v6014
    %v7981 = vpack.c.b16 %v6017, %v6015
    %v7982 = vpack.c.b16 %v6020, %v6018
    %v7983 = vpack.c.b16 %v6021, %v6019
    %v7984 = vpack.c.b16 %v6024, %v6022
    %v7985 = vpack.c.b16 %v6025, %v6023
    %v7986 = vpack.c.b16 %v6028, %v6026
    %v7987 = vpack.c.b16 %v6029, %v6027
    %v7988 = vpack.c.b16 %v6032, %v6030
    %v7989 = vpack.c.b16 %v6033, %v6031
    %v7990 = vpack.c.b16 %v6036, %v6034
    %v7991 = vpack.c.b16 %v6037, %v6035
    %v7992 = vpack.c.b16 %v6040, %v6038
    %v7993 = vpack.c.b16 %v6041, %v6039
    %v7994 = vpack.c.b16 %v6044, %v6042
    %v7995 = vpack.c.b16 %v6045, %v6043
    %v7996 = vpack.c.b16 %v6048, %v6046
    %v7997 = vpack.c.b16 %v6049, %v6047
    %v7998 = vpack.c.b16 %v6052, %v6050
    %v7999 = vpack.c.b16 %v6053, %v6051
    %v8000 = vpack.c.b16 %v6056, %v6054
    %v8001 = vpack.c.b16 %v6057, %v6055
    %v8002 = vpack.c.b16 %v6060, %v6058
    %v8003 = vpack.c.b16 %v6061, %v6059
    %v8004 = vpack.c.b16 %v6064, %v6062
    %v8005 = vpack.c.b16 %v6065, %v6063
    %v8006 = vpack.c.b16 %v6068, %v6066
    %v8007 = vpack.c.b16 %v6069, %v6067
    %v8008 = vpack.c.b16 %v6072, %v6070
    %v8009 = vpack.c.b16 %v6073, %v6071
    %v8010 = vpack.c.b16 %v6076, %v6074
    %v8011 = vpack.c.b16 %v6077, %v6075
    %v8012 = vpack.c.b16 %v6080, %v6078
    %v8013 = vpack.c.b16 %v6081, %v6079
    %v8014 = vpack.c.b16 %v6084, %v6082
    %v8015 = vpack.c.b16 %v6085, %v6083
    %v8016 = vpack.c.b16 %v6088, %v6086
    %v8017 = vpack.c.b16 %v6089, %v6087
    %v8018 = vpack.c.b16 %v6092, %v6090
    %v8019 = vpack.c.b16 %v6093, %v6091
    %v8020 = vpack.c.b16 %v6096, %v6094
    %v8021 = vpack.c.b16 %v6097, %v6095
    %v8022 = vpack.c.b16 %v6100, %v6098
    %v8023 = vpack.c.b16 %v6101, %v6099
    %v8024 = vpack.c.b16 %v6104, %v6102
    %v8025 = vpack.c.b16 %v6105, %v6103
    %v8026 = vpack.c.b16 %v6108, %v6106
    %v8027 = vpack.c.b16 %v6109, %v6107
    %v8028 = vpack.c.b16 %v6112, %v6110
    %v8029 = vpack.c.b16 %v6113, %v6111
    %v8030 = vpack.c.b16 %v6116, %v6114
    %v8031 = vpack.c.b16 %v6117, %v6115
    %v8032 = vpack.c.b16 %v6120, %v6118
    %v8033 = vpack.c.b16 %v6121, %v6119
    %v8034 = vpack.c.b16 %v6124, %v6122
    %v8035 = vpack.c.b16 %v6125, %v6123
    %v8036 = vpack.c.b16 %v6128, %v6126
    %v8037 = vpack.c.b16 %v6129, %v6127
    %v8038 = vpack.c.b16 %v6132, %v6130
    %v8039 = vpack.c.b16 %v6133, %v6131
    %v8040 = vpack.c.b16 %v6136, %v6134
    %v8041 = vpack.c.b16 %v6137, %v6135
    %v8042 = vpack.c.b16 %v6140, %v6138
    %v8043 = vpack.c.b16 %v6141, %v6139
    %v8044 = vpack.c.b16 %v6144, %v6142
    %v8045 = vpack.c.b16 %v6145, %v6143
    %v8046 = vpack.c.b16 %v6148, %v6146
    %v8047 = vpack.c.b16 %v6149, %v6147
    %v8048 = vpack.c.b16 %v6152, %v6150
    %v8049 = vpack.c.b16 %v6153, %v6151
    %v8050 = vpack.c.b16 %v6156, %v6154
    %v8051 = vpack.c.b16 %v6157, %v6155
    %v8052 = vpack.c.b16 %v6160, %v6158
    %v8053 = vpack.c.b16 %v6161, %v6159
    %v8054 = vpack.c.b16 %v6164, %v6162
    %v8055 = vpack.c.b16 %v6165, %v6163
    %v8056 = vpack.c.b16 %v6168, %v6166
    %v8057 = vpack.c.b16 %v6169, %v6167
    %v8058 = vpack.c.b16 %v6172, %v6170
    %v8059 = vpack.c.b16 %v6173, %v6171
    %v8060 = vpack.c.b16 %v6176, %v6174
    %v8061 = vpack.c.b16 %v6177, %v6175
    %v8062 = vpack.c.b16 %v6180, %v6178
    %v8063 = vpack.c.b16 %v6181, %v6179
    %v8064 = vpack.c.b16 %v6184, %v6182
    %v8065 = vpack.c.b16 %v6185, %v6183
    %v8066 = vpack.c.b16 %v6188, %v6186
    %v8067 = vpack.c.b16 %v6189, %v6187
    %v8068 = vpack.c.b16 %v6192, %v6190
    %v8069 = vpack.c.b16 %v6193, %v6191
    %v8070 = vpack.c.b16 %v6196, %v6194
    %v8071 = vpack.c.b16 %v6197, %v6195
    %v8072 = vpack.c.b16 %v6200, %v6198
    %v8073 = vpack.c.b16 %v6201, %v6199
    %v8074 = vpack.c.b16 %v6204, %v6202
    %v8075 = vpack.c.b16 %v6205, %v6203
    %v8076 = vpack.c.b16 %v6208, %v6206
    %v8077 = vpack.c.b16 %v6209, %v6207
    %v8078 = vpack.c.b16 %v6212, %v6210
    %v8079 = vpack.c.b16 %v6213, %v6211
    %v8080 = vpack.c.b16 %v6216, %v6214
    %v8081 = vpack.c.b16 %v6217, %v6215
    %v8082 = vpack.c.b16 %v6220, %v6218
    %v8083 = vpack.c.b16 %v6221, %v6219
    %v8084 = vpack.c.b16 %v6224, %v6222
    %v8085 = vpack.c.b16 %v6225, %v6223
    %v8086 = vpack.c.b16 %v6228, %v6226
    %v8087 = vpack.c.b16 %v6229, %v6227
    %v8088 = vpack.c.b16 %v6232, %v6230
    %v8089 = vpack.c.b16 %v6233, %v6231
    %v8090 = vpack.c.b16 %v6236, %v6234
    %v8091 = vpack.c.b16 %v6237, %v6235
    %v8092 = vpack.c.b16 %v6240, %v6238
    %v8093 = vpack.c.b16 %v6241, %v6239
    %v8094 = vpack.c.b16 %v6244, %v6242
    %v8095 = vpack.c.b16 %v6245, %v6243
    %v8096 = vpack.c.b16 %v6248, %v6246
    %v8097 = vpack.c.b16 %v6249, %v6247
    %v8098 = vpack.c.b16 %v6252, %v6250
    %v8099 = vpack.c.b16 %v6253, %v6251
    %v8100 = vpack.c.b16 %v6256, %v6254
    %v8101 = vpack.c.b16 %v6257, %v6255
    %v8102 = vpack.c.b16 %v6260, %v6258
    %v8103 = vpack.c.b16 %v6261, %v6259
    %v8104 = vpack.c.b16 %v6264, %v6262
    %v8105 = vpack.c.b16 %v6265, %v6263
    %v8106 = vpack.c.b16 %v6268, %v6266
    %v8107 = vpack.c.b16 %v6269, %v6267
    %v8108 = vpack.c.b16 %v6272, %v6270
    %v8109 = vpack.c.b16 %v6273, %v6271
    %v8110 = vpack.c.b16 %v6276, %v6274
    %v8111 = vpack.c.b16 %v6277, %v6275
    %v8112 = vpack.c.b16 %v6280, %v6278
    %v8113 = vpack.c.b16 %v6281, %v6279
    %v8114 = vpack.c.b16 %v6284, %v6282
    %v8115 = vpack.c.b16 %v6285, %v6283
    %v8116 = vpack.c.b16 %v6288, %v6286
    %v8117 = vpack.c.b16 %v6289, %v6287
    %v8118 = vpack.c.b16 %v6292, %v6290
    %v8119 = vpack.c.b16 %v6293, %v6291
    %v8120 = vpack.c.b16 %v6296, %v6294
    %v8121 = vpack.c.b16 %v6297, %v6295
    %v8122 = vpack.c.b16 %v6300, %v6298
    %v8123 = vpack.c.b16 %v6301, %v6299
    %v8124 = vpack.c.b16 %v6304, %v6302
    %v8125 = vpack.c.b16 %v6305, %v6303
    %v8126 = vpack.c.b16 %v6308, %v6306
    %v8127 = vpack.c.b16 %v6309, %v6307
    %v8128 = vpack.c.b16 %v6312, %v6310
    %v8129 = vpack.c.b16 %v6313, %v6311
    %v8130 = vpack.c.b16 %v6316, %v6314
    %v8131 = vpack.c.b16 %v6317, %v6315
    %v8132 = vpack.c.b16 %v6320, %v6318
    %v8133 = vpack.c.b16 %v6321, %v6319
    %v8134 = vpack.c.b16 %v6324, %v6322
    %v8135 = vpack.c.b16 %v6325, %v6323
    %v8136 = vpack.c.b16 %v6328, %v6326
    %v8137 = vpack.c.b16 %v6329, %v6327
    %v8138 = vpack.c.b16 %v6332, %v6330
    %v8139 = vpack.c.b16 %v6333, %v6331
    %v8140 = vpack.c.b16 %v6336, %v6334
    %v8141 = vpack.c.b16 %v6337, %v6335
    %v8142 = vpack.c.b16 %v6340, %v6338
    %v8143 = vpack.c.b16 %v6341, %v6339
    %v8144 = vpack.c.b16 %v6344, %v6342
    %v8145 = vpack.c.b16 %v6345, %v6343
    %v8146 = vpack.c.b16 %v6348, %v6346
    %v8147 = vpack.c.b16 %v6349, %v6347
    %v8148 = vpack.c.b16 %v6352, %v6350
    %v8149 = vpack.c.b16 %v6353, %v6351
    %v8150 = vpack.c.b16 %v6356, %v6354
    %v8151 = vpack.c.b16 %v6357, %v6355
    %v8152 = vpack.c.b16 %v6360, %v6358
    %v8153 = vpack.c.b16 %v6361, %v6359
    %v8154 = vpack.c.b16 %v6364, %v6362
    %v8155 = vpack.c.b16 %v6365, %v6363
    %v8156 = vpack.c.b16 %v6368, %v6366
    %v8157 = vpack.c.b16 %v6369, %v6367
    %v8158 = vpack.c.b16 %v6372, %v6370
    %v8159 = vpack.c.b16 %v6373, %v6371
    %v8160 = vpack.c.b16 %v6376, %v6374
    %v8161 = vpack.c.b16 %v6377, %v6375
    %v8162 = vpack.c.b16 %v6380, %v6378
    %v8163 = vpack.c.b16 %v6381, %v6379
    %v8164 = vpack.c.b16 %v6384, %v6382
    %v8165 = vpack.c.b16 %v6385, %v6383
    %v8166 = vpack.c.b16 %v6388, %v6386
    %v8167 = vpack.c.b16 %v6389, %v6387
    %v8168 = vpack.c.b16 %v6392, %v6390
    %v8169 = vpack.c.b16 %v6393, %v6391
    %v8170 = vpack.c.b16 %v6396, %v6394
    %v8171 = vpack.c.b16 %v6397, %v6395
    %v8172 = vpack.c.b16 %v6400, %v6398
    %v8173 = vpack.c.b16 %v6401, %v6399
    %v8174 = vpack.c.b16 %v6404, %v6402
    %v8175 = vpack.c.b16 %v6405, %v6403
    %v8176 = vpack.c.b16 %v6408, %v6406
    %v8177 = vpack.c.b16 %v6409, %v6407
    %v8178 = vpack.c.b16 %v6412, %v6410
    %v8179 = vpack.c.b16 %v6413, %v6411
    %v8180 = vpack.c.b16 %v6416, %v6414
    %v8181 = vpack.c.b16 %v6417, %v6415
    %v8182 = vpack.c.b16 %v6420, %v6418
    %v8183 = vpack.c.b16 %v6421, %v6419
    %v8184 = vpack.c.b16 %v6424, %v6422
    %v8185 = vpack.c.b16 %v6425, %v6423
    %v8186 = vpack.c.b16 %v6428, %v6426
    %v8187 = vpack.c.b16 %v6429, %v6427
    %v8188 = vpack.c.b16 %v6432, %v6430
    %v8189 = vpack.c.b16 %v6433, %v6431
    %v8190 = vpack.c.b16 %v6436, %v6434
    %v8191 = vpack.c.b16 %v6437, %v6435
    %v8192 = vpack.c.b16 %v6440, %v6438
    %v8193 = vpack.c.b16 %v6441, %v6439
    %v8194 = vpack.c.b16 %v6444, %v6442
    %v8195 = vpack.c.b16 %v6445, %v6443
    %v8196 = vpack.c.b16 %v6448, %v6446
    %v8197 = vpack.c.b16 %v6449, %v6447
    %v8198 = vpack.c.b16 %v6452, %v6450
    %v8199 = vpack.c.b16 %v6453, %v6451
    %v8200 = vpack.c.b16 %v6456, %v6454
    %v8201 = vpack.c.b16 %v6457, %v6455
    %v8202 = vpack.c.b16 %v6460, %v6458
    %v8203 = vpack.c.b16 %v6461, %v6459
    %v8204 = vpack.c.b16 %v6464, %v6462
    %v8205 = vpack.c.b16 %v6465, %v6463
    %v8206 = vpack.c.b16 %v6468, %v6466
    %v8207 = vpack.c.b16 %v6469, %v6467
    %v8208 = vpack.c.b16 %v6472, %v6470
    %v8209 = vpack.c.b16 %v6473, %v6471
    %v8210 = vpack.c.b16 %v6476, %v6474
    %v8211 = vpack.c.b16 %v6477, %v6475
    %v8212 = vpack.c.b16 %v6480, %v6478
    %v8213 = vpack.c.b16 %v6481, %v6479
    %v8214 = vpack.c.b16 %v6484, %v6482
    %v8215 = vpack.c.b16 %v6485, %v6483
    %v8216 = vpack.c.b16 %v6488, %v6486
    %v8217 = vpack.c.b16 %v6489, %v6487
    %v8218 = vpack.c.b16 %v6492, %v6490
    %v8219 = vpack.c.b16 %v6493, %v6491
    %v8220 = vpack.c.b16 %v6496, %v6494
    %v8221 = vpack.c.b16 %v6497, %v6495
    %v8222 = vpack.c.b16 %v6500, %v6498
    %v8223 = vpack.c.b16 %v6501, %v6499
    %v8224 = vpack.c.b16 %v6504, %v6502
    %v8225 = vpack.c.b16 %v6505, %v6503
    %v8226 = vpack.c.b16 %v6508, %v6506
    %v8227 = vpack.c.b16 %v6509, %v6507
    %v8228 = vpack.c.b16 %v6512, %v6510
    %v8229 = vpack.c.b16 %v6513, %v6511
    %v8230 = vpack.c.b16 %v6516, %v6514
    %v8231 = vpack.c.b16 %v6517, %v6515
    %v8232 = vpack.c.b16 %v6520, %v6518
    %v8233 = vpack.c.b16 %v6521, %v6519
    %v8234 = vpack.c.b16 %v6524, %v6522
    %v8235 = vpack.c.b16 %v6525, %v6523
    %v8236 = vpack.c.b16 %v6528, %v6526
    %v8237 = vpack.c.b16 %v6529, %v6527
    %v8238 = vpack.c.b16 %v6532, %v6530
    %v8239 = vpack.c.b16 %v6533, %v6531
    %v8240 = vpack.c.b16 %v6536, %v6534
    %v8241 = vpack.c.b16 %v6537, %v6535
    %v8242 = vpack.c.b16 %v6540, %v6538
    %v8243 = vpack.c.b16 %v6541, %v6539
    %v8244 = vpack.c.b16 %v6544, %v6542
    %v8245 = vpack.c.b16 %v6545, %v6543
    %v8246 = vpack.c.b16 %v6548, %v6546
    %v8247 = vpack.c.b16 %v6549, %v6547
    %v8248 = vpack.c.b16 %v6552, %v6550
    %v8249 = vpack.c.b16 %v6553, %v6551
    %v8250 = vpack.c.b16 %v6556, %v6554
    %v8251 = vpack.c.b16 %v6557, %v6555
    %v8252 = vpack.c.b16 %v6560, %v6558
    %v8253 = vpack.c.b16 %v6561, %v6559
    %v8254 = vpack.c.b16 %v6564, %v6562
    %v8255 = vpack.c.b16 %v6565, %v6563
    %v8256 = vpack.c.b16 %v6568, %v6566
    %v8257 = vpack.c.b16 %v6569, %v6567
    %v8258 = vpack.c.b16 %v6572, %v6570
    %v8259 = vpack.c.b16 %v6573, %v6571
    %v8260 = vpack.c.b16 %v6576, %v6574
    %v8261 = vpack.c.b16 %v6577, %v6575
    %v8262 = vpack.c.b16 %v6580, %v6578
    %v8263 = vpack.c.b16 %v6581, %v6579
    %v8264 = vpack.c.b16 %v6584, %v6582
    %v8265 = vpack.c.b16 %v6585, %v6583
    %v8266 = vpack.c.b16 %v6588, %v6586
    %v8267 = vpack.c.b16 %v6589, %v6587
    %v8268 = vpack.c.b16 %v6592, %v6590
    %v8269 = vpack.c.b16 %v6593, %v6591
    %v8270 = vpack.c.b16 %v6596, %v6594
    %v8271 = vpack.c.b16 %v6597, %v6595
    %v8272 = vpack.c.b16 %v6600, %v6598
    %v8273 = vpack.c.b16 %v6601, %v6599
    %v8274 = vpack.c.b16 %v6604, %v6602
    %v8275 = vpack.c.b16 %v6605, %v6603
    %v8276 = vpack.c.b16 %v6608, %v6606
    %v8277 = vpack.c.b16 %v6609, %v6607
    %v8278 = vpack.c.b16 %v6612, %v6610
    %v8279 = vpack.c.b16 %v6613, %v6611
    %v8280 = vpack.c.b16 %v6616, %v6614
    %v8281 = vpack.c.b16 %v6617, %v6615
    %v8282 = vpack.c.b16 %v6620, %v6618
    %v8283 = vpack.c.b16 %v6621, %v6619
    %v8284 = vpack.c.b16 %v6624, %v6622
    %v8285 = vpack.c.b16 %v6625, %v6623
    %v8286 = vpack.c.b16 %v6628, %v6626
    %v8287 = vpack.c.b16 %v6629, %v6627
    %v8288 = vpack.c.b16 %v6632, %v6630
    %v8289 = vpack.c.b16 %v6633, %v6631
    %v8290 = vpack.c.b16 %v6636, %v6634
    %v8291 = vpack.c.b16 %v6637, %v6635
    %v8292 = vpack.c.b16 %v6640, %v6638
    %v8293 = vpack.c.b16 %v6641, %v6639
    %v8294 = vpack.c.b16 %v6644, %v6642
    %v8295 = vpack.c.b16 %v6645, %v6643
    %v8296 = vpack.c.b16 %v6648, %v6646
    %v8297 = vpack.c.b16 %v6649, %v6647
    %v8298 = vpack.c.b16 %v6652, %v6650
    %v8299 = vpack.c.b16 %v6653, %v6651
    %v8300 = vpack.c.b16 %v6656, %v6654
    %v8301 = vpack.c.b16 %v6657, %v6655
    %v8302 = vpack.c.b16 %v6660, %v6658
    %v8303 = vpack.c.b16 %v6661, %v6659
    %v8304 = vpack.c.b16 %v6664, %v6662
    %v8305 = vpack.c.b16 %v6665, %v6663
    %v8306 = vpack.c.b16 %v6668, %v6666
    %v8307 = vpack.c.b16 %v6669, %v6667
    %v8308 = vpack.c.b16 %v6672, %v6670
    %v8309 = vpack.c.b16 %v6673, %v6671
    %v8310 = vpack.c.b16 %v6676, %v6674
    %v8311 = vpack.c.b16 %v6677, %v6675
    %v8312 = vpack.c.b16 %v6680, %v6678
    %v8313 = vpack.c.b16 %v6681, %v6679
    %v8314 = vpack.c.b16 %v6684, %v6682
    %v8315 = vpack.c.b16 %v6685, %v6683
    %v8316 = vpack.c.b16 %v6688, %v6686
    %v8317 = vpack.c.b16 %v6689, %v6687
    %v8318 = vpack.c.b16 %v6692, %v6690
    %v8319 = vpack.c.b16 %v6693, %v6691
    %v8320 = vpack.c.b16 %v6696, %v6694
    %v8321 = vpack.c.b16 %v6697, %v6695
    %v8322 = vpack.c.b16 %v6700, %v6698
    %v8323 = vpack.c.b16 %v6701, %v6699
    %v8324 = vpack.c.b16 %v6704, %v6702
    %v8325 = vpack.c.b16 %v6705, %v6703
    %v8326 = vpack.c.b16 %v6708, %v6706
    %v8327 = vpack.c.b16 %v6709, %v6707
    %v8328 = vpack.c.b16 %v6712, %v6710
    %v8329 = vpack.c.b16 %v6713, %v6711
    %v8330 = vpack.c.b16 %v6716, %v6714
    %v8331 = vpack.c.b16 %v6717, %v6715
    %v8332 = vpack.c.b16 %v6720, %v6718
    %v8333 = vpack.c.b16 %v6721, %v6719
    %v8334 = vpack.c.b16 %v6724, %v6722
    %v8335 = vpack.c.b16 %v6725, %v6723
    %v8336 = vpack.c.b16 %v6728, %v6726
    %v8337 = vpack.c.b16 %v6729, %v6727
    %v8338 = vpack.c.b16 %v6732, %v6730
    %v8339 = vpack.c.b16 %v6733, %v6731
    %v8340 = vpack.c.b16 %v6736, %v6734
    %v8341 = vpack.c.b16 %v6737, %v6735
    %v8342 = vpack.c.b16 %v6740, %v6738
    %v8343 = vpack.c.b16 %v6741, %v6739
    %v8344 = vpack.c.b16 %v6744, %v6742
    %v8345 = vpack.c.b16 %v6745, %v6743
    %v8346 = vpack.c.b16 %v6748, %v6746
    %v8347 = vpack.c.b16 %v6749, %v6747
    %v8348 = vpack.c.b16 %v6752, %v6750
    %v8349 = vpack.c.b16 %v6753, %v6751
    %v8350 = vpack.c.b16 %v6756, %v6754
    %v8351 = vpack.c.b16 %v6757, %v6755
    %v8352 = vpack.c.b16 %v6760, %v6758
    %v8353 = vpack.c.b16 %v6761, %v6759
    %v8354 = vpack.c.b16 %v6764, %v6762
    %v8355 = vpack.c.b16 %v6765, %v6763
    %v8356 = vpack.c.b16 %v6768, %v6766
    %v8357 = vpack.c.b16 %v6769, %v6767
    %v8358 = vpack.c.b16 %v6772, %v6770
    %v8359 = vpack.c.b16 %v6773, %v6771
    %v8360 = vpack.c.b16 %v6776, %v6774
    %v8361 = vpack.c.b16 %v6777, %v6775
    %v8362 = vpack.c.b16 %v6780, %v6778
    %v8363 = vpack.c.b16 %v6781, %v6779
    %v8364 = vpack.c.b16 %v6784, %v6782
    %v8365 = vpack.c.b16 %v6785, %v6783
    %v8366 = vpack.c.b16 %v6788, %v6786
    %v8367 = vpack.c.b16 %v6789, %v6787
    %v8368 = vpack.c.b16 %v6792, %v6790
    %v8369 = vpack.c.b16 %v6793, %v6791
    %v8370 = vpack.c.b16 %v6796, %v6794
    %v8371 = vpack.c.b16 %v6797, %v6795
    %v8372 = vpack.c.b16 %v6800, %v6798
    %v8373 = vpack.c.b16 %v6801, %v6799
    %v8374 = vpack.c.b16 %v6804, %v6802
    %v8375 = vpack.c.b16 %v6805, %v6803
    %v8376 = vpack.c.b16 %v6808, %v6806
    %v8377 = vpack.c.b16 %v6809, %v6807
    %v8378 = vpack.c.b16 %v6812, %v6810
    %v8379 = vpack.c.b16 %v6813, %v6811
    %v8380 = vpack.c.b16 %v6816, %v6814
    %v8381 = vpack.c.b16 %v6817, %v6815
    %v8382 = vpack.c.b16 %v6820, %v6818
    %v8383 = vpack.c.b16 %v6821, %v6819
    %v8384 = vpack.c.b16 %v6824, %v6822
    %v8385 = vpack.c.b16 %v6825, %v6823
    %v8386 = vpack.c.b16 %v6828, %v6826
    %v8387 = vpack.c.b16 %v6829, %v6827
    %v8388 = vpack.c.b16 %v6832, %v6830
    %v8389 = vpack.c.b16 %v6833, %v6831
    %v8390 = vpack.c.b16 %v6836, %v6834
    %v8391 = vpack.c.b16 %v6837, %v6835
    %v8392 = vpack.c.b16 %v6840, %v6838
    %v8393 = vpack.c.b16 %v6841, %v6839
    %v8394 = vpack.c.b16 %v6844, %v6842
    %v8395 = vpack.c.b16 %v6845, %v6843
    %v8396 = vpack.c.b16 %v6848, %v6846
    %v8397 = vpack.c.b16 %v6849, %v6847
    %v8398 = vpack.c.b16 %v6852, %v6850
    %v8399 = vpack.c.b16 %v6853, %v6851
    %v8400 = vpack.c.b16 %v6856, %v6854
    %v8401 = vpack.c.b16 %v6857, %v6855
    %v8402 = vpack.c.b16 %v6860, %v6858
    %v8403 = vpack.c.b16 %v6861, %v6859
    %v8404 = vpack.c.b16 %v6864, %v6862
    %v8405 = vpack.c.b16 %v6865, %v6863
    %v8406 = vpack.c.b16 %v6868, %v6866
    %v8407 = vpack.c.b16 %v6869, %v6867
    %v8408 = vpack.c.b16 %v6872, %v6870
    %v8409 = vpack.c.b16 %v6873, %v6871
    %9946 = vmatprep.subr.bf16.mxu0 %v6875
    %9947 = vmatpush1.bf16.msra.mxu0 %v6874
    %9948 = vmatprep.subr.bf16.mxu0 %v6877
    %9949 = vmatpush1.bf16.msra.mxu0 %v6876
    %9950 = vmatprep.subr.bf16.mxu0 %v6879
    %9951 = vmatpush1.bf16.msra.mxu0 %v6878
    %9952 = vmatprep.subr.bf16.mxu0 %v6881
    %9953 = vmatpush1.bf16.msra.mxu0 %v6880
    %9954 = vmatprep.subr.bf16.mxu0 %v6883
    %9955 = vmatpush1.bf16.msra.mxu0 %v6882
    %9956 = vmatprep.subr.bf16.mxu0 %v6885
    %9957 = vmatpush1.bf16.msra.mxu0 %v6884
    %9958 = vmatprep.subr.bf16.mxu0 %v6887
    %9959 = vmatpush1.bf16.msra.mxu0 %v6886
    %9960 = vmatprep.subr.bf16.mxu0 %v6889
    %9961 = vmatpush1.bf16.msra.mxu0 %v6888
    %9962 = vmatprep.subr.bf16.mxu0 %v6891
    %9963 = vmatpush1.bf16.msra.mxu0 %v6890
    %9964 = vmatprep.subr.bf16.mxu0 %v6893
    %9965 = vmatpush1.bf16.msra.mxu0 %v6892
    %9966 = vmatprep.subr.bf16.mxu0 %v6895
    %9967 = vmatpush1.bf16.msra.mxu0 %v6894
    %9968 = vmatprep.subr.bf16.mxu0 %v6897
    %9969 = vmatpush1.bf16.msra.mxu0 %v6896
    %9970 = vmatprep.subr.bf16.mxu0 %v6899
    %9971 = vmatpush1.bf16.msra.mxu0 %v6898
    %9972 = vmatprep.subr.bf16.mxu0 %v6901
    %9973 = vmatpush1.bf16.msra.mxu0 %v6900
    %9974 = vmatprep.subr.bf16.mxu0 %v6903
    %9975 = vmatpush1.bf16.msra.mxu0 %v6902
    %9976 = vmatprep.subr.bf16.mxu0 %v6905
    %9977 = vmatpush1.bf16.msra.mxu0 %v6904
    %9978 = vmatprep.mubr.bf16.mxu0 %v623
    %9979 = vmatmul.mubr.bf16.gmra.mrb[0].mxu0 %v622
    %v9980 = vpop.f32.mrb[0].mxu0
    %v9981 = vadd.f32 %v2259, %v9980
    %v9982 = vpop.f32.mrb[0].mxu0
    %v9983 = vadd.f32 %v2263, %v9982
    %v9984 = vpop.f32.mrb[0].mxu0
    %v9985 = vpop.f32.mrb[0].mxu0
    %9986 = vdwg.mxu0
    %9987 = vmatprep.subr.bf16.mxu0 %v6907
    %9988 = vmatpush1.bf16.msra.mxu0 %v6906
    %9989 = vmatprep.subr.bf16.mxu0 %v6909
    %9990 = vmatpush1.bf16.msra.mxu0 %v6908
    %9991 = vmatprep.subr.bf16.mxu0 %v6911
    %9992 = vmatpush1.bf16.msra.mxu0 %v6910
    %9993 = vmatprep.subr.bf16.mxu0 %v6913
    %9994 = vmatpush1.bf16.msra.mxu0 %v6912
    %9995 = vmatprep.subr.bf16.mxu0 %v6915
    %9996 = vmatpush1.bf16.msra.mxu0 %v6914
    %9997 = vmatprep.subr.bf16.mxu0 %v6917
    %9998 = vmatpush1.bf16.msra.mxu0 %v6916
    %9999 = vmatprep.subr.bf16.mxu0 %v6919
    %10000 = vmatpush1.bf16.msra.mxu0 %v6918
    %10001 = vmatprep.subr.bf16.mxu0 %v6921
    %10002 = vmatpush1.bf16.msra.mxu0 %v6920
    %10003 = vmatprep.subr.bf16.mxu0 %v6923
    %10004 = vmatpush1.bf16.msra.mxu0 %v6922
    %10005 = vmatprep.subr.bf16.mxu0 %v6925
    %10006 = vmatpush1.bf16.msra.mxu0 %v6924
    %10007 = vmatprep.subr.bf16.mxu0 %v6927
    %10008 = vmatpush1.bf16.msra.mxu0 %v6926
    %10009 = vmatprep.subr.bf16.mxu0 %v6929
    %10010 = vmatpush1.bf16.msra.mxu0 %v6928
    %10011 = vmatprep.subr.bf16.mxu0 %v6931
    %10012 = vmatpush1.bf16.msra.mxu0 %v6930
    %10013 = vmatprep.subr.bf16.mxu0 %v6933
    %10014 = vmatpush1.bf16.msra.mxu0 %v6932
    %10015 = vmatprep.subr.bf16.mxu0 %v6935
    %10016 = vmatpush1.bf16.msra.mxu0 %v6934
    %10017 = vmatprep.subr.bf16.mxu0 %v6937
    %10018 = vmatpush1.bf16.msra.mxu0 %v6936
    %10019 = vmatprep.mubr.bf16.mxu0 %v625
    %10020 = vmatmul.mubr.bf16.gmra.mrb[0].mxu0 %v624
    %v10021 = vpop.f32.mrb[0].mxu0
    %v10022 = vadd.f32 %v9981, %v10021
    %v10023 = vpop.f32.mrb[0].mxu0
    %v10024 = vadd.f32 %v9983, %v10023
    %v10025 = vpop.f32.mrb[0].mxu0
    %v10026 = vpop.f32.mrb[0].mxu0
    %10027 = vdwg.mxu0
    %10028 = vmatprep.subr.bf16.mxu0 %v6939
    %10029 = vmatpush1.bf16.msra.mxu0 %v6938
    %10030 = vmatprep.subr.bf16.mxu0 %v6941
    %10031 = vmatpush1.bf16.msra.mxu0 %v6940
    %10032 = vmatprep.subr.bf16.mxu0 %v6943
    %10033 = vmatpush1.bf16.msra.mxu0 %v6942
    %10034 = vmatprep.subr.bf16.mxu0 %v6945
    %10035 = vmatpush1.bf16.msra.mxu0 %v6944
    %10036 = vmatprep.subr.bf16.mxu0 %v6947
    %10037 = vmatpush1.bf16.msra.mxu0 %v6946
    %10038 = vmatprep.subr.bf16.mxu0 %v6949
    %10039 = vmatpush1.bf16.msra.mxu0 %v6948
    %10040 = vmatprep.subr.bf16.mxu0 %v6951
    %10041 = vmatpush1.bf16.msra.mxu0 %v6950
    %10042 = vmatprep.subr.bf16.mxu0 %v6953
    %10043 = vmatpush1.bf16.msra.mxu0 %v6952
    %10044 = vmatprep.subr.bf16.mxu0 %v6955
    %10045 = vmatpush1.bf16.msra.mxu0 %v6954
    %10046 = vmatprep.subr.bf16.mxu0 %v6957
    %10047 = vmatpush1.bf16.msra.mxu0 %v6956
    %10048 = vmatprep.subr.bf16.mxu0 %v6959
    %10049 = vmatpush1.bf16.msra.mxu0 %v6958
    %10050 = vmatprep.subr.bf16.mxu0 %v6961
    %10051 = vmatpush1.bf16.msra.mxu0 %v6960
    %10052 = vmatprep.subr.bf16.mxu0 %v6963
    %10053 = vmatpush1.bf16.msra.mxu0 %v6962
    %10054 = vmatprep.subr.bf16.mxu0 %v6965
    %10055 = vmatpush1.bf16.msra.mxu0 %v6964
    %10056 = vmatprep.subr.bf16.mxu0 %v6967
    %10057 = vmatpush1.bf16.msra.mxu0 %v6966
    %10058 = vmatprep.subr.bf16.mxu0 %v6969
    %10059 = vmatpush1.bf16.msra.mxu0 %v6968
    %10060 = vmatprep.mubr.bf16.mxu0 %v627
    %10061 = vmatmul.mubr.bf16.gmra.mrb[0].mxu0 %v626
    %v10062 = vpop.f32.mrb[0].mxu0
    %v10063 = vadd.f32 %v10022, %v10062
    %v10064 = vpop.f32.mrb[0].mxu0
    %v10065 = vadd.f32 %v10024, %v10064
    %v10066 = vpop.f32.mrb[0].mxu0
    %v10067 = vpop.f32.mrb[0].mxu0
    %10068 = vdwg.mxu0
    %10069 = vmatprep.subr.bf16.mxu0 %v6971
    %10070 = vmatpush1.bf16.msra.mxu0 %v6970
    %10071 = vmatprep.subr.bf16.mxu0 %v6973
    %10072 = vmatpush1.bf16.msra.mxu0 %v6972
    %10073 = vmatprep.subr.bf16.mxu0 %v6975
    %10074 = vmatpush1.bf16.msra.mxu0 %v6974
    %10075 = vmatprep.subr.bf16.mxu0 %v6977
    %10076 = vmatpush1.bf16.msra.mxu0 %v6976
    %10077 = vmatprep.subr.bf16.mxu0 %v6979
    %10078 = vmatpush1.bf16.msra.mxu0 %v6978
    %10079 = vmatprep.subr.bf16.mxu0 %v6981
    %10080 = vmatpush1.bf16.msra.mxu0 %v6980
    %10081 = vmatprep.subr.bf16.mxu0 %v6983
    %10082 = vmatpush1.bf16.msra.mxu0 %v6982
    %10083 = vmatprep.subr.bf16.mxu0 %v6985
    %10084 = vmatpush1.bf16.msra.mxu0 %v6984
    %10085 = vmatprep.subr.bf16.mxu0 %v6987
    %10086 = vmatpush1.bf16.msra.mxu0 %v6986
    %10087 = vmatprep.subr.bf16.mxu0 %v6989
    %10088 = vmatpush1.bf16.msra.mxu0 %v6988
    %10089 = vmatprep.subr.bf16.mxu0 %v6991
    %10090 = vmatpush1.bf16.msra.mxu0 %v6990
    %10091 = vmatprep.subr.bf16.mxu0 %v6993
    %10092 = vmatpush1.bf16.msra.mxu0 %v6992
    %10093 = vmatprep.subr.bf16.mxu0 %v6995
    %10094 = vmatpush1.bf16.msra.mxu0 %v6994
    %10095 = vmatprep.subr.bf16.mxu0 %v6997
    %10096 = vmatpush1.bf16.msra.mxu0 %v6996
    %10097 = vmatprep.subr.bf16.mxu0 %v6999
    %10098 = vmatpush1.bf16.msra.mxu0 %v6998
    %10099 = vmatprep.subr.bf16.mxu0 %v7001
    %10100 = vmatpush1.bf16.msra.mxu0 %v7000
    %10101 = vmatprep.mubr.bf16.mxu0 %v629
    %10102 = vmatmul.mubr.bf16.gmra.mrb[0].mxu0 %v628
    %v10103 = vpop.f32.mrb[0].mxu0
    %v10104 = vadd.f32 %v10063, %v10103
    %v10105 = vpop.f32.mrb[0].mxu0
    %v10106 = vadd.f32 %v10065, %v10105
    %v10107 = vpop.f32.mrb[0].mxu0
    %v10108 = vpop.f32.mrb[0].mxu0
    %10109 = vdwg.mxu0
    %10110 = vmatprep.subr.bf16.mxu0 %v7003
    %10111 = vmatpush1.bf16.msra.mxu0 %v7002
    %10112 = vmatprep.subr.bf16.mxu0 %v7005
    %10113 = vmatpush1.bf16.msra.mxu0 %v7004
    %10114 = vmatprep.subr.bf16.mxu0 %v7007
    %10115 = vmatpush1.bf16.msra.mxu0 %v7006
    %10116 = vmatprep.subr.bf16.mxu0 %v7009
    %10117 = vmatpush1.bf16.msra.mxu0 %v7008
    %10118 = vmatprep.subr.bf16.mxu0 %v7011
    %10119 = vmatpush1.bf16.msra.mxu0 %v7010
    %10120 = vmatprep.subr.bf16.mxu0 %v7013
    %10121 = vmatpush1.bf16.msra.mxu0 %v7012
    %10122 = vmatprep.subr.bf16.mxu0 %v7015
    %10123 = vmatpush1.bf16.msra.mxu0 %v7014
    %10124 = vmatprep.subr.bf16.mxu0 %v7017
    %10125 = vmatpush1.bf16.msra.mxu0 %v7016
    %10126 = vmatprep.subr.bf16.mxu0 %v7019
    %10127 = vmatpush1.bf16.msra.mxu0 %v7018
    %10128 = vmatprep.subr.bf16.mxu0 %v7021
    %10129 = vmatpush1.bf16.msra.mxu0 %v7020
    %10130 = vmatprep.subr.bf16.mxu0 %v7023
    %10131 = vmatpush1.bf16.msra.mxu0 %v7022
    %10132 = vmatprep.subr.bf16.mxu0 %v7025
    %10133 = vmatpush1.bf16.msra.mxu0 %v7024
    %10134 = vmatprep.subr.bf16.mxu0 %v7027
    %10135 = vmatpush1.bf16.msra.mxu0 %v7026
    %10136 = vmatprep.subr.bf16.mxu0 %v7029
    %10137 = vmatpush1.bf16.msra.mxu0 %v7028
    %10138 = vmatprep.subr.bf16.mxu0 %v7031
    %10139 = vmatpush1.bf16.msra.mxu0 %v7030
    %10140 = vmatprep.subr.bf16.mxu0 %v7033
    %10141 = vmatpush1.bf16.msra.mxu0 %v7032
    %10142 = vmatprep.mubr.bf16.mxu0 %v631
    %10143 = vmatmul.mubr.bf16.gmra.mrb[0].mxu0 %v630
    %v10144 = vpop.f32.mrb[0].mxu0
    %v10145 = vadd.f32 %v10104, %v10144
    %v10146 = vpop.f32.mrb[0].mxu0
    %v10147 = vadd.f32 %v10106, %v10146
    %v10148 = vpop.f32.mrb[0].mxu0
    %v10149 = vpop.f32.mrb[0].mxu0
    %10150 = vdwg.mxu0
    %10151 = vmatprep.subr.bf16.mxu0 %v7035
    %10152 = vmatpush1.bf16.msra.mxu0 %v7034
    %10153 = vmatprep.subr.bf16.mxu0 %v7037
    %10154 = vmatpush1.bf16.msra.mxu0 %v7036
    %10155 = vmatprep.subr.bf16.mxu0 %v7039
    %10156 = vmatpush1.bf16.msra.mxu0 %v7038
    %10157 = vmatprep.subr.bf16.mxu0 %v7041
    %10158 = vmatpush1.bf16.msra.mxu0 %v7040
    %10159 = vmatprep.subr.bf16.mxu0 %v7043
    %10160 = vmatpush1.bf16.msra.mxu0 %v7042
    %10161 = vmatprep.subr.bf16.mxu0 %v7045
    %10162 = vmatpush1.bf16.msra.mxu0 %v7044
    %10163 = vmatprep.subr.bf16.mxu0 %v7047
    %10164 = vmatpush1.bf16.msra.mxu0 %v7046
    %10165 = vmatprep.subr.bf16.mxu0 %v7049
    %10166 = vmatpush1.bf16.msra.mxu0 %v7048
    %10167 = vmatprep.subr.bf16.mxu0 %v7051
    %10168 = vmatpush1.bf16.msra.mxu0 %v7050
    %10169 = vmatprep.subr.bf16.mxu0 %v7053
    %10170 = vmatpush1.bf16.msra.mxu0 %v7052
    %10171 = vmatprep.subr.bf16.mxu0 %v7055
    %10172 = vmatpush1.bf16.msra.mxu0 %v7054
    %10173 = vmatprep.subr.bf16.mxu0 %v7057
    %10174 = vmatpush1.bf16.msra.mxu0 %v7056
    %10175 = vmatprep.subr.bf16.mxu0 %v7059
    %10176 = vmatpush1.bf16.msra.mxu0 %v7058
    %10177 = vmatprep.subr.bf16.mxu0 %v7061
    %10178 = vmatpush1.bf16.msra.mxu0 %v7060
    %10179 = vmatprep.subr.bf16.mxu0 %v7063
    %10180 = vmatpush1.bf16.msra.mxu0 %v7062
    %10181 = vmatprep.subr.bf16.mxu0 %v7065
    %10182 = vmatpush1.bf16.msra.mxu0 %v7064
    %10183 = vmatprep.mubr.bf16.mxu0 %v633
    %10184 = vmatmul.mubr.bf16.gmra.mrb[0].mxu0 %v632
    %v10185 = vpop.f32.mrb[0].mxu0
    %v10186 = vadd.f32 %v10145, %v10185
    %v10187 = vpop.f32.mrb[0].mxu0
    %v10188 = vadd.f32 %v10147, %v10187
    %v10189 = vpop.f32.mrb[0].mxu0
    %v10190 = vpop.f32.mrb[0].mxu0
    %10191 = vdwg.mxu0
    %10192 = vmatprep.subr.bf16.mxu0 %v7067
    %10193 = vmatpush1.bf16.msra.mxu0 %v7066
    %10194 = vmatprep.subr.bf16.mxu0 %v7069
    %10195 = vmatpush1.bf16.msra.mxu0 %v7068
    %10196 = vmatprep.subr.bf16.mxu0 %v7071
    %10197 = vmatpush1.bf16.msra.mxu0 %v7070
    %10198 = vmatprep.subr.bf16.mxu0 %v7073
    %10199 = vmatpush1.bf16.msra.mxu0 %v7072
    %10200 = vmatprep.subr.bf16.mxu0 %v7075
    %10201 = vmatpush1.bf16.msra.mxu0 %v7074
    %10202 = vmatprep.subr.bf16.mxu0 %v7077
    %10203 = vmatpush1.bf16.msra.mxu0 %v7076
    %10204 = vmatprep.subr.bf16.mxu0 %v7079
    %10205 = vmatpush1.bf16.msra.mxu0 %v7078
    %10206 = vmatprep.subr.bf16.mxu0 %v7081
    %10207 = vmatpush1.bf16.msra.mxu0 %v7080
    %10208 = vmatprep.subr.bf16.mxu0 %v7083
    %10209 = vmatpush1.bf16.msra.mxu0 %v7082
    %10210 = vmatprep.subr.bf16.mxu0 %v7085
    %10211 = vmatpush1.bf16.msra.mxu0 %v7084
    %10212 = vmatprep.subr.bf16.mxu0 %v7087
    %10213 = vmatpush1.bf16.msra.mxu0 %v7086
    %10214 = vmatprep.subr.bf16.mxu0 %v7089
    %10215 = vmatpush1.bf16.msra.mxu0 %v7088
    %10216 = vmatprep.subr.bf16.mxu0 %v7091
    %10217 = vmatpush1.bf16.msra.mxu0 %v7090
    %10218 = vmatprep.subr.bf16.mxu0 %v7093
    %10219 = vmatpush1.bf16.msra.mxu0 %v7092
    %10220 = vmatprep.subr.bf16.mxu0 %v7095
    %10221 = vmatpush1.bf16.msra.mxu0 %v7094
    %10222 = vmatprep.subr.bf16.mxu0 %v7097
    %10223 = vmatpush1.bf16.msra.mxu0 %v7096
    %10224 = vmatprep.mubr.bf16.mxu0 %v635
    %10225 = vmatmul.mubr.bf16.gmra.mrb[0].mxu0 %v634
    %v10226 = vpop.f32.mrb[0].mxu0
    %v10227 = vadd.f32 %v10186, %v10226
    %v10228 = vpop.f32.mrb[0].mxu0
    %v10229 = vadd.f32 %v10188, %v10228
    %v10230 = vpop.f32.mrb[0].mxu0
    %v10231 = vpop.f32.mrb[0].mxu0
    %10232 = vdwg.mxu0
    %10233 = vmatprep.subr.bf16.mxu0 %v7099
    %10234 = vmatpush1.bf16.msra.mxu0 %v7098
    %10235 = vmatprep.subr.bf16.mxu0 %v7101
    %10236 = vmatpush1.bf16.msra.mxu0 %v7100
    %10237 = vmatprep.subr.bf16.mxu0 %v7103
    %10238 = vmatpush1.bf16.msra.mxu0 %v7102
    %10239 = vmatprep.subr.bf16.mxu0 %v7105
    %10240 = vmatpush1.bf16.msra.mxu0 %v7104
    %10241 = vmatprep.subr.bf16.mxu0 %v7107
    %10242 = vmatpush1.bf16.msra.mxu0 %v7106
    %10243 = vmatprep.subr.bf16.mxu0 %v7109
    %10244 = vmatpush1.bf16.msra.mxu0 %v7108
    %10245 = vmatprep.subr.bf16.mxu0 %v7111
    %10246 = vmatpush1.bf16.msra.mxu0 %v7110
    %10247 = vmatprep.subr.bf16.mxu0 %v7113
    %10248 = vmatpush1.bf16.msra.mxu0 %v7112
    %10249 = vmatprep.subr.bf16.mxu0 %v7115
    %10250 = vmatpush1.bf16.msra.mxu0 %v7114
    %10251 = vmatprep.subr.bf16.mxu0 %v7117
    %10252 = vmatpush1.bf16.msra.mxu0 %v7116
    %10253 = vmatprep.subr.bf16.mxu0 %v7119
    %10254 = vmatpush1.bf16.msra.mxu0 %v7118
    %10255 = vmatprep.subr.bf16.mxu0 %v7121
    %10256 = vmatpush1.bf16.msra.mxu0 %v7120
    %10257 = vmatprep.subr.bf16.mxu0 %v7123
    %10258 = vmatpush1.bf16.msra.mxu0 %v7122
    %10259 = vmatprep.subr.bf16.mxu0 %v7125
    %10260 = vmatpush1.bf16.msra.mxu0 %v7124
    %10261 = vmatprep.subr.bf16.mxu0 %v7127
    %10262 = vmatpush1.bf16.msra.mxu0 %v7126
    %10263 = vmatprep.subr.bf16.mxu0 %v7129
    %10264 = vmatpush1.bf16.msra.mxu0 %v7128
    %10265 = vmatprep.mubr.bf16.mxu0 %v637
    %10266 = vmatmul.mubr.bf16.gmra.mrb[0].mxu0 %v636
    %v10267 = vpop.f32.mrb[0].mxu0
    %v10268 = vadd.f32 %v10227, %v10267
    %v10269 = vpop.f32.mrb[0].mxu0
    %v10270 = vadd.f32 %v10229, %v10269
    %v10271 = vpop.f32.mrb[0].mxu0
    %v10272 = vpop.f32.mrb[0].mxu0
    %10273 = vdwg.mxu0
    %10274 = vmatprep.subr.bf16.mxu0 %v7131
    %10275 = vmatpush1.bf16.msra.mxu0 %v7130
    %10276 = vmatprep.subr.bf16.mxu0 %v7133
    %10277 = vmatpush1.bf16.msra.mxu0 %v7132
    %10278 = vmatprep.subr.bf16.mxu0 %v7135
    %10279 = vmatpush1.bf16.msra.mxu0 %v7134
    %10280 = vmatprep.subr.bf16.mxu0 %v7137
    %10281 = vmatpush1.bf16.msra.mxu0 %v7136
    %10282 = vmatprep.subr.bf16.mxu0 %v7139
    %10283 = vmatpush1.bf16.msra.mxu0 %v7138
    %10284 = vmatprep.subr.bf16.mxu0 %v7141
    %10285 = vmatpush1.bf16.msra.mxu0 %v7140
    %10286 = vmatprep.subr.bf16.mxu0 %v7143
    %10287 = vmatpush1.bf16.msra.mxu0 %v7142
    %10288 = vmatprep.subr.bf16.mxu0 %v7145
    %10289 = vmatpush1.bf16.msra.mxu0 %v7144
    %10290 = vmatprep.subr.bf16.mxu0 %v7147
    %10291 = vmatpush1.bf16.msra.mxu0 %v7146
    %10292 = vmatprep.subr.bf16.mxu0 %v7149
    %10293 = vmatpush1.bf16.msra.mxu0 %v7148
    %10294 = vmatprep.subr.bf16.mxu0 %v7151
    %10295 = vmatpush1.bf16.msra.mxu0 %v7150
    %10296 = vmatprep.subr.bf16.mxu0 %v7153
    %10297 = vmatpush1.bf16.msra.mxu0 %v7152
    %10298 = vmatprep.subr.bf16.mxu0 %v7155
    %10299 = vmatpush1.bf16.msra.mxu0 %v7154
    %10300 = vmatprep.subr.bf16.mxu0 %v7157
    %10301 = vmatpush1.bf16.msra.mxu0 %v7156
    %10302 = vmatprep.subr.bf16.mxu0 %v7159
    %10303 = vmatpush1.bf16.msra.mxu0 %v7158
    %10304 = vmatprep.subr.bf16.mxu0 %v7161
    %10305 = vmatpush1.bf16.msra.mxu0 %v7160
    %10306 = vmatprep.mubr.bf16.mxu0 %v639
    %10307 = vmatmul.mubr.bf16.gmra.mrb[0].mxu0 %v638
    %v10308 = vpop.f32.mrb[0].mxu0
    %v10309 = vadd.f32 %v10268, %v10308
    %v10310 = vpop.f32.mrb[0].mxu0
    %v10311 = vadd.f32 %v10270, %v10310
    %v10312 = vpop.f32.mrb[0].mxu0
    %v10313 = vpop.f32.mrb[0].mxu0
    %10314 = vdwg.mxu0
    %10315 = vmatprep.subr.bf16.mxu0 %v7163
    %10316 = vmatpush1.bf16.msra.mxu0 %v7162
    %10317 = vmatprep.subr.bf16.mxu0 %v7165
    %10318 = vmatpush1.bf16.msra.mxu0 %v7164
    %10319 = vmatprep.subr.bf16.mxu0 %v7167
    %10320 = vmatpush1.bf16.msra.mxu0 %v7166
    %10321 = vmatprep.subr.bf16.mxu0 %v7169
    %10322 = vmatpush1.bf16.msra.mxu0 %v7168
    %10323 = vmatprep.subr.bf16.mxu0 %v7171
    %10324 = vmatpush1.bf16.msra.mxu0 %v7170
    %10325 = vmatprep.subr.bf16.mxu0 %v7173
    %10326 = vmatpush1.bf16.msra.mxu0 %v7172
    %10327 = vmatprep.subr.bf16.mxu0 %v7175
    %10328 = vmatpush1.bf16.msra.mxu0 %v7174
    %10329 = vmatprep.subr.bf16.mxu0 %v7177
    %10330 = vmatpush1.bf16.msra.mxu0 %v7176
    %10331 = vmatprep.subr.bf16.mxu0 %v7179
    %10332 = vmatpush1.bf16.msra.mxu0 %v7178
    %10333 = vmatprep.subr.bf16.mxu0 %v7181
    %10334 = vmatpush1.bf16.msra.mxu0 %v7180
    %10335 = vmatprep.subr.bf16.mxu0 %v7183
    %10336 = vmatpush1.bf16.msra.mxu0 %v7182
    %10337 = vmatprep.subr.bf16.mxu0 %v7185
    %10338 = vmatpush1.bf16.msra.mxu0 %v7184
    %10339 = vmatprep.subr.bf16.mxu0 %v7187
    %10340 = vmatpush1.bf16.msra.mxu0 %v7186
    %10341 = vmatprep.subr.bf16.mxu0 %v7189
    %10342 = vmatpush1.bf16.msra.mxu0 %v7188
    %10343 = vmatprep.subr.bf16.mxu0 %v7191
    %10344 = vmatpush1.bf16.msra.mxu0 %v7190
    %10345 = vmatprep.subr.bf16.mxu0 %v7193
    %10346 = vmatpush1.bf16.msra.mxu0 %v7192
    %10347 = vmatprep.mubr.bf16.mxu0 %v641
    %10348 = vmatmul.mubr.bf16.gmra.mrb[0].mxu0 %v640
    %v10349 = vpop.f32.mrb[0].mxu0
    %v10350 = vadd.f32 %v10309, %v10349
    %v10351 = vpop.f32.mrb[0].mxu0
    %v10352 = vadd.f32 %v10311, %v10351
    %v10353 = vpop.f32.mrb[0].mxu0
    %v10354 = vpop.f32.mrb[0].mxu0
    %10355 = vdwg.mxu0
    %10356 = vmatprep.subr.bf16.mxu0 %v7195
    %10357 = vmatpush1.bf16.msra.mxu0 %v7194
    %10358 = vmatprep.subr.bf16.mxu0 %v7197
    %10359 = vmatpush1.bf16.msra.mxu0 %v7196
    %10360 = vmatprep.subr.bf16.mxu0 %v7199
    %10361 = vmatpush1.bf16.msra.mxu0 %v7198
    %10362 = vmatprep.subr.bf16.mxu0 %v7201
    %10363 = vmatpush1.bf16.msra.mxu0 %v7200
    %10364 = vmatprep.subr.bf16.mxu0 %v7203
    %10365 = vmatpush1.bf16.msra.mxu0 %v7202
    %10366 = vmatprep.subr.bf16.mxu0 %v7205
    %10367 = vmatpush1.bf16.msra.mxu0 %v7204
    %10368 = vmatprep.subr.bf16.mxu0 %v7207
    %10369 = vmatpush1.bf16.msra.mxu0 %v7206
    %10370 = vmatprep.subr.bf16.mxu0 %v7209
    %10371 = vmatpush1.bf16.msra.mxu0 %v7208
    %10372 = vmatprep.subr.bf16.mxu0 %v7211
    %10373 = vmatpush1.bf16.msra.mxu0 %v7210
    %10374 = vmatprep.subr.bf16.mxu0 %v7213
    %10375 = vmatpush1.bf16.msra.mxu0 %v7212
    %10376 = vmatprep.subr.bf16.mxu0 %v7215
    %10377 = vmatpush1.bf16.msra.mxu0 %v7214
    %10378 = vmatprep.subr.bf16.mxu0 %v7217
    %10379 = vmatpush1.bf16.msra.mxu0 %v7216
    %10380 = vmatprep.subr.bf16.mxu0 %v7219
    %10381 = vmatpush1.bf16.msra.mxu0 %v7218
    %10382 = vmatprep.subr.bf16.mxu0 %v7221
    %10383 = vmatpush1.bf16.msra.mxu0 %v7220
    %10384 = vmatprep.subr.bf16.mxu0 %v7223
    %10385 = vmatpush1.bf16.msra.mxu0 %v7222
    %10386 = vmatprep.subr.bf16.mxu0 %v7225
    %10387 = vmatpush1.bf16.msra.mxu0 %v7224
    %10388 = vmatprep.mubr.bf16.mxu0 %v643
    %10389 = vmatmul.mubr.bf16.gmra.mrb[0].mxu0 %v642
    %v10390 = vpop.f32.mrb[0].mxu0
    %v10391 = vadd.f32 %v10350, %v10390
    %v10392 = vpop.f32.mrb[0].mxu0
    %v10393 = vadd.f32 %v10352, %v10392
    %v10394 = vpop.f32.mrb[0].mxu0
    %v10395 = vpop.f32.mrb[0].mxu0
    %10396 = vdwg.mxu0
    %10397 = vmatprep.subr.bf16.mxu0 %v7227
    %10398 = vmatpush1.bf16.msra.mxu0 %v7226
    %10399 = vmatprep.subr.bf16.mxu0 %v7229
    %10400 = vmatpush1.bf16.msra.mxu0 %v7228
    %10401 = vmatprep.subr.bf16.mxu0 %v7231
    %10402 = vmatpush1.bf16.msra.mxu0 %v7230
    %10403 = vmatprep.subr.bf16.mxu0 %v7233
    %10404 = vmatpush1.bf16.msra.mxu0 %v7232
    %10405 = vmatprep.subr.bf16.mxu0 %v7235
    %10406 = vmatpush1.bf16.msra.mxu0 %v7234
    %10407 = vmatprep.subr.bf16.mxu0 %v7237
    %10408 = vmatpush1.bf16.msra.mxu0 %v7236
    %10409 = vmatprep.subr.bf16.mxu0 %v7239
    %10410 = vmatpush1.bf16.msra.mxu0 %v7238
    %10411 = vmatprep.subr.bf16.mxu0 %v7241
    %10412 = vmatpush1.bf16.msra.mxu0 %v7240
    %10413 = vmatprep.subr.bf16.mxu0 %v7243
    %10414 = vmatpush1.bf16.msra.mxu0 %v7242
    %10415 = vmatprep.subr.bf16.mxu0 %v7245
    %10416 = vmatpush1.bf16.msra.mxu0 %v7244
    %10417 = vmatprep.subr.bf16.mxu0 %v7247
    %10418 = vmatpush1.bf16.msra.mxu0 %v7246
    %10419 = vmatprep.subr.bf16.mxu0 %v7249
    %10420 = vmatpush1.bf16.msra.mxu0 %v7248
    %10421 = vmatprep.subr.bf16.mxu0 %v7251
    %10422 = vmatpush1.bf16.msra.mxu0 %v7250
    %10423 = vmatprep.subr.bf16.mxu0 %v7253
    %10424 = vmatpush1.bf16.msra.mxu0 %v7252
    %10425 = vmatprep.subr.bf16.mxu0 %v7255
    %10426 = vmatpush1.bf16.msra.mxu0 %v7254
    %10427 = vmatprep.subr.bf16.mxu0 %v7257
    %10428 = vmatpush1.bf16.msra.mxu0 %v7256
    %10429 = vmatprep.mubr.bf16.mxu0 %v645
    %10430 = vmatmul.mubr.bf16.gmra.mrb[0].mxu0 %v644
    %v10431 = vpop.f32.mrb[0].mxu0
    %v10432 = vadd.f32 %v10391, %v10431
    %v10433 = vpop.f32.mrb[0].mxu0
    %v10434 = vadd.f32 %v10393, %v10433
    %v10435 = vpop.f32.mrb[0].mxu0
    %v10436 = vpop.f32.mrb[0].mxu0
    %10437 = vdwg.mxu0
    %10438 = vmatprep.subr.bf16.mxu0 %v7259
    %10439 = vmatpush1.bf16.msra.mxu0 %v7258
    %10440 = vmatprep.subr.bf16.mxu0 %v7261
    %10441 = vmatpush1.bf16.msra.mxu0 %v7260
    %10442 = vmatprep.subr.bf16.mxu0 %v7263
    %10443 = vmatpush1.bf16.msra.mxu0 %v7262
    %10444 = vmatprep.subr.bf16.mxu0 %v7265
    %10445 = vmatpush1.bf16.msra.mxu0 %v7264
    %10446 = vmatprep.subr.bf16.mxu0 %v7267
    %10447 = vmatpush1.bf16.msra.mxu0 %v7266
    %10448 = vmatprep.subr.bf16.mxu0 %v7269
    %10449 = vmatpush1.bf16.msra.mxu0 %v7268
    %10450 = vmatprep.subr.bf16.mxu0 %v7271
    %10451 = vmatpush1.bf16.msra.mxu0 %v7270
    %10452 = vmatprep.subr.bf16.mxu0 %v7273
    %10453 = vmatpush1.bf16.msra.mxu0 %v7272
    %10454 = vmatprep.subr.bf16.mxu0 %v7275
    %10455 = vmatpush1.bf16.msra.mxu0 %v7274
    %10456 = vmatprep.subr.bf16.mxu0 %v7277
    %10457 = vmatpush1.bf16.msra.mxu0 %v7276
    %10458 = vmatprep.subr.bf16.mxu0 %v7279
    %10459 = vmatpush1.bf16.msra.mxu0 %v7278
    %10460 = vmatprep.subr.bf16.mxu0 %v7281
    %10461 = vmatpush1.bf16.msra.mxu0 %v7280
    %10462 = vmatprep.subr.bf16.mxu0 %v7283
    %10463 = vmatpush1.bf16.msra.mxu0 %v7282
    %10464 = vmatprep.subr.bf16.mxu0 %v7285
    %10465 = vmatpush1.bf16.msra.mxu0 %v7284
    %10466 = vmatprep.subr.bf16.mxu0 %v7287
    %10467 = vmatpush1.bf16.msra.mxu0 %v7286
    %10468 = vmatprep.subr.bf16.mxu0 %v7289
    %10469 = vmatpush1.bf16.msra.mxu0 %v7288
    %10470 = vmatprep.mubr.bf16.mxu0 %v647
    %10471 = vmatmul.mubr.bf16.gmra.mrb[0].mxu0 %v646
    %v10472 = vpop.f32.mrb[0].mxu0
    %v10473 = vadd.f32 %v10432, %v10472
    %v10474 = vpop.f32.mrb[0].mxu0
    %v10475 = vadd.f32 %v10434, %v10474
    %v10476 = vpop.f32.mrb[0].mxu0
    %v10477 = vpop.f32.mrb[0].mxu0
    %10478 = vdwg.mxu0
    %10479 = vmatprep.subr.bf16.mxu0 %v7291
    %10480 = vmatpush1.bf16.msra.mxu0 %v7290
    %10481 = vmatprep.subr.bf16.mxu0 %v7293
    %10482 = vmatpush1.bf16.msra.mxu0 %v7292
    %10483 = vmatprep.subr.bf16.mxu0 %v7295
    %10484 = vmatpush1.bf16.msra.mxu0 %v7294
    %10485 = vmatprep.subr.bf16.mxu0 %v7297
    %10486 = vmatpush1.bf16.msra.mxu0 %v7296
    %10487 = vmatprep.subr.bf16.mxu0 %v7299
    %10488 = vmatpush1.bf16.msra.mxu0 %v7298
    %10489 = vmatprep.subr.bf16.mxu0 %v7301
    %10490 = vmatpush1.bf16.msra.mxu0 %v7300
    %10491 = vmatprep.subr.bf16.mxu0 %v7303
    %10492 = vmatpush1.bf16.msra.mxu0 %v7302
    %10493 = vmatprep.subr.bf16.mxu0 %v7305
    %10494 = vmatpush1.bf16.msra.mxu0 %v7304
    %10495 = vmatprep.subr.bf16.mxu0 %v7307
    %10496 = vmatpush1.bf16.msra.mxu0 %v7306
    %10497 = vmatprep.subr.bf16.mxu0 %v7309
    %10498 = vmatpush1.bf16.msra.mxu0 %v7308
    %10499 = vmatprep.subr.bf16.mxu0 %v7311
    %10500 = vmatpush1.bf16.msra.mxu0 %v7310
    %10501 = vmatprep.subr.bf16.mxu0 %v7313
    %10502 = vmatpush1.bf16.msra.mxu0 %v7312
    %10503 = vmatprep.subr.bf16.mxu0 %v7315
    %10504 = vmatpush1.bf16.msra.mxu0 %v7314
    %10505 = vmatprep.subr.bf16.mxu0 %v7317
    %10506 = vmatpush1.bf16.msra.mxu0 %v7316
    %10507 = vmatprep.subr.bf16.mxu0 %v7319
    %10508 = vmatpush1.bf16.msra.mxu0 %v7318
    %10509 = vmatprep.subr.bf16.mxu0 %v7321
    %10510 = vmatpush1.bf16.msra.mxu0 %v7320
    %10511 = vmatprep.mubr.bf16.mxu0 %v649
    %10512 = vmatmul.mubr.bf16.gmra.mrb[0].mxu0 %v648
    %v10513 = vpop.f32.mrb[0].mxu0
    %v10514 = vadd.f32 %v10473, %v10513
    %v10515 = vpop.f32.mrb[0].mxu0
    %v10516 = vadd.f32 %v10475, %v10515
    %v10517 = vpop.f32.mrb[0].mxu0
    %v10518 = vpop.f32.mrb[0].mxu0
    %10519 = vdwg.mxu0
    %10520 = vmatprep.subr.bf16.mxu0 %v7323
    %10521 = vmatpush1.bf16.msra.mxu0 %v7322
    %10522 = vmatprep.subr.bf16.mxu0 %v7325
    %10523 = vmatpush1.bf16.msra.mxu0 %v7324
    %10524 = vmatprep.subr.bf16.mxu0 %v7327
    %10525 = vmatpush1.bf16.msra.mxu0 %v7326
    %10526 = vmatprep.subr.bf16.mxu0 %v7329
    %10527 = vmatpush1.bf16.msra.mxu0 %v7328
    %10528 = vmatprep.subr.bf16.mxu0 %v7331
    %10529 = vmatpush1.bf16.msra.mxu0 %v7330
    %10530 = vmatprep.subr.bf16.mxu0 %v7333
    %10531 = vmatpush1.bf16.msra.mxu0 %v7332
    %10532 = vmatprep.subr.bf16.mxu0 %v7335
    %10533 = vmatpush1.bf16.msra.mxu0 %v7334
    %10534 = vmatprep.subr.bf16.mxu0 %v7337
    %10535 = vmatpush1.bf16.msra.mxu0 %v7336
    %10536 = vmatprep.subr.bf16.mxu0 %v7339
    %10537 = vmatpush1.bf16.msra.mxu0 %v7338
    %10538 = vmatprep.subr.bf16.mxu0 %v7341
    %10539 = vmatpush1.bf16.msra.mxu0 %v7340
    %10540 = vmatprep.subr.bf16.mxu0 %v7343
    %10541 = vmatpush1.bf16.msra.mxu0 %v7342
    %10542 = vmatprep.subr.bf16.mxu0 %v7345
    %10543 = vmatpush1.bf16.msra.mxu0 %v7344
    %10544 = vmatprep.subr.bf16.mxu0 %v7347
    %10545 = vmatpush1.bf16.msra.mxu0 %v7346
    %10546 = vmatprep.subr.bf16.mxu0 %v7349
    %10547 = vmatpush1.bf16.msra.mxu0 %v7348
    %10548 = vmatprep.subr.bf16.mxu0 %v7351
    %10549 = vmatpush1.bf16.msra.mxu0 %v7350
    %10550 = vmatprep.subr.bf16.mxu0 %v7353
    %10551 = vmatpush1.bf16.msra.mxu0 %v7352
    %10552 = vmatprep.mubr.bf16.mxu0 %v651
    %10553 = vmatmul.mubr.bf16.gmra.mrb[0].mxu0 %v650
    %v10554 = vpop.f32.mrb[0].mxu0
    %v10555 = vadd.f32 %v10514, %v10554
    %v10556 = vpop.f32.mrb[0].mxu0
    %v10557 = vadd.f32 %v10516, %v10556
    %v10558 = vpop.f32.mrb[0].mxu0
    %v10559 = vpop.f32.mrb[0].mxu0
    %10560 = vdwg.mxu0
    %10561 = vmatprep.subr.bf16.mxu0 %v7355
    %10562 = vmatpush1.bf16.msra.mxu0 %v7354
    %10563 = vmatprep.subr.bf16.mxu0 %v7357
    %10564 = vmatpush1.bf16.msra.mxu0 %v7356
    %10565 = vmatprep.subr.bf16.mxu0 %v7359
    %10566 = vmatpush1.bf16.msra.mxu0 %v7358
    %10567 = vmatprep.subr.bf16.mxu0 %v7361
    %10568 = vmatpush1.bf16.msra.mxu0 %v7360
    %10569 = vmatprep.subr.bf16.mxu0 %v7363
    %10570 = vmatpush1.bf16.msra.mxu0 %v7362
    %10571 = vmatprep.subr.bf16.mxu0 %v7365
    %10572 = vmatpush1.bf16.msra.mxu0 %v7364
    %10573 = vmatprep.subr.bf16.mxu0 %v7367
    %10574 = vmatpush1.bf16.msra.mxu0 %v7366
    %10575 = vmatprep.subr.bf16.mxu0 %v7369
    %10576 = vmatpush1.bf16.msra.mxu0 %v7368
    %10577 = vmatprep.subr.bf16.mxu0 %v7371
    %10578 = vmatpush1.bf16.msra.mxu0 %v7370
    %10579 = vmatprep.subr.bf16.mxu0 %v7373
    %10580 = vmatpush1.bf16.msra.mxu0 %v7372
    %10581 = vmatprep.subr.bf16.mxu0 %v7375
    %10582 = vmatpush1.bf16.msra.mxu0 %v7374
    %10583 = vmatprep.subr.bf16.mxu0 %v7377
    %10584 = vmatpush1.bf16.msra.mxu0 %v7376
    %10585 = vmatprep.subr.bf16.mxu0 %v7379
    %10586 = vmatpush1.bf16.msra.mxu0 %v7378
    %10587 = vmatprep.subr.bf16.mxu0 %v7381
    %10588 = vmatpush1.bf16.msra.mxu0 %v7380
    %10589 = vmatprep.subr.bf16.mxu0 %v7383
    %10590 = vmatpush1.bf16.msra.mxu0 %v7382
    %10591 = vmatprep.subr.bf16.mxu0 %v7385
    %10592 = vmatpush1.bf16.msra.mxu0 %v7384
    %10593 = vmatprep.mubr.bf16.mxu0 %v653
    %10594 = vmatmul.mubr.bf16.gmra.mrb[0].mxu0 %v652
    %v10595 = vpop.f32.mrb[0].mxu0
    %v10596 = vadd.f32 %v10555, %v10595
    %v10597 = vpop.f32.mrb[0].mxu0
    %v10598 = vadd.f32 %v10557, %v10597
    %v10599 = vpop.f32.mrb[0].mxu0
    %v10600 = vpop.f32.mrb[0].mxu0
    %10601 = vdwg.mxu0
    %10602 = vmatprep.subr.bf16.mxu0 %v7387
    %10603 = vmatpush1.bf16.msra.mxu0 %v7386
    %10604 = vmatprep.subr.bf16.mxu0 %v7389
    %10605 = vmatpush1.bf16.msra.mxu0 %v7388
    %10606 = vmatprep.subr.bf16.mxu0 %v7391
    %10607 = vmatpush1.bf16.msra.mxu0 %v7390
    %10608 = vmatprep.subr.bf16.mxu0 %v7393
    %10609 = vmatpush1.bf16.msra.mxu0 %v7392
    %10610 = vmatprep.subr.bf16.mxu0 %v7395
    %10611 = vmatpush1.bf16.msra.mxu0 %v7394
    %10612 = vmatprep.subr.bf16.mxu0 %v7397
    %10613 = vmatpush1.bf16.msra.mxu0 %v7396
    %10614 = vmatprep.subr.bf16.mxu0 %v7399
    %10615 = vmatpush1.bf16.msra.mxu0 %v7398
    %10616 = vmatprep.subr.bf16.mxu0 %v7401
    %10617 = vmatpush1.bf16.msra.mxu0 %v7400
    %10618 = vmatprep.subr.bf16.mxu0 %v7403
    %10619 = vmatpush1.bf16.msra.mxu0 %v7402
    %10620 = vmatprep.subr.bf16.mxu0 %v7405
    %10621 = vmatpush1.bf16.msra.mxu0 %v7404
    %10622 = vmatprep.subr.bf16.mxu0 %v7407
    %10623 = vmatpush1.bf16.msra.mxu0 %v7406
    %10624 = vmatprep.subr.bf16.mxu0 %v7409
    %10625 = vmatpush1.bf16.msra.mxu0 %v7408
    %10626 = vmatprep.subr.bf16.mxu0 %v7411
    %10627 = vmatpush1.bf16.msra.mxu0 %v7410
    %10628 = vmatprep.subr.bf16.mxu0 %v7413
    %10629 = vmatpush1.bf16.msra.mxu0 %v7412
    %10630 = vmatprep.subr.bf16.mxu0 %v7415
    %10631 = vmatpush1.bf16.msra.mxu0 %v7414
    %10632 = vmatprep.subr.bf16.mxu0 %v7417
    %10633 = vmatpush1.bf16.msra.mxu0 %v7416
    %10634 = vmatprep.mubr.bf16.mxu0 %v655
    %10635 = vmatmul.mubr.bf16.gmra.mrb[0].mxu0 %v654
    %v10636 = vpop.f32.mrb[0].mxu0
    %v10637 = vadd.f32 %v10596, %v10636
    %v10638 = vpop.f32.mrb[0].mxu0
    %v10639 = vadd.f32 %v10598, %v10638
    %v10640 = vpop.f32.mrb[0].mxu0
    %v10641 = vpop.f32.mrb[0].mxu0
    %10642 = vdwg.mxu0
    %10643 = vmatprep.subr.bf16.mxu0 %v7419
    %10644 = vmatpush1.bf16.msra.mxu0 %v7418
    %10645 = vmatprep.subr.bf16.mxu0 %v7421
    %10646 = vmatpush1.bf16.msra.mxu0 %v7420
    %10647 = vmatprep.subr.bf16.mxu0 %v7423
    %10648 = vmatpush1.bf16.msra.mxu0 %v7422
    %10649 = vmatprep.subr.bf16.mxu0 %v7425
    %10650 = vmatpush1.bf16.msra.mxu0 %v7424
    %10651 = vmatprep.subr.bf16.mxu0 %v7427
    %10652 = vmatpush1.bf16.msra.mxu0 %v7426
    %10653 = vmatprep.subr.bf16.mxu0 %v7429
    %10654 = vmatpush1.bf16.msra.mxu0 %v7428
    %10655 = vmatprep.subr.bf16.mxu0 %v7431
    %10656 = vmatpush1.bf16.msra.mxu0 %v7430
    %10657 = vmatprep.subr.bf16.mxu0 %v7433
    %10658 = vmatpush1.bf16.msra.mxu0 %v7432
    %10659 = vmatprep.subr.bf16.mxu0 %v7435
    %10660 = vmatpush1.bf16.msra.mxu0 %v7434
    %10661 = vmatprep.subr.bf16.mxu0 %v7437
    %10662 = vmatpush1.bf16.msra.mxu0 %v7436
    %10663 = vmatprep.subr.bf16.mxu0 %v7439
    %10664 = vmatpush1.bf16.msra.mxu0 %v7438
    %10665 = vmatprep.subr.bf16.mxu0 %v7441
    %10666 = vmatpush1.bf16.msra.mxu0 %v7440
    %10667 = vmatprep.subr.bf16.mxu0 %v7443
    %10668 = vmatpush1.bf16.msra.mxu0 %v7442
    %10669 = vmatprep.subr.bf16.mxu0 %v7445
    %10670 = vmatpush1.bf16.msra.mxu0 %v7444
    %10671 = vmatprep.subr.bf16.mxu0 %v7447
    %10672 = vmatpush1.bf16.msra.mxu0 %v7446
    %10673 = vmatprep.subr.bf16.mxu0 %v7449
    %10674 = vmatpush1.bf16.msra.mxu0 %v7448
    %10675 = vmatprep.mubr.bf16.mxu0 %v657
    %10676 = vmatmul.mubr.bf16.gmra.mrb[0].mxu0 %v656
    %v10677 = vpop.f32.mrb[0].mxu0
    %v10678 = vadd.f32 %v10637, %v10677
    %v10679 = vpop.f32.mrb[0].mxu0
    %v10680 = vadd.f32 %v10639, %v10679
    %v10681 = vpop.f32.mrb[0].mxu0
    %v10682 = vpop.f32.mrb[0].mxu0
    %10683 = vdwg.mxu0
    %10684 = vmatprep.subr.bf16.mxu0 %v7451
    %10685 = vmatpush1.bf16.msra.mxu0 %v7450
    %10686 = vmatprep.subr.bf16.mxu0 %v7453
    %10687 = vmatpush1.bf16.msra.mxu0 %v7452
    %10688 = vmatprep.subr.bf16.mxu0 %v7455
    %10689 = vmatpush1.bf16.msra.mxu0 %v7454
    %10690 = vmatprep.subr.bf16.mxu0 %v7457
    %10691 = vmatpush1.bf16.msra.mxu0 %v7456
    %10692 = vmatprep.subr.bf16.mxu0 %v7459
    %10693 = vmatpush1.bf16.msra.mxu0 %v7458
    %10694 = vmatprep.subr.bf16.mxu0 %v7461
    %10695 = vmatpush1.bf16.msra.mxu0 %v7460
    %10696 = vmatprep.subr.bf16.mxu0 %v7463
    %10697 = vmatpush1.bf16.msra.mxu0 %v7462
    %10698 = vmatprep.subr.bf16.mxu0 %v7465
    %10699 = vmatpush1.bf16.msra.mxu0 %v7464
    %10700 = vmatprep.subr.bf16.mxu0 %v7467
    %10701 = vmatpush1.bf16.msra.mxu0 %v7466
    %10702 = vmatprep.subr.bf16.mxu0 %v7469
    %10703 = vmatpush1.bf16.msra.mxu0 %v7468
    %10704 = vmatprep.subr.bf16.mxu0 %v7471
    %10705 = vmatpush1.bf16.msra.mxu0 %v7470
    %10706 = vmatprep.subr.bf16.mxu0 %v7473
    %10707 = vmatpush1.bf16.msra.mxu0 %v7472
    %10708 = vmatprep.subr.bf16.mxu0 %v7475
    %10709 = vmatpush1.bf16.msra.mxu0 %v7474
    %10710 = vmatprep.subr.bf16.mxu0 %v7477
    %10711 = vmatpush1.bf16.msra.mxu0 %v7476
    %10712 = vmatprep.subr.bf16.mxu0 %v7479
    %10713 = vmatpush1.bf16.msra.mxu0 %v7478
    %10714 = vmatprep.subr.bf16.mxu0 %v7481
    %10715 = vmatpush1.bf16.msra.mxu0 %v7480
    %10716 = vmatprep.mubr.bf16.mxu0 %v659
    %10717 = vmatmul.mubr.bf16.gmra.mrb[0].mxu0 %v658
    %v10718 = vpop.f32.mrb[0].mxu0
    %v10719 = vadd.f32 %v10678, %v10718
    %v10720 = vpop.f32.mrb[0].mxu0
    %v10721 = vadd.f32 %v10680, %v10720
    %v10722 = vpop.f32.mrb[0].mxu0
    %v10723 = vpop.f32.mrb[0].mxu0
    %10724 = vdwg.mxu0
    %10725 = vmatprep.subr.bf16.mxu0 %v7483
    %10726 = vmatpush1.bf16.msra.mxu0 %v7482
    %10727 = vmatprep.subr.bf16.mxu0 %v7485
    %10728 = vmatpush1.bf16.msra.mxu0 %v7484
    %10729 = vmatprep.subr.bf16.mxu0 %v7487
    %10730 = vmatpush1.bf16.msra.mxu0 %v7486
    %10731 = vmatprep.subr.bf16.mxu0 %v7489
    %10732 = vmatpush1.bf16.msra.mxu0 %v7488
    %10733 = vmatprep.subr.bf16.mxu0 %v7491
    %10734 = vmatpush1.bf16.msra.mxu0 %v7490
    %10735 = vmatprep.subr.bf16.mxu0 %v7493
    %10736 = vmatpush1.bf16.msra.mxu0 %v7492
    %10737 = vmatprep.subr.bf16.mxu0 %v7495
    %10738 = vmatpush1.bf16.msra.mxu0 %v7494
    %10739 = vmatprep.subr.bf16.mxu0 %v7497
    %10740 = vmatpush1.bf16.msra.mxu0 %v7496
    %10741 = vmatprep.subr.bf16.mxu0 %v7499
    %10742 = vmatpush1.bf16.msra.mxu0 %v7498
    %10743 = vmatprep.subr.bf16.mxu0 %v7501
    %10744 = vmatpush1.bf16.msra.mxu0 %v7500
    %10745 = vmatprep.subr.bf16.mxu0 %v7503
    %10746 = vmatpush1.bf16.msra.mxu0 %v7502
    %10747 = vmatprep.subr.bf16.mxu0 %v7505
    %10748 = vmatpush1.bf16.msra.mxu0 %v7504
    %10749 = vmatprep.subr.bf16.mxu0 %v7507
    %10750 = vmatpush1.bf16.msra.mxu0 %v7506
    %10751 = vmatprep.subr.bf16.mxu0 %v7509
    %10752 = vmatpush1.bf16.msra.mxu0 %v7508
    %10753 = vmatprep.subr.bf16.mxu0 %v7511
    %10754 = vmatpush1.bf16.msra.mxu0 %v7510
    %10755 = vmatprep.subr.bf16.mxu0 %v7513
    %10756 = vmatpush1.bf16.msra.mxu0 %v7512
    %10757 = vmatprep.mubr.bf16.mxu0 %v661
    %10758 = vmatmul.mubr.bf16.gmra.mrb[0].mxu0 %v660
    %v10759 = vpop.f32.mrb[0].mxu0
    %v10760 = vadd.f32 %v10719, %v10759
    %v10761 = vpop.f32.mrb[0].mxu0
    %v10762 = vadd.f32 %v10721, %v10761
    %v10763 = vpop.f32.mrb[0].mxu0
    %v10764 = vpop.f32.mrb[0].mxu0
    %10765 = vdwg.mxu0
    %10766 = vmatprep.subr.bf16.mxu0 %v7515
    %10767 = vmatpush1.bf16.msra.mxu0 %v7514
    %10768 = vmatprep.subr.bf16.mxu0 %v7517
    %10769 = vmatpush1.bf16.msra.mxu0 %v7516
    %10770 = vmatprep.subr.bf16.mxu0 %v7519
    %10771 = vmatpush1.bf16.msra.mxu0 %v7518
    %10772 = vmatprep.subr.bf16.mxu0 %v7521
    %10773 = vmatpush1.bf16.msra.mxu0 %v7520
    %10774 = vmatprep.subr.bf16.mxu0 %v7523
    %10775 = vmatpush1.bf16.msra.mxu0 %v7522
    %10776 = vmatprep.subr.bf16.mxu0 %v7525
    %10777 = vmatpush1.bf16.msra.mxu0 %v7524
    %10778 = vmatprep.subr.bf16.mxu0 %v7527
    %10779 = vmatpush1.bf16.msra.mxu0 %v7526
    %10780 = vmatprep.subr.bf16.mxu0 %v7529
    %10781 = vmatpush1.bf16.msra.mxu0 %v7528
    %10782 = vmatprep.subr.bf16.mxu0 %v7531
    %10783 = vmatpush1.bf16.msra.mxu0 %v7530
    %10784 = vmatprep.subr.bf16.mxu0 %v7533
    %10785 = vmatpush1.bf16.msra.mxu0 %v7532
    %10786 = vmatprep.subr.bf16.mxu0 %v7535
    %10787 = vmatpush1.bf16.msra.mxu0 %v7534
    %10788 = vmatprep.subr.bf16.mxu0 %v7537
    %10789 = vmatpush1.bf16.msra.mxu0 %v7536
    %10790 = vmatprep.subr.bf16.mxu0 %v7539
    %10791 = vmatpush1.bf16.msra.mxu0 %v7538
    %10792 = vmatprep.subr.bf16.mxu0 %v7541
    %10793 = vmatpush1.bf16.msra.mxu0 %v7540
    %10794 = vmatprep.subr.bf16.mxu0 %v7543
    %10795 = vmatpush1.bf16.msra.mxu0 %v7542
    %10796 = vmatprep.subr.bf16.mxu0 %v7545
    %10797 = vmatpush1.bf16.msra.mxu0 %v7544
    %10798 = vmatprep.mubr.bf16.mxu0 %v663
    %10799 = vmatmul.mubr.bf16.gmra.mrb[0].mxu0 %v662
    %v10800 = vpop.f32.mrb[0].mxu0
    %v10801 = vadd.f32 %v10760, %v10800
    %v10802 = vpop.f32.mrb[0].mxu0
    %v10803 = vadd.f32 %v10762, %v10802
    %v10804 = vpop.f32.mrb[0].mxu0
    %v10805 = vpop.f32.mrb[0].mxu0
    %10806 = vdwg.mxu0
    %10807 = vmatprep.subr.bf16.mxu0 %v7547
    %10808 = vmatpush1.bf16.msra.mxu0 %v7546
    %10809 = vmatprep.subr.bf16.mxu0 %v7549
    %10810 = vmatpush1.bf16.msra.mxu0 %v7548
    %10811 = vmatprep.subr.bf16.mxu0 %v7551
    %10812 = vmatpush1.bf16.msra.mxu0 %v7550
    %10813 = vmatprep.subr.bf16.mxu0 %v7553
    %10814 = vmatpush1.bf16.msra.mxu0 %v7552
    %10815 = vmatprep.subr.bf16.mxu0 %v7555
    %10816 = vmatpush1.bf16.msra.mxu0 %v7554
    %10817 = vmatprep.subr.bf16.mxu0 %v7557
    %10818 = vmatpush1.bf16.msra.mxu0 %v7556
    %10819 = vmatprep.subr.bf16.mxu0 %v7559
    %10820 = vmatpush1.bf16.msra.mxu0 %v7558
    %10821 = vmatprep.subr.bf16.mxu0 %v7561
    %10822 = vmatpush1.bf16.msra.mxu0 %v7560
    %10823 = vmatprep.subr.bf16.mxu0 %v7563
    %10824 = vmatpush1.bf16.msra.mxu0 %v7562
    %10825 = vmatprep.subr.bf16.mxu0 %v7565
    %10826 = vmatpush1.bf16.msra.mxu0 %v7564
    %10827 = vmatprep.subr.bf16.mxu0 %v7567
    %10828 = vmatpush1.bf16.msra.mxu0 %v7566
    %10829 = vmatprep.subr.bf16.mxu0 %v7569
    %10830 = vmatpush1.bf16.msra.mxu0 %v7568
    %10831 = vmatprep.subr.bf16.mxu0 %v7571
    %10832 = vmatpush1.bf16.msra.mxu0 %v7570
    %10833 = vmatprep.subr.bf16.mxu0 %v7573
    %10834 = vmatpush1.bf16.msra.mxu0 %v7572
    %10835 = vmatprep.subr.bf16.mxu0 %v7575
    %10836 = vmatpush1.bf16.msra.mxu0 %v7574
    %10837 = vmatprep.subr.bf16.mxu0 %v7577
    %10838 = vmatpush1.bf16.msra.mxu0 %v7576
    %10839 = vmatprep.mubr.bf16.mxu0 %v665
    %10840 = vmatmul.mubr.bf16.gmra.mrb[0].mxu0 %v664
    %v10841 = vpop.f32.mrb[0].mxu0
    %v10842 = vadd.f32 %v10801, %v10841
    %v10843 = vpop.f32.mrb[0].mxu0
    %v10844 = vadd.f32 %v10803, %v10843
    %v10845 = vpop.f32.mrb[0].mxu0
    %v10846 = vpop.f32.mrb[0].mxu0
    %10847 = vdwg.mxu0
    %10848 = vmatprep.subr.bf16.mxu0 %v7579
    %10849 = vmatpush1.bf16.msra.mxu0 %v7578
    %10850 = vmatprep.subr.bf16.mxu0 %v7581
    %10851 = vmatpush1.bf16.msra.mxu0 %v7580
    %10852 = vmatprep.subr.bf16.mxu0 %v7583
    %10853 = vmatpush1.bf16.msra.mxu0 %v7582
    %10854 = vmatprep.subr.bf16.mxu0 %v7585
    %10855 = vmatpush1.bf16.msra.mxu0 %v7584
    %10856 = vmatprep.subr.bf16.mxu0 %v7587
    %10857 = vmatpush1.bf16.msra.mxu0 %v7586
    %10858 = vmatprep.subr.bf16.mxu0 %v7589
    %10859 = vmatpush1.bf16.msra.mxu0 %v7588
    %10860 = vmatprep.subr.bf16.mxu0 %v7591
    %10861 = vmatpush1.bf16.msra.mxu0 %v7590
    %10862 = vmatprep.subr.bf16.mxu0 %v7593
    %10863 = vmatpush1.bf16.msra.mxu0 %v7592
    %10864 = vmatprep.subr.bf16.mxu0 %v7595
    %10865 = vmatpush1.bf16.msra.mxu0 %v7594
    %10866 = vmatprep.subr.bf16.mxu0 %v7597
    %10867 = vmatpush1.bf16.msra.mxu0 %v7596
    %10868 = vmatprep.subr.bf16.mxu0 %v7599
    %10869 = vmatpush1.bf16.msra.mxu0 %v7598
    %10870 = vmatprep.subr.bf16.mxu0 %v7601
    %10871 = vmatpush1.bf16.msra.mxu0 %v7600
    %10872 = vmatprep.subr.bf16.mxu0 %v7603
    %10873 = vmatpush1.bf16.msra.mxu0 %v7602
    %10874 = vmatprep.subr.bf16.mxu0 %v7605
    %10875 = vmatpush1.bf16.msra.mxu0 %v7604
    %10876 = vmatprep.subr.bf16.mxu0 %v7607
    %10877 = vmatpush1.bf16.msra.mxu0 %v7606
    %10878 = vmatprep.subr.bf16.mxu0 %v7609
    %10879 = vmatpush1.bf16.msra.mxu0 %v7608
    %10880 = vmatprep.mubr.bf16.mxu0 %v667
    %10881 = vmatmul.mubr.bf16.gmra.mrb[0].mxu0 %v666
    %v10882 = vpop.f32.mrb[0].mxu0
    %v10883 = vadd.f32 %v10842, %v10882
    %v10884 = vpop.f32.mrb[0].mxu0
    %v10885 = vadd.f32 %v10844, %v10884
    %v10886 = vpop.f32.mrb[0].mxu0
    %v10887 = vpop.f32.mrb[0].mxu0
    %10888 = vdwg.mxu0
    %10889 = vmatprep.subr.bf16.mxu0 %v7611
    %10890 = vmatpush1.bf16.msra.mxu0 %v7610
    %10891 = vmatprep.subr.bf16.mxu0 %v7613
    %10892 = vmatpush1.bf16.msra.mxu0 %v7612
    %10893 = vmatprep.subr.bf16.mxu0 %v7615
    %10894 = vmatpush1.bf16.msra.mxu0 %v7614
    %10895 = vmatprep.subr.bf16.mxu0 %v7617
    %10896 = vmatpush1.bf16.msra.mxu0 %v7616
    %10897 = vmatprep.subr.bf16.mxu0 %v7619
    %10898 = vmatpush1.bf16.msra.mxu0 %v7618
    %10899 = vmatprep.subr.bf16.mxu0 %v7621
    %10900 = vmatpush1.bf16.msra.mxu0 %v7620
    %10901 = vmatprep.subr.bf16.mxu0 %v7623
    %10902 = vmatpush1.bf16.msra.mxu0 %v7622
    %10903 = vmatprep.subr.bf16.mxu0 %v7625
    %10904 = vmatpush1.bf16.msra.mxu0 %v7624
    %10905 = vmatprep.subr.bf16.mxu0 %v7627
    %10906 = vmatpush1.bf16.msra.mxu0 %v7626
    %10907 = vmatprep.subr.bf16.mxu0 %v7629
    %10908 = vmatpush1.bf16.msra.mxu0 %v7628
    %10909 = vmatprep.subr.bf16.mxu0 %v7631
    %10910 = vmatpush1.bf16.msra.mxu0 %v7630
    %10911 = vmatprep.subr.bf16.mxu0 %v7633
    %10912 = vmatpush1.bf16.msra.mxu0 %v7632
    %10913 = vmatprep.subr.bf16.mxu0 %v7635
    %10914 = vmatpush1.bf16.msra.mxu0 %v7634
    %10915 = vmatprep.subr.bf16.mxu0 %v7637
    %10916 = vmatpush1.bf16.msra.mxu0 %v7636
    %10917 = vmatprep.subr.bf16.mxu0 %v7639
    %10918 = vmatpush1.bf16.msra.mxu0 %v7638
    %10919 = vmatprep.subr.bf16.mxu0 %v7641
    %10920 = vmatpush1.bf16.msra.mxu0 %v7640
    %10921 = vmatprep.mubr.bf16.mxu0 %v669
    %10922 = vmatmul.mubr.bf16.gmra.mrb[0].mxu0 %v668
    %v10923 = vpop.f32.mrb[0].mxu0
    %v10924 = vadd.f32 %v10883, %v10923
    %v10925 = vpop.f32.mrb[0].mxu0
    %v10926 = vadd.f32 %v10885, %v10925
    %v10927 = vpop.f32.mrb[0].mxu0
    %v10928 = vpop.f32.mrb[0].mxu0
    %10929 = vdwg.mxu0
    %10930 = vmatprep.subr.bf16.mxu0 %v7643
    %10931 = vmatpush1.bf16.msra.mxu0 %v7642
    %10932 = vmatprep.subr.bf16.mxu0 %v7645
    %10933 = vmatpush1.bf16.msra.mxu0 %v7644
    %10934 = vmatprep.subr.bf16.mxu0 %v7647
    %10935 = vmatpush1.bf16.msra.mxu0 %v7646
    %10936 = vmatprep.subr.bf16.mxu0 %v7649
    %10937 = vmatpush1.bf16.msra.mxu0 %v7648
    %10938 = vmatprep.subr.bf16.mxu0 %v7651
    %10939 = vmatpush1.bf16.msra.mxu0 %v7650
    %10940 = vmatprep.subr.bf16.mxu0 %v7653
    %10941 = vmatpush1.bf16.msra.mxu0 %v7652
    %10942 = vmatprep.subr.bf16.mxu0 %v7655
    %10943 = vmatpush1.bf16.msra.mxu0 %v7654
    %10944 = vmatprep.subr.bf16.mxu0 %v7657
    %10945 = vmatpush1.bf16.msra.mxu0 %v7656
    %10946 = vmatprep.subr.bf16.mxu0 %v7659
    %10947 = vmatpush1.bf16.msra.mxu0 %v7658
    %10948 = vmatprep.subr.bf16.mxu0 %v7661
    %10949 = vmatpush1.bf16.msra.mxu0 %v7660
    %10950 = vmatprep.subr.bf16.mxu0 %v7663
    %10951 = vmatpush1.bf16.msra.mxu0 %v7662
    %10952 = vmatprep.subr.bf16.mxu0 %v7665
    %10953 = vmatpush1.bf16.msra.mxu0 %v7664
    %10954 = vmatprep.subr.bf16.mxu0 %v7667
    %10955 = vmatpush1.bf16.msra.mxu0 %v7666
    %10956 = vmatprep.subr.bf16.mxu0 %v7669
    %10957 = vmatpush1.bf16.msra.mxu0 %v7668
    %10958 = vmatprep.subr.bf16.mxu0 %v7671
    %10959 = vmatpush1.bf16.msra.mxu0 %v7670
    %10960 = vmatprep.subr.bf16.mxu0 %v7673
    %10961 = vmatpush1.bf16.msra.mxu0 %v7672
    %10962 = vmatprep.mubr.bf16.mxu0 %v671
    %10963 = vmatmul.mubr.bf16.gmra.mrb[0].mxu0 %v670
    %v10964 = vpop.f32.mrb[0].mxu0
    %v10965 = vadd.f32 %v10924, %v10964
    %v10966 = vpop.f32.mrb[0].mxu0
    %v10967 = vadd.f32 %v10926, %v10966
    %v10968 = vpop.f32.mrb[0].mxu0
    %v10969 = vpop.f32.mrb[0].mxu0
    %10970 = vdwg.mxu0
    %10971 = vmatprep.subr.bf16.mxu0 %v7675
    %10972 = vmatpush1.bf16.msra.mxu0 %v7674
    %10973 = vmatprep.subr.bf16.mxu0 %v7677
    %10974 = vmatpush1.bf16.msra.mxu0 %v7676
    %10975 = vmatprep.subr.bf16.mxu0 %v7679
    %10976 = vmatpush1.bf16.msra.mxu0 %v7678
    %10977 = vmatprep.subr.bf16.mxu0 %v7681
    %10978 = vmatpush1.bf16.msra.mxu0 %v7680
    %10979 = vmatprep.subr.bf16.mxu0 %v7683
    %10980 = vmatpush1.bf16.msra.mxu0 %v7682
    %10981 = vmatprep.subr.bf16.mxu0 %v7685
    %10982 = vmatpush1.bf16.msra.mxu0 %v7684
    %10983 = vmatprep.subr.bf16.mxu0 %v7687
    %10984 = vmatpush1.bf16.msra.mxu0 %v7686
    %10985 = vmatprep.subr.bf16.mxu0 %v7689
    %10986 = vmatpush1.bf16.msra.mxu0 %v7688
    %10987 = vmatprep.subr.bf16.mxu0 %v7691
    %10988 = vmatpush1.bf16.msra.mxu0 %v7690
    %10989 = vmatprep.subr.bf16.mxu0 %v7693
    %10990 = vmatpush1.bf16.msra.mxu0 %v7692
    %10991 = vmatprep.subr.bf16.mxu0 %v7695
    %10992 = vmatpush1.bf16.msra.mxu0 %v7694
    %10993 = vmatprep.subr.bf16.mxu0 %v7697
    %10994 = vmatpush1.bf16.msra.mxu0 %v7696
    %10995 = vmatprep.subr.bf16.mxu0 %v7699
    %10996 = vmatpush1.bf16.msra.mxu0 %v7698
    %10997 = vmatprep.subr.bf16.mxu0 %v7701
    %10998 = vmatpush1.bf16.msra.mxu0 %v7700
    %10999 = vmatprep.subr.bf16.mxu0 %v7703
    %11000 = vmatpush1.bf16.msra.mxu0 %v7702
    %11001 = vmatprep.subr.bf16.mxu0 %v7705
    %11002 = vmatpush1.bf16.msra.mxu0 %v7704
    %11003 = vmatprep.mubr.bf16.mxu0 %v673
    %11004 = vmatmul.mubr.bf16.gmra.mrb[0].mxu0 %v672
    %v11005 = vpop.f32.mrb[0].mxu0
    %v11006 = vadd.f32 %v10965, %v11005
    %v11007 = vpop.f32.mrb[0].mxu0
    %v11008 = vadd.f32 %v10967, %v11007
    %v11009 = vpop.f32.mrb[0].mxu0
    %v11010 = vpop.f32.mrb[0].mxu0
    %11011 = vdwg.mxu0
    %11012 = vmatprep.subr.bf16.mxu0 %v7707
    %11013 = vmatpush1.bf16.msra.mxu0 %v7706
    %11014 = vmatprep.subr.bf16.mxu0 %v7709
    %11015 = vmatpush1.bf16.msra.mxu0 %v7708
    %11016 = vmatprep.subr.bf16.mxu0 %v7711
    %11017 = vmatpush1.bf16.msra.mxu0 %v7710
    %11018 = vmatprep.subr.bf16.mxu0 %v7713
    %11019 = vmatpush1.bf16.msra.mxu0 %v7712
    %11020 = vmatprep.subr.bf16.mxu0 %v7715
    %11021 = vmatpush1.bf16.msra.mxu0 %v7714
    %11022 = vmatprep.subr.bf16.mxu0 %v7717
    %11023 = vmatpush1.bf16.msra.mxu0 %v7716
    %11024 = vmatprep.subr.bf16.mxu0 %v7719
    %11025 = vmatpush1.bf16.msra.mxu0 %v7718
    %11026 = vmatprep.subr.bf16.mxu0 %v7721
    %11027 = vmatpush1.bf16.msra.mxu0 %v7720
    %11028 = vmatprep.subr.bf16.mxu0 %v7723
    %11029 = vmatpush1.bf16.msra.mxu0 %v7722
    %11030 = vmatprep.subr.bf16.mxu0 %v7725
    %11031 = vmatpush1.bf16.msra.mxu0 %v7724
    %11032 = vmatprep.subr.bf16.mxu0 %v7727
    %11033 = vmatpush1.bf16.msra.mxu0 %v7726
    %11034 = vmatprep.subr.bf16.mxu0 %v7729
    %11035 = vmatpush1.bf16.msra.mxu0 %v7728
    %11036 = vmatprep.subr.bf16.mxu0 %v7731
    %11037 = vmatpush1.bf16.msra.mxu0 %v7730
    %11038 = vmatprep.subr.bf16.mxu0 %v7733
    %11039 = vmatpush1.bf16.msra.mxu0 %v7732
    %11040 = vmatprep.subr.bf16.mxu0 %v7735
    %11041 = vmatpush1.bf16.msra.mxu0 %v7734
    %11042 = vmatprep.subr.bf16.mxu0 %v7737
    %11043 = vmatpush1.bf16.msra.mxu0 %v7736
    %11044 = vmatprep.mubr.bf16.mxu0 %v675
    %11045 = vmatmul.mubr.bf16.gmra.mrb[0].mxu0 %v674
    %v11046 = vpop.f32.mrb[0].mxu0
    %v11047 = vadd.f32 %v11006, %v11046
    %v11048 = vpop.f32.mrb[0].mxu0
    %v11049 = vadd.f32 %v11008, %v11048
    %v11050 = vpop.f32.mrb[0].mxu0
    %v11051 = vpop.f32.mrb[0].mxu0
    %11052 = vdwg.mxu0
    %11053 = vmatprep.subr.bf16.mxu0 %v7739
    %11054 = vmatpush1.bf16.msra.mxu0 %v7738
    %11055 = vmatprep.subr.bf16.mxu0 %v7741
    %11056 = vmatpush1.bf16.msra.mxu0 %v7740
    %11057 = vmatprep.subr.bf16.mxu0 %v7743
    %11058 = vmatpush1.bf16.msra.mxu0 %v7742
    %11059 = vmatprep.subr.bf16.mxu0 %v7745
    %11060 = vmatpush1.bf16.msra.mxu0 %v7744
    %11061 = vmatprep.subr.bf16.mxu0 %v7747
    %11062 = vmatpush1.bf16.msra.mxu0 %v7746
    %11063 = vmatprep.subr.bf16.mxu0 %v7749
    %11064 = vmatpush1.bf16.msra.mxu0 %v7748
    %11065 = vmatprep.subr.bf16.mxu0 %v7751
    %11066 = vmatpush1.bf16.msra.mxu0 %v7750
    %11067 = vmatprep.subr.bf16.mxu0 %v7753
    %11068 = vmatpush1.bf16.msra.mxu0 %v7752
    %11069 = vmatprep.subr.bf16.mxu0 %v7755
    %11070 = vmatpush1.bf16.msra.mxu0 %v7754
    %11071 = vmatprep.subr.bf16.mxu0 %v7757
    %11072 = vmatpush1.bf16.msra.mxu0 %v7756
    %11073 = vmatprep.subr.bf16.mxu0 %v7759
    %11074 = vmatpush1.bf16.msra.mxu0 %v7758
    %11075 = vmatprep.subr.bf16.mxu0 %v7761
    %11076 = vmatpush1.bf16.msra.mxu0 %v7760
    %11077 = vmatprep.subr.bf16.mxu0 %v7763
    %11078 = vmatpush1.bf16.msra.mxu0 %v7762
    %11079 = vmatprep.subr.bf16.mxu0 %v7765
    %11080 = vmatpush1.bf16.msra.mxu0 %v7764
    %11081 = vmatprep.subr.bf16.mxu0 %v7767
    %11082 = vmatpush1.bf16.msra.mxu0 %v7766
    %11083 = vmatprep.subr.bf16.mxu0 %v7769
    %11084 = vmatpush1.bf16.msra.mxu0 %v7768
    %11085 = vmatprep.mubr.bf16.mxu0 %v677
    %11086 = vmatmul.mubr.bf16.gmra.mrb[0].mxu0 %v676
    %v11087 = vpop.f32.mrb[0].mxu0
    %v11088 = vadd.f32 %v11047, %v11087
    %v11089 = vpop.f32.mrb[0].mxu0
    %v11090 = vadd.f32 %v11049, %v11089
    %v11091 = vpop.f32.mrb[0].mxu0
    %v11092 = vpop.f32.mrb[0].mxu0
    %11093 = vdwg.mxu0
    %11094 = vmatprep.subr.bf16.mxu0 %v7771
    %11095 = vmatpush1.bf16.msra.mxu0 %v7770
    %11096 = vmatprep.subr.bf16.mxu0 %v7773
    %11097 = vmatpush1.bf16.msra.mxu0 %v7772
    %11098 = vmatprep.subr.bf16.mxu0 %v7775
    %11099 = vmatpush1.bf16.msra.mxu0 %v7774
    %11100 = vmatprep.subr.bf16.mxu0 %v7777
    %11101 = vmatpush1.bf16.msra.mxu0 %v7776
    %11102 = vmatprep.subr.bf16.mxu0 %v7779
    %11103 = vmatpush1.bf16.msra.mxu0 %v7778
    %11104 = vmatprep.subr.bf16.mxu0 %v7781
    %11105 = vmatpush1.bf16.msra.mxu0 %v7780
    %11106 = vmatprep.subr.bf16.mxu0 %v7783
    %11107 = vmatpush1.bf16.msra.mxu0 %v7782
    %11108 = vmatprep.subr.bf16.mxu0 %v7785
    %11109 = vmatpush1.bf16.msra.mxu0 %v7784
    %11110 = vmatprep.subr.bf16.mxu0 %v7787
    %11111 = vmatpush1.bf16.msra.mxu0 %v7786
    %11112 = vmatprep.subr.bf16.mxu0 %v7789
    %11113 = vmatpush1.bf16.msra.mxu0 %v7788
    %11114 = vmatprep.subr.bf16.mxu0 %v7791
    %11115 = vmatpush1.bf16.msra.mxu0 %v7790
    %11116 = vmatprep.subr.bf16.mxu0 %v7793
    %11117 = vmatpush1.bf16.msra.mxu0 %v7792
    %11118 = vmatprep.subr.bf16.mxu0 %v7795
    %11119 = vmatpush1.bf16.msra.mxu0 %v7794
    %11120 = vmatprep.subr.bf16.mxu0 %v7797
    %11121 = vmatpush1.bf16.msra.mxu0 %v7796
    %11122 = vmatprep.subr.bf16.mxu0 %v7799
    %11123 = vmatpush1.bf16.msra.mxu0 %v7798
    %11124 = vmatprep.subr.bf16.mxu0 %v7801
    %11125 = vmatpush1.bf16.msra.mxu0 %v7800
    %11126 = vmatprep.mubr.bf16.mxu0 %v679
    %11127 = vmatmul.mubr.bf16.gmra.mrb[0].mxu0 %v678
    %v11128 = vpop.f32.mrb[0].mxu0
    %v11129 = vadd.f32 %v11088, %v11128
    %v11130 = vpop.f32.mrb[0].mxu0
    %v11131 = vadd.f32 %v11090, %v11130
    %v11132 = vpop.f32.mrb[0].mxu0
    %v11133 = vpop.f32.mrb[0].mxu0
    %11134 = vdwg.mxu0
    %11135 = vmatprep.subr.bf16.mxu0 %v7803
    %11136 = vmatpush1.bf16.msra.mxu0 %v7802
    %11137 = vmatprep.subr.bf16.mxu0 %v7805
    %11138 = vmatpush1.bf16.msra.mxu0 %v7804
    %11139 = vmatprep.subr.bf16.mxu0 %v7807
    %11140 = vmatpush1.bf16.msra.mxu0 %v7806
    %11141 = vmatprep.subr.bf16.mxu0 %v7809
    %11142 = vmatpush1.bf16.msra.mxu0 %v7808
    %11143 = vmatprep.subr.bf16.mxu0 %v7811
    %11144 = vmatpush1.bf16.msra.mxu0 %v7810
    %11145 = vmatprep.subr.bf16.mxu0 %v7813
    %11146 = vmatpush1.bf16.msra.mxu0 %v7812
    %11147 = vmatprep.subr.bf16.mxu0 %v7815
    %11148 = vmatpush1.bf16.msra.mxu0 %v7814
    %11149 = vmatprep.subr.bf16.mxu0 %v7817
    %11150 = vmatpush1.bf16.msra.mxu0 %v7816
    %11151 = vmatprep.subr.bf16.mxu0 %v7819
    %11152 = vmatpush1.bf16.msra.mxu0 %v7818
    %11153 = vmatprep.subr.bf16.mxu0 %v7821
    %11154 = vmatpush1.bf16.msra.mxu0 %v7820
    %11155 = vmatprep.subr.bf16.mxu0 %v7823
    %11156 = vmatpush1.bf16.msra.mxu0 %v7822
    %11157 = vmatprep.subr.bf16.mxu0 %v7825
    %11158 = vmatpush1.bf16.msra.mxu0 %v7824
    %11159 = vmatprep.subr.bf16.mxu0 %v7827
    %11160 = vmatpush1.bf16.msra.mxu0 %v7826
    %11161 = vmatprep.subr.bf16.mxu0 %v7829
    %11162 = vmatpush1.bf16.msra.mxu0 %v7828
    %11163 = vmatprep.subr.bf16.mxu0 %v7831
    %11164 = vmatpush1.bf16.msra.mxu0 %v7830
    %11165 = vmatprep.subr.bf16.mxu0 %v7833
    %11166 = vmatpush1.bf16.msra.mxu0 %v7832
    %11167 = vmatprep.mubr.bf16.mxu0 %v681
    %11168 = vmatmul.mubr.bf16.gmra.mrb[0].mxu0 %v680
    %v11169 = vpop.f32.mrb[0].mxu0
    %v11170 = vadd.f32 %v11129, %v11169
    %v11171 = vpop.f32.mrb[0].mxu0
    %v11172 = vadd.f32 %v11131, %v11171
    %v11173 = vpop.f32.mrb[0].mxu0
    %v11174 = vpop.f32.mrb[0].mxu0
    %11175 = vdwg.mxu0
    %11176 = vmatprep.subr.bf16.mxu0 %v7835
    %11177 = vmatpush1.bf16.msra.mxu0 %v7834
    %11178 = vmatprep.subr.bf16.mxu0 %v7837
    %11179 = vmatpush1.bf16.msra.mxu0 %v7836
    %11180 = vmatprep.subr.bf16.mxu0 %v7839
    %11181 = vmatpush1.bf16.msra.mxu0 %v7838
    %11182 = vmatprep.subr.bf16.mxu0 %v7841
    %11183 = vmatpush1.bf16.msra.mxu0 %v7840
    %11184 = vmatprep.subr.bf16.mxu0 %v7843
    %11185 = vmatpush1.bf16.msra.mxu0 %v7842
    %11186 = vmatprep.subr.bf16.mxu0 %v7845
    %11187 = vmatpush1.bf16.msra.mxu0 %v7844
    %11188 = vmatprep.subr.bf16.mxu0 %v7847
    %11189 = vmatpush1.bf16.msra.mxu0 %v7846
    %11190 = vmatprep.subr.bf16.mxu0 %v7849
    %11191 = vmatpush1.bf16.msra.mxu0 %v7848
    %11192 = vmatprep.subr.bf16.mxu0 %v7851
    %11193 = vmatpush1.bf16.msra.mxu0 %v7850
    %11194 = vmatprep.subr.bf16.mxu0 %v7853
    %11195 = vmatpush1.bf16.msra.mxu0 %v7852
    %11196 = vmatprep.subr.bf16.mxu0 %v7855
    %11197 = vmatpush1.bf16.msra.mxu0 %v7854
    %11198 = vmatprep.subr.bf16.mxu0 %v7857
    %11199 = vmatpush1.bf16.msra.mxu0 %v7856
    %11200 = vmatprep.subr.bf16.mxu0 %v7859
    %11201 = vmatpush1.bf16.msra.mxu0 %v7858
    %11202 = vmatprep.subr.bf16.mxu0 %v7861
    %11203 = vmatpush1.bf16.msra.mxu0 %v7860
    %11204 = vmatprep.subr.bf16.mxu0 %v7863
    %11205 = vmatpush1.bf16.msra.mxu0 %v7862
    %11206 = vmatprep.subr.bf16.mxu0 %v7865
    %11207 = vmatpush1.bf16.msra.mxu0 %v7864
    %11208 = vmatprep.mubr.bf16.mxu0 %v683
    %11209 = vmatmul.mubr.bf16.gmra.mrb[0].mxu0 %v682
    %v11210 = vpop.f32.mrb[0].mxu0
    %v11211 = vadd.f32 %v11170, %v11210
    %v11212 = vpop.f32.mrb[0].mxu0
    %v11213 = vadd.f32 %v11172, %v11212
    %v11214 = vpop.f32.mrb[0].mxu0
    %v11215 = vpop.f32.mrb[0].mxu0
    %11216 = vdwg.mxu0
    %11217 = vmatprep.subr.bf16.mxu0 %v7867
    %11218 = vmatpush1.bf16.msra.mxu0 %v7866
    %11219 = vmatprep.subr.bf16.mxu0 %v7869
    %11220 = vmatpush1.bf16.msra.mxu0 %v7868
    %11221 = vmatprep.subr.bf16.mxu0 %v7871
    %11222 = vmatpush1.bf16.msra.mxu0 %v7870
    %11223 = vmatprep.subr.bf16.mxu0 %v7873
    %11224 = vmatpush1.bf16.msra.mxu0 %v7872
    %11225 = vmatprep.subr.bf16.mxu0 %v7875
    %11226 = vmatpush1.bf16.msra.mxu0 %v7874
    %11227 = vmatprep.subr.bf16.mxu0 %v7877
    %11228 = vmatpush1.bf16.msra.mxu0 %v7876
    %11229 = vmatprep.subr.bf16.mxu0 %v7879
    %11230 = vmatpush1.bf16.msra.mxu0 %v7878
    %11231 = vmatprep.subr.bf16.mxu0 %v7881
    %11232 = vmatpush1.bf16.msra.mxu0 %v7880
    %11233 = vmatprep.subr.bf16.mxu0 %v7883
    %11234 = vmatpush1.bf16.msra.mxu0 %v7882
    %11235 = vmatprep.subr.bf16.mxu0 %v7885
    %11236 = vmatpush1.bf16.msra.mxu0 %v7884
    %11237 = vmatprep.subr.bf16.mxu0 %v7887
    %11238 = vmatpush1.bf16.msra.mxu0 %v7886
    %11239 = vmatprep.subr.bf16.mxu0 %v7889
    %11240 = vmatpush1.bf16.msra.mxu0 %v7888
    %11241 = vmatprep.subr.bf16.mxu0 %v7891
    %11242 = vmatpush1.bf16.msra.mxu0 %v7890
    %11243 = vmatprep.subr.bf16.mxu0 %v7893
    %11244 = vmatpush1.bf16.msra.mxu0 %v7892
    %11245 = vmatprep.subr.bf16.mxu0 %v7895
    %11246 = vmatpush1.bf16.msra.mxu0 %v7894
    %11247 = vmatprep.subr.bf16.mxu0 %v7897
    %11248 = vmatpush1.bf16.msra.mxu0 %v7896
    %11249 = vmatprep.mubr.bf16.mxu0 %v685
    %11250 = vmatmul.mubr.bf16.gmra.mrb[0].mxu0 %v684
    %v11251 = vpop.f32.mrb[0].mxu0
    %v11252 = vadd.f32 %v11211, %v11251
    %v11253 = vpop.f32.mrb[0].mxu0
    %v11254 = vadd.f32 %v11213, %v11253
    %v11255 = vpop.f32.mrb[0].mxu0
    %v11256 = vpop.f32.mrb[0].mxu0
    %11257 = vdwg.mxu0
    %11258 = vmatprep.subr.bf16.mxu0 %v7899
    %11259 = vmatpush1.bf16.msra.mxu0 %v7898
    %11260 = vmatprep.subr.bf16.mxu0 %v7901
    %11261 = vmatpush1.bf16.msra.mxu0 %v7900
    %11262 = vmatprep.subr.bf16.mxu0 %v7903
    %11263 = vmatpush1.bf16.msra.mxu0 %v7902
    %11264 = vmatprep.subr.bf16.mxu0 %v7905
    %11265 = vmatpush1.bf16.msra.mxu0 %v7904
    %11266 = vmatprep.subr.bf16.mxu0 %v7907
    %11267 = vmatpush1.bf16.msra.mxu0 %v7906
    %11268 = vmatprep.subr.bf16.mxu0 %v7909
    %11269 = vmatpush1.bf16.msra.mxu0 %v7908
    %11270 = vmatprep.subr.bf16.mxu0 %v7911
    %11271 = vmatpush1.bf16.msra.mxu0 %v7910
    %11272 = vmatprep.subr.bf16.mxu0 %v7913
    %11273 = vmatpush1.bf16.msra.mxu0 %v7912
    %11274 = vmatprep.subr.bf16.mxu0 %v7915
    %11275 = vmatpush1.bf16.msra.mxu0 %v7914
    %11276 = vmatprep.subr.bf16.mxu0 %v7917
    %11277 = vmatpush1.bf16.msra.mxu0 %v7916
    %11278 = vmatprep.subr.bf16.mxu0 %v7919
    %11279 = vmatpush1.bf16.msra.mxu0 %v7918
    %11280 = vmatprep.subr.bf16.mxu0 %v7921
    %11281 = vmatpush1.bf16.msra.mxu0 %v7920
    %11282 = vmatprep.subr.bf16.mxu0 %v7923
    %11283 = vmatpush1.bf16.msra.mxu0 %v7922
    %11284 = vmatprep.subr.bf16.mxu0 %v7925
    %11285 = vmatpush1.bf16.msra.mxu0 %v7924
    %11286 = vmatprep.subr.bf16.mxu0 %v7927
    %11287 = vmatpush1.bf16.msra.mxu0 %v7926
    %11288 = vmatprep.subr.bf16.mxu0 %v7929
    %11289 = vmatpush1.bf16.msra.mxu0 %v7928
    %11290 = vmatprep.mubr.bf16.mxu0 %v687
    %11291 = vmatmul.mubr.bf16.gmra.mrb[0].mxu0 %v686
    %v11292 = vpop.f32.mrb[0].mxu0
    %v11293 = vadd.f32 %v11252, %v11292
    %v11294 = vpop.f32.mrb[0].mxu0
    %v11295 = vadd.f32 %v11254, %v11294
    %v11296 = vpop.f32.mrb[0].mxu0
    %v11297 = vpop.f32.mrb[0].mxu0
    %11298 = vdwg.mxu0
    %11299 = vmatprep.subr.bf16.mxu0 %v7931
    %11300 = vmatpush1.bf16.msra.mxu0 %v7930
    %11301 = vmatprep.subr.bf16.mxu0 %v7933
    %11302 = vmatpush1.bf16.msra.mxu0 %v7932
    %11303 = vmatprep.subr.bf16.mxu0 %v7935
    %11304 = vmatpush1.bf16.msra.mxu0 %v7934
    %11305 = vmatprep.subr.bf16.mxu0 %v7937
    %11306 = vmatpush1.bf16.msra.mxu0 %v7936
    %11307 = vmatprep.subr.bf16.mxu0 %v7939
    %11308 = vmatpush1.bf16.msra.mxu0 %v7938
    %11309 = vmatprep.subr.bf16.mxu0 %v7941
    %11310 = vmatpush1.bf16.msra.mxu0 %v7940
    %11311 = vmatprep.subr.bf16.mxu0 %v7943
    %11312 = vmatpush1.bf16.msra.mxu0 %v7942
    %11313 = vmatprep.subr.bf16.mxu0 %v7945
    %11314 = vmatpush1.bf16.msra.mxu0 %v7944
    %11315 = vmatprep.subr.bf16.mxu0 %v7947
    %11316 = vmatpush1.bf16.msra.mxu0 %v7946
    %11317 = vmatprep.subr.bf16.mxu0 %v7949
    %11318 = vmatpush1.bf16.msra.mxu0 %v7948
    %11319 = vmatprep.subr.bf16.mxu0 %v7951
    %11320 = vmatpush1.bf16.msra.mxu0 %v7950
    %11321 = vmatprep.subr.bf16.mxu0 %v7953
    %11322 = vmatpush1.bf16.msra.mxu0 %v7952
    %11323 = vmatprep.subr.bf16.mxu0 %v7955
    %11324 = vmatpush1.bf16.msra.mxu0 %v7954
    %11325 = vmatprep.subr.bf16.mxu0 %v7957
    %11326 = vmatpush1.bf16.msra.mxu0 %v7956
    %11327 = vmatprep.subr.bf16.mxu0 %v7959
    %11328 = vmatpush1.bf16.msra.mxu0 %v7958
    %11329 = vmatprep.subr.bf16.mxu0 %v7961
    %11330 = vmatpush1.bf16.msra.mxu0 %v7960
    %11331 = vmatprep.mubr.bf16.mxu0 %v689
    %11332 = vmatmul.mubr.bf16.gmra.mrb[0].mxu0 %v688
    %v11333 = vpop.f32.mrb[0].mxu0
    %v11334 = vadd.f32 %v11293, %v11333
    %v11335 = vpop.f32.mrb[0].mxu0
    %v11336 = vadd.f32 %v11295, %v11335
    %v11337 = vpop.f32.mrb[0].mxu0
    %v11338 = vpop.f32.mrb[0].mxu0
    %11339 = vdwg.mxu0
    %11340 = vmatprep.subr.bf16.mxu0 %v7963
    %11341 = vmatpush1.bf16.msra.mxu0 %v7962
    %11342 = vmatprep.subr.bf16.mxu0 %v7965
    %11343 = vmatpush1.bf16.msra.mxu0 %v7964
    %11344 = vmatprep.subr.bf16.mxu0 %v7967
    %11345 = vmatpush1.bf16.msra.mxu0 %v7966
    %11346 = vmatprep.subr.bf16.mxu0 %v7969
    %11347 = vmatpush1.bf16.msra.mxu0 %v7968
    %11348 = vmatprep.subr.bf16.mxu0 %v7971
    %11349 = vmatpush1.bf16.msra.mxu0 %v7970
    %11350 = vmatprep.subr.bf16.mxu0 %v7973
    %11351 = vmatpush1.bf16.msra.mxu0 %v7972
    %11352 = vmatprep.subr.bf16.mxu0 %v7975
    %11353 = vmatpush1.bf16.msra.mxu0 %v7974
    %11354 = vmatprep.subr.bf16.mxu0 %v7977
    %11355 = vmatpush1.bf16.msra.mxu0 %v7976
    %11356 = vmatprep.subr.bf16.mxu0 %v7979
    %11357 = vmatpush1.bf16.msra.mxu0 %v7978
    %11358 = vmatprep.subr.bf16.mxu0 %v7981
    %11359 = vmatpush1.bf16.msra.mxu0 %v7980
    %11360 = vmatprep.subr.bf16.mxu0 %v7983
    %11361 = vmatpush1.bf16.msra.mxu0 %v7982
    %11362 = vmatprep.subr.bf16.mxu0 %v7985
    %11363 = vmatpush1.bf16.msra.mxu0 %v7984
    %11364 = vmatprep.subr.bf16.mxu0 %v7987
    %11365 = vmatpush1.bf16.msra.mxu0 %v7986
    %11366 = vmatprep.subr.bf16.mxu0 %v7989
    %11367 = vmatpush1.bf16.msra.mxu0 %v7988
    %11368 = vmatprep.subr.bf16.mxu0 %v7991
    %11369 = vmatpush1.bf16.msra.mxu0 %v7990
    %11370 = vmatprep.subr.bf16.mxu0 %v7993
    %11371 = vmatpush1.bf16.msra.mxu0 %v7992
    %11372 = vmatprep.mubr.bf16.mxu0 %v691
    %11373 = vmatmul.mubr.bf16.gmra.mrb[0].mxu0 %v690
    %v11374 = vpop.f32.mrb[0].mxu0
    %v11375 = vadd.f32 %v11334, %v11374
    %v11376 = vpop.f32.mrb[0].mxu0
    %v11377 = vadd.f32 %v11336, %v11376
    %v11378 = vpop.f32.mrb[0].mxu0
    %v11379 = vpop.f32.mrb[0].mxu0
    %11380 = vdwg.mxu0
    %11381 = vmatprep.subr.bf16.mxu0 %v7995
    %11382 = vmatpush1.bf16.msra.mxu0 %v7994
    %11383 = vmatprep.subr.bf16.mxu0 %v7997
    %11384 = vmatpush1.bf16.msra.mxu0 %v7996
    %11385 = vmatprep.subr.bf16.mxu0 %v7999
    %11386 = vmatpush1.bf16.msra.mxu0 %v7998
    %11387 = vmatprep.subr.bf16.mxu0 %v8001
    %11388 = vmatpush1.bf16.msra.mxu0 %v8000
    %11389 = vmatprep.subr.bf16.mxu0 %v8003
    %11390 = vmatpush1.bf16.msra.mxu0 %v8002
    %11391 = vmatprep.subr.bf16.mxu0 %v8005
    %11392 = vmatpush1.bf16.msra.mxu0 %v8004
    %11393 = vmatprep.subr.bf16.mxu0 %v8007
    %11394 = vmatpush1.bf16.msra.mxu0 %v8006
    %11395 = vmatprep.subr.bf16.mxu0 %v8009
    %11396 = vmatpush1.bf16.msra.mxu0 %v8008
    %11397 = vmatprep.subr.bf16.mxu0 %v8011
    %11398 = vmatpush1.bf16.msra.mxu0 %v8010
    %11399 = vmatprep.subr.bf16.mxu0 %v8013
    %11400 = vmatpush1.bf16.msra.mxu0 %v8012
    %11401 = vmatprep.subr.bf16.mxu0 %v8015
    %11402 = vmatpush1.bf16.msra.mxu0 %v8014
    %11403 = vmatprep.subr.bf16.mxu0 %v8017
    %11404 = vmatpush1.bf16.msra.mxu0 %v8016
    %11405 = vmatprep.subr.bf16.mxu0 %v8019
    %11406 = vmatpush1.bf16.msra.mxu0 %v8018
    %11407 = vmatprep.subr.bf16.mxu0 %v8021
    %11408 = vmatpush1.bf16.msra.mxu0 %v8020
    %11409 = vmatprep.subr.bf16.mxu0 %v8023
    %11410 = vmatpush1.bf16.msra.mxu0 %v8022
    %11411 = vmatprep.subr.bf16.mxu0 %v8025
    %11412 = vmatpush1.bf16.msra.mxu0 %v8024
    %11413 = vmatprep.mubr.bf16.mxu0 %v693
    %11414 = vmatmul.mubr.bf16.gmra.mrb[0].mxu0 %v692
    %v11415 = vpop.f32.mrb[0].mxu0
    %v11416 = vadd.f32 %v11375, %v11415
    %v11417 = vpop.f32.mrb[0].mxu0
    %v11418 = vadd.f32 %v11377, %v11417
    %v11419 = vpop.f32.mrb[0].mxu0
    %v11420 = vpop.f32.mrb[0].mxu0
    %11421 = vdwg.mxu0
    %11422 = vmatprep.subr.bf16.mxu0 %v8027
    %11423 = vmatpush1.bf16.msra.mxu0 %v8026
    %11424 = vmatprep.subr.bf16.mxu0 %v8029
    %11425 = vmatpush1.bf16.msra.mxu0 %v8028
    %11426 = vmatprep.subr.bf16.mxu0 %v8031
    %11427 = vmatpush1.bf16.msra.mxu0 %v8030
    %11428 = vmatprep.subr.bf16.mxu0 %v8033
    %11429 = vmatpush1.bf16.msra.mxu0 %v8032
    %11430 = vmatprep.subr.bf16.mxu0 %v8035
    %11431 = vmatpush1.bf16.msra.mxu0 %v8034
    %11432 = vmatprep.subr.bf16.mxu0 %v8037
    %11433 = vmatpush1.bf16.msra.mxu0 %v8036
    %11434 = vmatprep.subr.bf16.mxu0 %v8039
    %11435 = vmatpush1.bf16.msra.mxu0 %v8038
    %11436 = vmatprep.subr.bf16.mxu0 %v8041
    %11437 = vmatpush1.bf16.msra.mxu0 %v8040
    %11438 = vmatprep.subr.bf16.mxu0 %v8043
    %11439 = vmatpush1.bf16.msra.mxu0 %v8042
    %11440 = vmatprep.subr.bf16.mxu0 %v8045
    %11441 = vmatpush1.bf16.msra.mxu0 %v8044
    %11442 = vmatprep.subr.bf16.mxu0 %v8047
    %11443 = vmatpush1.bf16.msra.mxu0 %v8046
    %11444 = vmatprep.subr.bf16.mxu0 %v8049
    %11445 = vmatpush1.bf16.msra.mxu0 %v8048
    %11446 = vmatprep.subr.bf16.mxu0 %v8051
    %11447 = vmatpush1.bf16.msra.mxu0 %v8050
    %11448 = vmatprep.subr.bf16.mxu0 %v8053
    %11449 = vmatpush1.bf16.msra.mxu0 %v8052
    %11450 = vmatprep.subr.bf16.mxu0 %v8055
    %11451 = vmatpush1.bf16.msra.mxu0 %v8054
    %11452 = vmatprep.subr.bf16.mxu0 %v8057
    %11453 = vmatpush1.bf16.msra.mxu0 %v8056
    %11454 = vmatprep.mubr.bf16.mxu0 %v695
    %11455 = vmatmul.mubr.bf16.gmra.mrb[0].mxu0 %v694
    %v11456 = vpop.f32.mrb[0].mxu0
    %v11457 = vadd.f32 %v11416, %v11456
    %v11458 = vpop.f32.mrb[0].mxu0
    %v11459 = vadd.f32 %v11418, %v11458
    %v11460 = vpop.f32.mrb[0].mxu0
    %v11461 = vpop.f32.mrb[0].mxu0
    %11462 = vdwg.mxu0
    %11463 = vmatprep.subr.bf16.mxu0 %v8059
    %11464 = vmatpush1.bf16.msra.mxu0 %v8058
    %11465 = vmatprep.subr.bf16.mxu0 %v8061
    %11466 = vmatpush1.bf16.msra.mxu0 %v8060
    %11467 = vmatprep.subr.bf16.mxu0 %v8063
    %11468 = vmatpush1.bf16.msra.mxu0 %v8062
    %11469 = vmatprep.subr.bf16.mxu0 %v8065
    %11470 = vmatpush1.bf16.msra.mxu0 %v8064
    %11471 = vmatprep.subr.bf16.mxu0 %v8067
    %11472 = vmatpush1.bf16.msra.mxu0 %v8066
    %11473 = vmatprep.subr.bf16.mxu0 %v8069
    %11474 = vmatpush1.bf16.msra.mxu0 %v8068
    %11475 = vmatprep.subr.bf16.mxu0 %v8071
    %11476 = vmatpush1.bf16.msra.mxu0 %v8070
    %11477 = vmatprep.subr.bf16.mxu0 %v8073
    %11478 = vmatpush1.bf16.msra.mxu0 %v8072
    %11479 = vmatprep.subr.bf16.mxu0 %v8075
    %11480 = vmatpush1.bf16.msra.mxu0 %v8074
    %11481 = vmatprep.subr.bf16.mxu0 %v8077
    %11482 = vmatpush1.bf16.msra.mxu0 %v8076
    %11483 = vmatprep.subr.bf16.mxu0 %v8079
    %11484 = vmatpush1.bf16.msra.mxu0 %v8078
    %11485 = vmatprep.subr.bf16.mxu0 %v8081
    %11486 = vmatpush1.bf16.msra.mxu0 %v8080
    %11487 = vmatprep.subr.bf16.mxu0 %v8083
    %11488 = vmatpush1.bf16.msra.mxu0 %v8082
    %11489 = vmatprep.subr.bf16.mxu0 %v8085
    %11490 = vmatpush1.bf16.msra.mxu0 %v8084
    %11491 = vmatprep.subr.bf16.mxu0 %v8087
    %11492 = vmatpush1.bf16.msra.mxu0 %v8086
    %11493 = vmatprep.subr.bf16.mxu0 %v8089
    %11494 = vmatpush1.bf16.msra.mxu0 %v8088
    %11495 = vmatprep.mubr.bf16.mxu0 %v697
    %11496 = vmatmul.mubr.bf16.gmra.mrb[0].mxu0 %v696
    %v11497 = vpop.f32.mrb[0].mxu0
    %v11498 = vadd.f32 %v11457, %v11497
    %v11499 = vpop.f32.mrb[0].mxu0
    %v11500 = vadd.f32 %v11459, %v11499
    %v11501 = vpop.f32.mrb[0].mxu0
    %v11502 = vpop.f32.mrb[0].mxu0
    %11503 = vdwg.mxu0
    %11504 = vmatprep.subr.bf16.mxu0 %v8091
    %11505 = vmatpush1.bf16.msra.mxu0 %v8090
    %11506 = vmatprep.subr.bf16.mxu0 %v8093
    %11507 = vmatpush1.bf16.msra.mxu0 %v8092
    %11508 = vmatprep.subr.bf16.mxu0 %v8095
    %11509 = vmatpush1.bf16.msra.mxu0 %v8094
    %11510 = vmatprep.subr.bf16.mxu0 %v8097
    %11511 = vmatpush1.bf16.msra.mxu0 %v8096
    %11512 = vmatprep.subr.bf16.mxu0 %v8099
    %11513 = vmatpush1.bf16.msra.mxu0 %v8098
    %11514 = vmatprep.subr.bf16.mxu0 %v8101
    %11515 = vmatpush1.bf16.msra.mxu0 %v8100
    %11516 = vmatprep.subr.bf16.mxu0 %v8103
    %11517 = vmatpush1.bf16.msra.mxu0 %v8102
    %11518 = vmatprep.subr.bf16.mxu0 %v8105
    %11519 = vmatpush1.bf16.msra.mxu0 %v8104
    %11520 = vmatprep.subr.bf16.mxu0 %v8107
    %11521 = vmatpush1.bf16.msra.mxu0 %v8106
    %11522 = vmatprep.subr.bf16.mxu0 %v8109
    %11523 = vmatpush1.bf16.msra.mxu0 %v8108
    %11524 = vmatprep.subr.bf16.mxu0 %v8111
    %11525 = vmatpush1.bf16.msra.mxu0 %v8110
    %11526 = vmatprep.subr.bf16.mxu0 %v8113
    %11527 = vmatpush1.bf16.msra.mxu0 %v8112
    %11528 = vmatprep.subr.bf16.mxu0 %v8115
    %11529 = vmatpush1.bf16.msra.mxu0 %v8114
    %11530 = vmatprep.subr.bf16.mxu0 %v8117
    %11531 = vmatpush1.bf16.msra.mxu0 %v8116
    %11532 = vmatprep.subr.bf16.mxu0 %v8119
    %11533 = vmatpush1.bf16.msra.mxu0 %v8118
    %11534 = vmatprep.subr.bf16.mxu0 %v8121
    %11535 = vmatpush1.bf16.msra.mxu0 %v8120
    %11536 = vmatprep.mubr.bf16.mxu0 %v699
    %11537 = vmatmul.mubr.bf16.gmra.mrb[0].mxu0 %v698
    %v11538 = vpop.f32.mrb[0].mxu0
    %v11539 = vadd.f32 %v11498, %v11538
    %v11540 = vpop.f32.mrb[0].mxu0
    %v11541 = vadd.f32 %v11500, %v11540
    %v11542 = vpop.f32.mrb[0].mxu0
    %v11543 = vpop.f32.mrb[0].mxu0
    %11544 = vdwg.mxu0
    %11545 = vmatprep.subr.bf16.mxu0 %v8123
    %11546 = vmatpush1.bf16.msra.mxu0 %v8122
    %11547 = vmatprep.subr.bf16.mxu0 %v8125
    %11548 = vmatpush1.bf16.msra.mxu0 %v8124
    %11549 = vmatprep.subr.bf16.mxu0 %v8127
    %11550 = vmatpush1.bf16.msra.mxu0 %v8126
    %11551 = vmatprep.subr.bf16.mxu0 %v8129
    %11552 = vmatpush1.bf16.msra.mxu0 %v8128
    %11553 = vmatprep.subr.bf16.mxu0 %v8131
    %11554 = vmatpush1.bf16.msra.mxu0 %v8130
    %11555 = vmatprep.subr.bf16.mxu0 %v8133
    %11556 = vmatpush1.bf16.msra.mxu0 %v8132
    %11557 = vmatprep.subr.bf16.mxu0 %v8135
    %11558 = vmatpush1.bf16.msra.mxu0 %v8134
    %11559 = vmatprep.subr.bf16.mxu0 %v8137
    %11560 = vmatpush1.bf16.msra.mxu0 %v8136
    %11561 = vmatprep.subr.bf16.mxu0 %v8139
    %11562 = vmatpush1.bf16.msra.mxu0 %v8138
    %11563 = vmatprep.subr.bf16.mxu0 %v8141
    %11564 = vmatpush1.bf16.msra.mxu0 %v8140
    %11565 = vmatprep.subr.bf16.mxu0 %v8143
    %11566 = vmatpush1.bf16.msra.mxu0 %v8142
    %11567 = vmatprep.subr.bf16.mxu0 %v8145
    %11568 = vmatpush1.bf16.msra.mxu0 %v8144
    %11569 = vmatprep.subr.bf16.mxu0 %v8147
    %11570 = vmatpush1.bf16.msra.mxu0 %v8146
    %11571 = vmatprep.subr.bf16.mxu0 %v8149
    %11572 = vmatpush1.bf16.msra.mxu0 %v8148
    %11573 = vmatprep.subr.bf16.mxu0 %v8151
    %11574 = vmatpush1.bf16.msra.mxu0 %v8150
    %11575 = vmatprep.subr.bf16.mxu0 %v8153
    %11576 = vmatpush1.bf16.msra.mxu0 %v8152
    %11577 = vmatprep.mubr.bf16.mxu0 %v701
    %11578 = vmatmul.mubr.bf16.gmra.mrb[0].mxu0 %v700
    %v11579 = vpop.f32.mrb[0].mxu0
    %v11580 = vadd.f32 %v11539, %v11579
    %v11581 = vpop.f32.mrb[0].mxu0
    %v11582 = vadd.f32 %v11541, %v11581
    %v11583 = vpop.f32.mrb[0].mxu0
    %v11584 = vpop.f32.mrb[0].mxu0
    %11585 = vdwg.mxu0
    %11586 = vmatprep.subr.bf16.mxu0 %v8155
    %11587 = vmatpush1.bf16.msra.mxu0 %v8154
    %11588 = vmatprep.subr.bf16.mxu0 %v8157
    %11589 = vmatpush1.bf16.msra.mxu0 %v8156
    %11590 = vmatprep.subr.bf16.mxu0 %v8159
    %11591 = vmatpush1.bf16.msra.mxu0 %v8158
    %11592 = vmatprep.subr.bf16.mxu0 %v8161
    %11593 = vmatpush1.bf16.msra.mxu0 %v8160
    %11594 = vmatprep.subr.bf16.mxu0 %v8163
    %11595 = vmatpush1.bf16.msra.mxu0 %v8162
    %11596 = vmatprep.subr.bf16.mxu0 %v8165
    %11597 = vmatpush1.bf16.msra.mxu0 %v8164
    %11598 = vmatprep.subr.bf16.mxu0 %v8167
    %11599 = vmatpush1.bf16.msra.mxu0 %v8166
    %11600 = vmatprep.subr.bf16.mxu0 %v8169
    %11601 = vmatpush1.bf16.msra.mxu0 %v8168
    %11602 = vmatprep.subr.bf16.mxu0 %v8171
    %11603 = vmatpush1.bf16.msra.mxu0 %v8170
    %11604 = vmatprep.subr.bf16.mxu0 %v8173
    %11605 = vmatpush1.bf16.msra.mxu0 %v8172
    %11606 = vmatprep.subr.bf16.mxu0 %v8175
    %11607 = vmatpush1.bf16.msra.mxu0 %v8174
    %11608 = vmatprep.subr.bf16.mxu0 %v8177
    %11609 = vmatpush1.bf16.msra.mxu0 %v8176
    %11610 = vmatprep.subr.bf16.mxu0 %v8179
    %11611 = vmatpush1.bf16.msra.mxu0 %v8178
    %11612 = vmatprep.subr.bf16.mxu0 %v8181
    %11613 = vmatpush1.bf16.msra.mxu0 %v8180
    %11614 = vmatprep.subr.bf16.mxu0 %v8183
    %11615 = vmatpush1.bf16.msra.mxu0 %v8182
    %11616 = vmatprep.subr.bf16.mxu0 %v8185
    %11617 = vmatpush1.bf16.msra.mxu0 %v8184
    %11618 = vmatprep.mubr.bf16.mxu0 %v703
    %11619 = vmatmul.mubr.bf16.gmra.mrb[0].mxu0 %v702
    %v11620 = vpop.f32.mrb[0].mxu0
    %v11621 = vadd.f32 %v11580, %v11620
    %v11622 = vpop.f32.mrb[0].mxu0
    %v11623 = vadd.f32 %v11582, %v11622
    %v11624 = vpop.f32.mrb[0].mxu0
    %v11625 = vpop.f32.mrb[0].mxu0
    %11626 = vdwg.mxu0
    %11627 = vmatprep.subr.bf16.mxu0 %v8187
    %11628 = vmatpush1.bf16.msra.mxu0 %v8186
    %11629 = vmatprep.subr.bf16.mxu0 %v8189
    %11630 = vmatpush1.bf16.msra.mxu0 %v8188
    %11631 = vmatprep.subr.bf16.mxu0 %v8191
    %11632 = vmatpush1.bf16.msra.mxu0 %v8190
    %11633 = vmatprep.subr.bf16.mxu0 %v8193
    %11634 = vmatpush1.bf16.msra.mxu0 %v8192
    %11635 = vmatprep.subr.bf16.mxu0 %v8195
    %11636 = vmatpush1.bf16.msra.mxu0 %v8194
    %11637 = vmatprep.subr.bf16.mxu0 %v8197
    %11638 = vmatpush1.bf16.msra.mxu0 %v8196
    %11639 = vmatprep.subr.bf16.mxu0 %v8199
    %11640 = vmatpush1.bf16.msra.mxu0 %v8198
    %11641 = vmatprep.subr.bf16.mxu0 %v8201
    %11642 = vmatpush1.bf16.msra.mxu0 %v8200
    %11643 = vmatprep.subr.bf16.mxu0 %v8203
    %11644 = vmatpush1.bf16.msra.mxu0 %v8202
    %11645 = vmatprep.subr.bf16.mxu0 %v8205
    %11646 = vmatpush1.bf16.msra.mxu0 %v8204
    %11647 = vmatprep.subr.bf16.mxu0 %v8207
    %11648 = vmatpush1.bf16.msra.mxu0 %v8206
    %11649 = vmatprep.subr.bf16.mxu0 %v8209
    %11650 = vmatpush1.bf16.msra.mxu0 %v8208
    %11651 = vmatprep.subr.bf16.mxu0 %v8211
    %11652 = vmatpush1.bf16.msra.mxu0 %v8210
    %11653 = vmatprep.subr.bf16.mxu0 %v8213
    %11654 = vmatpush1.bf16.msra.mxu0 %v8212
    %11655 = vmatprep.subr.bf16.mxu0 %v8215
    %11656 = vmatpush1.bf16.msra.mxu0 %v8214
    %11657 = vmatprep.subr.bf16.mxu0 %v8217
    %11658 = vmatpush1.bf16.msra.mxu0 %v8216
    %11659 = vmatprep.mubr.bf16.mxu0 %v705
    %11660 = vmatmul.mubr.bf16.gmra.mrb[0].mxu0 %v704
    %v11661 = vpop.f32.mrb[0].mxu0
    %v11662 = vadd.f32 %v11621, %v11661
    %v11663 = vpop.f32.mrb[0].mxu0
    %v11664 = vadd.f32 %v11623, %v11663
    %v11665 = vpop.f32.mrb[0].mxu0
    %v11666 = vpop.f32.mrb[0].mxu0
    %11667 = vdwg.mxu0
    %11668 = vmatprep.subr.bf16.mxu0 %v8219
    %11669 = vmatpush1.bf16.msra.mxu0 %v8218
    %11670 = vmatprep.subr.bf16.mxu0 %v8221
    %11671 = vmatpush1.bf16.msra.mxu0 %v8220
    %11672 = vmatprep.subr.bf16.mxu0 %v8223
    %11673 = vmatpush1.bf16.msra.mxu0 %v8222
    %11674 = vmatprep.subr.bf16.mxu0 %v8225
    %11675 = vmatpush1.bf16.msra.mxu0 %v8224
    %11676 = vmatprep.subr.bf16.mxu0 %v8227
    %11677 = vmatpush1.bf16.msra.mxu0 %v8226
    %11678 = vmatprep.subr.bf16.mxu0 %v8229
    %11679 = vmatpush1.bf16.msra.mxu0 %v8228
    %11680 = vmatprep.subr.bf16.mxu0 %v8231
    %11681 = vmatpush1.bf16.msra.mxu0 %v8230
    %11682 = vmatprep.subr.bf16.mxu0 %v8233
    %11683 = vmatpush1.bf16.msra.mxu0 %v8232
    %11684 = vmatprep.subr.bf16.mxu0 %v8235
    %11685 = vmatpush1.bf16.msra.mxu0 %v8234
    %11686 = vmatprep.subr.bf16.mxu0 %v8237
    %11687 = vmatpush1.bf16.msra.mxu0 %v8236
    %11688 = vmatprep.subr.bf16.mxu0 %v8239
    %11689 = vmatpush1.bf16.msra.mxu0 %v8238
    %11690 = vmatprep.subr.bf16.mxu0 %v8241
    %11691 = vmatpush1.bf16.msra.mxu0 %v8240
    %11692 = vmatprep.subr.bf16.mxu0 %v8243
    %11693 = vmatpush1.bf16.msra.mxu0 %v8242
    %11694 = vmatprep.subr.bf16.mxu0 %v8245
    %11695 = vmatpush1.bf16.msra.mxu0 %v8244
    %11696 = vmatprep.subr.bf16.mxu0 %v8247
    %11697 = vmatpush1.bf16.msra.mxu0 %v8246
    %11698 = vmatprep.subr.bf16.mxu0 %v8249
    %11699 = vmatpush1.bf16.msra.mxu0 %v8248
    %11700 = vmatprep.mubr.bf16.mxu0 %v707
    %11701 = vmatmul.mubr.bf16.gmra.mrb[0].mxu0 %v706
    %v11702 = vpop.f32.mrb[0].mxu0
    %v11703 = vadd.f32 %v11662, %v11702
    %v11704 = vpop.f32.mrb[0].mxu0
    %v11705 = vadd.f32 %v11664, %v11704
    %v11706 = vpop.f32.mrb[0].mxu0
    %v11707 = vpop.f32.mrb[0].mxu0
    %11708 = vdwg.mxu0
    %11709 = vmatprep.subr.bf16.mxu0 %v8251
    %11710 = vmatpush1.bf16.msra.mxu0 %v8250
    %11711 = vmatprep.subr.bf16.mxu0 %v8253
    %11712 = vmatpush1.bf16.msra.mxu0 %v8252
    %11713 = vmatprep.subr.bf16.mxu0 %v8255
    %11714 = vmatpush1.bf16.msra.mxu0 %v8254
    %11715 = vmatprep.subr.bf16.mxu0 %v8257
    %11716 = vmatpush1.bf16.msra.mxu0 %v8256
    %11717 = vmatprep.subr.bf16.mxu0 %v8259
    %11718 = vmatpush1.bf16.msra.mxu0 %v8258
    %11719 = vmatprep.subr.bf16.mxu0 %v8261
    %11720 = vmatpush1.bf16.msra.mxu0 %v8260
    %11721 = vmatprep.subr.bf16.mxu0 %v8263
    %11722 = vmatpush1.bf16.msra.mxu0 %v8262
    %11723 = vmatprep.subr.bf16.mxu0 %v8265
    %11724 = vmatpush1.bf16.msra.mxu0 %v8264
    %11725 = vmatprep.subr.bf16.mxu0 %v8267
    %11726 = vmatpush1.bf16.msra.mxu0 %v8266
    %11727 = vmatprep.subr.bf16.mxu0 %v8269
    %11728 = vmatpush1.bf16.msra.mxu0 %v8268
    %11729 = vmatprep.subr.bf16.mxu0 %v8271
    %11730 = vmatpush1.bf16.msra.mxu0 %v8270
    %11731 = vmatprep.subr.bf16.mxu0 %v8273
    %11732 = vmatpush1.bf16.msra.mxu0 %v8272
    %11733 = vmatprep.subr.bf16.mxu0 %v8275
    %11734 = vmatpush1.bf16.msra.mxu0 %v8274
    %11735 = vmatprep.subr.bf16.mxu0 %v8277
    %11736 = vmatpush1.bf16.msra.mxu0 %v8276
    %11737 = vmatprep.subr.bf16.mxu0 %v8279
    %11738 = vmatpush1.bf16.msra.mxu0 %v8278
    %11739 = vmatprep.subr.bf16.mxu0 %v8281
    %11740 = vmatpush1.bf16.msra.mxu0 %v8280
    %11741 = vmatprep.mubr.bf16.mxu0 %v709
    %11742 = vmatmul.mubr.bf16.gmra.mrb[0].mxu0 %v708
    %v11743 = vpop.f32.mrb[0].mxu0
    %v11744 = vadd.f32 %v11703, %v11743
    %v11745 = vpop.f32.mrb[0].mxu0
    %v11746 = vadd.f32 %v11705, %v11745
    %v11747 = vpop.f32.mrb[0].mxu0
    %v11748 = vpop.f32.mrb[0].mxu0
    %11749 = vdwg.mxu0
    %11750 = vmatprep.subr.bf16.mxu0 %v8283
    %11751 = vmatpush1.bf16.msra.mxu0 %v8282
    %11752 = vmatprep.subr.bf16.mxu0 %v8285
    %11753 = vmatpush1.bf16.msra.mxu0 %v8284
    %11754 = vmatprep.subr.bf16.mxu0 %v8287
    %11755 = vmatpush1.bf16.msra.mxu0 %v8286
    %11756 = vmatprep.subr.bf16.mxu0 %v8289
    %11757 = vmatpush1.bf16.msra.mxu0 %v8288
    %11758 = vmatprep.subr.bf16.mxu0 %v8291
    %11759 = vmatpush1.bf16.msra.mxu0 %v8290
    %11760 = vmatprep.subr.bf16.mxu0 %v8293
    %11761 = vmatpush1.bf16.msra.mxu0 %v8292
    %11762 = vmatprep.subr.bf16.mxu0 %v8295
    %11763 = vmatpush1.bf16.msra.mxu0 %v8294
    %11764 = vmatprep.subr.bf16.mxu0 %v8297
    %11765 = vmatpush1.bf16.msra.mxu0 %v8296
    %11766 = vmatprep.subr.bf16.mxu0 %v8299
    %11767 = vmatpush1.bf16.msra.mxu0 %v8298
    %11768 = vmatprep.subr.bf16.mxu0 %v8301
    %11769 = vmatpush1.bf16.msra.mxu0 %v8300
    %11770 = vmatprep.subr.bf16.mxu0 %v8303
    %11771 = vmatpush1.bf16.msra.mxu0 %v8302
    %11772 = vmatprep.subr.bf16.mxu0 %v8305
    %11773 = vmatpush1.bf16.msra.mxu0 %v8304
    %11774 = vmatprep.subr.bf16.mxu0 %v8307
    %11775 = vmatpush1.bf16.msra.mxu0 %v8306
    %11776 = vmatprep.subr.bf16.mxu0 %v8309
    %11777 = vmatpush1.bf16.msra.mxu0 %v8308
    %11778 = vmatprep.subr.bf16.mxu0 %v8311
    %11779 = vmatpush1.bf16.msra.mxu0 %v8310
    %11780 = vmatprep.subr.bf16.mxu0 %v8313
    %11781 = vmatpush1.bf16.msra.mxu0 %v8312
    %11782 = vmatprep.mubr.bf16.mxu0 %v711
    %11783 = vmatmul.mubr.bf16.gmra.mrb[0].mxu0 %v710
    %v11784 = vpop.f32.mrb[0].mxu0
    %v11785 = vadd.f32 %v11744, %v11784
    %v11786 = vpop.f32.mrb[0].mxu0
    %v11787 = vadd.f32 %v11746, %v11786
    %v11788 = vpop.f32.mrb[0].mxu0
    %v11789 = vpop.f32.mrb[0].mxu0
    %11790 = vdwg.mxu0
    %11791 = vmatprep.subr.bf16.mxu0 %v8315
    %11792 = vmatpush1.bf16.msra.mxu0 %v8314
    %11793 = vmatprep.subr.bf16.mxu0 %v8317
    %11794 = vmatpush1.bf16.msra.mxu0 %v8316
    %11795 = vmatprep.subr.bf16.mxu0 %v8319
    %11796 = vmatpush1.bf16.msra.mxu0 %v8318
    %11797 = vmatprep.subr.bf16.mxu0 %v8321
    %11798 = vmatpush1.bf16.msra.mxu0 %v8320
    %11799 = vmatprep.subr.bf16.mxu0 %v8323
    %11800 = vmatpush1.bf16.msra.mxu0 %v8322
    %11801 = vmatprep.subr.bf16.mxu0 %v8325
    %11802 = vmatpush1.bf16.msra.mxu0 %v8324
    %11803 = vmatprep.subr.bf16.mxu0 %v8327
    %11804 = vmatpush1.bf16.msra.mxu0 %v8326
    %11805 = vmatprep.subr.bf16.mxu0 %v8329
    %11806 = vmatpush1.bf16.msra.mxu0 %v8328
    %11807 = vmatprep.subr.bf16.mxu0 %v8331
    %11808 = vmatpush1.bf16.msra.mxu0 %v8330
    %11809 = vmatprep.subr.bf16.mxu0 %v8333
    %11810 = vmatpush1.bf16.msra.mxu0 %v8332
    %11811 = vmatprep.subr.bf16.mxu0 %v8335
    %11812 = vmatpush1.bf16.msra.mxu0 %v8334
    %11813 = vmatprep.subr.bf16.mxu0 %v8337
    %11814 = vmatpush1.bf16.msra.mxu0 %v8336
    %11815 = vmatprep.subr.bf16.mxu0 %v8339
    %11816 = vmatpush1.bf16.msra.mxu0 %v8338
    %11817 = vmatprep.subr.bf16.mxu0 %v8341
    %11818 = vmatpush1.bf16.msra.mxu0 %v8340
    %11819 = vmatprep.subr.bf16.mxu0 %v8343
    %11820 = vmatpush1.bf16.msra.mxu0 %v8342
    %11821 = vmatprep.subr.bf16.mxu0 %v8345
    %11822 = vmatpush1.bf16.msra.mxu0 %v8344
    %11823 = vmatprep.mubr.bf16.mxu0 %v713
    %11824 = vmatmul.mubr.bf16.gmra.mrb[0].mxu0 %v712
    %v11825 = vpop.f32.mrb[0].mxu0
    %v11826 = vadd.f32 %v11785, %v11825
    %v11827 = vpop.f32.mrb[0].mxu0
    %v11828 = vadd.f32 %v11787, %v11827
    %v11829 = vpop.f32.mrb[0].mxu0
    %v11830 = vpop.f32.mrb[0].mxu0
    %11831 = vdwg.mxu0
    %11832 = vmatprep.subr.bf16.mxu0 %v8347
    %11833 = vmatpush1.bf16.msra.mxu0 %v8346
    %11834 = vmatprep.subr.bf16.mxu0 %v8349
    %11835 = vmatpush1.bf16.msra.mxu0 %v8348
    %11836 = vmatprep.subr.bf16.mxu0 %v8351
    %11837 = vmatpush1.bf16.msra.mxu0 %v8350
    %11838 = vmatprep.subr.bf16.mxu0 %v8353
    %11839 = vmatpush1.bf16.msra.mxu0 %v8352
    %11840 = vmatprep.subr.bf16.mxu0 %v8355
    %11841 = vmatpush1.bf16.msra.mxu0 %v8354
    %11842 = vmatprep.subr.bf16.mxu0 %v8357
    %11843 = vmatpush1.bf16.msra.mxu0 %v8356
    %11844 = vmatprep.subr.bf16.mxu0 %v8359
    %11845 = vmatpush1.bf16.msra.mxu0 %v8358
    %11846 = vmatprep.subr.bf16.mxu0 %v8361
    %11847 = vmatpush1.bf16.msra.mxu0 %v8360
    %11848 = vmatprep.subr.bf16.mxu0 %v8363
    %11849 = vmatpush1.bf16.msra.mxu0 %v8362
    %11850 = vmatprep.subr.bf16.mxu0 %v8365
    %11851 = vmatpush1.bf16.msra.mxu0 %v8364
    %11852 = vmatprep.subr.bf16.mxu0 %v8367
    %11853 = vmatpush1.bf16.msra.mxu0 %v8366
    %11854 = vmatprep.subr.bf16.mxu0 %v8369
    %11855 = vmatpush1.bf16.msra.mxu0 %v8368
    %11856 = vmatprep.subr.bf16.mxu0 %v8371
    %11857 = vmatpush1.bf16.msra.mxu0 %v8370
    %11858 = vmatprep.subr.bf16.mxu0 %v8373
    %11859 = vmatpush1.bf16.msra.mxu0 %v8372
    %11860 = vmatprep.subr.bf16.mxu0 %v8375
    %11861 = vmatpush1.bf16.msra.mxu0 %v8374
    %11862 = vmatprep.subr.bf16.mxu0 %v8377
    %11863 = vmatpush1.bf16.msra.mxu0 %v8376
    %11864 = vmatprep.mubr.bf16.mxu0 %v715
    %11865 = vmatmul.mubr.bf16.gmra.mrb[0].mxu0 %v714
    %v11866 = vpop.f32.mrb[0].mxu0
    %v11867 = vadd.f32 %v11826, %v11866
    %v11868 = vpop.f32.mrb[0].mxu0
    %v11869 = vadd.f32 %v11828, %v11868
    %v11870 = vpop.f32.mrb[0].mxu0
    %v11871 = vpop.f32.mrb[0].mxu0
    %11872 = vdwg.mxu0
    %11873 = vmatprep.subr.bf16.mxu0 %v8379
    %11874 = vmatpush1.bf16.msra.mxu0 %v8378
    %11875 = vmatprep.subr.bf16.mxu0 %v8381
    %11876 = vmatpush1.bf16.msra.mxu0 %v8380
    %11877 = vmatprep.subr.bf16.mxu0 %v8383
    %11878 = vmatpush1.bf16.msra.mxu0 %v8382
    %11879 = vmatprep.subr.bf16.mxu0 %v8385
    %11880 = vmatpush1.bf16.msra.mxu0 %v8384
    %11881 = vmatprep.subr.bf16.mxu0 %v8387
    %11882 = vmatpush1.bf16.msra.mxu0 %v8386
    %11883 = vmatprep.subr.bf16.mxu0 %v8389
    %11884 = vmatpush1.bf16.msra.mxu0 %v8388
    %11885 = vmatprep.subr.bf16.mxu0 %v8391
    %11886 = vmatpush1.bf16.msra.mxu0 %v8390
    %11887 = vmatprep.subr.bf16.mxu0 %v8393
    %11888 = vmatpush1.bf16.msra.mxu0 %v8392
    %11889 = vmatprep.subr.bf16.mxu0 %v8395
    %11890 = vmatpush1.bf16.msra.mxu0 %v8394
    %11891 = vmatprep.subr.bf16.mxu0 %v8397
    %11892 = vmatpush1.bf16.msra.mxu0 %v8396
    %11893 = vmatprep.subr.bf16.mxu0 %v8399
    %11894 = vmatpush1.bf16.msra.mxu0 %v8398
    %11895 = vmatprep.subr.bf16.mxu0 %v8401
    %11896 = vmatpush1.bf16.msra.mxu0 %v8400
    %11897 = vmatprep.subr.bf16.mxu0 %v8403
    %11898 = vmatpush1.bf16.msra.mxu0 %v8402
    %11899 = vmatprep.subr.bf16.mxu0 %v8405
    %11900 = vmatpush1.bf16.msra.mxu0 %v8404
    %11901 = vmatprep.subr.bf16.mxu0 %v8407
    %11902 = vmatpush1.bf16.msra.mxu0 %v8406
    %11903 = vmatprep.subr.bf16.mxu0 %v8409
    %11904 = vmatpush1.bf16.msra.mxu0 %v8408
    %11905 = vmatprep.mubr.bf16.mxu0 %v717
    %11906 = vmatmul.mubr.bf16.gmra.mrb[0].mxu0 %v716
    %v11907 = vpop.f32.mrb[0].mxu0
    %v11908 = vadd.f32 %v11867, %v11907
    %v11909 = vpop.f32.mrb[0].mxu0
    %v11910 = vadd.f32 %v11869, %v11909
    %v11911 = vpop.f32.mrb[0].mxu0
    %v11912 = vpop.f32.mrb[0].mxu0
    %11913 = vdwg.mxu0
    %vm11914 = vcmp.gt.f32.partialorder %v11908, 0.0
    %vm11915 = vcmp.gt.f32.partialorder %v11910, 0.0
    %v11916 = vmul.f32 %v11908, 0.01
    %v11917 = vmul.f32 %v11910, 0.01
    %v11918 = vsel %vm11914, %v11908, %v11916
    %v11919 = vsel %vm11915, %v11910, %v11917
    %v11920 = vld [vmem:[%s3] sm:$0xff]
    %v11921 = vld [vmem:[%s3 + $0x8] sm:$0xff]
    %v11922 = vld [vmem:[%s3 + $0x10] sm:$0xff]
    %v11923 = vld [vmem:[%s3 + $0x18] sm:$0xff]
    %v11924 = vld [vmem:[%s3 + $0x20] sm:$0xff]
    %v11925 = vld [vmem:[%s3 + $0x28] sm:$0xff]
    %v11926 = vld [vmem:[%s3 + $0x30] sm:$0xff]
    %v11927 = vld [vmem:[%s3 + $0x38] sm:$0xff]
    %v11928 = vld [vmem:[%s3 + $0x40] sm:$0xff]
    %v11929 = vld [vmem:[%s3 + $0x48] sm:$0xff]
    %v11930 = vld [vmem:[%s3 + $0x50] sm:$0xff]
    %v11931 = vld [vmem:[%s3 + $0x58] sm:$0xff]
    %v11932 = vld [vmem:[%s3 + $0x60] sm:$0xff]
    %v11933 = vld [vmem:[%s3 + $0x68] sm:$0xff]
    %v11934 = vld [vmem:[%s3 + $0x70] sm:$0xff]
    %v11935 = vld [vmem:[%s3 + $0x78] sm:$0xff]
    %v11936 = vld [vmem:[%s3 + $0x80] sm:$0xff]
    %v11937 = vld [vmem:[%s3 + $0x88] sm:$0xff]
    %v11938 = vld [vmem:[%s3 + $0x90] sm:$0xff]
    %v11939 = vld [vmem:[%s3 + $0x98] sm:$0xff]
    %v11940 = vld [vmem:[%s3 + $0xa0] sm:$0xff]
    %v11941 = vld [vmem:[%s3 + $0xa8] sm:$0xff]
    %v11942 = vld [vmem:[%s3 + $0xb0] sm:$0xff]
    %v11943 = vld [vmem:[%s3 + $0xb8] sm:$0xff]
    %v11944 = vld [vmem:[%s3 + $0xc0] sm:$0xff]
    %v11945 = vld [vmem:[%s3 + $0xc8] sm:$0xff]
    %v11946 = vld [vmem:[%s3 + $0xd0] sm:$0xff]
    %v11947 = vld [vmem:[%s3 + $0xd8] sm:$0xff]
    %v11948 = vld [vmem:[%s3 + $0xe0] sm:$0xff]
    %v11949 = vld [vmem:[%s3 + $0xe8] sm:$0xff]
    %v11950 = vld [vmem:[%s3 + $0xf0] sm:$0xff]
    %v11951 = vld [vmem:[%s3 + $0xf8] sm:$0xff]
    %v11952 = vld [vmem:[#allocation8] sm:$0x1]
    %v11954 = vlaneseq
    %v11955 = vshrl.u32 %v11954, 7
    %v11956 = vsub.s32 0, %v11955
    %v11957 = vrot.slane %v11952, %v11956
    %11959 = vmatprep.subr.mxu0 0.0
    %11960 = vmatpush1.msra.mxu0 %v11920
    %11961 = vmatprep.subr.mxu0 0.0
    %11962 = vmatpush1.msra.mxu0 %v11921
    %11963 = vmatprep.subr.mxu0 0.0
    %11964 = vmatpush1.msra.mxu0 %v11922
    %11965 = vmatprep.subr.mxu0 0.0
    %11966 = vmatpush1.msra.mxu0 %v11923
    %11967 = vmatprep.subr.mxu0 0.0
    %11968 = vmatpush1.msra.mxu0 %v11924
    %11969 = vmatprep.subr.mxu0 0.0
    %11970 = vmatpush1.msra.mxu0 %v11925
    %11971 = vmatprep.subr.mxu0 0.0
    %11972 = vmatpush1.msra.mxu0 %v11926
    %11973 = vmatprep.subr.mxu0 0.0
    %11974 = vmatpush1.msra.mxu0 %v11927
    %11975 = vmatprep.subr.mxu0 0.0
    %11976 = vmatpush1.msra.mxu0 %v11928
    %11977 = vmatprep.subr.mxu0 0.0
    %11978 = vmatpush1.msra.mxu0 %v11929
    %11979 = vmatprep.subr.mxu0 0.0
    %11980 = vmatpush1.msra.mxu0 %v11930
    %11981 = vmatprep.subr.mxu0 0.0
    %11982 = vmatpush1.msra.mxu0 %v11931
    %11983 = vmatprep.subr.mxu0 0.0
    %11984 = vmatpush1.msra.mxu0 %v11932
    %11985 = vmatprep.subr.mxu0 0.0
    %11986 = vmatpush1.msra.mxu0 %v11933
    %11987 = vmatprep.subr.mxu0 0.0
    %11988 = vmatpush1.msra.mxu0 %v11934
    %11989 = vmatprep.subr.mxu0 0.0
    %11990 = vmatpush1.msra.mxu0 %v11935
    %11991 = vmatprep.subr.mxu0 0.0
    %11992 = vmatpush1.msra.mxu0 %v11936
    %11993 = vmatprep.subr.mxu0 0.0
    %11994 = vmatpush1.msra.mxu0 %v11937
    %11995 = vmatprep.subr.mxu0 0.0
    %11996 = vmatpush1.msra.mxu0 %v11938
    %11997 = vmatprep.subr.mxu0 0.0
    %11998 = vmatpush1.msra.mxu0 %v11939
    %11999 = vmatprep.subr.mxu0 0.0
    %12000 = vmatpush1.msra.mxu0 %v11940
    %12001 = vmatprep.subr.mxu0 0.0
    %12002 = vmatpush1.msra.mxu0 %v11941
    %12003 = vmatprep.subr.mxu0 0.0
    %12004 = vmatpush1.msra.mxu0 %v11942
    %12005 = vmatprep.subr.mxu0 0.0
    %12006 = vmatpush1.msra.mxu0 %v11943
    %12007 = vmatprep.subr.mxu0 0.0
    %12008 = vmatpush1.msra.mxu0 %v11944
    %12009 = vmatprep.subr.mxu0 0.0
    %12010 = vmatpush1.msra.mxu0 %v11945
    %12011 = vmatprep.subr.mxu0 0.0
    %12012 = vmatpush1.msra.mxu0 %v11946
    %12013 = vmatprep.subr.mxu0 0.0
    %12014 = vmatpush1.msra.mxu0 %v11947
    %12015 = vmatprep.subr.mxu0 0.0
    %12016 = vmatpush1.msra.mxu0 %v11948
    %12017 = vmatprep.subr.mxu0 0.0
    %12018 = vmatpush1.msra.mxu0 %v11949
    %12019 = vmatprep.subr.mxu0 0.0
    %12020 = vmatpush1.msra.mxu0 %v11950
    %12021 = vmatprep.subr.mxu0 0.0
    %12022 = vmatpush1.msra.mxu0 %v11951
    %12023 = vmatprep.mubr.f32.mxu0 %v11919
    %12024 = vmatmul.mubr.f32.gmra.mrb[0].mxu0 %v11918
    %v12025 = vpop.f32.mrb[0].mxu0
    %v12026 = vadd.f32 %v11957, %v12025
    %v12027 = vpop.f32.mrb[0].mxu0
    %12028 = vdwg.mxu0
    %vm12029 = vcmask 779264
    %12030 = vst.msk [vmem:[#allocation10] sm:$0x3] %vm12029, %v12026
    // Predicated region
    $region38: #{tpu_custom_call.1} parent=1 // pred_check
      _
    $region39: #{tpu_custom_call.1} parent=1 // pred_check_branch
      %12032 = sbr.rel (0) target = $region41
    $region40: #{tpu_custom_call.1} parent=1 // pred_region
      %s12034 = ssub.s32 32, 32
      %12035 = vsyncadd [#allocation4], %s12034
      %s12037 = sshll.u32 [#allocation10], 4
      %s12038 = int_to_ptr.vmem [resolvable:$true] %s12037
      %12040 = dma.vmem_to_hbm [thread:$0]  %s12038, 32, %s5, [#allocation4]
    $region41: #{tpu_custom_call.1} parent=1 // pred_fallthru
      _
    // Predicated region
    $region42: #{tpu_custom_call.1} parent=1 // pred_check
      _
    $region43: #{tpu_custom_call.1} parent=1 // pred_check_branch
      %12042 = sbr.rel (0) target = $region45
    $region44: #{tpu_custom_call.1} parent=1 // pred_region
      %12043 = dma.done [#allocation4], 32
    $region45: #{tpu_custom_call.1} parent=1 // pred_fallthru
      _
    %12044 = vsyncpa [#allocation3], 1
    %12045 = vsyncpa [#allocation6], 1
    %12046 = vsyncpa [#allocation9], 1
    %12047 = vsyncpa [#allocation4], 1

</llo_original>
